<compile_context>
chip_gen: v5e
topology: v5e:2x2
jax: 0.10.0
libtpu: 0.0.40
codegen_flags: <defaults>
</compile_context>

<pallas_src>
import jax
import jax.numpy as jnp
from jax import lax
from jax.experimental import pallas as pl
from jax.experimental.pallas import tpu as pltpu


# ---- static network geometry (fc expects 960 = 32 * 6 * 5  ->  input H=24, W=20) ----
C0, H1, W1 = 3, 24, 20            # conv1 input channels / spatial
C1 = 16                           # conv1 output channels
H2, W2 = H1 // 2, W1 // 2         # after pool1: 12 x 10
C2 = 32                           # conv2 output channels
H3, W3 = H2 // 2, W2 // 2         # after pool2: 6 x 5   (flatten -> 960)
HP1 = H1 + 2                      # 26  H-padded conv1 rows per image (W-pad folded into bands)
HP2 = H2 + 2                      # 14  H-padded conv2 rows per image

B_TILE = 8                        # images stacked per grid step
R1 = B_TILE * HP1 - 2             # conv1 output rows per step (206)
R2 = B_TILE * HP2 - 2             # conv2 output rows per step (110)
NCLS = 11
NCLS_PAD = 128                    # lane-dense output width


# ------------------------------- fused Pallas kernel -------------------------------

def fused_net_kernel(x_ref, w1_ref, b1_ref, selh1_ref, selw1_ref,
                     w2_ref, b2_ref, selh2_ref, selw2_ref,
                     wfc_ref, bfc_ref, wcls_ref, bcls_ref,
                     o_ref,
                     y1_ref, x2p_ref, y2_ref, p2_ref):
    f32 = jnp.float32
    bf16 = jnp.bfloat16

    # ---- conv1 (3x3, pad 1): 3 banded bf16 matmuls (one per dy), VMEM-accumulated ----
    y1_ref[...] = jnp.dot(x_ref[0:R1, :], w1_ref[0], preferred_element_type=f32)
    y1_ref[...] += jnp.dot(x_ref[1:1 + R1, :], w1_ref[1], preferred_element_type=f32)
    y1_ref[...] += jnp.dot(x_ref[2:2 + R1, :], w1_ref[2], preferred_element_type=f32)
    y1_ref[...] = jax.nn.sigmoid(y1_ref[...] + b1_ref[...])        # (206, 320) lanes=(w,c)

    # ---- maxpool1 2x2/2 fused: row-pair max temp, lane-pair max, then exact 0/1
    #      selection matmuls that compact strided rows AND scatter into the H-padded
    #      conv2 input layout (pad rows come out as zero selection rows).
    rm1 = jnp.maximum(y1_ref[0:R1 - 1, :], y1_ref[1:R1, :])        # (205, 320)
    wm1 = jnp.maximum(rm1[:, 0:(W1 - 1) * C1], rm1[:, C1:W1 * C1]).astype(bf16)  # (205, 304)
    st1 = jnp.dot(selh1_ref[...], wm1, preferred_element_type=f32).astype(bf16)  # (112, 304)
    x2p_ref[...] = jnp.dot(st1, selw1_ref[...],
                           preferred_element_type=f32).astype(bf16)              # (112, 160)

    # ---- conv2 (3x3, pad 1): 3 banded bf16 matmuls ----
    y2_ref[...] = jnp.dot(x2p_ref[0:R2, :], w2_ref[0], preferred_element_type=f32)
    y2_ref[...] += jnp.dot(x2p_ref[1:1 + R2, :], w2_ref[1], preferred_element_type=f32)
    y2_ref[...] += jnp.dot(x2p_ref[2:2 + R2, :], w2_ref[2], preferred_element_type=f32)
    y2_ref[...] = jax.nn.sigmoid(y2_ref[...] + b2_ref[...])        # (110, 320)

    # ---- maxpool2: selection into h-major / batch-minor rows for the fc head (f32,
    #      keeps the 960-term fc path in full precision) ----
    rm2 = jnp.maximum(y2_ref[0:R2 - 1, :], y2_ref[1:R2, :])        # (109, 320)
    wm2 = jnp.maximum(rm2[:, 0:(W2 - 1) * C2], rm2[:, C2:W2 * C2])  # (109, 288)
    st2 = jnp.dot(selh2_ref[...], wm2, preferred_element_type=f32)  # (48, 288)
    p2_ref[...] = jnp.dot(st2, selw2_ref[...], preferred_element_type=f32)  # (48, 160)

    # ---- fc (960->64): NCHW flatten folded into wfc; batched (B_TILE, 160) slices ----
    h = jnp.dot(p2_ref[0:B_TILE, :], wfc_ref[0], preferred_element_type=f32)
    for r in range(1, H3):
        h = h + jnp.dot(p2_ref[r * B_TILE:(r + 1) * B_TILE, :], wfc_ref[r],
                        preferred_element_type=f32)
    h = jax.nn.sigmoid(h + bfc_ref[...])                            # (B_TILE, 64)
    # TODO(synk): nn.Dropout(p=0.3) treated as identity (eval mode); no torch-RNG-matching mask.
    o_ref[...] = jnp.dot(h, wcls_ref[...], preferred_element_type=f32) + bcls_ref[...]


# ------------------------- one-time (outside jit) weight prep -------------------------

def _banded_taps(w_oihw, width):
    """(O, I, 3, 3) -> (3, width*I, width*O): one block-tridiagonal matrix per vertical
    tap dy, with the dx taps and W-direction zero padding folded in."""
    O, I, KH, KW = w_oihw.shape
    taps = jnp.transpose(w_oihw, (2, 3, 1, 0))                     # (3, 3, I, O)
    bands = []
    for dy in range(KH):
        band = jnp.zeros((width * I, width * O), jnp.float32)
        for dx in range(KW):
            shift = jnp.eye(width, k=1 - dx, dtype=jnp.float32)    # w_in -> w_out = w_in+1-dx
            band = band + jnp.einsum('wv,io->wivo', shift,
                                     taps[dy, dx]).reshape(width * I, width * O)
        bands.append(band)
    return jnp.stack(bands)


def _pool_lane_selector(w_in, c):
    """0/1 matrix compacting the lane-pair-max result: lane (w',c) -> pooled lane (w2,c)."""
    w_out = w_in // 2
    q = jnp.arange(w_out * c)
    src = 2 * (q // c) * c + (q % c)
    sel = jnp.zeros(((w_in - 1) * c, w_out * c), jnp.float32)
    return sel.at[src, q].set(1.0)


def _pool1_row_scatter(b_tile):
    """Rows of the conv1 row-pair-max -> H-padded conv2 input rows (pad rows stay zero)."""
    rows, cols = b_tile * HP2, b_tile * HP1 - 3
    bb, hh = jnp.arange(b_tile), jnp.arange(H2)
    r = (bb[:, None] * HP2 + 1 + hh[None, :]).reshape(-1)
    c = (bb[:, None] * HP1 + 2 * hh[None, :]).reshape(-1)
    return jnp.zeros((rows, cols), jnp.float32).at[r, c].set(1.0)


def _pool2_row_select(b_tile):
    """Rows of the conv2 row-pair-max -> (h-major, batch-minor) rows for the fc head."""
    rows, cols = H3 * b_tile, b_tile * HP2 - 3
    bb, hh = jnp.arange(b_tile), jnp.arange(H3)
    r = (hh[:, None] * b_tile + bb[None, :]).reshape(-1)
    c = (bb[None, :] * HP2 + 2 * hh[:, None]).reshape(-1)
    return jnp.zeros((rows, cols), jnp.float32).at[r, c].set(1.0)


def prepare_params(params):
    """PyTorch-layout params -> kernel-layout params. Call once, outside jit."""
    w1, b1, w2, b2, w_fc, b_fc, w_cls, b_cls = params
    band1 = _banded_taps(w1, W1).astype(jnp.bfloat16)              # (3,  60, 320)
    band2 = _banded_taps(w2, W2).astype(jnp.bfloat16)              # (3, 160, 320)
    b1t = jnp.tile(b1, W1).reshape(1, W1 * C1)                     # (1, 320) lanes=(w,c)
    b2t = jnp.tile(b2, W2).reshape(1, W2 * C2)                     # (1, 320)
    selh1 = _pool1_row_scatter(B_TILE).astype(jnp.bfloat16)        # (112, 205)
    selw1 = _pool_lane_selector(W1, C1).astype(jnp.bfloat16)       # (304, 160)
    selh2 = _pool2_row_select(B_TILE)                              # (48, 109) f32
    selw2 = _pool_lane_selector(W2, C2)                            # (288, 160) f32
    # fc weight with the NCHW flatten (n = c*H3*W3 + h*W3 + w) folded in, grouped per row h:
    wfc_r = jnp.transpose(w_fc.reshape(64, C2, H3, W3), (2, 3, 1, 0)).reshape(H3, W3 * C2, 64)
    bfc = b_fc.reshape(1, 64)
    wcls = jnp.zeros((64, NCLS_PAD), jnp.float32).at[:, :NCLS].set(jnp.transpose(w_cls))
    bcls = jnp.zeros((1, NCLS_PAD), jnp.float32).at[:, :NCLS].set(b_cls.reshape(1, NCLS))
    return (band1, b1t, selh1, selw1, band2, b2t, selh2, selw2, wfc_r, bfc, wcls, bcls)


# ----------------------------------- forward wrapper -----------------------------------

def _prep_input(x_nchw):
    """NCHW -> row-stacked, H-padded, (w,c)-lane-interleaved bf16 tiles (W pad is in bands)."""
    B = x_nchw.shape[0]
    x = jnp.transpose(x_nchw, (0, 2, 3, 1))                        # NHWC (B,24,20,3)
    xp = jnp.pad(x, ((0, 0), (1, 1), (0, 0), (0, 0)))              # (B,26,20,3)
    return xp.reshape(B * HP1, W1 * C0).astype(jnp.bfloat16)       # (B*26, 60)


def pallas_net_forward(x_nchw, prepped):
    (band1, b1t, selh1, selw1, band2, b2t, selh2, selw2, wfc_r, bfc, wcls, bcls) = prepped
    B = x_nchw.shape[0]
    b_pad = ((B + B_TILE - 1) // B_TILE) * B_TILE
    if b_pad != B:
        x_nchw = jnp.pad(x_nchw, ((0, b_pad - B), (0, 0), (0, 0), (0, 0)))
    xk = _prep_input(x_nchw)                                       # (b_pad*26, 60) bf16
    n_tiles = b_pad // B_TILE

    def full(a):
        nd = a.ndim
        return pl.BlockSpec(a.shape, lambda t, nd=nd: (0,) * nd)

    out = pl.pallas_call(
        fused_net_kernel,
        out_shape=jax.ShapeDtypeStruct((b_pad, NCLS_PAD), jnp.float32),
        grid_spec=pltpu.PrefetchScalarGridSpec(
            num_scalar_prefetch=0,
            grid=(n_tiles,),
            in_specs=[
                pl.BlockSpec((B_TILE * HP1, W1 * C0), lambda t: (t, 0)),   # stacked input rows
                full(band1), full(b1t), full(selh1), full(selw1),
                full(band2), full(b2t), full(selh2), full(selw2),
                full(wfc_r), full(bfc), full(wcls), full(bcls),
            ],
            out_specs=pl.BlockSpec((B_TILE, NCLS_PAD), lambda t: (t, 0)),
            scratch_shapes=[
                pltpu.VMEM((R1, W1 * C1), jnp.float32),                    # conv1 acc/out (206,320)
                pltpu.VMEM((B_TILE * HP2, W2 * C1), jnp.bfloat16),         # padded conv2 in (112,160)
                pltpu.VMEM((R2, W2 * C2), jnp.float32),                    # conv2 acc/out (110,320)
                pltpu.VMEM((H3 * B_TILE, W3 * C2), jnp.float32),           # pooled2 (48,160)
            ],
        ),
        compiler_params=pltpu.CompilerParams(dimension_semantics=("parallel",)),
    )(xk, band1, b1t, selh1, selw1, band2, b2t, selh2, selw2, wfc_r, bfc, wcls, bcls)
    return out[:B, :NCLS]                                          # logits


# ------------------------------ reference (pure JAX / XLA) ------------------------------

def reference_forward(x_nchw, params):
    w1, b1, w2, b2, w_fc, b_fc, w_cls, b_cls = params
    B = x_nchw.shape[0]
    x = jnp.transpose(x_nchw, (0, 2, 3, 1))

    def conv(x, w, b):
        w_hwio = jnp.transpose(w, (2, 3, 1, 0))
        y = lax.conv_general_dilated(
            x, w_hwio, window_strides=(1, 1), padding='SAME',
            dimension_numbers=('NHWC', 'HWIO', 'NHWC'),
            precision=lax.Precision.HIGHEST)
        return jax.nn.sigmoid(y + b)

    def pool(y):
        return lax.reduce_window(y, -jnp.inf, lax.max, (1, 2, 2, 1), (1, 2, 2, 1), 'VALID')

    y = pool(conv(x, w1, b1))
    y = pool(conv(y, w2, b2))
    flat = jnp.transpose(y, (0, 3, 1, 2)).reshape(B, -1)
    h = jax.nn.sigmoid(jnp.dot(flat, w_fc.T, precision=lax.Precision.HIGHEST) + b_fc)
    return jnp.dot(h, w_cls.T, precision=lax.Precision.HIGHEST) + b_cls


# ----------------------------------------- main -----------------------------------------

if __name__ == "__main__":
    key = jax.random.PRNGKey(0)
    k1, k2, k3, k4, kx = jax.random.split(key, 5)

    # Parameters in PyTorch layouts: conv (O, I, KH, KW), linear (out, in).
    # init.normal_(std=0.1) for weights, zeros for biases.
    w1 = 0.1 * jax.random.normal(k1, (16, 3, 3, 3), dtype=jnp.float32)
    b1 = jnp.zeros((16,), jnp.float32)
    w2 = 0.1 * jax.random.normal(k2, (32, 16, 3, 3), dtype=jnp.float32)
    b2 = jnp.zeros((32,), jnp.float32)
    w_fc = 0.1 * jax.random.normal(k3, (64, 960), dtype=jnp.float32)
    b_fc = jnp.zeros((64,), jnp.float32)
    w_cls = 0.1 * jax.random.normal(k4, (11, 64), dtype=jnp.float32)
    b_cls = jnp.zeros((11,), jnp.float32)
    params = (w1, b1, w2, b2, w_fc, b_fc, w_cls, b_cls)

    # Input: fc expects 960 = 32 * (H/4) * (W/4)  ->  H=24, W=20.  NCHW like PyTorch.
    # Batch 32 -> 4 grid steps of B_TILE=8 (keeps v7x megacore fully occupied).
    x = jax.random.normal(kx, (32, 3, 24, 20), dtype=jnp.float32)

    prepped = prepare_params(params)                 # one-time weight re-layout, outside jit
    fwd = jax.jit(pallas_net_forward)
    out = fwd(x, prepped)
    jax.block_until_ready(out)
    assert out.shape == (32, 11), out.shape

    ref = reference_forward(x, params)
    assert jnp.allclose(out, ref, atol=1e-2, rtol=1e-2), (
        float(jnp.max(jnp.abs(out - ref))))

    print("KERNEL_OK")
</pallas_src>

<mosaic_0001>
module attributes {stable_mosaic.version = 11 : i64} {
  func.func @fused_net_kernel(%arg0: i32, %arg1: memref<208x60xbf16, #tpu.memory_space<vmem>>, %arg2: memref<3x60x320xbf16, #tpu.memory_space<vmem>>, %arg3: memref<1x320xf32, #tpu.memory_space<vmem>>, %arg4: memref<112x205xbf16, #tpu.memory_space<vmem>>, %arg5: memref<304x160xbf16, #tpu.memory_space<vmem>>, %arg6: memref<3x160x320xbf16, #tpu.memory_space<vmem>>, %arg7: memref<1x320xf32, #tpu.memory_space<vmem>>, %arg8: memref<48x109xf32, #tpu.memory_space<vmem>>, %arg9: memref<288x160xf32, #tpu.memory_space<vmem>>, %arg10: memref<6x160x64xf32, #tpu.memory_space<vmem>>, %arg11: memref<1x64xf32, #tpu.memory_space<vmem>>, %arg12: memref<64x128xf32, #tpu.memory_space<vmem>>, %arg13: memref<1x128xf32, #tpu.memory_space<vmem>>, %arg14: memref<8x128xf32, #tpu.memory_space<vmem>>, %arg15: memref<206x320xf32, #tpu.memory_space<vmem>>, %arg16: memref<112x160xbf16, #tpu.memory_space<vmem>>, %arg17: memref<110x320xf32, #tpu.memory_space<vmem>>, %arg18: memref<48x160xf32, #tpu.memory_space<vmem>>) attributes {dimension_semantics = [#tpu.dimension_semantics<parallel>], iteration_bounds = array<i64: 4>, scalar_prefetch = 0 : i64, scratch_operands = 4 : i64, tpu.core_type = #tpu.core_type<tc>, window_params = [{transform_indices = @transform_0, window_bounds = array<i64: 208, 60>}, {pipeline_mode = #tpu.pipeline_mode<synchronous>, transform_indices = @transform_1, window_bounds = array<i64: 3, 60, 320>}, {pipeline_mode = #tpu.pipeline_mode<synchronous>, transform_indices = @transform_2, window_bounds = array<i64: 1, 320>}, {pipeline_mode = #tpu.pipeline_mode<synchronous>, transform_indices = @transform_3, window_bounds = array<i64: 112, 205>}, {pipeline_mode = #tpu.pipeline_mode<synchronous>, transform_indices = @transform_4, window_bounds = array<i64: 304, 160>}, {pipeline_mode = #tpu.pipeline_mode<synchronous>, transform_indices = @transform_5, window_bounds = array<i64: 3, 160, 320>}, {pipeline_mode = #tpu.pipeline_mode<synchronous>, transform_indices = @transform_6, window_bounds = array<i64: 1, 320>}, {pipeline_mode = #tpu.pipeline_mode<synchronous>, transform_indices = @transform_7, window_bounds = array<i64: 48, 109>}, {pipeline_mode = #tpu.pipeline_mode<synchronous>, transform_indices = @transform_8, window_bounds = array<i64: 288, 160>}, {pipeline_mode = #tpu.pipeline_mode<synchronous>, transform_indices = @transform_9, window_bounds = array<i64: 6, 160, 64>}, {pipeline_mode = #tpu.pipeline_mode<synchronous>, transform_indices = @transform_10, window_bounds = array<i64: 1, 64>}, {pipeline_mode = #tpu.pipeline_mode<synchronous>, transform_indices = @transform_11, window_bounds = array<i64: 64, 128>}, {pipeline_mode = #tpu.pipeline_mode<synchronous>, transform_indices = @transform_12, window_bounds = array<i64: 1, 128>}, {transform_indices = @transform_13, window_bounds = array<i64: 8, 128>}]} {
    %c0 = arith.constant 0 : index
    %c0_0 = arith.constant 0 : index
    %0 = vector.load %arg1[%c0, %c0_0] : memref<208x60xbf16, #tpu.memory_space<vmem>>, vector<206x60xbf16>
    %c0_1 = arith.constant 0 : index
    %c0_2 = arith.constant 0 : index
    %c0_3 = arith.constant 0 : index
    %1 = vector.load %arg2[%c0_1, %c0_2, %c0_3] : memref<3x60x320xbf16, #tpu.memory_space<vmem>>, vector<1x60x320xbf16>
    %2 = vector.shape_cast %1 : vector<1x60x320xbf16> to vector<60x320xbf16>
    %cst = arith.constant dense<0.000000e+00> : vector<206x320xf32>
    %3 = tpu.matmul %0, %2, %cst {dimension_numbers = #tpu.dot_dimension_numbers<[1], [0], [0], [1], [0, 0, 1, 1], [], []>} : vector<206x60xbf16>, vector<60x320xbf16>, vector<206x320xf32> -> vector<206x320xf32>
    %c0_4 = arith.constant 0 : index
    %c0_5 = arith.constant 0 : index
    %4 = vector.load %arg15[%c0_4, %c0_5] : memref<206x320xf32, #tpu.memory_space<vmem>>, vector<206x320xf32>
    tpu.vector_store %arg15[%c0_4, %c0_5], %3 {strides = array<i32>} : memref<206x320xf32, #tpu.memory_space<vmem>>, vector<206x320xf32>,
    %c0_6 = arith.constant 0 : index
    %c0_7 = arith.constant 0 : index
    %5 = vector.load %arg15[%c0_6, %c0_7] : memref<206x320xf32, #tpu.memory_space<vmem>>, vector<206x320xf32>
    %c1 = arith.constant 1 : index
    %c0_8 = arith.constant 0 : index
    %6 = vector.load %arg1[%c1, %c0_8] : memref<208x60xbf16, #tpu.memory_space<vmem>>, vector<206x60xbf16>
    %c1_9 = arith.constant 1 : index
    %c0_10 = arith.constant 0 : index
    %c0_11 = arith.constant 0 : index
    %7 = vector.load %arg2[%c1_9, %c0_10, %c0_11] : memref<3x60x320xbf16, #tpu.memory_space<vmem>>, vector<1x60x320xbf16>
    %8 = vector.shape_cast %7 : vector<1x60x320xbf16> to vector<60x320xbf16>
    %cst_12 = arith.constant dense<0.000000e+00> : vector<206x320xf32>
    %9 = tpu.matmul %6, %8, %cst_12 {dimension_numbers = #tpu.dot_dimension_numbers<[1], [0], [0], [1], [0, 0, 1, 1], [], []>} : vector<206x60xbf16>, vector<60x320xbf16>, vector<206x320xf32> -> vector<206x320xf32>
    %10 = arith.addf %5, %9 : vector<206x320xf32>
    %c0_13 = arith.constant 0 : index
    %c0_14 = arith.constant 0 : index
    %11 = vector.load %arg15[%c0_13, %c0_14] : memref<206x320xf32, #tpu.memory_space<vmem>>, vector<206x320xf32>
    tpu.vector_store %arg15[%c0_13, %c0_14], %10 {strides = array<i32>} : memref<206x320xf32, #tpu.memory_space<vmem>>, vector<206x320xf32>,
    %c0_15 = arith.constant 0 : index
    %c0_16 = arith.constant 0 : index
    %12 = vector.load %arg15[%c0_15, %c0_16] : memref<206x320xf32, #tpu.memory_space<vmem>>, vector<206x320xf32>
    %c2 = arith.constant 2 : index
    %c0_17 = arith.constant 0 : index
    %13 = vector.load %arg1[%c2, %c0_17] : memref<208x60xbf16, #tpu.memory_space<vmem>>, vector<206x60xbf16>
    %c2_18 = arith.constant 2 : index
    %c0_19 = arith.constant 0 : index
    %c0_20 = arith.constant 0 : index
    %14 = vector.load %arg2[%c2_18, %c0_19, %c0_20] : memref<3x60x320xbf16, #tpu.memory_space<vmem>>, vector<1x60x320xbf16>
    %15 = vector.shape_cast %14 : vector<1x60x320xbf16> to vector<60x320xbf16>
    %cst_21 = arith.constant dense<0.000000e+00> : vector<206x320xf32>
    %16 = tpu.matmul %13, %15, %cst_21 {dimension_numbers = #tpu.dot_dimension_numbers<[1], [0], [0], [1], [0, 0, 1, 1], [], []>} : vector<206x60xbf16>, vector<60x320xbf16>, vector<206x320xf32> -> vector<206x320xf32>
    %17 = arith.addf %12, %16 : vector<206x320xf32>
    %c0_22 = arith.constant 0 : index
    %c0_23 = arith.constant 0 : index
    %18 = vector.load %arg15[%c0_22, %c0_23] : memref<206x320xf32, #tpu.memory_space<vmem>>, vector<206x320xf32>
    tpu.vector_store %arg15[%c0_22, %c0_23], %17 {strides = array<i32>} : memref<206x320xf32, #tpu.memory_space<vmem>>, vector<206x320xf32>,
    %c0_24 = arith.constant 0 : index
    %c0_25 = arith.constant 0 : index
    %19 = vector.load %arg15[%c0_24, %c0_25] : memref<206x320xf32, #tpu.memory_space<vmem>>, vector<206x320xf32>
    %c0_26 = arith.constant 0 : index
    %c0_27 = arith.constant 0 : index
    %20 = vector.load %arg3[%c0_26, %c0_27] : memref<1x320xf32, #tpu.memory_space<vmem>>, vector<1x320xf32>
    %21 = vector.broadcast %20 : vector<1x320xf32> to vector<206x320xf32>
    %22 = arith.addf %19, %21 : vector<206x320xf32>
    %23 = arith.negf %22 : vector<206x320xf32>
    %24 = math.exp %23 : vector<206x320xf32>
    %cst_28 = arith.constant 1.000000e+00 : f32
    %25 = vector.broadcast %cst_28 : f32 to vector<206x320xf32>
    %26 = arith.addf %25, %24 : vector<206x320xf32>
    %27 = arith.divf %25, %26 : vector<206x320xf32>
    %c0_29 = arith.constant 0 : index
    %c0_30 = arith.constant 0 : index
    %28 = vector.load %arg15[%c0_29, %c0_30] : memref<206x320xf32, #tpu.memory_space<vmem>>, vector<206x320xf32>
    tpu.vector_store %arg15[%c0_29, %c0_30], %27 {strides = array<i32>} : memref<206x320xf32, #tpu.memory_space<vmem>>, vector<206x320xf32>,
    %c0_31 = arith.constant 0 : index
    %c0_32 = arith.constant 0 : index
    %29 = vector.load %arg15[%c0_31, %c0_32] : memref<206x320xf32, #tpu.memory_space<vmem>>, vector<205x320xf32>
    %c1_33 = arith.constant 1 : index
    %c0_34 = arith.constant 0 : index
    %30 = vector.load %arg15[%c1_33, %c0_34] : memref<206x320xf32, #tpu.memory_space<vmem>>, vector<205x320xf32>
    %31 = arith.maximumf %29, %30 : vector<205x320xf32>
    %32 = vector.extract_strided_slice %31 {offsets = [0, 0], sizes = [205, 304], strides = [1, 1]} : vector<205x320xf32> to vector<205x304xf32>
    %33 = vector.extract_strided_slice %31 {offsets = [0, 16], sizes = [205, 304], strides = [1, 1]} : vector<205x320xf32> to vector<205x304xf32>
    %34 = arith.maximumf %32, %33 : vector<205x304xf32>
    %35 = arith.truncf %34 : vector<205x304xf32> to vector<205x304xbf16>
    %c0_35 = arith.constant 0 : index
    %c0_36 = arith.constant 0 : index
    %36 = vector.load %arg4[%c0_35, %c0_36] : memref<112x205xbf16, #tpu.memory_space<vmem>>, vector<112x205xbf16>
    %cst_37 = arith.constant dense<0.000000e+00> : vector<112x304xf32>
    %37 = tpu.matmul %36, %35, %cst_37 {dimension_numbers = #tpu.dot_dimension_numbers<[1], [0], [0], [1], [0, 0, 1, 1], [], []>} : vector<112x205xbf16>, vector<205x304xbf16>, vector<112x304xf32> -> vector<112x304xf32>
    %38 = arith.truncf %37 : vector<112x304xf32> to vector<112x304xbf16>
    %c0_38 = arith.constant 0 : index
    %c0_39 = arith.constant 0 : index
    %39 = vector.load %arg5[%c0_38, %c0_39] : memref<304x160xbf16, #tpu.memory_space<vmem>>, vector<304x160xbf16>
    %cst_40 = arith.constant dense<0.000000e+00> : vector<112x160xf32>
    %40 = tpu.matmul %38, %39, %cst_40 {dimension_numbers = #tpu.dot_dimension_numbers<[1], [0], [0], [1], [0, 0, 1, 1], [], []>} : vector<112x304xbf16>, vector<304x160xbf16>, vector<112x160xf32> -> vector<112x160xf32>
    %41 = arith.truncf %40 : vector<112x160xf32> to vector<112x160xbf16>
    %c0_41 = arith.constant 0 : index
    %c0_42 = arith.constant 0 : index
    %42 = vector.load %arg16[%c0_41, %c0_42] : memref<112x160xbf16, #tpu.memory_space<vmem>>, vector<112x160xbf16>
    tpu.vector_store %arg16[%c0_41, %c0_42], %41 {strides = array<i32>} : memref<112x160xbf16, #tpu.memory_space<vmem>>, vector<112x160xbf16>,
    %c0_43 = arith.constant 0 : index
    %c0_44 = arith.constant 0 : index
    %43 = vector.load %arg16[%c0_43, %c0_44] : memref<112x160xbf16, #tpu.memory_space<vmem>>, vector<110x160xbf16>
    %c0_45 = arith.constant 0 : index
    %c0_46 = arith.constant 0 : index
    %c0_47 = arith.constant 0 : index
    %44 = vector.load %arg6[%c0_45, %c0_46, %c0_47] : memref<3x160x320xbf16, #tpu.memory_space<vmem>>, vector<1x160x320xbf16>
    %45 = vector.shape_cast %44 : vector<1x160x320xbf16> to vector<160x320xbf16>
    %cst_48 = arith.constant dense<0.000000e+00> : vector<110x320xf32>
    %46 = tpu.matmul %43, %45, %cst_48 {dimension_numbers = #tpu.dot_dimension_numbers<[1], [0], [0], [1], [0, 0, 1, 1], [], []>} : vector<110x160xbf16>, vector<160x320xbf16>, vector<110x320xf32> -> vector<110x320xf32>
    %c0_49 = arith.constant 0 : index
    %c0_50 = arith.constant 0 : index
    %47 = vector.load %arg17[%c0_49, %c0_50] : memref<110x320xf32, #tpu.memory_space<vmem>>, vector<110x320xf32>
    tpu.vector_store %arg17[%c0_49, %c0_50], %46 {strides = array<i32>} : memref<110x320xf32, #tpu.memory_space<vmem>>, vector<110x320xf32>,
    %c0_51 = arith.constant 0 : index
    %c0_52 = arith.constant 0 : index
    %48 = vector.load %arg17[%c0_51, %c0_52] : memref<110x320xf32, #tpu.memory_space<vmem>>, vector<110x320xf32>
    %c1_53 = arith.constant 1 : index
    %c0_54 = arith.constant 0 : index
    %49 = vector.load %arg16[%c1_53, %c0_54] : memref<112x160xbf16, #tpu.memory_space<vmem>>, vector<110x160xbf16>
    %c1_55 = arith.constant 1 : index
    %c0_56 = arith.constant 0 : index
    %c0_57 = arith.constant 0 : index
    %50 = vector.load %arg6[%c1_55, %c0_56, %c0_57] : memref<3x160x320xbf16, #tpu.memory_space<vmem>>, vector<1x160x320xbf16>
    %51 = vector.shape_cast %50 : vector<1x160x320xbf16> to vector<160x320xbf16>
    %cst_58 = arith.constant dense<0.000000e+00> : vector<110x320xf32>
    %52 = tpu.matmul %49, %51, %cst_58 {dimension_numbers = #tpu.dot_dimension_numbers<[1], [0], [0], [1], [0, 0, 1, 1], [], []>} : vector<110x160xbf16>, vector<160x320xbf16>, vector<110x320xf32> -> vector<110x320xf32>
    %53 = arith.addf %48, %52 : vector<110x320xf32>
    %c0_59 = arith.constant 0 : index
    %c0_60 = arith.constant 0 : index
    %54 = vector.load %arg17[%c0_59, %c0_60] : memref<110x320xf32, #tpu.memory_space<vmem>>, vector<110x320xf32>
    tpu.vector_store %arg17[%c0_59, %c0_60], %53 {strides = array<i32>} : memref<110x320xf32, #tpu.memory_space<vmem>>, vector<110x320xf32>,
    %c0_61 = arith.constant 0 : index
    %c0_62 = arith.constant 0 : index
    %55 = vector.load %arg17[%c0_61, %c0_62] : memref<110x320xf32, #tpu.memory_space<vmem>>, vector<110x320xf32>
    %c2_63 = arith.constant 2 : index
    %c0_64 = arith.constant 0 : index
    %56 = vector.load %arg16[%c2_63, %c0_64] : memref<112x160xbf16, #tpu.memory_space<vmem>>, vector<110x160xbf16>
    %c2_65 = arith.constant 2 : index
    %c0_66 = arith.constant 0 : index
    %c0_67 = arith.constant 0 : index
    %57 = vector.load %arg6[%c2_65, %c0_66, %c0_67] : memref<3x160x320xbf16, #tpu.memory_space<vmem>>, vector<1x160x320xbf16>
    %58 = vector.shape_cast %57 : vector<1x160x320xbf16> to vector<160x320xbf16>
    %cst_68 = arith.constant dense<0.000000e+00> : vector<110x320xf32>
    %59 = tpu.matmul %56, %58, %cst_68 {dimension_numbers = #tpu.dot_dimension_numbers<[1], [0], [0], [1], [0, 0, 1, 1], [], []>} : vector<110x160xbf16>, vector<160x320xbf16>, vector<110x320xf32> -> vector<110x320xf32>
    %60 = arith.addf %55, %59 : vector<110x320xf32>
    %c0_69 = arith.constant 0 : index
    %c0_70 = arith.constant 0 : index
    %61 = vector.load %arg17[%c0_69, %c0_70] : memref<110x320xf32, #tpu.memory_space<vmem>>, vector<110x320xf32>
    tpu.vector_store %arg17[%c0_69, %c0_70], %60 {strides = array<i32>} : memref<110x320xf32, #tpu.memory_space<vmem>>, vector<110x320xf32>,
    %c0_71 = arith.constant 0 : index
    %c0_72 = arith.constant 0 : index
    %62 = vector.load %arg17[%c0_71, %c0_72] : memref<110x320xf32, #tpu.memory_space<vmem>>, vector<110x320xf32>
    %c0_73 = arith.constant 0 : index
    %c0_74 = arith.constant 0 : index
    %63 = vector.load %arg7[%c0_73, %c0_74] : memref<1x320xf32, #tpu.memory_space<vmem>>, vector<1x320xf32>
    %64 = vector.broadcast %63 : vector<1x320xf32> to vector<110x320xf32>
    %65 = arith.addf %62, %64 : vector<110x320xf32>
    %66 = arith.negf %65 : vector<110x320xf32>
    %67 = math.exp %66 : vector<110x320xf32>
    %cst_75 = arith.constant 1.000000e+00 : f32
    %68 = vector.broadcast %cst_75 : f32 to vector<110x320xf32>
    %69 = arith.addf %68, %67 : vector<110x320xf32>
    %70 = arith.divf %68, %69 : vector<110x320xf32>
    %c0_76 = arith.constant 0 : index
    %c0_77 = arith.constant 0 : index
    %71 = vector.load %arg17[%c0_76, %c0_77] : memref<110x320xf32, #tpu.memory_space<vmem>>, vector<110x320xf32>
    tpu.vector_store %arg17[%c0_76, %c0_77], %70 {strides = array<i32>} : memref<110x320xf32, #tpu.memory_space<vmem>>, vector<110x320xf32>,
    %c0_78 = arith.constant 0 : index
    %c0_79 = arith.constant 0 : index
    %72 = vector.load %arg17[%c0_78, %c0_79] : memref<110x320xf32, #tpu.memory_space<vmem>>, vector<109x320xf32>
    %c1_80 = arith.constant 1 : index
    %c0_81 = arith.constant 0 : index
    %73 = vector.load %arg17[%c1_80, %c0_81] : memref<110x320xf32, #tpu.memory_space<vmem>>, vector<109x320xf32>
    %74 = arith.maximumf %72, %73 : vector<109x320xf32>
    %75 = vector.extract_strided_slice %74 {offsets = [0, 0], sizes = [109, 288], strides = [1, 1]} : vector<109x320xf32> to vector<109x288xf32>
    %76 = vector.extract_strided_slice %74 {offsets = [0, 32], sizes = [109, 288], strides = [1, 1]} : vector<109x320xf32> to vector<109x288xf32>
    %77 = arith.maximumf %75, %76 : vector<109x288xf32>
    %c0_82 = arith.constant 0 : index
    %c0_83 = arith.constant 0 : index
    %78 = vector.load %arg8[%c0_82, %c0_83] : memref<48x109xf32, #tpu.memory_space<vmem>>, vector<48x109xf32>
    %cst_84 = arith.constant dense<0.000000e+00> : vector<48x288xf32>
    %79 = tpu.matmul %78, %77, %cst_84 {dimension_numbers = #tpu.dot_dimension_numbers<[1], [0], [0], [1], [0, 0, 1, 1], [], []>} : vector<48x109xf32>, vector<109x288xf32>, vector<48x288xf32> -> vector<48x288xf32>
    %c0_85 = arith.constant 0 : index
    %c0_86 = arith.constant 0 : index
    %80 = vector.load %arg9[%c0_85, %c0_86] : memref<288x160xf32, #tpu.memory_space<vmem>>, vector<288x160xf32>
    %cst_87 = arith.constant dense<0.000000e+00> : vector<48x160xf32>
    %81 = tpu.matmul %79, %80, %cst_87 {dimension_numbers = #tpu.dot_dimension_numbers<[1], [0], [0], [1], [0, 0, 1, 1], [], []>} : vector<48x288xf32>, vector<288x160xf32>, vector<48x160xf32> -> vector<48x160xf32>
    %c0_88 = arith.constant 0 : index
    %c0_89 = arith.constant 0 : index
    %82 = vector.load %arg18[%c0_88, %c0_89] : memref<48x160xf32, #tpu.memory_space<vmem>>, vector<48x160xf32>
    tpu.vector_store %arg18[%c0_88, %c0_89], %81 {strides = array<i32>} : memref<48x160xf32, #tpu.memory_space<vmem>>, vector<48x160xf32>,
    %c0_90 = arith.constant 0 : index
    %c0_91 = arith.constant 0 : index
    %83 = vector.load %arg18[%c0_90, %c0_91] : memref<48x160xf32, #tpu.memory_space<vmem>>, vector<8x160xf32>
    %c0_92 = arith.constant 0 : index
    %c0_93 = arith.constant 0 : index
    %c0_94 = arith.constant 0 : index
    %84 = vector.load %arg10[%c0_92, %c0_93, %c0_94] : memref<6x160x64xf32, #tpu.memory_space<vmem>>, vector<1x160x64xf32>
    %85 = vector.shape_cast %84 : vector<1x160x64xf32> to vector<160x64xf32>
    %cst_95 = arith.constant dense<0.000000e+00> : vector<8x64xf32>
    %86 = tpu.matmul %83, %85, %cst_95 {dimension_numbers = #tpu.dot_dimension_numbers<[1], [0], [0], [1], [0, 0, 1, 1], [], []>} : vector<8x160xf32>, vector<160x64xf32>, vector<8x64xf32> -> vector<8x64xf32>
    %c8 = arith.constant 8 : index
    %c0_96 = arith.constant 0 : index
    %87 = vector.load %arg18[%c8, %c0_96] : memref<48x160xf32, #tpu.memory_space<vmem>>, vector<8x160xf32>
    %c1_97 = arith.constant 1 : index
    %c0_98 = arith.constant 0 : index
    %c0_99 = arith.constant 0 : index
    %88 = vector.load %arg10[%c1_97, %c0_98, %c0_99] : memref<6x160x64xf32, #tpu.memory_space<vmem>>, vector<1x160x64xf32>
    %89 = vector.shape_cast %88 : vector<1x160x64xf32> to vector<160x64xf32>
    %cst_100 = arith.constant dense<0.000000e+00> : vector<8x64xf32>
    %90 = tpu.matmul %87, %89, %cst_100 {dimension_numbers = #tpu.dot_dimension_numbers<[1], [0], [0], [1], [0, 0, 1, 1], [], []>} : vector<8x160xf32>, vector<160x64xf32>, vector<8x64xf32> -> vector<8x64xf32>
    %91 = arith.addf %86, %90 : vector<8x64xf32>
    %c16 = arith.constant 16 : index
    %c0_101 = arith.constant 0 : index
    %92 = vector.load %arg18[%c16, %c0_101] : memref<48x160xf32, #tpu.memory_space<vmem>>, vector<8x160xf32>
    %c2_102 = arith.constant 2 : index
    %c0_103 = arith.constant 0 : index
    %c0_104 = arith.constant 0 : index
    %93 = vector.load %arg10[%c2_102, %c0_103, %c0_104] : memref<6x160x64xf32, #tpu.memory_space<vmem>>, vector<1x160x64xf32>
    %94 = vector.shape_cast %93 : vector<1x160x64xf32> to vector<160x64xf32>
    %cst_105 = arith.constant dense<0.000000e+00> : vector<8x64xf32>
    %95 = tpu.matmul %92, %94, %cst_105 {dimension_numbers = #tpu.dot_dimension_numbers<[1], [0], [0], [1], [0, 0, 1, 1], [], []>} : vector<8x160xf32>, vector<160x64xf32>, vector<8x64xf32> -> vector<8x64xf32>
    %96 = arith.addf %91, %95 : vector<8x64xf32>
    %c24 = arith.constant 24 : index
    %c0_106 = arith.constant 0 : index
    %97 = vector.load %arg18[%c24, %c0_106] : memref<48x160xf32, #tpu.memory_space<vmem>>, vector<8x160xf32>
    %c3 = arith.constant 3 : index
    %c0_107 = arith.constant 0 : index
    %c0_108 = arith.constant 0 : index
    %98 = vector.load %arg10[%c3, %c0_107, %c0_108] : memref<6x160x64xf32, #tpu.memory_space<vmem>>, vector<1x160x64xf32>
    %99 = vector.shape_cast %98 : vector<1x160x64xf32> to vector<160x64xf32>
    %cst_109 = arith.constant dense<0.000000e+00> : vector<8x64xf32>
    %100 = tpu.matmul %97, %99, %cst_109 {dimension_numbers = #tpu.dot_dimension_numbers<[1], [0], [0], [1], [0, 0, 1, 1], [], []>} : vector<8x160xf32>, vector<160x64xf32>, vector<8x64xf32> -> vector<8x64xf32>
    %101 = arith.addf %96, %100 : vector<8x64xf32>
    %c32 = arith.constant 32 : index
    %c0_110 = arith.constant 0 : index
    %102 = vector.load %arg18[%c32, %c0_110] : memref<48x160xf32, #tpu.memory_space<vmem>>, vector<8x160xf32>
    %c4 = arith.constant 4 : index
    %c0_111 = arith.constant 0 : index
    %c0_112 = arith.constant 0 : index
    %103 = vector.load %arg10[%c4, %c0_111, %c0_112] : memref<6x160x64xf32, #tpu.memory_space<vmem>>, vector<1x160x64xf32>
    %104 = vector.shape_cast %103 : vector<1x160x64xf32> to vector<160x64xf32>
    %cst_113 = arith.constant dense<0.000000e+00> : vector<8x64xf32>
    %105 = tpu.matmul %102, %104, %cst_113 {dimension_numbers = #tpu.dot_dimension_numbers<[1], [0], [0], [1], [0, 0, 1, 1], [], []>} : vector<8x160xf32>, vector<160x64xf32>, vector<8x64xf32> -> vector<8x64xf32>
    %106 = arith.addf %101, %105 : vector<8x64xf32>
    %c40 = arith.constant 40 : index
    %c0_114 = arith.constant 0 : index
    %107 = vector.load %arg18[%c40, %c0_114] : memref<48x160xf32, #tpu.memory_space<vmem>>, vector<8x160xf32>
    %c5 = arith.constant 5 : index
    %c0_115 = arith.constant 0 : index
    %c0_116 = arith.constant 0 : index
    %108 = vector.load %arg10[%c5, %c0_115, %c0_116] : memref<6x160x64xf32, #tpu.memory_space<vmem>>, vector<1x160x64xf32>
    %109 = vector.shape_cast %108 : vector<1x160x64xf32> to vector<160x64xf32>
    %cst_117 = arith.constant dense<0.000000e+00> : vector<8x64xf32>
    %110 = tpu.matmul %107, %109, %cst_117 {dimension_numbers = #tpu.dot_dimension_numbers<[1], [0], [0], [1], [0, 0, 1, 1], [], []>} : vector<8x160xf32>, vector<160x64xf32>, vector<8x64xf32> -> vector<8x64xf32>
    %111 = arith.addf %106, %110 : vector<8x64xf32>
    %c0_118 = arith.constant 0 : index
    %c0_119 = arith.constant 0 : index
    %112 = vector.load %arg11[%c0_118, %c0_119] : memref<1x64xf32, #tpu.memory_space<vmem>>, vector<1x64xf32>
    %113 = vector.broadcast %112 : vector<1x64xf32> to vector<8x64xf32>
    %114 = arith.addf %111, %113 : vector<8x64xf32>
    %115 = arith.negf %114 : vector<8x64xf32>
    %116 = math.exp %115 : vector<8x64xf32>
    %cst_120 = arith.constant 1.000000e+00 : f32
    %117 = vector.broadcast %cst_120 : f32 to vector<8x64xf32>
    %118 = arith.addf %117, %116 : vector<8x64xf32>
    %119 = arith.divf %117, %118 : vector<8x64xf32>
    %c0_121 = arith.constant 0 : index
    %c0_122 = arith.constant 0 : index
    %120 = vector.load %arg12[%c0_121, %c0_122] : memref<64x128xf32, #tpu.memory_space<vmem>>, vector<64x128xf32>
    %cst_123 = arith.constant dense<0.000000e+00> : vector<8x128xf32>
    %121 = tpu.matmul %119, %120, %cst_123 {dimension_numbers = #tpu.dot_dimension_numbers<[1], [0], [0], [1], [0, 0, 1, 1], [], []>} : vector<8x64xf32>, vector<64x128xf32>, vector<8x128xf32> -> vector<8x128xf32>
    %c0_124 = arith.constant 0 : index
    %c0_125 = arith.constant 0 : index
    %122 = vector.load %arg13[%c0_124, %c0_125] : memref<1x128xf32, #tpu.memory_space<vmem>>, vector<1x128xf32>
    %123 = vector.broadcast %122 : vector<1x128xf32> to vector<8x128xf32>
    %124 = arith.addf %121, %123 : vector<8x128xf32>
    %c0_126 = arith.constant 0 : index
    %c0_127 = arith.constant 0 : index
    %125 = vector.load %arg14[%c0_126, %c0_127] : memref<8x128xf32, #tpu.memory_space<vmem>>, vector<8x128xf32>
    tpu.vector_store %arg14[%c0_126, %c0_127], %124 {strides = array<i32>} : memref<8x128xf32, #tpu.memory_space<vmem>>, vector<8x128xf32>,
    return
  }
  func.func @transform_0(%arg0: i32) -> (i32, i32) {
    %c0_i32 = arith.constant 0 : i32
    %c0_i32_0 = arith.constant 0 : i32
    return %arg0, %c0_i32 : i32, i32
  }
  func.func @transform_1(%arg0: i32) -> (i32, i32, i32) {
    %c0_i32 = arith.constant 0 : i32
    %c0_i32_0 = arith.constant 0 : i32
    %c0_i32_1 = arith.constant 0 : i32
    %c0_i32_2 = arith.constant 0 : i32
    return %c0_i32, %c0_i32_0, %c0_i32_1 : i32, i32, i32
  }
  func.func @transform_2(%arg0: i32) -> (i32, i32) {
    %c0_i32 = arith.constant 0 : i32
    %c0_i32_0 = arith.constant 0 : i32
    %c0_i32_1 = arith.constant 0 : i32
    return %c0_i32, %c0_i32_0 : i32, i32
  }
  func.func @transform_3(%arg0: i32) -> (i32, i32) {
    %c0_i32 = arith.constant 0 : i32
    %c0_i32_0 = arith.constant 0 : i32
    %c0_i32_1 = arith.constant 0 : i32
    return %c0_i32, %c0_i32_0 : i32, i32
  }
  func.func @transform_4(%arg0: i32) -> (i32, i32) {
    %c0_i32 = arith.constant 0 : i32
    %c0_i32_0 = arith.constant 0 : i32
    %c0_i32_1 = arith.constant 0 : i32
    return %c0_i32, %c0_i32_0 : i32, i32
  }
  func.func @transform_5(%arg0: i32) -> (i32, i32, i32) {
    %c0_i32 = arith.constant 0 : i32
    %c0_i32_0 = arith.constant 0 : i32
    %c0_i32_1 = arith.constant 0 : i32
    %c0_i32_2 = arith.constant 0 : i32
    return %c0_i32, %c0_i32_0, %c0_i32_1 : i32, i32, i32
  }
  func.func @transform_6(%arg0: i32) -> (i32, i32) {
    %c0_i32 = arith.constant 0 : i32
    %c0_i32_0 = arith.constant 0 : i32
    %c0_i32_1 = arith.constant 0 : i32
    return %c0_i32, %c0_i32_0 : i32, i32
  }
  func.func @transform_7(%arg0: i32) -> (i32, i32) {
    %c0_i32 = arith.constant 0 : i32
    %c0_i32_0 = arith.constant 0 : i32
    %c0_i32_1 = arith.constant 0 : i32
    return %c0_i32, %c0_i32_0 : i32, i32
  }
  func.func @transform_8(%arg0: i32) -> (i32, i32) {
    %c0_i32 = arith.constant 0 : i32
    %c0_i32_0 = arith.constant 0 : i32
    %c0_i32_1 = arith.constant 0 : i32
    return %c0_i32, %c0_i32_0 : i32, i32
  }
  func.func @transform_9(%arg0: i32) -> (i32, i32, i32) {
    %c0_i32 = arith.constant 0 : i32
    %c0_i32_0 = arith.constant 0 : i32
    %c0_i32_1 = arith.constant 0 : i32
    %c0_i32_2 = arith.constant 0 : i32
    return %c0_i32, %c0_i32_0, %c0_i32_1 : i32, i32, i32
  }
  func.func @transform_10(%arg0: i32) -> (i32, i32) {
    %c0_i32 = arith.constant 0 : i32
    %c0_i32_0 = arith.constant 0 : i32
    %c0_i32_1 = arith.constant 0 : i32
    return %c0_i32, %c0_i32_0 : i32, i32
  }
  func.func @transform_11(%arg0: i32) -> (i32, i32) {
    %c0_i32 = arith.constant 0 : i32
    %c0_i32_0 = arith.constant 0 : i32
    %c0_i32_1 = arith.constant 0 : i32
    return %c0_i32, %c0_i32_0 : i32, i32
  }
  func.func @transform_12(%arg0: i32) -> (i32, i32) {
    %c0_i32 = arith.constant 0 : i32
    %c0_i32_0 = arith.constant 0 : i32
    %c0_i32_1 = arith.constant 0 : i32
    return %c0_i32, %c0_i32_0 : i32, i32
  }
  func.func @transform_13(%arg0: i32) -> (i32, i32) {
    %c0_i32 = arith.constant 0 : i32
    %c0_i32_0 = arith.constant 0 : i32
    return %arg0, %c0_i32 : i32, i32
  }
}

</mosaic_0001>

<llo_original>
// kernel: pallas_net_forward.1
$region0: #{pallas_net_forward.1}
  #allocation0 [shape = 'u32[]', space=smem, size = 0x4, offset = 0x4, fixed_abs, tag = 'smem constant byte address 0x4 - core index']
  #allocation1 [shape = 'u32[72,128]{1,0:T(1,128)}', space=vmem, size = 0x9000, scoped, tag = 'internal scratch']
  #allocation2 [shape = 'f32[206,320]{1,0:T(8,128)}', space=vmem, size = 0x4e000, scoped, tag = 'scratch operand']
  #allocation3 [shape = 'bf16[112,160]{1,0:T(8,128)(2,1)}', space=vmem, size = 0xe000, scoped, tag = 'scratch operand']
  #allocation4 [shape = 'f32[110,320]{1,0:T(8,128)}', space=vmem, size = 0x2a000, scoped, tag = 'scratch operand']
  #allocation5 [shape = 'f32[48,160]{1,0:T(8,128)}', space=vmem, size = 0xc000, scoped, tag = 'scratch operand']
  %s0 = inlined_call_operand.vmem [shape: bf16[832,60], index: 0, kind: input, shape index: {}]
  %s1 = inlined_call_operand.vmem [shape: bf16[3,60,320], index: 1, kind: input, shape index: {}]
  %s2 = inlined_call_operand.vmem [shape: f32[1,320], index: 2, kind: input, shape index: {}]
  %s3 = inlined_call_operand.vmem [shape: bf16[112,205], index: 3, kind: input, shape index: {}]
  %s4 = inlined_call_operand.vmem [shape: bf16[304,160], index: 4, kind: input, shape index: {}]
  %s5 = inlined_call_operand.vmem [shape: bf16[3,160,320], index: 5, kind: input, shape index: {}]
  %s6 = inlined_call_operand.vmem [shape: f32[1,320], index: 6, kind: input, shape index: {}]
  %s7 = inlined_call_operand.vmem [shape: f32[48,109], index: 7, kind: input, shape index: {}]
  %s8 = inlined_call_operand.vmem [shape: f32[288,160], index: 8, kind: input, shape index: {}]
  %s9 = inlined_call_operand.vmem [shape: f32[6,160,64], index: 9, kind: input, shape index: {}]
  %s10 = inlined_call_operand.vmem [shape: f32[1,64], index: 10, kind: input, shape index: {}]
  %s11 = inlined_call_operand.vmem [shape: f32[64,128], index: 11, kind: input, shape index: {}]
  %s12 = inlined_call_operand.vmem [shape: f32[1,128], index: 12, kind: input, shape index: {}]
  %s13 = inlined_call_operand.vmem [shape: f32[32,128], index: 13, kind: output, shape index: {}]
  %s14 = sld [smem:[#allocation0]]
  $region85: #{pallas_net_forward.1} parent=0
    _
  %s16 = ssub.s32 1, %s14
  %s17 = scalar_select 0, %s16, %s14
  loop: start=0, step=1, limit=6
  $region2: #{pallas_net_forward.1} parent=0 // loop_pre_header
    _
  $region3: #{pallas_net_forward.1} parent=0 // loop_header
    %s19 = sphi 0, %s23
    %p20 = scmp.ge.s32.totalorder %s19, 6
    %s29 = sphi 0, %s31
    %s32 = sphi 0, %s29
    %s33 = sphi 0, %s32
    %s49 = sphi 0, %s33
    %s53 = sphi 0, %s53
    %s55 = sphi 0, %s53
    %s56 = sphi 0, %s55
    %s70 = sphi 0, %s56
    %s74 = sphi 0, %s74
    %s76 = sphi 0, %s74
    %s77 = sphi 0, %s76
    %s91 = sphi 0, %s77
    %s95 = sphi 0, %s95
    %s97 = sphi 0, %s95
    %s98 = sphi 0, %s97
    %s112 = sphi 0, %s98
    %s116 = sphi 0, %s116
    %s118 = sphi 0, %s116
    %s119 = sphi 0, %s118
    %s133 = sphi 0, %s119
    %s137 = sphi 0, %s137
    %s139 = sphi 0, %s137
    %s140 = sphi 0, %s139
    %s154 = sphi 0, %s140
    %s158 = sphi 0, %s158
    %s160 = sphi 0, %s158
    %s161 = sphi 0, %s160
    %s175 = sphi 0, %s161
    %s179 = sphi 0, %s179
    %s181 = sphi 0, %s179
    %s182 = sphi 0, %s181
    %s196 = sphi 0, %s182
    %s200 = sphi 0, %s200
    %s202 = sphi 0, %s200
    %s203 = sphi 0, %s202
    %s217 = sphi 0, %s203
    %s221 = sphi 0, %s221
    %s223 = sphi 0, %s221
    %s224 = sphi 0, %s223
    %s238 = sphi 0, %s224
    %s242 = sphi 0, %s242
    %s244 = sphi 0, %s242
    %s245 = sphi 0, %s244
    %s259 = sphi 0, %s245
    %s263 = sphi 0, %s263
    %s265 = sphi 0, %s263
    %s266 = sphi 0, %s265
    %s280 = sphi 0, %s266
    %s284 = sphi 0, %s284
    %s286 = sphi 0, %s284
    %s287 = sphi 0, %s286
    %s301 = sphi 0, %s287
    %s307 = sphi 0, %s309
    %s310 = sphi 0, %s307
    %s311 = sphi 0, %s310
    %s327 = sphi 0, %s311
  $region4: #{pallas_net_forward.1} parent=0 // loop_header_branch
    %22 = sbr.rel (%p20) target = $region8
  $region5: #{pallas_net_forward.1} parent=0 // loop_body
    %s24 = ssub.s32 %s19, 1
    %s25 = ssub.s32 %s19, 2
    %s26 = sadd.s32 %s19, 1
    %s27 = ssub.s32 %s19, %s26
    %p28 = scmp.eq.s32.totalorder %s27, 0
    %s30 = sadd.s32 %s29, 1
    %s31 = scalar_select %p28, %s29, %s30
    %p34 = pneg %p28
    %p35 = scmp.eq.s32.totalorder %s19, 3
    %p36 = por %p34, %p35
    %p37 = scmp.ne.s32.totalorder %s29, %s32
    %p38 = scmp.eq.s32.totalorder %s19, 0
    %p39 = por %p37, %p38
    %p40 = scmp.ne.s32.totalorder %s29, %s32
    %p41 = scmp.eq.s32.totalorder %s24, 3
    %p42 = por %p40, %p41
    %p43 = scmp.ne.s32.totalorder %s32, %s33
    %p44 = scmp.eq.s32.totalorder %s24, 0
    %p45 = por %p43, %p44
    %p46 = scmp.ne.s32.totalorder %s32, %s33
    %p47 = scmp.eq.s32.totalorder %s25, 3
    %p48 = por %p46, %p47
    %p50 = scmp.ne.s32.totalorder %s33, %s49
    %p51 = scmp.eq.s32.totalorder %s25, 0
    %p52 = por %p50, %p51
    %s54 = sadd.s32 %s53, 1
    %p57 = scmp.eq.s32.totalorder %s19, 3
    %p58 = scmp.ne.s32.totalorder %s53, %s55
    %p59 = scmp.eq.s32.totalorder %s19, 0
    %p60 = por %p58, %p59
    %p61 = scmp.ne.s32.totalorder %s53, %s55
    %p62 = scmp.eq.s32.totalorder %s24, 3
    %p63 = por %p61, %p62
    %p64 = scmp.ne.s32.totalorder %s55, %s56
    %p65 = scmp.eq.s32.totalorder %s24, 0
    %p66 = por %p64, %p65
    %p67 = scmp.ne.s32.totalorder %s55, %s56
    %p68 = scmp.eq.s32.totalorder %s25, 3
    %p69 = por %p67, %p68
    %p71 = scmp.ne.s32.totalorder %s56, %s70
    %p72 = scmp.eq.s32.totalorder %s25, 0
    %p73 = por %p71, %p72
    %s75 = sadd.s32 %s74, 1
    %p78 = scmp.eq.s32.totalorder %s19, 3
    %p79 = scmp.ne.s32.totalorder %s74, %s76
    %p80 = scmp.eq.s32.totalorder %s19, 0
    %p81 = por %p79, %p80
    %p82 = scmp.ne.s32.totalorder %s74, %s76
    %p83 = scmp.eq.s32.totalorder %s24, 3
    %p84 = por %p82, %p83
    %p85 = scmp.ne.s32.totalorder %s76, %s77
    %p86 = scmp.eq.s32.totalorder %s24, 0
    %p87 = por %p85, %p86
    %p88 = scmp.ne.s32.totalorder %s76, %s77
    %p89 = scmp.eq.s32.totalorder %s25, 3
    %p90 = por %p88, %p89
    %p92 = scmp.ne.s32.totalorder %s77, %s91
    %p93 = scmp.eq.s32.totalorder %s25, 0
    %p94 = por %p92, %p93
    %s96 = sadd.s32 %s95, 1
    %p99 = scmp.eq.s32.totalorder %s19, 3
    %p100 = scmp.ne.s32.totalorder %s95, %s97
    %p101 = scmp.eq.s32.totalorder %s19, 0
    %p102 = por %p100, %p101
    %p103 = scmp.ne.s32.totalorder %s95, %s97
    %p104 = scmp.eq.s32.totalorder %s24, 3
    %p105 = por %p103, %p104
    %p106 = scmp.ne.s32.totalorder %s97, %s98
    %p107 = scmp.eq.s32.totalorder %s24, 0
    %p108 = por %p106, %p107
    %p109 = scmp.ne.s32.totalorder %s97, %s98
    %p110 = scmp.eq.s32.totalorder %s25, 3
    %p111 = por %p109, %p110
    %p113 = scmp.ne.s32.totalorder %s98, %s112
    %p114 = scmp.eq.s32.totalorder %s25, 0
    %p115 = por %p113, %p114
    %s117 = sadd.s32 %s116, 1
    %p120 = scmp.eq.s32.totalorder %s19, 3
    %p121 = scmp.ne.s32.totalorder %s116, %s118
    %p122 = scmp.eq.s32.totalorder %s19, 0
    %p123 = por %p121, %p122
    %p124 = scmp.ne.s32.totalorder %s116, %s118
    %p125 = scmp.eq.s32.totalorder %s24, 3
    %p126 = por %p124, %p125
    %p127 = scmp.ne.s32.totalorder %s118, %s119
    %p128 = scmp.eq.s32.totalorder %s24, 0
    %p129 = por %p127, %p128
    %p130 = scmp.ne.s32.totalorder %s118, %s119
    %p131 = scmp.eq.s32.totalorder %s25, 3
    %p132 = por %p130, %p131
    %p134 = scmp.ne.s32.totalorder %s119, %s133
    %p135 = scmp.eq.s32.totalorder %s25, 0
    %p136 = por %p134, %p135
    %s138 = sadd.s32 %s137, 1
    %p141 = scmp.eq.s32.totalorder %s19, 3
    %p142 = scmp.ne.s32.totalorder %s137, %s139
    %p143 = scmp.eq.s32.totalorder %s19, 0
    %p144 = por %p142, %p143
    %p145 = scmp.ne.s32.totalorder %s137, %s139
    %p146 = scmp.eq.s32.totalorder %s24, 3
    %p147 = por %p145, %p146
    %p148 = scmp.ne.s32.totalorder %s139, %s140
    %p149 = scmp.eq.s32.totalorder %s24, 0
    %p150 = por %p148, %p149
    %p151 = scmp.ne.s32.totalorder %s139, %s140
    %p152 = scmp.eq.s32.totalorder %s25, 3
    %p153 = por %p151, %p152
    %p155 = scmp.ne.s32.totalorder %s140, %s154
    %p156 = scmp.eq.s32.totalorder %s25, 0
    %p157 = por %p155, %p156
    %s159 = sadd.s32 %s158, 1
    %p162 = scmp.eq.s32.totalorder %s19, 3
    %p163 = scmp.ne.s32.totalorder %s158, %s160
    %p164 = scmp.eq.s32.totalorder %s19, 0
    %p165 = por %p163, %p164
    %p166 = scmp.ne.s32.totalorder %s158, %s160
    %p167 = scmp.eq.s32.totalorder %s24, 3
    %p168 = por %p166, %p167
    %p169 = scmp.ne.s32.totalorder %s160, %s161
    %p170 = scmp.eq.s32.totalorder %s24, 0
    %p171 = por %p169, %p170
    %p172 = scmp.ne.s32.totalorder %s160, %s161
    %p173 = scmp.eq.s32.totalorder %s25, 3
    %p174 = por %p172, %p173
    %p176 = scmp.ne.s32.totalorder %s161, %s175
    %p177 = scmp.eq.s32.totalorder %s25, 0
    %p178 = por %p176, %p177
    %s180 = sadd.s32 %s179, 1
    %p183 = scmp.eq.s32.totalorder %s19, 3
    %p184 = scmp.ne.s32.totalorder %s179, %s181
    %p185 = scmp.eq.s32.totalorder %s19, 0
    %p186 = por %p184, %p185
    %p187 = scmp.ne.s32.totalorder %s179, %s181
    %p188 = scmp.eq.s32.totalorder %s24, 3
    %p189 = por %p187, %p188
    %p190 = scmp.ne.s32.totalorder %s181, %s182
    %p191 = scmp.eq.s32.totalorder %s24, 0
    %p192 = por %p190, %p191
    %p193 = scmp.ne.s32.totalorder %s181, %s182
    %p194 = scmp.eq.s32.totalorder %s25, 3
    %p195 = por %p193, %p194
    %p197 = scmp.ne.s32.totalorder %s182, %s196
    %p198 = scmp.eq.s32.totalorder %s25, 0
    %p199 = por %p197, %p198
    %s201 = sadd.s32 %s200, 1
    %p204 = scmp.eq.s32.totalorder %s19, 3
    %p205 = scmp.ne.s32.totalorder %s200, %s202
    %p206 = scmp.eq.s32.totalorder %s19, 0
    %p207 = por %p205, %p206
    %p208 = scmp.ne.s32.totalorder %s200, %s202
    %p209 = scmp.eq.s32.totalorder %s24, 3
    %p210 = por %p208, %p209
    %p211 = scmp.ne.s32.totalorder %s202, %s203
    %p212 = scmp.eq.s32.totalorder %s24, 0
    %p213 = por %p211, %p212
    %p214 = scmp.ne.s32.totalorder %s202, %s203
    %p215 = scmp.eq.s32.totalorder %s25, 3
    %p216 = por %p214, %p215
    %p218 = scmp.ne.s32.totalorder %s203, %s217
    %p219 = scmp.eq.s32.totalorder %s25, 0
    %p220 = por %p218, %p219
    %s222 = sadd.s32 %s221, 1
    %p225 = scmp.eq.s32.totalorder %s19, 3
    %p226 = scmp.ne.s32.totalorder %s221, %s223
    %p227 = scmp.eq.s32.totalorder %s19, 0
    %p228 = por %p226, %p227
    %p229 = scmp.ne.s32.totalorder %s221, %s223
    %p230 = scmp.eq.s32.totalorder %s24, 3
    %p231 = por %p229, %p230
    %p232 = scmp.ne.s32.totalorder %s223, %s224
    %p233 = scmp.eq.s32.totalorder %s24, 0
    %p234 = por %p232, %p233
    %p235 = scmp.ne.s32.totalorder %s223, %s224
    %p236 = scmp.eq.s32.totalorder %s25, 3
    %p237 = por %p235, %p236
    %p239 = scmp.ne.s32.totalorder %s224, %s238
    %p240 = scmp.eq.s32.totalorder %s25, 0
    %p241 = por %p239, %p240
    %s243 = sadd.s32 %s242, 1
    %p246 = scmp.eq.s32.totalorder %s19, 3
    %p247 = scmp.ne.s32.totalorder %s242, %s244
    %p248 = scmp.eq.s32.totalorder %s19, 0
    %p249 = por %p247, %p248
    %p250 = scmp.ne.s32.totalorder %s242, %s244
    %p251 = scmp.eq.s32.totalorder %s24, 3
    %p252 = por %p250, %p251
    %p253 = scmp.ne.s32.totalorder %s244, %s245
    %p254 = scmp.eq.s32.totalorder %s24, 0
    %p255 = por %p253, %p254
    %p256 = scmp.ne.s32.totalorder %s244, %s245
    %p257 = scmp.eq.s32.totalorder %s25, 3
    %p258 = por %p256, %p257
    %p260 = scmp.ne.s32.totalorder %s245, %s259
    %p261 = scmp.eq.s32.totalorder %s25, 0
    %p262 = por %p260, %p261
    %s264 = sadd.s32 %s263, 1
    %p267 = scmp.eq.s32.totalorder %s19, 3
    %p268 = scmp.ne.s32.totalorder %s263, %s265
    %p269 = scmp.eq.s32.totalorder %s19, 0
    %p270 = por %p268, %p269
    %p271 = scmp.ne.s32.totalorder %s263, %s265
    %p272 = scmp.eq.s32.totalorder %s24, 3
    %p273 = por %p271, %p272
    %p274 = scmp.ne.s32.totalorder %s265, %s266
    %p275 = scmp.eq.s32.totalorder %s24, 0
    %p276 = por %p274, %p275
    %p277 = scmp.ne.s32.totalorder %s265, %s266
    %p278 = scmp.eq.s32.totalorder %s25, 3
    %p279 = por %p277, %p278
    %p281 = scmp.ne.s32.totalorder %s266, %s280
    %p282 = scmp.eq.s32.totalorder %s25, 0
    %p283 = por %p281, %p282
    %s285 = sadd.s32 %s284, 1
    %p288 = scmp.eq.s32.totalorder %s19, 3
    %p289 = scmp.ne.s32.totalorder %s284, %s286
    %p290 = scmp.eq.s32.totalorder %s19, 0
    %p291 = por %p289, %p290
    %p292 = scmp.ne.s32.totalorder %s284, %s286
    %p293 = scmp.eq.s32.totalorder %s24, 3
    %p294 = por %p292, %p293
    %p295 = scmp.ne.s32.totalorder %s286, %s287
    %p296 = scmp.eq.s32.totalorder %s24, 0
    %p297 = por %p295, %p296
    %p298 = scmp.ne.s32.totalorder %s286, %s287
    %p299 = scmp.eq.s32.totalorder %s25, 3
    %p300 = por %p298, %p299
    %p302 = scmp.ne.s32.totalorder %s287, %s301
    %p303 = scmp.eq.s32.totalorder %s25, 0
    %p304 = por %p302, %p303
    %s305 = ssub.s32 %s19, %s26
    %p306 = scmp.eq.s32.totalorder %s305, 0
    %s308 = sadd.s32 %s307, 1
    %s309 = scalar_select %p306, %s307, %s308
    %p312 = pneg %p306
    %p313 = scmp.eq.s32.totalorder %s19, 3
    %p314 = por %p312, %p313
    %p315 = scmp.ne.s32.totalorder %s307, %s310
    %p316 = scmp.eq.s32.totalorder %s19, 0
    %p317 = por %p315, %p316
    %p318 = scmp.ne.s32.totalorder %s307, %s310
    %p319 = scmp.eq.s32.totalorder %s24, 3
    %p320 = por %p318, %p319
    %p321 = scmp.ne.s32.totalorder %s310, %s311
    %p322 = scmp.eq.s32.totalorder %s24, 0
    %p323 = por %p321, %p322
    %p324 = scmp.ne.s32.totalorder %s310, %s311
    %p325 = scmp.eq.s32.totalorder %s25, 3
    %p326 = por %p324, %p325
    %p328 = scmp.ne.s32.totalorder %s311, %s327
    %p329 = scmp.eq.s32.totalorder %s25, 0
    %p330 = por %p328, %p329
    %p331 = scmp.le.s32.totalorder 1, %s19
    %p332 = scmp.lt.s32.totalorder %s19, 5
    %p333 = pnand %p331, %p332
    %p334 = pneg %p333
    // Predicated region
    $region9: #{pallas_net_forward.1} parent=5 // pred_check
      _
    $region10: #{pallas_net_forward.1} parent=5 // pred_check_branch
      %336 = sbr.rel (%p333) target = $region12
    $region11: #{pallas_net_forward.1} parent=5 // pred_region
      %s337 = ssub.s32 %s19, 1
      // Predicated region
      $region13: #{pallas_net_forward.1} parent=11 // pred_check
        %p338 = pneg %p66
      $region14: #{pallas_net_forward.1} parent=11 // pred_check_branch
        %340 = sbr.rel (%p338) target = $region16
      $region15: #{pallas_net_forward.1} parent=11 // pred_region
        _
      $region16: #{pallas_net_forward.1} parent=11 // pred_fallthru
        _
      // Predicated region
      $region17: #{pallas_net_forward.1} parent=11 // pred_check
        %p341 = pneg %p87
      $region18: #{pallas_net_forward.1} parent=11 // pred_check_branch
        %343 = sbr.rel (%p341) target = $region20
      $region19: #{pallas_net_forward.1} parent=11 // pred_region
        _
      $region20: #{pallas_net_forward.1} parent=11 // pred_fallthru
        _
      // Predicated region
      $region21: #{pallas_net_forward.1} parent=11 // pred_check
        %p344 = pneg %p108
      $region22: #{pallas_net_forward.1} parent=11 // pred_check_branch
        %346 = sbr.rel (%p344) target = $region24
      $region23: #{pallas_net_forward.1} parent=11 // pred_region
        _
      $region24: #{pallas_net_forward.1} parent=11 // pred_fallthru
        _
      // Predicated region
      $region25: #{pallas_net_forward.1} parent=11 // pred_check
        %p347 = pneg %p129
      $region26: #{pallas_net_forward.1} parent=11 // pred_check_branch
        %349 = sbr.rel (%p347) target = $region28
      $region27: #{pallas_net_forward.1} parent=11 // pred_region
        _
      $region28: #{pallas_net_forward.1} parent=11 // pred_fallthru
        _
      // Predicated region
      $region29: #{pallas_net_forward.1} parent=11 // pred_check
        %p350 = pneg %p150
      $region30: #{pallas_net_forward.1} parent=11 // pred_check_branch
        %352 = sbr.rel (%p350) target = $region32
      $region31: #{pallas_net_forward.1} parent=11 // pred_region
        _
      $region32: #{pallas_net_forward.1} parent=11 // pred_fallthru
        _
      // Predicated region
      $region33: #{pallas_net_forward.1} parent=11 // pred_check
        %p353 = pneg %p171
      $region34: #{pallas_net_forward.1} parent=11 // pred_check_branch
        %355 = sbr.rel (%p353) target = $region36
      $region35: #{pallas_net_forward.1} parent=11 // pred_region
        _
      $region36: #{pallas_net_forward.1} parent=11 // pred_fallthru
        _
      // Predicated region
      $region37: #{pallas_net_forward.1} parent=11 // pred_check
        %p356 = pneg %p192
      $region38: #{pallas_net_forward.1} parent=11 // pred_check_branch
        %358 = sbr.rel (%p356) target = $region40
      $region39: #{pallas_net_forward.1} parent=11 // pred_region
        _
      $region40: #{pallas_net_forward.1} parent=11 // pred_fallthru
        _
      // Predicated region
      $region41: #{pallas_net_forward.1} parent=11 // pred_check
        %p359 = pneg %p213
      $region42: #{pallas_net_forward.1} parent=11 // pred_check_branch
        %361 = sbr.rel (%p359) target = $region44
      $region43: #{pallas_net_forward.1} parent=11 // pred_region
        _
      $region44: #{pallas_net_forward.1} parent=11 // pred_fallthru
        _
      // Predicated region
      $region45: #{pallas_net_forward.1} parent=11 // pred_check
        %p362 = pneg %p234
      $region46: #{pallas_net_forward.1} parent=11 // pred_check_branch
        %364 = sbr.rel (%p362) target = $region48
      $region47: #{pallas_net_forward.1} parent=11 // pred_region
        _
      $region48: #{pallas_net_forward.1} parent=11 // pred_fallthru
        _
      // Predicated region
      $region49: #{pallas_net_forward.1} parent=11 // pred_check
        %p365 = pneg %p255
      $region50: #{pallas_net_forward.1} parent=11 // pred_check_branch
        %367 = sbr.rel (%p365) target = $region52
      $region51: #{pallas_net_forward.1} parent=11 // pred_region
        _
      $region52: #{pallas_net_forward.1} parent=11 // pred_fallthru
        _
      // Predicated region
      $region53: #{pallas_net_forward.1} parent=11 // pred_check
        %p368 = pneg %p276
      $region54: #{pallas_net_forward.1} parent=11 // pred_check_branch
        %370 = sbr.rel (%p368) target = $region56
      $region55: #{pallas_net_forward.1} parent=11 // pred_region
        _
      $region56: #{pallas_net_forward.1} parent=11 // pred_fallthru
        _
      // Predicated region
      $region57: #{pallas_net_forward.1} parent=11 // pred_check
        %p371 = pneg %p297
      $region58: #{pallas_net_forward.1} parent=11 // pred_check_branch
        %373 = sbr.rel (%p371) target = $region60
      $region59: #{pallas_net_forward.1} parent=11 // pred_region
        _
      $region60: #{pallas_net_forward.1} parent=11 // pred_fallthru
        _
    $region12: #{pallas_net_forward.1} parent=5 // pred_fallthru
      _
    %p374 = scmp.lt.s32.totalorder %s19, 4
    // Predicated region
    $region61: #{pallas_net_forward.1} parent=5 // pred_check
      %p375 = pneg %p374
    $region62: #{pallas_net_forward.1} parent=5 // pred_check_branch
      %377 = sbr.rel (%p375) target = $region64
    $region63: #{pallas_net_forward.1} parent=5 // pred_region
      // Predicated region
      $region65: #{pallas_net_forward.1} parent=63 // pred_check
        %p378 = pneg %p39
      $region66: #{pallas_net_forward.1} parent=63 // pred_check_branch
        %380 = sbr.rel (%p378) target = $region68
      $region67: #{pallas_net_forward.1} parent=63 // pred_region
        %s381 = smul.u32 26, %s19
        %p382 = scmp.lt.s32.totalorder %s381, 103
        %s383 = scalar_select %p382, %s381, 103
        %s384 = smul.addr %s383, 4
        %s385 = scalar_lea.vmem %s0, %s384
        %s386 = smul.u32 26, %s19
      $region68: #{pallas_net_forward.1} parent=63 // pred_fallthru
        _
    $region64: #{pallas_net_forward.1} parent=5 // pred_fallthru
      _
    %p387 = scmp.le.s32.totalorder 1, %s19
    %p388 = scmp.lt.s32.totalorder %s19, 5
    %p389 = pnand %p387, %p388
    %p390 = pneg %p389
    // Predicated region
    $region69: #{pallas_net_forward.1} parent=5 // pred_check
      _
    $region70: #{pallas_net_forward.1} parent=5 // pred_check_branch
      %392 = sbr.rel (%p389) target = $region72
    $region71: #{pallas_net_forward.1} parent=5 // pred_region
      %s393 = ssub.s32 %s19, 1
      %s394 = smul.u32 26, %s24
      %p395 = scmp.lt.s32.totalorder %s394, 103
      %s396 = scalar_select %p395, %s394, 103
      %s397 = smul.addr %s396, 4
      %s398 = scalar_lea.vmem %s0, %s397
      %p399 = pneg %p45
      %p400 = pneg %p42
      %p401 = pneg %p66
      %p402 = pneg %p63
      %p403 = pneg %p87
      %p404 = pneg %p84
      %p405 = pneg %p108
      %p406 = pneg %p105
      %p407 = pneg %p129
      %p408 = pneg %p126
      %p409 = pneg %p150
      %p410 = pneg %p147
      %p411 = pneg %p171
      %p412 = pneg %p168
      %p413 = pneg %p192
      %p414 = pneg %p189
      %p415 = pneg %p213
      %p416 = pneg %p210
      %p417 = pneg %p234
      %p418 = pneg %p231
      %p419 = pneg %p255
      %p420 = pneg %p252
      %p421 = pneg %p276
      %p422 = pneg %p273
      %p423 = pneg %p297
      %p424 = pneg %p294
      %p425 = pneg %p323
      %p426 = pneg %p320
      %p427 = scmp.lt.s32.totalorder %s24, 3
      %s428 = scalar_select %p427, %s24, 3
      %s429 = smul.addr %s428, 8
      %s430 = scalar_lea.vmem %s13, %s429
      %s431 = smul.u32 26, %s24
      %p432 = scmp.lt.s32.totalorder %s431, 103
      %s433 = scalar_select %p432, %s431, 103
      %s434 = smul.addr %s433, 4
      %s435 = scalar_lea.vmem %s0, %s434
      %s436 = smul.u32 26, %s24
      %p437 = scmp.lt.s32.totalorder %s24, 3
      %s438 = scalar_select %p437, %s24, 3
      %s439 = smul.addr %s438, 8
      %s440 = scalar_lea.vmem %s13, %s439
      %v442 = vld [vmem:[%s435] sm:$0xf]
      %v443 = vld [vmem:[%s435 + $0x4] sm:$0xf]
      %v444 = vld [vmem:[%s435 + $0x8] sm:$0xf]
      %v445 = vld [vmem:[%s435 + $0xc] sm:$0xf]
      %v446 = vld [vmem:[%s435 + $0x10] sm:$0xf]
      %v447 = vld [vmem:[%s435 + $0x14] sm:$0xf]
      %v448 = vld [vmem:[%s435 + $0x18] sm:$0xf]
      %v449 = vld [vmem:[%s435 + $0x1c] sm:$0xf]
      %v450 = vld [vmem:[%s435 + $0x20] sm:$0xf]
      %v451 = vld [vmem:[%s435 + $0x24] sm:$0xf]
      %v452 = vld [vmem:[%s435 + $0x28] sm:$0xf]
      %v453 = vld [vmem:[%s435 + $0x2c] sm:$0xf]
      %v454 = vld [vmem:[%s435 + $0x30] sm:$0xf]
      %v455 = vld [vmem:[%s435 + $0x34] sm:$0xf]
      %v456 = vld [vmem:[%s435 + $0x38] sm:$0xf]
      %v457 = vld [vmem:[%s435 + $0x3c] sm:$0xf]
      %v458 = vld [vmem:[%s435 + $0x40] sm:$0xf]
      %v459 = vld [vmem:[%s435 + $0x44] sm:$0xf]
      %v460 = vld [vmem:[%s435 + $0x48] sm:$0xf]
      %v461 = vld [vmem:[%s435 + $0x4c] sm:$0xf]
      %v462 = vld [vmem:[%s435 + $0x50] sm:$0xf]
      %v463 = vld [vmem:[%s435 + $0x54] sm:$0xf]
      %v464 = vld [vmem:[%s435 + $0x58] sm:$0xf]
      %v465 = vld [vmem:[%s435 + $0x5c] sm:$0xf]
      %v466 = vld [vmem:[%s435 + $0x60] sm:$0xf]
      %v467 = vld [vmem:[%s435 + $0x64] sm:$0x7]
      %v468 = vld [vmem:[%s1] sm:$0xff]
      %v469 = vld [vmem:[%s1 + $0x8] sm:$0xf]
      %v470 = vld [vmem:[%s1 + $0xc] sm:$0xff]
      %v471 = vld [vmem:[%s1 + $0x14] sm:$0xf]
      %v472 = vld [vmem:[%s1 + $0x18] sm:$0xff]
      %v473 = vld [vmem:[%s1 + $0x20] sm:$0xf]
      %v474 = vld [vmem:[%s1 + $0x24] sm:$0xff]
      %v475 = vld [vmem:[%s1 + $0x2c] sm:$0xf]
      %v476 = vld [vmem:[%s1 + $0x30] sm:$0xff]
      %v477 = vld [vmem:[%s1 + $0x38] sm:$0xf]
      %v478 = vld [vmem:[%s1 + $0x3c] sm:$0xff]
      %v479 = vld [vmem:[%s1 + $0x44] sm:$0xf]
      %v480 = vld [vmem:[%s1 + $0x48] sm:$0xff]
      %v481 = vld [vmem:[%s1 + $0x50] sm:$0xf]
      %v482 = vld [vmem:[%s1 + $0x54] sm:$0x33]
      %v483 = vld [vmem:[%s1 + $0x5c] sm:$0x3]
      %v510 = vunpack.c.l.b16 %v442
      %v511 = vunpack.c.l.b16 %v443
      %v512 = vunpack.c.l.b16 %v444
      %v513 = vunpack.c.l.b16 %v445
      %v514 = vunpack.c.l.b16 %v446
      %v515 = vunpack.c.l.b16 %v447
      %v516 = vunpack.c.l.b16 %v448
      %v517 = vunpack.c.l.b16 %v449
      %v518 = vunpack.c.l.b16 %v450
      %v519 = vunpack.c.l.b16 %v451
      %v520 = vunpack.c.l.b16 %v452
      %v521 = vunpack.c.l.b16 %v453
      %v522 = vunpack.c.l.b16 %v454
      %v523 = vunpack.c.l.b16 %v455
      %v524 = vunpack.c.l.b16 %v456
      %v525 = vunpack.c.l.b16 %v457
      %v526 = vunpack.c.l.b16 %v458
      %v527 = vunpack.c.l.b16 %v459
      %v528 = vunpack.c.l.b16 %v460
      %v529 = vunpack.c.l.b16 %v461
      %v530 = vunpack.c.l.b16 %v462
      %v531 = vunpack.c.l.b16 %v463
      %v532 = vunpack.c.l.b16 %v464
      %v533 = vunpack.c.l.b16 %v465
      %v534 = vunpack.c.l.b16 %v466
      %v535 = vunpack.c.l.b16 %v467
      %v536 = vpack.c.b16 %v511, %v510
      %v537 = vpack.c.b16 %v513, %v512
      %v538 = vpack.c.b16 %v515, %v514
      %v539 = vpack.c.b16 %v517, %v516
      %v540 = vpack.c.b16 %v519, %v518
      %v541 = vpack.c.b16 %v521, %v520
      %v542 = vpack.c.b16 %v523, %v522
      %v543 = vpack.c.b16 %v525, %v524
      %v544 = vpack.c.b16 %v527, %v526
      %v545 = vpack.c.b16 %v529, %v528
      %v546 = vpack.c.b16 %v531, %v530
      %v547 = vpack.c.b16 %v533, %v532
      %v548 = vpack.c.b16 %v535, %v534
      %v565 = vunpack.c.l.b16 %v468
      %v566 = vunpack.c.h.b16 %v468
      %v567 = vunpack.c.l.b16 %v469
      %v568 = vunpack.c.l.b16 %v470
      %v569 = vunpack.c.h.b16 %v470
      %v570 = vunpack.c.l.b16 %v471
      %v571 = vunpack.c.l.b16 %v472
      %v572 = vunpack.c.h.b16 %v472
      %v573 = vunpack.c.l.b16 %v473
      %v574 = vunpack.c.l.b16 %v474
      %v575 = vunpack.c.h.b16 %v474
      %v576 = vunpack.c.l.b16 %v475
      %v577 = vunpack.c.l.b16 %v476
      %v578 = vunpack.c.h.b16 %v476
      %v579 = vunpack.c.l.b16 %v477
      %v580 = vunpack.c.l.b16 %v478
      %v581 = vunpack.c.h.b16 %v478
      %v582 = vunpack.c.l.b16 %v479
      %v583 = vunpack.c.l.b16 %v480
      %v584 = vunpack.c.h.b16 %v480
      %v585 = vunpack.c.l.b16 %v481
      %v586 = vunpack.c.l.b16 %v482
      %v587 = vunpack.c.h.b16 %v482
      %v588 = vunpack.c.l.b16 %v483
      %v589 = vpack.c.b16 %v568, %v565
      %v590 = vpack.c.b16 %v569, %v566
      %v591 = vpack.c.b16 %v570, %v567
      %v592 = vpack.c.b16 %v574, %v571
      %v593 = vpack.c.b16 %v575, %v572
      %v594 = vpack.c.b16 %v576, %v573
      %v595 = vpack.c.b16 %v580, %v577
      %v596 = vpack.c.b16 %v581, %v578
      %v597 = vpack.c.b16 %v582, %v579
      %v598 = vpack.c.b16 %v586, %v583
      %v599 = vpack.c.b16 %v587, %v584
      %v600 = vpack.c.b16 %v588, %v585
      %vm610 = vcmask 490496
      %v612 = vsel %vm610, %v536, 0
      %v615 = vsel %vm610, %v537, 0
      %v618 = vsel %vm610, %v538, 0
      %v621 = vsel %vm610, %v539, 0
      %v624 = vsel %vm610, %v540, 0
      %v627 = vsel %vm610, %v541, 0
      %v630 = vsel %vm610, %v542, 0
      %v633 = vsel %vm610, %v543, 0
      %v636 = vsel %vm610, %v544, 0
      %v639 = vsel %vm610, %v545, 0
      %v642 = vsel %vm610, %v546, 0
      %v645 = vsel %vm610, %v547, 0
      %v648 = vsel %vm610, %v548, 0
      %vm650 = vcmask 1045504
      %v652 = vsel %vm650, %v598, 0
      %v655 = vsel %vm650, %v599, 0
      %v658 = vsel %vm650, %v600, 0
      %660 = vmatpush.bf16.msra.mxu0 0
      %661 = vmatpush.bf16.msra.mxu0 0
      %662 = vmatpush.bf16.msra.mxu0 0
      %663 = vmatpush.bf16.msra.mxu0 0
      %664 = vmatpush.bf16.msra.mxu0 %v652
      %665 = vmatpush.bf16.msra.mxu0 %v595
      %666 = vmatpush.bf16.msra.mxu0 %v592
      %667 = vmatpush.bf16.msra.mxu0 %v589
      %668 = vmatmul.bf16.gmra.mxu0 %v612
      %v669 = vpop.f32.mrf.mxu0
      %v670 = vadd.f32 0.0, %v669
      %v671 = vpop.f32.mrf.mxu0
      %v672 = vadd.f32 0.0, %v671
      %673 = vmatmul.bf16.gmra.mxu0 %v615
      %v674 = vpop.f32.mrf.mxu0
      %v675 = vadd.f32 0.0, %v674
      %v676 = vpop.f32.mrf.mxu0
      %v677 = vadd.f32 0.0, %v676
      %678 = vmatmul.bf16.gmra.mxu0 %v618
      %v679 = vpop.f32.mrf.mxu0
      %v680 = vadd.f32 0.0, %v679
      %v681 = vpop.f32.mrf.mxu0
      %v682 = vadd.f32 0.0, %v681
      %683 = vmatmul.bf16.gmra.mxu0 %v621
      %v684 = vpop.f32.mrf.mxu0
      %v685 = vadd.f32 0.0, %v684
      %v686 = vpop.f32.mrf.mxu0
      %v687 = vadd.f32 0.0, %v686
      %688 = vmatmul.bf16.gmra.mxu0 %v624
      %v689 = vpop.f32.mrf.mxu0
      %v690 = vadd.f32 0.0, %v689
      %v691 = vpop.f32.mrf.mxu0
      %v692 = vadd.f32 0.0, %v691
      %693 = vmatmul.bf16.gmra.mxu0 %v627
      %v694 = vpop.f32.mrf.mxu0
      %v695 = vadd.f32 0.0, %v694
      %v696 = vpop.f32.mrf.mxu0
      %v697 = vadd.f32 0.0, %v696
      %698 = vmatmul.bf16.gmra.mxu0 %v630
      %v699 = vpop.f32.mrf.mxu0
      %v700 = vadd.f32 0.0, %v699
      %v701 = vpop.f32.mrf.mxu0
      %v702 = vadd.f32 0.0, %v701
      %703 = vmatmul.bf16.gmra.mxu0 %v633
      %v704 = vpop.f32.mrf.mxu0
      %v705 = vadd.f32 0.0, %v704
      %v706 = vpop.f32.mrf.mxu0
      %v707 = vadd.f32 0.0, %v706
      %708 = vmatmul.bf16.gmra.mxu0 %v636
      %v709 = vpop.f32.mrf.mxu0
      %v710 = vadd.f32 0.0, %v709
      %v711 = vpop.f32.mrf.mxu0
      %v712 = vadd.f32 0.0, %v711
      %713 = vmatmul.bf16.gmra.mxu0 %v639
      %v714 = vpop.f32.mrf.mxu0
      %v715 = vadd.f32 0.0, %v714
      %v716 = vpop.f32.mrf.mxu0
      %v717 = vadd.f32 0.0, %v716
      %718 = vmatmul.bf16.gmra.mxu0 %v642
      %v719 = vpop.f32.mrf.mxu0
      %v720 = vadd.f32 0.0, %v719
      %v721 = vpop.f32.mrf.mxu0
      %v722 = vadd.f32 0.0, %v721
      %723 = vmatmul.bf16.gmra.mxu0 %v645
      %v724 = vpop.f32.mrf.mxu0
      %v725 = vadd.f32 0.0, %v724
      %v726 = vpop.f32.mrf.mxu0
      %v727 = vadd.f32 0.0, %v726
      %728 = vmatmul.bf16.gmra.mxu0 %v648
      %v729 = vpop.f32.mrf.mxu0
      %v730 = vadd.f32 0.0, %v729
      %v731 = vpop.f32.mrf.mxu0
      %v732 = vadd.f32 0.0, %v731
      %733 = vdwg.mxu0
      %734 = vmatpush.bf16.msra.mxu0 0
      %735 = vmatpush.bf16.msra.mxu0 0
      %736 = vmatpush.bf16.msra.mxu0 0
      %737 = vmatpush.bf16.msra.mxu0 0
      %738 = vmatpush.bf16.msra.mxu0 %v655
      %739 = vmatpush.bf16.msra.mxu0 %v596
      %740 = vmatpush.bf16.msra.mxu0 %v593
      %741 = vmatpush.bf16.msra.mxu0 %v590
      %742 = vmatmul.bf16.gmra.mxu0 %v612
      %v743 = vpop.f32.mrf.mxu0
      %v744 = vadd.f32 0.0, %v743
      %v745 = vpop.f32.mrf.mxu0
      %v746 = vadd.f32 0.0, %v745
      %747 = vmatmul.bf16.gmra.mxu0 %v615
      %v748 = vpop.f32.mrf.mxu0
      %v749 = vadd.f32 0.0, %v748
      %v750 = vpop.f32.mrf.mxu0
      %v751 = vadd.f32 0.0, %v750
      %752 = vmatmul.bf16.gmra.mxu0 %v618
      %v753 = vpop.f32.mrf.mxu0
      %v754 = vadd.f32 0.0, %v753
      %v755 = vpop.f32.mrf.mxu0
      %v756 = vadd.f32 0.0, %v755
      %757 = vmatmul.bf16.gmra.mxu0 %v621
      %v758 = vpop.f32.mrf.mxu0
      %v759 = vadd.f32 0.0, %v758
      %v760 = vpop.f32.mrf.mxu0
      %v761 = vadd.f32 0.0, %v760
      %762 = vmatmul.bf16.gmra.mxu0 %v624
      %v763 = vpop.f32.mrf.mxu0
      %v764 = vadd.f32 0.0, %v763
      %v765 = vpop.f32.mrf.mxu0
      %v766 = vadd.f32 0.0, %v765
      %767 = vmatmul.bf16.gmra.mxu0 %v627
      %v768 = vpop.f32.mrf.mxu0
      %v769 = vadd.f32 0.0, %v768
      %v770 = vpop.f32.mrf.mxu0
      %v771 = vadd.f32 0.0, %v770
      %772 = vmatmul.bf16.gmra.mxu0 %v630
      %v773 = vpop.f32.mrf.mxu0
      %v774 = vadd.f32 0.0, %v773
      %v775 = vpop.f32.mrf.mxu0
      %v776 = vadd.f32 0.0, %v775
      %777 = vmatmul.bf16.gmra.mxu0 %v633
      %v778 = vpop.f32.mrf.mxu0
      %v779 = vadd.f32 0.0, %v778
      %v780 = vpop.f32.mrf.mxu0
      %v781 = vadd.f32 0.0, %v780
      %782 = vmatmul.bf16.gmra.mxu0 %v636
      %v783 = vpop.f32.mrf.mxu0
      %v784 = vadd.f32 0.0, %v783
      %v785 = vpop.f32.mrf.mxu0
      %v786 = vadd.f32 0.0, %v785
      %787 = vmatmul.bf16.gmra.mxu0 %v639
      %v788 = vpop.f32.mrf.mxu0
      %v789 = vadd.f32 0.0, %v788
      %v790 = vpop.f32.mrf.mxu0
      %v791 = vadd.f32 0.0, %v790
      %792 = vmatmul.bf16.gmra.mxu0 %v642
      %v793 = vpop.f32.mrf.mxu0
      %v794 = vadd.f32 0.0, %v793
      %v795 = vpop.f32.mrf.mxu0
      %v796 = vadd.f32 0.0, %v795
      %797 = vmatmul.bf16.gmra.mxu0 %v645
      %v798 = vpop.f32.mrf.mxu0
      %v799 = vadd.f32 0.0, %v798
      %v800 = vpop.f32.mrf.mxu0
      %v801 = vadd.f32 0.0, %v800
      %802 = vmatmul.bf16.gmra.mxu0 %v648
      %v803 = vpop.f32.mrf.mxu0
      %v804 = vadd.f32 0.0, %v803
      %v805 = vpop.f32.mrf.mxu0
      %v806 = vadd.f32 0.0, %v805
      %807 = vdwg.mxu0
      %808 = vmatpush.bf16.msra.mxu0 0
      %809 = vmatpush.bf16.msra.mxu0 0
      %810 = vmatpush.bf16.msra.mxu0 0
      %811 = vmatpush.bf16.msra.mxu0 0
      %812 = vmatpush.bf16.msra.mxu0 %v658
      %813 = vmatpush.bf16.msra.mxu0 %v597
      %814 = vmatpush.bf16.msra.mxu0 %v594
      %815 = vmatpush.bf16.msra.mxu0 %v591
      %816 = vmatmul.bf16.gmra.mxu0 %v612
      %v817 = vpop.f32.mrf.mxu0
      %v818 = vadd.f32 0.0, %v817
      %v819 = vpop.f32.mrf.mxu0
      %v820 = vadd.f32 0.0, %v819
      %821 = vmatmul.bf16.gmra.mxu0 %v615
      %v822 = vpop.f32.mrf.mxu0
      %v823 = vadd.f32 0.0, %v822
      %v824 = vpop.f32.mrf.mxu0
      %v825 = vadd.f32 0.0, %v824
      %826 = vmatmul.bf16.gmra.mxu0 %v618
      %v827 = vpop.f32.mrf.mxu0
      %v828 = vadd.f32 0.0, %v827
      %v829 = vpop.f32.mrf.mxu0
      %v830 = vadd.f32 0.0, %v829
      %831 = vmatmul.bf16.gmra.mxu0 %v621
      %v832 = vpop.f32.mrf.mxu0
      %v833 = vadd.f32 0.0, %v832
      %v834 = vpop.f32.mrf.mxu0
      %v835 = vadd.f32 0.0, %v834
      %836 = vmatmul.bf16.gmra.mxu0 %v624
      %v837 = vpop.f32.mrf.mxu0
      %v838 = vadd.f32 0.0, %v837
      %v839 = vpop.f32.mrf.mxu0
      %v840 = vadd.f32 0.0, %v839
      %841 = vmatmul.bf16.gmra.mxu0 %v627
      %v842 = vpop.f32.mrf.mxu0
      %v843 = vadd.f32 0.0, %v842
      %v844 = vpop.f32.mrf.mxu0
      %v845 = vadd.f32 0.0, %v844
      %846 = vmatmul.bf16.gmra.mxu0 %v630
      %v847 = vpop.f32.mrf.mxu0
      %v848 = vadd.f32 0.0, %v847
      %v849 = vpop.f32.mrf.mxu0
      %v850 = vadd.f32 0.0, %v849
      %851 = vmatmul.bf16.gmra.mxu0 %v633
      %v852 = vpop.f32.mrf.mxu0
      %v853 = vadd.f32 0.0, %v852
      %v854 = vpop.f32.mrf.mxu0
      %v855 = vadd.f32 0.0, %v854
      %856 = vmatmul.bf16.gmra.mxu0 %v636
      %v857 = vpop.f32.mrf.mxu0
      %v858 = vadd.f32 0.0, %v857
      %v859 = vpop.f32.mrf.mxu0
      %v860 = vadd.f32 0.0, %v859
      %861 = vmatmul.bf16.gmra.mxu0 %v639
      %v862 = vpop.f32.mrf.mxu0
      %v863 = vadd.f32 0.0, %v862
      %v864 = vpop.f32.mrf.mxu0
      %v865 = vadd.f32 0.0, %v864
      %866 = vmatmul.bf16.gmra.mxu0 %v642
      %v867 = vpop.f32.mrf.mxu0
      %v868 = vadd.f32 0.0, %v867
      %v869 = vpop.f32.mrf.mxu0
      %v870 = vadd.f32 0.0, %v869
      %871 = vmatmul.bf16.gmra.mxu0 %v645
      %v872 = vpop.f32.mrf.mxu0
      %v873 = vadd.f32 0.0, %v872
      %v874 = vpop.f32.mrf.mxu0
      %v875 = vadd.f32 0.0, %v874
      %876 = vmatmul.bf16.gmra.mxu0 %v648
      %v877 = vpop.f32.mrf.mxu0
      %v878 = vadd.f32 0.0, %v877
      %v879 = vpop.f32.mrf.mxu0
      %v880 = vadd.f32 0.0, %v879
      %881 = vdwg.mxu0
      %882 = vst [vmem:[#allocation2] sm:$0xff] %v670
      %883 = vst [vmem:[#allocation2 + $0x8] sm:$0xff] %v744
      %vm884 = vcmask 523264
      %885 = vst.msk [vmem:[#allocation2 + $0x10] sm:$0xff] %vm884, %v818
      %886 = vst [vmem:[#allocation2 + $0x18] sm:$0xff] %v672
      %887 = vst [vmem:[#allocation2 + $0x20] sm:$0xff] %v746
      %888 = vst.msk [vmem:[#allocation2 + $0x28] sm:$0xff] %vm884, %v820
      %889 = vst [vmem:[#allocation2 + $0x30] sm:$0xff] %v675
      %890 = vst [vmem:[#allocation2 + $0x38] sm:$0xff] %v749
      %891 = vst.msk [vmem:[#allocation2 + $0x40] sm:$0xff] %vm884, %v823
      %892 = vst [vmem:[#allocation2 + $0x48] sm:$0xff] %v677
      %893 = vst [vmem:[#allocation2 + $0x50] sm:$0xff] %v751
      %894 = vst.msk [vmem:[#allocation2 + $0x58] sm:$0xff] %vm884, %v825
      %895 = vst [vmem:[#allocation2 + $0x60] sm:$0xff] %v680
      %896 = vst [vmem:[#allocation2 + $0x68] sm:$0xff] %v754
      %897 = vst.msk [vmem:[#allocation2 + $0x70] sm:$0xff] %vm884, %v828
      %898 = vst [vmem:[#allocation2 + $0x78] sm:$0xff] %v682
      %899 = vst [vmem:[#allocation2 + $0x80] sm:$0xff] %v756
      %900 = vst.msk [vmem:[#allocation2 + $0x88] sm:$0xff] %vm884, %v830
      %901 = vst [vmem:[#allocation2 + $0x90] sm:$0xff] %v685
      %902 = vst [vmem:[#allocation2 + $0x98] sm:$0xff] %v759
      %903 = vst.msk [vmem:[#allocation2 + $0xa0] sm:$0xff] %vm884, %v833
      %904 = vst [vmem:[#allocation2 + $0xa8] sm:$0xff] %v687
      %905 = vst [vmem:[#allocation2 + $0xb0] sm:$0xff] %v761
      %906 = vst.msk [vmem:[#allocation2 + $0xb8] sm:$0xff] %vm884, %v835
      %907 = vst [vmem:[#allocation2 + $0xc0] sm:$0xff] %v690
      %908 = vst [vmem:[#allocation2 + $0xc8] sm:$0xff] %v764
      %909 = vst.msk [vmem:[#allocation2 + $0xd0] sm:$0xff] %vm884, %v838
      %910 = vst [vmem:[#allocation2 + $0xd8] sm:$0xff] %v692
      %911 = vst [vmem:[#allocation2 + $0xe0] sm:$0xff] %v766
      %912 = vst.msk [vmem:[#allocation2 + $0xe8] sm:$0xff] %vm884, %v840
      %913 = vst [vmem:[#allocation2 + $0xf0] sm:$0xff] %v695
      %914 = vst [vmem:[#allocation2 + $0xf8] sm:$0xff] %v769
      %915 = vst.msk [vmem:[#allocation2 + $0x100] sm:$0xff] %vm884, %v843
      %916 = vst [vmem:[#allocation2 + $0x108] sm:$0xff] %v697
      %917 = vst [vmem:[#allocation2 + $0x110] sm:$0xff] %v771
      %918 = vst.msk [vmem:[#allocation2 + $0x118] sm:$0xff] %vm884, %v845
      %919 = vst [vmem:[#allocation2 + $0x120] sm:$0xff] %v700
      %920 = vst [vmem:[#allocation2 + $0x128] sm:$0xff] %v774
      %921 = vst.msk [vmem:[#allocation2 + $0x130] sm:$0xff] %vm884, %v848
      %922 = vst [vmem:[#allocation2 + $0x138] sm:$0xff] %v702
      %923 = vst [vmem:[#allocation2 + $0x140] sm:$0xff] %v776
      %924 = vst.msk [vmem:[#allocation2 + $0x148] sm:$0xff] %vm884, %v850
      %925 = vst [vmem:[#allocation2 + $0x150] sm:$0xff] %v705
      %926 = vst [vmem:[#allocation2 + $0x158] sm:$0xff] %v779
      %927 = vst.msk [vmem:[#allocation2 + $0x160] sm:$0xff] %vm884, %v853
      %928 = vst [vmem:[#allocation2 + $0x168] sm:$0xff] %v707
      %929 = vst [vmem:[#allocation2 + $0x170] sm:$0xff] %v781
      %930 = vst.msk [vmem:[#allocation2 + $0x178] sm:$0xff] %vm884, %v855
      %931 = vst [vmem:[#allocation2 + $0x180] sm:$0xff] %v710
      %932 = vst [vmem:[#allocation2 + $0x188] sm:$0xff] %v784
      %933 = vst.msk [vmem:[#allocation2 + $0x190] sm:$0xff] %vm884, %v858
      %934 = vst [vmem:[#allocation2 + $0x198] sm:$0xff] %v712
      %935 = vst [vmem:[#allocation2 + $0x1a0] sm:$0xff] %v786
      %936 = vst.msk [vmem:[#allocation2 + $0x1a8] sm:$0xff] %vm884, %v860
      %937 = vst [vmem:[#allocation2 + $0x1b0] sm:$0xff] %v715
      %938 = vst [vmem:[#allocation2 + $0x1b8] sm:$0xff] %v789
      %939 = vst.msk [vmem:[#allocation2 + $0x1c0] sm:$0xff] %vm884, %v863
      %940 = vst [vmem:[#allocation2 + $0x1c8] sm:$0xff] %v717
      %941 = vst [vmem:[#allocation2 + $0x1d0] sm:$0xff] %v791
      %942 = vst.msk [vmem:[#allocation2 + $0x1d8] sm:$0xff] %vm884, %v865
      %943 = vst [vmem:[#allocation2 + $0x1e0] sm:$0xff] %v720
      %944 = vst [vmem:[#allocation2 + $0x1e8] sm:$0xff] %v794
      %945 = vst.msk [vmem:[#allocation2 + $0x1f0] sm:$0xff] %vm884, %v868
      %946 = vst [vmem:[#allocation2 + $0x1f8] sm:$0xff] %v722
      %947 = vst [vmem:[#allocation2 + $0x200] sm:$0xff] %v796
      %948 = vst.msk [vmem:[#allocation2 + $0x208] sm:$0xff] %vm884, %v870
      %949 = vst [vmem:[#allocation2 + $0x210] sm:$0xff] %v725
      %950 = vst [vmem:[#allocation2 + $0x218] sm:$0xff] %v799
      %951 = vst.msk [vmem:[#allocation2 + $0x220] sm:$0xff] %vm884, %v873
      %952 = vst [vmem:[#allocation2 + $0x228] sm:$0xff] %v727
      %953 = vst [vmem:[#allocation2 + $0x230] sm:$0xff] %v801
      %954 = vst.msk [vmem:[#allocation2 + $0x238] sm:$0xff] %vm884, %v875
      %955 = vst [vmem:[#allocation2 + $0x240] sm:$0xff] %v730
      %956 = vst [vmem:[#allocation2 + $0x248] sm:$0xff] %v804
      %957 = vst.msk [vmem:[#allocation2 + $0x250] sm:$0xff] %vm884, %v878
      %958 = vst [vmem:[#allocation2 + $0x258] sm:$0x3f] %v732
      %959 = vst [vmem:[#allocation2 + $0x260] sm:$0x3f] %v806
      %vm960 = vcmask 521216
      %961 = vst.msk [vmem:[#allocation2 + $0x268] sm:$0x3f] %vm960, %v880
      %v962 = vld [vmem:[#allocation2] sm:$0xff]
      %v963 = vld [vmem:[#allocation2 + $0x8] sm:$0xff]
      %v964 = vld [vmem:[#allocation2 + $0x10] sm:$0xff]
      %v965 = vld [vmem:[#allocation2 + $0x18] sm:$0xff]
      %v966 = vld [vmem:[#allocation2 + $0x20] sm:$0xff]
      %v967 = vld [vmem:[#allocation2 + $0x28] sm:$0xff]
      %v968 = vld [vmem:[#allocation2 + $0x30] sm:$0xff]
      %v969 = vld [vmem:[#allocation2 + $0x38] sm:$0xff]
      %v970 = vld [vmem:[#allocation2 + $0x40] sm:$0xff]
      %v971 = vld [vmem:[#allocation2 + $0x48] sm:$0xff]
      %v972 = vld [vmem:[#allocation2 + $0x50] sm:$0xff]
      %v973 = vld [vmem:[#allocation2 + $0x58] sm:$0xff]
      %v974 = vld [vmem:[#allocation2 + $0x60] sm:$0xff]
      %v975 = vld [vmem:[#allocation2 + $0x68] sm:$0xff]
      %v976 = vld [vmem:[#allocation2 + $0x70] sm:$0xff]
      %v977 = vld [vmem:[#allocation2 + $0x78] sm:$0xff]
      %v978 = vld [vmem:[#allocation2 + $0x80] sm:$0xff]
      %v979 = vld [vmem:[#allocation2 + $0x88] sm:$0xff]
      %v980 = vld [vmem:[#allocation2 + $0x90] sm:$0xff]
      %v981 = vld [vmem:[#allocation2 + $0x98] sm:$0xff]
      %v982 = vld [vmem:[#allocation2 + $0xa0] sm:$0xff]
      %v983 = vld [vmem:[#allocation2 + $0xa8] sm:$0xff]
      %v984 = vld [vmem:[#allocation2 + $0xb0] sm:$0xff]
      %v985 = vld [vmem:[#allocation2 + $0xb8] sm:$0xff]
      %v986 = vld [vmem:[#allocation2 + $0xc0] sm:$0xff]
      %v987 = vld [vmem:[#allocation2 + $0xc8] sm:$0xff]
      %v988 = vld [vmem:[#allocation2 + $0xd0] sm:$0xff]
      %v989 = vld [vmem:[#allocation2 + $0xd8] sm:$0xff]
      %v990 = vld [vmem:[#allocation2 + $0xe0] sm:$0xff]
      %v991 = vld [vmem:[#allocation2 + $0xe8] sm:$0xff]
      %v992 = vld [vmem:[#allocation2 + $0xf0] sm:$0xff]
      %v993 = vld [vmem:[#allocation2 + $0xf8] sm:$0xff]
      %v994 = vld [vmem:[#allocation2 + $0x100] sm:$0xff]
      %v995 = vld [vmem:[#allocation2 + $0x108] sm:$0xff]
      %v996 = vld [vmem:[#allocation2 + $0x110] sm:$0xff]
      %v997 = vld [vmem:[#allocation2 + $0x118] sm:$0xff]
      %v998 = vld [vmem:[#allocation2 + $0x120] sm:$0xff]
      %v999 = vld [vmem:[#allocation2 + $0x128] sm:$0xff]
      %v1000 = vld [vmem:[#allocation2 + $0x130] sm:$0xff]
      %v1001 = vld [vmem:[#allocation2 + $0x138] sm:$0xff]
      %v1002 = vld [vmem:[#allocation2 + $0x140] sm:$0xff]
      %v1003 = vld [vmem:[#allocation2 + $0x148] sm:$0xff]
      %v1004 = vld [vmem:[#allocation2 + $0x150] sm:$0xff]
      %v1005 = vld [vmem:[#allocation2 + $0x158] sm:$0xff]
      %v1006 = vld [vmem:[#allocation2 + $0x160] sm:$0xff]
      %v1007 = vld [vmem:[#allocation2 + $0x168] sm:$0xff]
      %v1008 = vld [vmem:[#allocation2 + $0x170] sm:$0xff]
      %v1009 = vld [vmem:[#allocation2 + $0x178] sm:$0xff]
      %v1010 = vld [vmem:[#allocation2 + $0x180] sm:$0xff]
      %v1011 = vld [vmem:[#allocation2 + $0x188] sm:$0xff]
      %v1012 = vld [vmem:[#allocation2 + $0x190] sm:$0xff]
      %v1013 = vld [vmem:[#allocation2 + $0x198] sm:$0xff]
      %v1014 = vld [vmem:[#allocation2 + $0x1a0] sm:$0xff]
      %v1015 = vld [vmem:[#allocation2 + $0x1a8] sm:$0xff]
      %v1016 = vld [vmem:[#allocation2 + $0x1b0] sm:$0xff]
      %v1017 = vld [vmem:[#allocation2 + $0x1b8] sm:$0xff]
      %v1018 = vld [vmem:[#allocation2 + $0x1c0] sm:$0xff]
      %v1019 = vld [vmem:[#allocation2 + $0x1c8] sm:$0xff]
      %v1020 = vld [vmem:[#allocation2 + $0x1d0] sm:$0xff]
      %v1021 = vld [vmem:[#allocation2 + $0x1d8] sm:$0xff]
      %v1022 = vld [vmem:[#allocation2 + $0x1e0] sm:$0xff]
      %v1023 = vld [vmem:[#allocation2 + $0x1e8] sm:$0xff]
      %v1024 = vld [vmem:[#allocation2 + $0x1f0] sm:$0xff]
      %v1025 = vld [vmem:[#allocation2 + $0x1f8] sm:$0xff]
      %v1026 = vld [vmem:[#allocation2 + $0x200] sm:$0xff]
      %v1027 = vld [vmem:[#allocation2 + $0x208] sm:$0xff]
      %v1028 = vld [vmem:[#allocation2 + $0x210] sm:$0xff]
      %v1029 = vld [vmem:[#allocation2 + $0x218] sm:$0xff]
      %v1030 = vld [vmem:[#allocation2 + $0x220] sm:$0xff]
      %v1031 = vld [vmem:[#allocation2 + $0x228] sm:$0xff]
      %v1032 = vld [vmem:[#allocation2 + $0x230] sm:$0xff]
      %v1033 = vld [vmem:[#allocation2 + $0x238] sm:$0xff]
      %v1034 = vld [vmem:[#allocation2 + $0x240] sm:$0xff]
      %v1035 = vld [vmem:[#allocation2 + $0x248] sm:$0xff]
      %v1036 = vld [vmem:[#allocation2 + $0x250] sm:$0xff]
      %v1037 = vld [vmem:[#allocation2 + $0x258] sm:$0x3f]
      %v1038 = vld [vmem:[#allocation2 + $0x260] sm:$0x3f]
      %v1039 = vld [vmem:[#allocation2 + $0x268] sm:$0x3f]
      %v1040 = vld [vmem:[%s435] sm:$0xf]
      %v1041 = vld [vmem:[%s435 + $0x4] sm:$0xf]
      %v1042 = vld [vmem:[%s435 + $0x8] sm:$0xf]
      %v1043 = vld [vmem:[%s435 + $0xc] sm:$0xf]
      %v1044 = vld [vmem:[%s435 + $0x10] sm:$0xf]
      %v1045 = vld [vmem:[%s435 + $0x14] sm:$0xf]
      %v1046 = vld [vmem:[%s435 + $0x18] sm:$0xf]
      %v1047 = vld [vmem:[%s435 + $0x1c] sm:$0xf]
      %v1048 = vld [vmem:[%s435 + $0x20] sm:$0xf]
      %v1049 = vld [vmem:[%s435 + $0x24] sm:$0xf]
      %v1050 = vld [vmem:[%s435 + $0x28] sm:$0xf]
      %v1051 = vld [vmem:[%s435 + $0x2c] sm:$0xf]
      %v1052 = vld [vmem:[%s435 + $0x30] sm:$0xf]
      %v1053 = vld [vmem:[%s435 + $0x34] sm:$0xf]
      %v1054 = vld [vmem:[%s435 + $0x38] sm:$0xf]
      %v1055 = vld [vmem:[%s435 + $0x3c] sm:$0xf]
      %v1056 = vld [vmem:[%s435 + $0x40] sm:$0xf]
      %v1057 = vld [vmem:[%s435 + $0x44] sm:$0xf]
      %v1058 = vld [vmem:[%s435 + $0x48] sm:$0xf]
      %v1059 = vld [vmem:[%s435 + $0x4c] sm:$0xf]
      %v1060 = vld [vmem:[%s435 + $0x50] sm:$0xf]
      %v1061 = vld [vmem:[%s435 + $0x54] sm:$0xf]
      %v1062 = vld [vmem:[%s435 + $0x58] sm:$0xf]
      %v1063 = vld [vmem:[%s435 + $0x5c] sm:$0xf]
      %v1064 = vld [vmem:[%s435 + $0x60] sm:$0xf]
      %v1065 = vld [vmem:[%s435 + $0x64] sm:$0xf]
      %s1066 = scalar_lea.vmem %s1, 96
      %v1067 = vld [vmem:[%s1066] sm:$0xff]
      %v1068 = vld [vmem:[%s1066 + $0x8] sm:$0xf]
      %v1069 = vld [vmem:[%s1066 + $0xc] sm:$0xff]
      %v1070 = vld [vmem:[%s1066 + $0x14] sm:$0xf]
      %v1071 = vld [vmem:[%s1066 + $0x18] sm:$0xff]
      %v1072 = vld [vmem:[%s1066 + $0x20] sm:$0xf]
      %v1073 = vld [vmem:[%s1066 + $0x24] sm:$0xff]
      %v1074 = vld [vmem:[%s1066 + $0x2c] sm:$0xf]
      %v1075 = vld [vmem:[%s1066 + $0x30] sm:$0xff]
      %v1076 = vld [vmem:[%s1066 + $0x38] sm:$0xf]
      %v1077 = vld [vmem:[%s1066 + $0x3c] sm:$0xff]
      %v1078 = vld [vmem:[%s1066 + $0x44] sm:$0xf]
      %v1079 = vld [vmem:[%s1066 + $0x48] sm:$0xff]
      %v1080 = vld [vmem:[%s1066 + $0x50] sm:$0xf]
      %v1081 = vld [vmem:[%s1066 + $0x54] sm:$0x33]
      %v1082 = vld [vmem:[%s1066 + $0x5c] sm:$0x3]
      %v1109 = vunpack.c.l.b16 %v1040
      %v1110 = vunpack.c.l.b16 %v1041
      %v1111 = vunpack.c.l.b16 %v1042
      %v1112 = vunpack.c.l.b16 %v1043
      %v1113 = vunpack.c.l.b16 %v1044
      %v1114 = vunpack.c.l.b16 %v1045
      %v1115 = vunpack.c.l.b16 %v1046
      %v1116 = vunpack.c.l.b16 %v1047
      %v1117 = vunpack.c.l.b16 %v1048
      %v1118 = vunpack.c.l.b16 %v1049
      %v1119 = vunpack.c.l.b16 %v1050
      %v1120 = vunpack.c.l.b16 %v1051
      %v1121 = vunpack.c.l.b16 %v1052
      %v1122 = vunpack.c.l.b16 %v1053
      %v1123 = vunpack.c.l.b16 %v1054
      %v1124 = vunpack.c.l.b16 %v1055
      %v1125 = vunpack.c.l.b16 %v1056
      %v1126 = vunpack.c.l.b16 %v1057
      %v1127 = vunpack.c.l.b16 %v1058
      %v1128 = vunpack.c.l.b16 %v1059
      %v1129 = vunpack.c.l.b16 %v1060
      %v1130 = vunpack.c.l.b16 %v1061
      %v1131 = vunpack.c.l.b16 %v1062
      %v1132 = vunpack.c.l.b16 %v1063
      %v1133 = vunpack.c.l.b16 %v1064
      %v1134 = vunpack.c.l.b16 %v1065
      %v1135 = vpack.c.b16 %v1110, %v1109
      %v1136 = vpack.c.b16 %v1112, %v1111
      %v1137 = vpack.c.b16 %v1114, %v1113
      %v1138 = vpack.c.b16 %v1116, %v1115
      %v1139 = vpack.c.b16 %v1118, %v1117
      %v1140 = vpack.c.b16 %v1120, %v1119
      %v1141 = vpack.c.b16 %v1122, %v1121
      %v1142 = vpack.c.b16 %v1124, %v1123
      %v1143 = vpack.c.b16 %v1126, %v1125
      %v1144 = vpack.c.b16 %v1128, %v1127
      %v1145 = vpack.c.b16 %v1130, %v1129
      %v1146 = vpack.c.b16 %v1132, %v1131
      %v1147 = vpack.c.b16 %v1134, %v1133
      %vm1148 = vsmask.f32 7424
      %v1150 = vshrl.u32 %v1135, 16
      %v1152 = vshll.u32 %v1135, 16
      %v1154 = vrot.slane %v1152, 1
      %v1155 = vor.u32 %v1150, %v1154
      %v1157 = vshll.u32 %v1136, 16
      %v1159 = vrot.slane %v1157, 1
      %v1160 = vsel %vm1148, %v1155, %v1159
      %v1161 = vshrl.u32 %v1136, 16
      %v1163 = vor.u32 %v1161, %v1159
      %v1165 = vshll.u32 %v1137, 16
      %v1167 = vrot.slane %v1165, 1
      %v1168 = vsel %vm1148, %v1163, %v1167
      %v1169 = vshrl.u32 %v1137, 16
      %v1171 = vor.u32 %v1169, %v1167
      %v1173 = vshll.u32 %v1138, 16
      %v1175 = vrot.slane %v1173, 1
      %v1176 = vsel %vm1148, %v1171, %v1175
      %v1177 = vshrl.u32 %v1138, 16
      %v1179 = vor.u32 %v1177, %v1175
      %v1181 = vshll.u32 %v1139, 16
      %v1183 = vrot.slane %v1181, 1
      %v1184 = vsel %vm1148, %v1179, %v1183
      %v1185 = vshrl.u32 %v1139, 16
      %v1187 = vor.u32 %v1185, %v1183
      %v1189 = vshll.u32 %v1140, 16
      %v1191 = vrot.slane %v1189, 1
      %v1192 = vsel %vm1148, %v1187, %v1191
      %v1193 = vshrl.u32 %v1140, 16
      %v1195 = vor.u32 %v1193, %v1191
      %v1197 = vshll.u32 %v1141, 16
      %v1199 = vrot.slane %v1197, 1
      %v1200 = vsel %vm1148, %v1195, %v1199
      %v1201 = vshrl.u32 %v1141, 16
      %v1203 = vor.u32 %v1201, %v1199
      %v1205 = vshll.u32 %v1142, 16
      %v1207 = vrot.slane %v1205, 1
      %v1208 = vsel %vm1148, %v1203, %v1207
      %v1209 = vshrl.u32 %v1142, 16
      %v1211 = vor.u32 %v1209, %v1207
      %v1213 = vshll.u32 %v1143, 16
      %v1215 = vrot.slane %v1213, 1
      %v1216 = vsel %vm1148, %v1211, %v1215
      %v1217 = vshrl.u32 %v1143, 16
      %v1219 = vor.u32 %v1217, %v1215
      %v1221 = vshll.u32 %v1144, 16
      %v1223 = vrot.slane %v1221, 1
      %v1224 = vsel %vm1148, %v1219, %v1223
      %v1225 = vshrl.u32 %v1144, 16
      %v1227 = vor.u32 %v1225, %v1223
      %v1229 = vshll.u32 %v1145, 16
      %v1231 = vrot.slane %v1229, 1
      %v1232 = vsel %vm1148, %v1227, %v1231
      %v1233 = vshrl.u32 %v1145, 16
      %v1235 = vor.u32 %v1233, %v1231
      %v1237 = vshll.u32 %v1146, 16
      %v1239 = vrot.slane %v1237, 1
      %v1240 = vsel %vm1148, %v1235, %v1239
      %v1241 = vshrl.u32 %v1146, 16
      %v1243 = vor.u32 %v1241, %v1239
      %v1245 = vshll.u32 %v1147, 16
      %v1247 = vrot.slane %v1245, 1
      %v1248 = vsel %vm1148, %v1243, %v1247
      %v1249 = vshrl.u32 %v1147, 16
      %v1251 = vor.u32 %v1249, %v1247
      %v1268 = vunpack.c.l.b16 %v1067
      %v1269 = vunpack.c.h.b16 %v1067
      %v1270 = vunpack.c.l.b16 %v1068
      %v1271 = vunpack.c.l.b16 %v1069
      %v1272 = vunpack.c.h.b16 %v1069
      %v1273 = vunpack.c.l.b16 %v1070
      %v1274 = vunpack.c.l.b16 %v1071
      %v1275 = vunpack.c.h.b16 %v1071
      %v1276 = vunpack.c.l.b16 %v1072
      %v1277 = vunpack.c.l.b16 %v1073
      %v1278 = vunpack.c.h.b16 %v1073
      %v1279 = vunpack.c.l.b16 %v1074
      %v1280 = vunpack.c.l.b16 %v1075
      %v1281 = vunpack.c.h.b16 %v1075
      %v1282 = vunpack.c.l.b16 %v1076
      %v1283 = vunpack.c.l.b16 %v1077
      %v1284 = vunpack.c.h.b16 %v1077
      %v1285 = vunpack.c.l.b16 %v1078
      %v1286 = vunpack.c.l.b16 %v1079
      %v1287 = vunpack.c.h.b16 %v1079
      %v1288 = vunpack.c.l.b16 %v1080
      %v1289 = vunpack.c.l.b16 %v1081
      %v1290 = vunpack.c.h.b16 %v1081
      %v1291 = vunpack.c.l.b16 %v1082
      %v1292 = vpack.c.b16 %v1271, %v1268
      %v1293 = vpack.c.b16 %v1272, %v1269
      %v1294 = vpack.c.b16 %v1273, %v1270
      %v1295 = vpack.c.b16 %v1277, %v1274
      %v1296 = vpack.c.b16 %v1278, %v1275
      %v1297 = vpack.c.b16 %v1279, %v1276
      %v1298 = vpack.c.b16 %v1283, %v1280
      %v1299 = vpack.c.b16 %v1284, %v1281
      %v1300 = vpack.c.b16 %v1285, %v1282
      %v1301 = vpack.c.b16 %v1289, %v1286
      %v1302 = vpack.c.b16 %v1290, %v1287
      %v1303 = vpack.c.b16 %v1291, %v1288
      %v1314 = vsel %vm610, %v1160, 0
      %v1317 = vsel %vm610, %v1168, 0
      %v1320 = vsel %vm610, %v1176, 0
      %v1323 = vsel %vm610, %v1184, 0
      %v1326 = vsel %vm610, %v1192, 0
      %v1329 = vsel %vm610, %v1200, 0
      %v1332 = vsel %vm610, %v1208, 0
      %v1335 = vsel %vm610, %v1216, 0
      %v1338 = vsel %vm610, %v1224, 0
      %v1341 = vsel %vm610, %v1232, 0
      %v1344 = vsel %vm610, %v1240, 0
      %v1347 = vsel %vm610, %v1248, 0
      %v1350 = vsel %vm610, %v1251, 0
      %v1353 = vsel %vm650, %v1301, 0
      %v1356 = vsel %vm650, %v1302, 0
      %v1359 = vsel %vm650, %v1303, 0
      %1361 = vmatpush.bf16.msra.mxu0 0
      %1362 = vmatpush.bf16.msra.mxu0 0
      %1363 = vmatpush.bf16.msra.mxu0 0
      %1364 = vmatpush.bf16.msra.mxu0 0
      %1365 = vmatpush.bf16.msra.mxu0 %v1353
      %1366 = vmatpush.bf16.msra.mxu0 %v1298
      %1367 = vmatpush.bf16.msra.mxu0 %v1295
      %1368 = vmatpush.bf16.msra.mxu0 %v1292
      %1369 = vmatmul.bf16.gmra.mxu0 %v1314
      %v1370 = vpop.f32.mrf.mxu0
      %v1371 = vadd.f32 0.0, %v1370
      %v1372 = vpop.f32.mrf.mxu0
      %v1373 = vadd.f32 0.0, %v1372
      %1374 = vmatmul.bf16.gmra.mxu0 %v1317
      %v1375 = vpop.f32.mrf.mxu0
      %v1376 = vadd.f32 0.0, %v1375
      %v1377 = vpop.f32.mrf.mxu0
      %v1378 = vadd.f32 0.0, %v1377
      %1379 = vmatmul.bf16.gmra.mxu0 %v1320
      %v1380 = vpop.f32.mrf.mxu0
      %v1381 = vadd.f32 0.0, %v1380
      %v1382 = vpop.f32.mrf.mxu0
      %v1383 = vadd.f32 0.0, %v1382
      %1384 = vmatmul.bf16.gmra.mxu0 %v1323
      %v1385 = vpop.f32.mrf.mxu0
      %v1386 = vadd.f32 0.0, %v1385
      %v1387 = vpop.f32.mrf.mxu0
      %v1388 = vadd.f32 0.0, %v1387
      %1389 = vmatmul.bf16.gmra.mxu0 %v1326
      %v1390 = vpop.f32.mrf.mxu0
      %v1391 = vadd.f32 0.0, %v1390
      %v1392 = vpop.f32.mrf.mxu0
      %v1393 = vadd.f32 0.0, %v1392
      %1394 = vmatmul.bf16.gmra.mxu0 %v1329
      %v1395 = vpop.f32.mrf.mxu0
      %v1396 = vadd.f32 0.0, %v1395
      %v1397 = vpop.f32.mrf.mxu0
      %v1398 = vadd.f32 0.0, %v1397
      %1399 = vmatmul.bf16.gmra.mxu0 %v1332
      %v1400 = vpop.f32.mrf.mxu0
      %v1401 = vadd.f32 0.0, %v1400
      %v1402 = vpop.f32.mrf.mxu0
      %v1403 = vadd.f32 0.0, %v1402
      %1404 = vmatmul.bf16.gmra.mxu0 %v1335
      %v1405 = vpop.f32.mrf.mxu0
      %v1406 = vadd.f32 0.0, %v1405
      %v1407 = vpop.f32.mrf.mxu0
      %v1408 = vadd.f32 0.0, %v1407
      %1409 = vmatmul.bf16.gmra.mxu0 %v1338
      %v1410 = vpop.f32.mrf.mxu0
      %v1411 = vadd.f32 0.0, %v1410
      %v1412 = vpop.f32.mrf.mxu0
      %v1413 = vadd.f32 0.0, %v1412
      %1414 = vmatmul.bf16.gmra.mxu0 %v1341
      %v1415 = vpop.f32.mrf.mxu0
      %v1416 = vadd.f32 0.0, %v1415
      %v1417 = vpop.f32.mrf.mxu0
      %v1418 = vadd.f32 0.0, %v1417
      %1419 = vmatmul.bf16.gmra.mxu0 %v1344
      %v1420 = vpop.f32.mrf.mxu0
      %v1421 = vadd.f32 0.0, %v1420
      %v1422 = vpop.f32.mrf.mxu0
      %v1423 = vadd.f32 0.0, %v1422
      %1424 = vmatmul.bf16.gmra.mxu0 %v1347
      %v1425 = vpop.f32.mrf.mxu0
      %v1426 = vadd.f32 0.0, %v1425
      %v1427 = vpop.f32.mrf.mxu0
      %v1428 = vadd.f32 0.0, %v1427
      %1429 = vmatmul.bf16.gmra.mxu0 %v1350
      %v1430 = vpop.f32.mrf.mxu0
      %v1431 = vadd.f32 0.0, %v1430
      %v1432 = vpop.f32.mrf.mxu0
      %v1433 = vadd.f32 0.0, %v1432
      %1434 = vdwg.mxu0
      %1435 = vmatpush.bf16.msra.mxu0 0
      %1436 = vmatpush.bf16.msra.mxu0 0
      %1437 = vmatpush.bf16.msra.mxu0 0
      %1438 = vmatpush.bf16.msra.mxu0 0
      %1439 = vmatpush.bf16.msra.mxu0 %v1356
      %1440 = vmatpush.bf16.msra.mxu0 %v1299
      %1441 = vmatpush.bf16.msra.mxu0 %v1296
      %1442 = vmatpush.bf16.msra.mxu0 %v1293
      %1443 = vmatmul.bf16.gmra.mxu0 %v1314
      %v1444 = vpop.f32.mrf.mxu0
      %v1445 = vadd.f32 0.0, %v1444
      %v1446 = vpop.f32.mrf.mxu0
      %v1447 = vadd.f32 0.0, %v1446
      %1448 = vmatmul.bf16.gmra.mxu0 %v1317
      %v1449 = vpop.f32.mrf.mxu0
      %v1450 = vadd.f32 0.0, %v1449
      %v1451 = vpop.f32.mrf.mxu0
      %v1452 = vadd.f32 0.0, %v1451
      %1453 = vmatmul.bf16.gmra.mxu0 %v1320
      %v1454 = vpop.f32.mrf.mxu0
      %v1455 = vadd.f32 0.0, %v1454
      %v1456 = vpop.f32.mrf.mxu0
      %v1457 = vadd.f32 0.0, %v1456
      %1458 = vmatmul.bf16.gmra.mxu0 %v1323
      %v1459 = vpop.f32.mrf.mxu0
      %v1460 = vadd.f32 0.0, %v1459
      %v1461 = vpop.f32.mrf.mxu0
      %v1462 = vadd.f32 0.0, %v1461
      %1463 = vmatmul.bf16.gmra.mxu0 %v1326
      %v1464 = vpop.f32.mrf.mxu0
      %v1465 = vadd.f32 0.0, %v1464
      %v1466 = vpop.f32.mrf.mxu0
      %v1467 = vadd.f32 0.0, %v1466
      %1468 = vmatmul.bf16.gmra.mxu0 %v1329
      %v1469 = vpop.f32.mrf.mxu0
      %v1470 = vadd.f32 0.0, %v1469
      %v1471 = vpop.f32.mrf.mxu0
      %v1472 = vadd.f32 0.0, %v1471
      %1473 = vmatmul.bf16.gmra.mxu0 %v1332
      %v1474 = vpop.f32.mrf.mxu0
      %v1475 = vadd.f32 0.0, %v1474
      %v1476 = vpop.f32.mrf.mxu0
      %v1477 = vadd.f32 0.0, %v1476
      %1478 = vmatmul.bf16.gmra.mxu0 %v1335
      %v1479 = vpop.f32.mrf.mxu0
      %v1480 = vadd.f32 0.0, %v1479
      %v1481 = vpop.f32.mrf.mxu0
      %v1482 = vadd.f32 0.0, %v1481
      %1483 = vmatmul.bf16.gmra.mxu0 %v1338
      %v1484 = vpop.f32.mrf.mxu0
      %v1485 = vadd.f32 0.0, %v1484
      %v1486 = vpop.f32.mrf.mxu0
      %v1487 = vadd.f32 0.0, %v1486
      %1488 = vmatmul.bf16.gmra.mxu0 %v1341
      %v1489 = vpop.f32.mrf.mxu0
      %v1490 = vadd.f32 0.0, %v1489
      %v1491 = vpop.f32.mrf.mxu0
      %v1492 = vadd.f32 0.0, %v1491
      %1493 = vmatmul.bf16.gmra.mxu0 %v1344
      %v1494 = vpop.f32.mrf.mxu0
      %v1495 = vadd.f32 0.0, %v1494
      %v1496 = vpop.f32.mrf.mxu0
      %v1497 = vadd.f32 0.0, %v1496
      %1498 = vmatmul.bf16.gmra.mxu0 %v1347
      %v1499 = vpop.f32.mrf.mxu0
      %v1500 = vadd.f32 0.0, %v1499
      %v1501 = vpop.f32.mrf.mxu0
      %v1502 = vadd.f32 0.0, %v1501
      %1503 = vmatmul.bf16.gmra.mxu0 %v1350
      %v1504 = vpop.f32.mrf.mxu0
      %v1505 = vadd.f32 0.0, %v1504
      %v1506 = vpop.f32.mrf.mxu0
      %v1507 = vadd.f32 0.0, %v1506
      %1508 = vdwg.mxu0
      %1509 = vmatpush.bf16.msra.mxu0 0
      %1510 = vmatpush.bf16.msra.mxu0 0
      %1511 = vmatpush.bf16.msra.mxu0 0
      %1512 = vmatpush.bf16.msra.mxu0 0
      %1513 = vmatpush.bf16.msra.mxu0 %v1359
      %1514 = vmatpush.bf16.msra.mxu0 %v1300
      %1515 = vmatpush.bf16.msra.mxu0 %v1297
      %1516 = vmatpush.bf16.msra.mxu0 %v1294
      %1517 = vmatmul.bf16.gmra.mxu0 %v1314
      %v1518 = vpop.f32.mrf.mxu0
      %v1519 = vadd.f32 0.0, %v1518
      %v1520 = vpop.f32.mrf.mxu0
      %v1521 = vadd.f32 0.0, %v1520
      %1522 = vmatmul.bf16.gmra.mxu0 %v1317
      %v1523 = vpop.f32.mrf.mxu0
      %v1524 = vadd.f32 0.0, %v1523
      %v1525 = vpop.f32.mrf.mxu0
      %v1526 = vadd.f32 0.0, %v1525
      %1527 = vmatmul.bf16.gmra.mxu0 %v1320
      %v1528 = vpop.f32.mrf.mxu0
      %v1529 = vadd.f32 0.0, %v1528
      %v1530 = vpop.f32.mrf.mxu0
      %v1531 = vadd.f32 0.0, %v1530
      %1532 = vmatmul.bf16.gmra.mxu0 %v1323
      %v1533 = vpop.f32.mrf.mxu0
      %v1534 = vadd.f32 0.0, %v1533
      %v1535 = vpop.f32.mrf.mxu0
      %v1536 = vadd.f32 0.0, %v1535
      %1537 = vmatmul.bf16.gmra.mxu0 %v1326
      %v1538 = vpop.f32.mrf.mxu0
      %v1539 = vadd.f32 0.0, %v1538
      %v1540 = vpop.f32.mrf.mxu0
      %v1541 = vadd.f32 0.0, %v1540
      %1542 = vmatmul.bf16.gmra.mxu0 %v1329
      %v1543 = vpop.f32.mrf.mxu0
      %v1544 = vadd.f32 0.0, %v1543
      %v1545 = vpop.f32.mrf.mxu0
      %v1546 = vadd.f32 0.0, %v1545
      %1547 = vmatmul.bf16.gmra.mxu0 %v1332
      %v1548 = vpop.f32.mrf.mxu0
      %v1549 = vadd.f32 0.0, %v1548
      %v1550 = vpop.f32.mrf.mxu0
      %v1551 = vadd.f32 0.0, %v1550
      %1552 = vmatmul.bf16.gmra.mxu0 %v1335
      %v1553 = vpop.f32.mrf.mxu0
      %v1554 = vadd.f32 0.0, %v1553
      %v1555 = vpop.f32.mrf.mxu0
      %v1556 = vadd.f32 0.0, %v1555
      %1557 = vmatmul.bf16.gmra.mxu0 %v1338
      %v1558 = vpop.f32.mrf.mxu0
      %v1559 = vadd.f32 0.0, %v1558
      %v1560 = vpop.f32.mrf.mxu0
      %v1561 = vadd.f32 0.0, %v1560
      %1562 = vmatmul.bf16.gmra.mxu0 %v1341
      %v1563 = vpop.f32.mrf.mxu0
      %v1564 = vadd.f32 0.0, %v1563
      %v1565 = vpop.f32.mrf.mxu0
      %v1566 = vadd.f32 0.0, %v1565
      %1567 = vmatmul.bf16.gmra.mxu0 %v1344
      %v1568 = vpop.f32.mrf.mxu0
      %v1569 = vadd.f32 0.0, %v1568
      %v1570 = vpop.f32.mrf.mxu0
      %v1571 = vadd.f32 0.0, %v1570
      %1572 = vmatmul.bf16.gmra.mxu0 %v1347
      %v1573 = vpop.f32.mrf.mxu0
      %v1574 = vadd.f32 0.0, %v1573
      %v1575 = vpop.f32.mrf.mxu0
      %v1576 = vadd.f32 0.0, %v1575
      %1577 = vmatmul.bf16.gmra.mxu0 %v1350
      %v1578 = vpop.f32.mrf.mxu0
      %v1579 = vadd.f32 0.0, %v1578
      %v1580 = vpop.f32.mrf.mxu0
      %v1581 = vadd.f32 0.0, %v1580
      %1582 = vdwg.mxu0
      %v1583 = vadd.f32 %v962, %v1371
      %v1584 = vadd.f32 %v963, %v1445
      %v1585 = vadd.f32 %v964, %v1519
      %v1586 = vadd.f32 %v965, %v1373
      %v1587 = vadd.f32 %v966, %v1447
      %v1588 = vadd.f32 %v967, %v1521
      %v1589 = vadd.f32 %v968, %v1376
      %v1590 = vadd.f32 %v969, %v1450
      %v1591 = vadd.f32 %v970, %v1524
      %v1592 = vadd.f32 %v971, %v1378
      %v1593 = vadd.f32 %v972, %v1452
      %v1594 = vadd.f32 %v973, %v1526
      %v1595 = vadd.f32 %v974, %v1381
      %v1596 = vadd.f32 %v975, %v1455
      %v1597 = vadd.f32 %v976, %v1529
      %v1598 = vadd.f32 %v977, %v1383
      %v1599 = vadd.f32 %v978, %v1457
      %v1600 = vadd.f32 %v979, %v1531
      %v1601 = vadd.f32 %v980, %v1386
      %v1602 = vadd.f32 %v981, %v1460
      %v1603 = vadd.f32 %v982, %v1534
      %v1604 = vadd.f32 %v983, %v1388
      %v1605 = vadd.f32 %v984, %v1462
      %v1606 = vadd.f32 %v985, %v1536
      %v1607 = vadd.f32 %v986, %v1391
      %v1608 = vadd.f32 %v987, %v1465
      %v1609 = vadd.f32 %v988, %v1539
      %v1610 = vadd.f32 %v989, %v1393
      %v1611 = vadd.f32 %v990, %v1467
      %v1612 = vadd.f32 %v991, %v1541
      %v1613 = vadd.f32 %v992, %v1396
      %v1614 = vadd.f32 %v993, %v1470
      %v1615 = vadd.f32 %v994, %v1544
      %v1616 = vadd.f32 %v995, %v1398
      %v1617 = vadd.f32 %v996, %v1472
      %v1618 = vadd.f32 %v997, %v1546
      %v1619 = vadd.f32 %v998, %v1401
      %v1620 = vadd.f32 %v999, %v1475
      %v1621 = vadd.f32 %v1000, %v1549
      %v1622 = vadd.f32 %v1001, %v1403
      %v1623 = vadd.f32 %v1002, %v1477
      %v1624 = vadd.f32 %v1003, %v1551
      %v1625 = vadd.f32 %v1004, %v1406
      %v1626 = vadd.f32 %v1005, %v1480
      %v1627 = vadd.f32 %v1006, %v1554
      %v1628 = vadd.f32 %v1007, %v1408
      %v1629 = vadd.f32 %v1008, %v1482
      %v1630 = vadd.f32 %v1009, %v1556
      %v1631 = vadd.f32 %v1010, %v1411
      %v1632 = vadd.f32 %v1011, %v1485
      %v1633 = vadd.f32 %v1012, %v1559
      %v1634 = vadd.f32 %v1013, %v1413
      %v1635 = vadd.f32 %v1014, %v1487
      %v1636 = vadd.f32 %v1015, %v1561
      %v1637 = vadd.f32 %v1016, %v1416
      %v1638 = vadd.f32 %v1017, %v1490
      %v1639 = vadd.f32 %v1018, %v1564
      %v1640 = vadd.f32 %v1019, %v1418
      %v1641 = vadd.f32 %v1020, %v1492
      %v1642 = vadd.f32 %v1021, %v1566
      %v1643 = vadd.f32 %v1022, %v1421
      %v1644 = vadd.f32 %v1023, %v1495
      %v1645 = vadd.f32 %v1024, %v1569
      %v1646 = vadd.f32 %v1025, %v1423
      %v1647 = vadd.f32 %v1026, %v1497
      %v1648 = vadd.f32 %v1027, %v1571
      %v1649 = vadd.f32 %v1028, %v1426
      %v1650 = vadd.f32 %v1029, %v1500
      %v1651 = vadd.f32 %v1030, %v1574
      %v1652 = vadd.f32 %v1031, %v1428
      %v1653 = vadd.f32 %v1032, %v1502
      %v1654 = vadd.f32 %v1033, %v1576
      %v1655 = vadd.f32 %v1034, %v1431
      %v1656 = vadd.f32 %v1035, %v1505
      %v1657 = vadd.f32 %v1036, %v1579
      %v1658 = vadd.f32 %v1037, %v1433
      %v1659 = vadd.f32 %v1038, %v1507
      %v1660 = vadd.f32 %v1039, %v1581
      %1661 = vst [vmem:[#allocation2] sm:$0xff] %v1583
      %1662 = vst [vmem:[#allocation2 + $0x8] sm:$0xff] %v1584
      %1663 = vst.msk [vmem:[#allocation2 + $0x10] sm:$0xff] %vm884, %v1585
      %1664 = vst [vmem:[#allocation2 + $0x18] sm:$0xff] %v1586
      %1665 = vst [vmem:[#allocation2 + $0x20] sm:$0xff] %v1587
      %1666 = vst.msk [vmem:[#allocation2 + $0x28] sm:$0xff] %vm884, %v1588
      %1667 = vst [vmem:[#allocation2 + $0x30] sm:$0xff] %v1589
      %1668 = vst [vmem:[#allocation2 + $0x38] sm:$0xff] %v1590
      %1669 = vst.msk [vmem:[#allocation2 + $0x40] sm:$0xff] %vm884, %v1591
      %1670 = vst [vmem:[#allocation2 + $0x48] sm:$0xff] %v1592
      %1671 = vst [vmem:[#allocation2 + $0x50] sm:$0xff] %v1593
      %1672 = vst.msk [vmem:[#allocation2 + $0x58] sm:$0xff] %vm884, %v1594
      %1673 = vst [vmem:[#allocation2 + $0x60] sm:$0xff] %v1595
      %1674 = vst [vmem:[#allocation2 + $0x68] sm:$0xff] %v1596
      %1675 = vst.msk [vmem:[#allocation2 + $0x70] sm:$0xff] %vm884, %v1597
      %1676 = vst [vmem:[#allocation2 + $0x78] sm:$0xff] %v1598
      %1677 = vst [vmem:[#allocation2 + $0x80] sm:$0xff] %v1599
      %1678 = vst.msk [vmem:[#allocation2 + $0x88] sm:$0xff] %vm884, %v1600
      %1679 = vst [vmem:[#allocation2 + $0x90] sm:$0xff] %v1601
      %1680 = vst [vmem:[#allocation2 + $0x98] sm:$0xff] %v1602
      %1681 = vst.msk [vmem:[#allocation2 + $0xa0] sm:$0xff] %vm884, %v1603
      %1682 = vst [vmem:[#allocation2 + $0xa8] sm:$0xff] %v1604
      %1683 = vst [vmem:[#allocation2 + $0xb0] sm:$0xff] %v1605
      %1684 = vst.msk [vmem:[#allocation2 + $0xb8] sm:$0xff] %vm884, %v1606
      %1685 = vst [vmem:[#allocation2 + $0xc0] sm:$0xff] %v1607
      %1686 = vst [vmem:[#allocation2 + $0xc8] sm:$0xff] %v1608
      %1687 = vst.msk [vmem:[#allocation2 + $0xd0] sm:$0xff] %vm884, %v1609
      %1688 = vst [vmem:[#allocation2 + $0xd8] sm:$0xff] %v1610
      %1689 = vst [vmem:[#allocation2 + $0xe0] sm:$0xff] %v1611
      %1690 = vst.msk [vmem:[#allocation2 + $0xe8] sm:$0xff] %vm884, %v1612
      %1691 = vst [vmem:[#allocation2 + $0xf0] sm:$0xff] %v1613
      %1692 = vst [vmem:[#allocation2 + $0xf8] sm:$0xff] %v1614
      %1693 = vst.msk [vmem:[#allocation2 + $0x100] sm:$0xff] %vm884, %v1615
      %1694 = vst [vmem:[#allocation2 + $0x108] sm:$0xff] %v1616
      %1695 = vst [vmem:[#allocation2 + $0x110] sm:$0xff] %v1617
      %1696 = vst.msk [vmem:[#allocation2 + $0x118] sm:$0xff] %vm884, %v1618
      %1697 = vst [vmem:[#allocation2 + $0x120] sm:$0xff] %v1619
      %1698 = vst [vmem:[#allocation2 + $0x128] sm:$0xff] %v1620
      %1699 = vst.msk [vmem:[#allocation2 + $0x130] sm:$0xff] %vm884, %v1621
      %1700 = vst [vmem:[#allocation2 + $0x138] sm:$0xff] %v1622
      %1701 = vst [vmem:[#allocation2 + $0x140] sm:$0xff] %v1623
      %1702 = vst.msk [vmem:[#allocation2 + $0x148] sm:$0xff] %vm884, %v1624
      %1703 = vst [vmem:[#allocation2 + $0x150] sm:$0xff] %v1625
      %1704 = vst [vmem:[#allocation2 + $0x158] sm:$0xff] %v1626
      %1705 = vst.msk [vmem:[#allocation2 + $0x160] sm:$0xff] %vm884, %v1627
      %1706 = vst [vmem:[#allocation2 + $0x168] sm:$0xff] %v1628
      %1707 = vst [vmem:[#allocation2 + $0x170] sm:$0xff] %v1629
      %1708 = vst.msk [vmem:[#allocation2 + $0x178] sm:$0xff] %vm884, %v1630
      %1709 = vst [vmem:[#allocation2 + $0x180] sm:$0xff] %v1631
      %1710 = vst [vmem:[#allocation2 + $0x188] sm:$0xff] %v1632
      %1711 = vst.msk [vmem:[#allocation2 + $0x190] sm:$0xff] %vm884, %v1633
      %1712 = vst [vmem:[#allocation2 + $0x198] sm:$0xff] %v1634
      %1713 = vst [vmem:[#allocation2 + $0x1a0] sm:$0xff] %v1635
      %1714 = vst.msk [vmem:[#allocation2 + $0x1a8] sm:$0xff] %vm884, %v1636
      %1715 = vst [vmem:[#allocation2 + $0x1b0] sm:$0xff] %v1637
      %1716 = vst [vmem:[#allocation2 + $0x1b8] sm:$0xff] %v1638
      %1717 = vst.msk [vmem:[#allocation2 + $0x1c0] sm:$0xff] %vm884, %v1639
      %1718 = vst [vmem:[#allocation2 + $0x1c8] sm:$0xff] %v1640
      %1719 = vst [vmem:[#allocation2 + $0x1d0] sm:$0xff] %v1641
      %1720 = vst.msk [vmem:[#allocation2 + $0x1d8] sm:$0xff] %vm884, %v1642
      %1721 = vst [vmem:[#allocation2 + $0x1e0] sm:$0xff] %v1643
      %1722 = vst [vmem:[#allocation2 + $0x1e8] sm:$0xff] %v1644
      %1723 = vst.msk [vmem:[#allocation2 + $0x1f0] sm:$0xff] %vm884, %v1645
      %1724 = vst [vmem:[#allocation2 + $0x1f8] sm:$0xff] %v1646
      %1725 = vst [vmem:[#allocation2 + $0x200] sm:$0xff] %v1647
      %1726 = vst.msk [vmem:[#allocation2 + $0x208] sm:$0xff] %vm884, %v1648
      %1727 = vst [vmem:[#allocation2 + $0x210] sm:$0xff] %v1649
      %1728 = vst [vmem:[#allocation2 + $0x218] sm:$0xff] %v1650
      %1729 = vst.msk [vmem:[#allocation2 + $0x220] sm:$0xff] %vm884, %v1651
      %1730 = vst [vmem:[#allocation2 + $0x228] sm:$0xff] %v1652
      %1731 = vst [vmem:[#allocation2 + $0x230] sm:$0xff] %v1653
      %1732 = vst.msk [vmem:[#allocation2 + $0x238] sm:$0xff] %vm884, %v1654
      %1733 = vst [vmem:[#allocation2 + $0x240] sm:$0xff] %v1655
      %1734 = vst [vmem:[#allocation2 + $0x248] sm:$0xff] %v1656
      %1735 = vst.msk [vmem:[#allocation2 + $0x250] sm:$0xff] %vm884, %v1657
      %1736 = vst [vmem:[#allocation2 + $0x258] sm:$0x3f] %v1658
      %1737 = vst [vmem:[#allocation2 + $0x260] sm:$0x3f] %v1659
      %1738 = vst.msk [vmem:[#allocation2 + $0x268] sm:$0x3f] %vm960, %v1660
      %v1739 = vld [vmem:[#allocation2] sm:$0xff]
      %v1740 = vld [vmem:[#allocation2 + $0x8] sm:$0xff]
      %v1741 = vld [vmem:[#allocation2 + $0x10] sm:$0xff]
      %v1742 = vld [vmem:[#allocation2 + $0x18] sm:$0xff]
      %v1743 = vld [vmem:[#allocation2 + $0x20] sm:$0xff]
      %v1744 = vld [vmem:[#allocation2 + $0x28] sm:$0xff]
      %v1745 = vld [vmem:[#allocation2 + $0x30] sm:$0xff]
      %v1746 = vld [vmem:[#allocation2 + $0x38] sm:$0xff]
      %v1747 = vld [vmem:[#allocation2 + $0x40] sm:$0xff]
      %v1748 = vld [vmem:[#allocation2 + $0x48] sm:$0xff]
      %v1749 = vld [vmem:[#allocation2 + $0x50] sm:$0xff]
      %v1750 = vld [vmem:[#allocation2 + $0x58] sm:$0xff]
      %v1751 = vld [vmem:[#allocation2 + $0x60] sm:$0xff]
      %v1752 = vld [vmem:[#allocation2 + $0x68] sm:$0xff]
      %v1753 = vld [vmem:[#allocation2 + $0x70] sm:$0xff]
      %v1754 = vld [vmem:[#allocation2 + $0x78] sm:$0xff]
      %v1755 = vld [vmem:[#allocation2 + $0x80] sm:$0xff]
      %v1756 = vld [vmem:[#allocation2 + $0x88] sm:$0xff]
      %v1757 = vld [vmem:[#allocation2 + $0x90] sm:$0xff]
      %v1758 = vld [vmem:[#allocation2 + $0x98] sm:$0xff]
      %v1759 = vld [vmem:[#allocation2 + $0xa0] sm:$0xff]
      %v1760 = vld [vmem:[#allocation2 + $0xa8] sm:$0xff]
      %v1761 = vld [vmem:[#allocation2 + $0xb0] sm:$0xff]
      %v1762 = vld [vmem:[#allocation2 + $0xb8] sm:$0xff]
      %v1763 = vld [vmem:[#allocation2 + $0xc0] sm:$0xff]
      %v1764 = vld [vmem:[#allocation2 + $0xc8] sm:$0xff]
      %v1765 = vld [vmem:[#allocation2 + $0xd0] sm:$0xff]
      %v1766 = vld [vmem:[#allocation2 + $0xd8] sm:$0xff]
      %v1767 = vld [vmem:[#allocation2 + $0xe0] sm:$0xff]
      %v1768 = vld [vmem:[#allocation2 + $0xe8] sm:$0xff]
      %v1769 = vld [vmem:[#allocation2 + $0xf0] sm:$0xff]
      %v1770 = vld [vmem:[#allocation2 + $0xf8] sm:$0xff]
      %v1771 = vld [vmem:[#allocation2 + $0x100] sm:$0xff]
      %v1772 = vld [vmem:[#allocation2 + $0x108] sm:$0xff]
      %v1773 = vld [vmem:[#allocation2 + $0x110] sm:$0xff]
      %v1774 = vld [vmem:[#allocation2 + $0x118] sm:$0xff]
      %v1775 = vld [vmem:[#allocation2 + $0x120] sm:$0xff]
      %v1776 = vld [vmem:[#allocation2 + $0x128] sm:$0xff]
      %v1777 = vld [vmem:[#allocation2 + $0x130] sm:$0xff]
      %v1778 = vld [vmem:[#allocation2 + $0x138] sm:$0xff]
      %v1779 = vld [vmem:[#allocation2 + $0x140] sm:$0xff]
      %v1780 = vld [vmem:[#allocation2 + $0x148] sm:$0xff]
      %v1781 = vld [vmem:[#allocation2 + $0x150] sm:$0xff]
      %v1782 = vld [vmem:[#allocation2 + $0x158] sm:$0xff]
      %v1783 = vld [vmem:[#allocation2 + $0x160] sm:$0xff]
      %v1784 = vld [vmem:[#allocation2 + $0x168] sm:$0xff]
      %v1785 = vld [vmem:[#allocation2 + $0x170] sm:$0xff]
      %v1786 = vld [vmem:[#allocation2 + $0x178] sm:$0xff]
      %v1787 = vld [vmem:[#allocation2 + $0x180] sm:$0xff]
      %v1788 = vld [vmem:[#allocation2 + $0x188] sm:$0xff]
      %v1789 = vld [vmem:[#allocation2 + $0x190] sm:$0xff]
      %v1790 = vld [vmem:[#allocation2 + $0x198] sm:$0xff]
      %v1791 = vld [vmem:[#allocation2 + $0x1a0] sm:$0xff]
      %v1792 = vld [vmem:[#allocation2 + $0x1a8] sm:$0xff]
      %v1793 = vld [vmem:[#allocation2 + $0x1b0] sm:$0xff]
      %v1794 = vld [vmem:[#allocation2 + $0x1b8] sm:$0xff]
      %v1795 = vld [vmem:[#allocation2 + $0x1c0] sm:$0xff]
      %v1796 = vld [vmem:[#allocation2 + $0x1c8] sm:$0xff]
      %v1797 = vld [vmem:[#allocation2 + $0x1d0] sm:$0xff]
      %v1798 = vld [vmem:[#allocation2 + $0x1d8] sm:$0xff]
      %v1799 = vld [vmem:[#allocation2 + $0x1e0] sm:$0xff]
      %v1800 = vld [vmem:[#allocation2 + $0x1e8] sm:$0xff]
      %v1801 = vld [vmem:[#allocation2 + $0x1f0] sm:$0xff]
      %v1802 = vld [vmem:[#allocation2 + $0x1f8] sm:$0xff]
      %v1803 = vld [vmem:[#allocation2 + $0x200] sm:$0xff]
      %v1804 = vld [vmem:[#allocation2 + $0x208] sm:$0xff]
      %v1805 = vld [vmem:[#allocation2 + $0x210] sm:$0xff]
      %v1806 = vld [vmem:[#allocation2 + $0x218] sm:$0xff]
      %v1807 = vld [vmem:[#allocation2 + $0x220] sm:$0xff]
      %v1808 = vld [vmem:[#allocation2 + $0x228] sm:$0xff]
      %v1809 = vld [vmem:[#allocation2 + $0x230] sm:$0xff]
      %v1810 = vld [vmem:[#allocation2 + $0x238] sm:$0xff]
      %v1811 = vld [vmem:[#allocation2 + $0x240] sm:$0xff]
      %v1812 = vld [vmem:[#allocation2 + $0x248] sm:$0xff]
      %v1813 = vld [vmem:[#allocation2 + $0x250] sm:$0xff]
      %v1814 = vld [vmem:[#allocation2 + $0x258] sm:$0x3f]
      %v1815 = vld [vmem:[#allocation2 + $0x260] sm:$0x3f]
      %v1816 = vld [vmem:[#allocation2 + $0x268] sm:$0x3f]
      %v1817 = vld [vmem:[%s435] sm:$0xe]
      %v1818 = vld [vmem:[%s435 + $0x4] sm:$0xf]
      %v1819 = vld [vmem:[%s435 + $0x8] sm:$0xf]
      %v1820 = vld [vmem:[%s435 + $0xc] sm:$0xf]
      %v1821 = vld [vmem:[%s435 + $0x10] sm:$0xf]
      %v1822 = vld [vmem:[%s435 + $0x14] sm:$0xf]
      %v1823 = vld [vmem:[%s435 + $0x18] sm:$0xf]
      %v1824 = vld [vmem:[%s435 + $0x1c] sm:$0xf]
      %v1825 = vld [vmem:[%s435 + $0x20] sm:$0xf]
      %v1826 = vld [vmem:[%s435 + $0x24] sm:$0xf]
      %v1827 = vld [vmem:[%s435 + $0x28] sm:$0xf]
      %v1828 = vld [vmem:[%s435 + $0x2c] sm:$0xf]
      %v1829 = vld [vmem:[%s435 + $0x30] sm:$0xf]
      %v1830 = vld [vmem:[%s435 + $0x34] sm:$0xf]
      %v1831 = vld [vmem:[%s435 + $0x38] sm:$0xf]
      %v1832 = vld [vmem:[%s435 + $0x3c] sm:$0xf]
      %v1833 = vld [vmem:[%s435 + $0x40] sm:$0xf]
      %v1834 = vld [vmem:[%s435 + $0x44] sm:$0xf]
      %v1835 = vld [vmem:[%s435 + $0x48] sm:$0xf]
      %v1836 = vld [vmem:[%s435 + $0x4c] sm:$0xf]
      %v1837 = vld [vmem:[%s435 + $0x50] sm:$0xf]
      %v1838 = vld [vmem:[%s435 + $0x54] sm:$0xf]
      %v1839 = vld [vmem:[%s435 + $0x58] sm:$0xf]
      %v1840 = vld [vmem:[%s435 + $0x5c] sm:$0xf]
      %v1841 = vld [vmem:[%s435 + $0x60] sm:$0xf]
      %v1842 = vld [vmem:[%s435 + $0x64] sm:$0xf]
      %s1843 = scalar_lea.vmem %s1, 192
      %v1844 = vld [vmem:[%s1843] sm:$0xff]
      %v1845 = vld [vmem:[%s1843 + $0x8] sm:$0xf]
      %v1846 = vld [vmem:[%s1843 + $0xc] sm:$0xff]
      %v1847 = vld [vmem:[%s1843 + $0x14] sm:$0xf]
      %v1848 = vld [vmem:[%s1843 + $0x18] sm:$0xff]
      %v1849 = vld [vmem:[%s1843 + $0x20] sm:$0xf]
      %v1850 = vld [vmem:[%s1843 + $0x24] sm:$0xff]
      %v1851 = vld [vmem:[%s1843 + $0x2c] sm:$0xf]
      %v1852 = vld [vmem:[%s1843 + $0x30] sm:$0xff]
      %v1853 = vld [vmem:[%s1843 + $0x38] sm:$0xf]
      %v1854 = vld [vmem:[%s1843 + $0x3c] sm:$0xff]
      %v1855 = vld [vmem:[%s1843 + $0x44] sm:$0xf]
      %v1856 = vld [vmem:[%s1843 + $0x48] sm:$0xff]
      %v1857 = vld [vmem:[%s1843 + $0x50] sm:$0xf]
      %v1858 = vld [vmem:[%s1843 + $0x54] sm:$0x33]
      %v1859 = vld [vmem:[%s1843 + $0x5c] sm:$0x3]
      %v1886 = vunpack.c.l.b16 %v1817
      %v1887 = vunpack.c.l.b16 %v1818
      %v1888 = vunpack.c.l.b16 %v1819
      %v1889 = vunpack.c.l.b16 %v1820
      %v1890 = vunpack.c.l.b16 %v1821
      %v1891 = vunpack.c.l.b16 %v1822
      %v1892 = vunpack.c.l.b16 %v1823
      %v1893 = vunpack.c.l.b16 %v1824
      %v1894 = vunpack.c.l.b16 %v1825
      %v1895 = vunpack.c.l.b16 %v1826
      %v1896 = vunpack.c.l.b16 %v1827
      %v1897 = vunpack.c.l.b16 %v1828
      %v1898 = vunpack.c.l.b16 %v1829
      %v1899 = vunpack.c.l.b16 %v1830
      %v1900 = vunpack.c.l.b16 %v1831
      %v1901 = vunpack.c.l.b16 %v1832
      %v1902 = vunpack.c.l.b16 %v1833
      %v1903 = vunpack.c.l.b16 %v1834
      %v1904 = vunpack.c.l.b16 %v1835
      %v1905 = vunpack.c.l.b16 %v1836
      %v1906 = vunpack.c.l.b16 %v1837
      %v1907 = vunpack.c.l.b16 %v1838
      %v1908 = vunpack.c.l.b16 %v1839
      %v1909 = vunpack.c.l.b16 %v1840
      %v1910 = vunpack.c.l.b16 %v1841
      %v1911 = vunpack.c.l.b16 %v1842
      %v1912 = vpack.c.b16 %v1887, %v1886
      %v1913 = vpack.c.b16 %v1889, %v1888
      %v1914 = vpack.c.b16 %v1891, %v1890
      %v1915 = vpack.c.b16 %v1893, %v1892
      %v1916 = vpack.c.b16 %v1895, %v1894
      %v1917 = vpack.c.b16 %v1897, %v1896
      %v1918 = vpack.c.b16 %v1899, %v1898
      %v1919 = vpack.c.b16 %v1901, %v1900
      %v1920 = vpack.c.b16 %v1903, %v1902
      %v1921 = vpack.c.b16 %v1905, %v1904
      %v1922 = vpack.c.b16 %v1907, %v1906
      %v1923 = vpack.c.b16 %v1909, %v1908
      %v1924 = vpack.c.b16 %v1911, %v1910
      %vm1925 = vcmask 1046528
      %v1926 = vrot.slane %v1912, 1
      %v1927 = vrot.slane %v1913, 1
      %v1928 = vsel %vm1925, %v1926, %v1927
      %v1929 = vrot.slane %v1914, 1
      %v1930 = vsel %vm1925, %v1927, %v1929
      %v1931 = vrot.slane %v1915, 1
      %v1932 = vsel %vm1925, %v1929, %v1931
      %v1933 = vrot.slane %v1916, 1
      %v1934 = vsel %vm1925, %v1931, %v1933
      %v1935 = vrot.slane %v1917, 1
      %v1936 = vsel %vm1925, %v1933, %v1935
      %v1937 = vrot.slane %v1918, 1
      %v1938 = vsel %vm1925, %v1935, %v1937
      %v1939 = vrot.slane %v1919, 1
      %v1940 = vsel %vm1925, %v1937, %v1939
      %v1941 = vrot.slane %v1920, 1
      %v1942 = vsel %vm1925, %v1939, %v1941
      %v1943 = vrot.slane %v1921, 1
      %v1944 = vsel %vm1925, %v1941, %v1943
      %v1945 = vrot.slane %v1922, 1
      %v1946 = vsel %vm1925, %v1943, %v1945
      %v1947 = vrot.slane %v1923, 1
      %v1948 = vsel %vm1925, %v1945, %v1947
      %v1949 = vrot.slane %v1924, 1
      %v1950 = vsel %vm1925, %v1947, %v1949
      %v1967 = vunpack.c.l.b16 %v1844
      %v1968 = vunpack.c.h.b16 %v1844
      %v1969 = vunpack.c.l.b16 %v1845
      %v1970 = vunpack.c.l.b16 %v1846
      %v1971 = vunpack.c.h.b16 %v1846
      %v1972 = vunpack.c.l.b16 %v1847
      %v1973 = vunpack.c.l.b16 %v1848
      %v1974 = vunpack.c.h.b16 %v1848
      %v1975 = vunpack.c.l.b16 %v1849
      %v1976 = vunpack.c.l.b16 %v1850
      %v1977 = vunpack.c.h.b16 %v1850
      %v1978 = vunpack.c.l.b16 %v1851
      %v1979 = vunpack.c.l.b16 %v1852
      %v1980 = vunpack.c.h.b16 %v1852
      %v1981 = vunpack.c.l.b16 %v1853
      %v1982 = vunpack.c.l.b16 %v1854
      %v1983 = vunpack.c.h.b16 %v1854
      %v1984 = vunpack.c.l.b16 %v1855
      %v1985 = vunpack.c.l.b16 %v1856
      %v1986 = vunpack.c.h.b16 %v1856
      %v1987 = vunpack.c.l.b16 %v1857
      %v1988 = vunpack.c.l.b16 %v1858
      %v1989 = vunpack.c.h.b16 %v1858
      %v1990 = vunpack.c.l.b16 %v1859
      %v1991 = vpack.c.b16 %v1970, %v1967
      %v1992 = vpack.c.b16 %v1971, %v1968
      %v1993 = vpack.c.b16 %v1972, %v1969
      %v1994 = vpack.c.b16 %v1976, %v1973
      %v1995 = vpack.c.b16 %v1977, %v1974
      %v1996 = vpack.c.b16 %v1978, %v1975
      %v1997 = vpack.c.b16 %v1982, %v1979
      %v1998 = vpack.c.b16 %v1983, %v1980
      %v1999 = vpack.c.b16 %v1984, %v1981
      %v2000 = vpack.c.b16 %v1988, %v1985
      %v2001 = vpack.c.b16 %v1989, %v1986
      %v2002 = vpack.c.b16 %v1990, %v1987
      %v2013 = vsel %vm610, %v1928, 0
      %v2016 = vsel %vm610, %v1930, 0
      %v2019 = vsel %vm610, %v1932, 0
      %v2022 = vsel %vm610, %v1934, 0
      %v2025 = vsel %vm610, %v1936, 0
      %v2028 = vsel %vm610, %v1938, 0
      %v2031 = vsel %vm610, %v1940, 0
      %v2034 = vsel %vm610, %v1942, 0
      %v2037 = vsel %vm610, %v1944, 0
      %v2040 = vsel %vm610, %v1946, 0
      %v2043 = vsel %vm610, %v1948, 0
      %v2046 = vsel %vm610, %v1950, 0
      %v2049 = vsel %vm610, %v1949, 0
      %v2052 = vsel %vm650, %v2000, 0
      %v2055 = vsel %vm650, %v2001, 0
      %v2058 = vsel %vm650, %v2002, 0
      %2060 = vmatpush.bf16.msra.mxu0 0
      %2061 = vmatpush.bf16.msra.mxu0 0
      %2062 = vmatpush.bf16.msra.mxu0 0
      %2063 = vmatpush.bf16.msra.mxu0 0
      %2064 = vmatpush.bf16.msra.mxu0 %v2052
      %2065 = vmatpush.bf16.msra.mxu0 %v1997
      %2066 = vmatpush.bf16.msra.mxu0 %v1994
      %2067 = vmatpush.bf16.msra.mxu0 %v1991
      %2068 = vmatmul.bf16.gmra.mxu0 %v2013
      %v2069 = vpop.f32.mrf.mxu0
      %v2070 = vadd.f32 0.0, %v2069
      %v2071 = vpop.f32.mrf.mxu0
      %v2072 = vadd.f32 0.0, %v2071
      %2073 = vmatmul.bf16.gmra.mxu0 %v2016
      %v2074 = vpop.f32.mrf.mxu0
      %v2075 = vadd.f32 0.0, %v2074
      %v2076 = vpop.f32.mrf.mxu0
      %v2077 = vadd.f32 0.0, %v2076
      %2078 = vmatmul.bf16.gmra.mxu0 %v2019
      %v2079 = vpop.f32.mrf.mxu0
      %v2080 = vadd.f32 0.0, %v2079
      %v2081 = vpop.f32.mrf.mxu0
      %v2082 = vadd.f32 0.0, %v2081
      %2083 = vmatmul.bf16.gmra.mxu0 %v2022
      %v2084 = vpop.f32.mrf.mxu0
      %v2085 = vadd.f32 0.0, %v2084
      %v2086 = vpop.f32.mrf.mxu0
      %v2087 = vadd.f32 0.0, %v2086
      %2088 = vmatmul.bf16.gmra.mxu0 %v2025
      %v2089 = vpop.f32.mrf.mxu0
      %v2090 = vadd.f32 0.0, %v2089
      %v2091 = vpop.f32.mrf.mxu0
      %v2092 = vadd.f32 0.0, %v2091
      %2093 = vmatmul.bf16.gmra.mxu0 %v2028
      %v2094 = vpop.f32.mrf.mxu0
      %v2095 = vadd.f32 0.0, %v2094
      %v2096 = vpop.f32.mrf.mxu0
      %v2097 = vadd.f32 0.0, %v2096
      %2098 = vmatmul.bf16.gmra.mxu0 %v2031
      %v2099 = vpop.f32.mrf.mxu0
      %v2100 = vadd.f32 0.0, %v2099
      %v2101 = vpop.f32.mrf.mxu0
      %v2102 = vadd.f32 0.0, %v2101
      %2103 = vmatmul.bf16.gmra.mxu0 %v2034
      %v2104 = vpop.f32.mrf.mxu0
      %v2105 = vadd.f32 0.0, %v2104
      %v2106 = vpop.f32.mrf.mxu0
      %v2107 = vadd.f32 0.0, %v2106
      %2108 = vmatmul.bf16.gmra.mxu0 %v2037
      %v2109 = vpop.f32.mrf.mxu0
      %v2110 = vadd.f32 0.0, %v2109
      %v2111 = vpop.f32.mrf.mxu0
      %v2112 = vadd.f32 0.0, %v2111
      %2113 = vmatmul.bf16.gmra.mxu0 %v2040
      %v2114 = vpop.f32.mrf.mxu0
      %v2115 = vadd.f32 0.0, %v2114
      %v2116 = vpop.f32.mrf.mxu0
      %v2117 = vadd.f32 0.0, %v2116
      %2118 = vmatmul.bf16.gmra.mxu0 %v2043
      %v2119 = vpop.f32.mrf.mxu0
      %v2120 = vadd.f32 0.0, %v2119
      %v2121 = vpop.f32.mrf.mxu0
      %v2122 = vadd.f32 0.0, %v2121
      %2123 = vmatmul.bf16.gmra.mxu0 %v2046
      %v2124 = vpop.f32.mrf.mxu0
      %v2125 = vadd.f32 0.0, %v2124
      %v2126 = vpop.f32.mrf.mxu0
      %v2127 = vadd.f32 0.0, %v2126
      %2128 = vmatmul.bf16.gmra.mxu0 %v2049
      %v2129 = vpop.f32.mrf.mxu0
      %v2130 = vadd.f32 0.0, %v2129
      %v2131 = vpop.f32.mrf.mxu0
      %v2132 = vadd.f32 0.0, %v2131
      %2133 = vdwg.mxu0
      %2134 = vmatpush.bf16.msra.mxu0 0
      %2135 = vmatpush.bf16.msra.mxu0 0
      %2136 = vmatpush.bf16.msra.mxu0 0
      %2137 = vmatpush.bf16.msra.mxu0 0
      %2138 = vmatpush.bf16.msra.mxu0 %v2055
      %2139 = vmatpush.bf16.msra.mxu0 %v1998
      %2140 = vmatpush.bf16.msra.mxu0 %v1995
      %2141 = vmatpush.bf16.msra.mxu0 %v1992
      %2142 = vmatmul.bf16.gmra.mxu0 %v2013
      %v2143 = vpop.f32.mrf.mxu0
      %v2144 = vadd.f32 0.0, %v2143
      %v2145 = vpop.f32.mrf.mxu0
      %v2146 = vadd.f32 0.0, %v2145
      %2147 = vmatmul.bf16.gmra.mxu0 %v2016
      %v2148 = vpop.f32.mrf.mxu0
      %v2149 = vadd.f32 0.0, %v2148
      %v2150 = vpop.f32.mrf.mxu0
      %v2151 = vadd.f32 0.0, %v2150
      %2152 = vmatmul.bf16.gmra.mxu0 %v2019
      %v2153 = vpop.f32.mrf.mxu0
      %v2154 = vadd.f32 0.0, %v2153
      %v2155 = vpop.f32.mrf.mxu0
      %v2156 = vadd.f32 0.0, %v2155
      %2157 = vmatmul.bf16.gmra.mxu0 %v2022
      %v2158 = vpop.f32.mrf.mxu0
      %v2159 = vadd.f32 0.0, %v2158
      %v2160 = vpop.f32.mrf.mxu0
      %v2161 = vadd.f32 0.0, %v2160
      %2162 = vmatmul.bf16.gmra.mxu0 %v2025
      %v2163 = vpop.f32.mrf.mxu0
      %v2164 = vadd.f32 0.0, %v2163
      %v2165 = vpop.f32.mrf.mxu0
      %v2166 = vadd.f32 0.0, %v2165
      %2167 = vmatmul.bf16.gmra.mxu0 %v2028
      %v2168 = vpop.f32.mrf.mxu0
      %v2169 = vadd.f32 0.0, %v2168
      %v2170 = vpop.f32.mrf.mxu0
      %v2171 = vadd.f32 0.0, %v2170
      %2172 = vmatmul.bf16.gmra.mxu0 %v2031
      %v2173 = vpop.f32.mrf.mxu0
      %v2174 = vadd.f32 0.0, %v2173
      %v2175 = vpop.f32.mrf.mxu0
      %v2176 = vadd.f32 0.0, %v2175
      %2177 = vmatmul.bf16.gmra.mxu0 %v2034
      %v2178 = vpop.f32.mrf.mxu0
      %v2179 = vadd.f32 0.0, %v2178
      %v2180 = vpop.f32.mrf.mxu0
      %v2181 = vadd.f32 0.0, %v2180
      %2182 = vmatmul.bf16.gmra.mxu0 %v2037
      %v2183 = vpop.f32.mrf.mxu0
      %v2184 = vadd.f32 0.0, %v2183
      %v2185 = vpop.f32.mrf.mxu0
      %v2186 = vadd.f32 0.0, %v2185
      %2187 = vmatmul.bf16.gmra.mxu0 %v2040
      %v2188 = vpop.f32.mrf.mxu0
      %v2189 = vadd.f32 0.0, %v2188
      %v2190 = vpop.f32.mrf.mxu0
      %v2191 = vadd.f32 0.0, %v2190
      %2192 = vmatmul.bf16.gmra.mxu0 %v2043
      %v2193 = vpop.f32.mrf.mxu0
      %v2194 = vadd.f32 0.0, %v2193
      %v2195 = vpop.f32.mrf.mxu0
      %v2196 = vadd.f32 0.0, %v2195
      %2197 = vmatmul.bf16.gmra.mxu0 %v2046
      %v2198 = vpop.f32.mrf.mxu0
      %v2199 = vadd.f32 0.0, %v2198
      %v2200 = vpop.f32.mrf.mxu0
      %v2201 = vadd.f32 0.0, %v2200
      %2202 = vmatmul.bf16.gmra.mxu0 %v2049
      %v2203 = vpop.f32.mrf.mxu0
      %v2204 = vadd.f32 0.0, %v2203
      %v2205 = vpop.f32.mrf.mxu0
      %v2206 = vadd.f32 0.0, %v2205
      %2207 = vdwg.mxu0
      %2208 = vmatpush.bf16.msra.mxu0 0
      %2209 = vmatpush.bf16.msra.mxu0 0
      %2210 = vmatpush.bf16.msra.mxu0 0
      %2211 = vmatpush.bf16.msra.mxu0 0
      %2212 = vmatpush.bf16.msra.mxu0 %v2058
      %2213 = vmatpush.bf16.msra.mxu0 %v1999
      %2214 = vmatpush.bf16.msra.mxu0 %v1996
      %2215 = vmatpush.bf16.msra.mxu0 %v1993
      %2216 = vmatmul.bf16.gmra.mxu0 %v2013
      %v2217 = vpop.f32.mrf.mxu0
      %v2218 = vadd.f32 0.0, %v2217
      %v2219 = vpop.f32.mrf.mxu0
      %v2220 = vadd.f32 0.0, %v2219
      %2221 = vmatmul.bf16.gmra.mxu0 %v2016
      %v2222 = vpop.f32.mrf.mxu0
      %v2223 = vadd.f32 0.0, %v2222
      %v2224 = vpop.f32.mrf.mxu0
      %v2225 = vadd.f32 0.0, %v2224
      %2226 = vmatmul.bf16.gmra.mxu0 %v2019
      %v2227 = vpop.f32.mrf.mxu0
      %v2228 = vadd.f32 0.0, %v2227
      %v2229 = vpop.f32.mrf.mxu0
      %v2230 = vadd.f32 0.0, %v2229
      %2231 = vmatmul.bf16.gmra.mxu0 %v2022
      %v2232 = vpop.f32.mrf.mxu0
      %v2233 = vadd.f32 0.0, %v2232
      %v2234 = vpop.f32.mrf.mxu0
      %v2235 = vadd.f32 0.0, %v2234
      %2236 = vmatmul.bf16.gmra.mxu0 %v2025
      %v2237 = vpop.f32.mrf.mxu0
      %v2238 = vadd.f32 0.0, %v2237
      %v2239 = vpop.f32.mrf.mxu0
      %v2240 = vadd.f32 0.0, %v2239
      %2241 = vmatmul.bf16.gmra.mxu0 %v2028
      %v2242 = vpop.f32.mrf.mxu0
      %v2243 = vadd.f32 0.0, %v2242
      %v2244 = vpop.f32.mrf.mxu0
      %v2245 = vadd.f32 0.0, %v2244
      %2246 = vmatmul.bf16.gmra.mxu0 %v2031
      %v2247 = vpop.f32.mrf.mxu0
      %v2248 = vadd.f32 0.0, %v2247
      %v2249 = vpop.f32.mrf.mxu0
      %v2250 = vadd.f32 0.0, %v2249
      %2251 = vmatmul.bf16.gmra.mxu0 %v2034
      %v2252 = vpop.f32.mrf.mxu0
      %v2253 = vadd.f32 0.0, %v2252
      %v2254 = vpop.f32.mrf.mxu0
      %v2255 = vadd.f32 0.0, %v2254
      %2256 = vmatmul.bf16.gmra.mxu0 %v2037
      %v2257 = vpop.f32.mrf.mxu0
      %v2258 = vadd.f32 0.0, %v2257
      %v2259 = vpop.f32.mrf.mxu0
      %v2260 = vadd.f32 0.0, %v2259
      %2261 = vmatmul.bf16.gmra.mxu0 %v2040
      %v2262 = vpop.f32.mrf.mxu0
      %v2263 = vadd.f32 0.0, %v2262
      %v2264 = vpop.f32.mrf.mxu0
      %v2265 = vadd.f32 0.0, %v2264
      %2266 = vmatmul.bf16.gmra.mxu0 %v2043
      %v2267 = vpop.f32.mrf.mxu0
      %v2268 = vadd.f32 0.0, %v2267
      %v2269 = vpop.f32.mrf.mxu0
      %v2270 = vadd.f32 0.0, %v2269
      %2271 = vmatmul.bf16.gmra.mxu0 %v2046
      %v2272 = vpop.f32.mrf.mxu0
      %v2273 = vadd.f32 0.0, %v2272
      %v2274 = vpop.f32.mrf.mxu0
      %v2275 = vadd.f32 0.0, %v2274
      %2276 = vmatmul.bf16.gmra.mxu0 %v2049
      %v2277 = vpop.f32.mrf.mxu0
      %v2278 = vadd.f32 0.0, %v2277
      %v2279 = vpop.f32.mrf.mxu0
      %v2280 = vadd.f32 0.0, %v2279
      %2281 = vdwg.mxu0
      %v2282 = vadd.f32 %v1739, %v2070
      %v2283 = vadd.f32 %v1740, %v2144
      %v2284 = vadd.f32 %v1741, %v2218
      %v2285 = vadd.f32 %v1742, %v2072
      %v2286 = vadd.f32 %v1743, %v2146
      %v2287 = vadd.f32 %v1744, %v2220
      %v2288 = vadd.f32 %v1745, %v2075
      %v2289 = vadd.f32 %v1746, %v2149
      %v2290 = vadd.f32 %v1747, %v2223
      %v2291 = vadd.f32 %v1748, %v2077
      %v2292 = vadd.f32 %v1749, %v2151
      %v2293 = vadd.f32 %v1750, %v2225
      %v2294 = vadd.f32 %v1751, %v2080
      %v2295 = vadd.f32 %v1752, %v2154
      %v2296 = vadd.f32 %v1753, %v2228
      %v2297 = vadd.f32 %v1754, %v2082
      %v2298 = vadd.f32 %v1755, %v2156
      %v2299 = vadd.f32 %v1756, %v2230
      %v2300 = vadd.f32 %v1757, %v2085
      %v2301 = vadd.f32 %v1758, %v2159
      %v2302 = vadd.f32 %v1759, %v2233
      %v2303 = vadd.f32 %v1760, %v2087
      %v2304 = vadd.f32 %v1761, %v2161
      %v2305 = vadd.f32 %v1762, %v2235
      %v2306 = vadd.f32 %v1763, %v2090
      %v2307 = vadd.f32 %v1764, %v2164
      %v2308 = vadd.f32 %v1765, %v2238
      %v2309 = vadd.f32 %v1766, %v2092
      %v2310 = vadd.f32 %v1767, %v2166
      %v2311 = vadd.f32 %v1768, %v2240
      %v2312 = vadd.f32 %v1769, %v2095
      %v2313 = vadd.f32 %v1770, %v2169
      %v2314 = vadd.f32 %v1771, %v2243
      %v2315 = vadd.f32 %v1772, %v2097
      %v2316 = vadd.f32 %v1773, %v2171
      %v2317 = vadd.f32 %v1774, %v2245
      %v2318 = vadd.f32 %v1775, %v2100
      %v2319 = vadd.f32 %v1776, %v2174
      %v2320 = vadd.f32 %v1777, %v2248
      %v2321 = vadd.f32 %v1778, %v2102
      %v2322 = vadd.f32 %v1779, %v2176
      %v2323 = vadd.f32 %v1780, %v2250
      %v2324 = vadd.f32 %v1781, %v2105
      %v2325 = vadd.f32 %v1782, %v2179
      %v2326 = vadd.f32 %v1783, %v2253
      %v2327 = vadd.f32 %v1784, %v2107
      %v2328 = vadd.f32 %v1785, %v2181
      %v2329 = vadd.f32 %v1786, %v2255
      %v2330 = vadd.f32 %v1787, %v2110
      %v2331 = vadd.f32 %v1788, %v2184
      %v2332 = vadd.f32 %v1789, %v2258
      %v2333 = vadd.f32 %v1790, %v2112
      %v2334 = vadd.f32 %v1791, %v2186
      %v2335 = vadd.f32 %v1792, %v2260
      %v2336 = vadd.f32 %v1793, %v2115
      %v2337 = vadd.f32 %v1794, %v2189
      %v2338 = vadd.f32 %v1795, %v2263
      %v2339 = vadd.f32 %v1796, %v2117
      %v2340 = vadd.f32 %v1797, %v2191
      %v2341 = vadd.f32 %v1798, %v2265
      %v2342 = vadd.f32 %v1799, %v2120
      %v2343 = vadd.f32 %v1800, %v2194
      %v2344 = vadd.f32 %v1801, %v2268
      %v2345 = vadd.f32 %v1802, %v2122
      %v2346 = vadd.f32 %v1803, %v2196
      %v2347 = vadd.f32 %v1804, %v2270
      %v2348 = vadd.f32 %v1805, %v2125
      %v2349 = vadd.f32 %v1806, %v2199
      %v2350 = vadd.f32 %v1807, %v2273
      %v2351 = vadd.f32 %v1808, %v2127
      %v2352 = vadd.f32 %v1809, %v2201
      %v2353 = vadd.f32 %v1810, %v2275
      %v2354 = vadd.f32 %v1811, %v2130
      %v2355 = vadd.f32 %v1812, %v2204
      %v2356 = vadd.f32 %v1813, %v2278
      %v2357 = vadd.f32 %v1814, %v2132
      %v2358 = vadd.f32 %v1815, %v2206
      %v2359 = vadd.f32 %v1816, %v2280
      %2360 = vst [vmem:[#allocation2] sm:$0xff] %v2282
      %2361 = vst [vmem:[#allocation2 + $0x8] sm:$0xff] %v2283
      %2362 = vst.msk [vmem:[#allocation2 + $0x10] sm:$0xff] %vm884, %v2284
      %2363 = vst [vmem:[#allocation2 + $0x18] sm:$0xff] %v2285
      %2364 = vst [vmem:[#allocation2 + $0x20] sm:$0xff] %v2286
      %2365 = vst.msk [vmem:[#allocation2 + $0x28] sm:$0xff] %vm884, %v2287
      %2366 = vst [vmem:[#allocation2 + $0x30] sm:$0xff] %v2288
      %2367 = vst [vmem:[#allocation2 + $0x38] sm:$0xff] %v2289
      %2368 = vst.msk [vmem:[#allocation2 + $0x40] sm:$0xff] %vm884, %v2290
      %2369 = vst [vmem:[#allocation2 + $0x48] sm:$0xff] %v2291
      %2370 = vst [vmem:[#allocation2 + $0x50] sm:$0xff] %v2292
      %2371 = vst.msk [vmem:[#allocation2 + $0x58] sm:$0xff] %vm884, %v2293
      %2372 = vst [vmem:[#allocation2 + $0x60] sm:$0xff] %v2294
      %2373 = vst [vmem:[#allocation2 + $0x68] sm:$0xff] %v2295
      %2374 = vst.msk [vmem:[#allocation2 + $0x70] sm:$0xff] %vm884, %v2296
      %2375 = vst [vmem:[#allocation2 + $0x78] sm:$0xff] %v2297
      %2376 = vst [vmem:[#allocation2 + $0x80] sm:$0xff] %v2298
      %2377 = vst.msk [vmem:[#allocation2 + $0x88] sm:$0xff] %vm884, %v2299
      %2378 = vst [vmem:[#allocation2 + $0x90] sm:$0xff] %v2300
      %2379 = vst [vmem:[#allocation2 + $0x98] sm:$0xff] %v2301
      %2380 = vst.msk [vmem:[#allocation2 + $0xa0] sm:$0xff] %vm884, %v2302
      %2381 = vst [vmem:[#allocation2 + $0xa8] sm:$0xff] %v2303
      %2382 = vst [vmem:[#allocation2 + $0xb0] sm:$0xff] %v2304
      %2383 = vst.msk [vmem:[#allocation2 + $0xb8] sm:$0xff] %vm884, %v2305
      %2384 = vst [vmem:[#allocation2 + $0xc0] sm:$0xff] %v2306
      %2385 = vst [vmem:[#allocation2 + $0xc8] sm:$0xff] %v2307
      %2386 = vst.msk [vmem:[#allocation2 + $0xd0] sm:$0xff] %vm884, %v2308
      %2387 = vst [vmem:[#allocation2 + $0xd8] sm:$0xff] %v2309
      %2388 = vst [vmem:[#allocation2 + $0xe0] sm:$0xff] %v2310
      %2389 = vst.msk [vmem:[#allocation2 + $0xe8] sm:$0xff] %vm884, %v2311
      %2390 = vst [vmem:[#allocation2 + $0xf0] sm:$0xff] %v2312
      %2391 = vst [vmem:[#allocation2 + $0xf8] sm:$0xff] %v2313
      %2392 = vst.msk [vmem:[#allocation2 + $0x100] sm:$0xff] %vm884, %v2314
      %2393 = vst [vmem:[#allocation2 + $0x108] sm:$0xff] %v2315
      %2394 = vst [vmem:[#allocation2 + $0x110] sm:$0xff] %v2316
      %2395 = vst.msk [vmem:[#allocation2 + $0x118] sm:$0xff] %vm884, %v2317
      %2396 = vst [vmem:[#allocation2 + $0x120] sm:$0xff] %v2318
      %2397 = vst [vmem:[#allocation2 + $0x128] sm:$0xff] %v2319
      %2398 = vst.msk [vmem:[#allocation2 + $0x130] sm:$0xff] %vm884, %v2320
      %2399 = vst [vmem:[#allocation2 + $0x138] sm:$0xff] %v2321
      %2400 = vst [vmem:[#allocation2 + $0x140] sm:$0xff] %v2322
      %2401 = vst.msk [vmem:[#allocation2 + $0x148] sm:$0xff] %vm884, %v2323
      %2402 = vst [vmem:[#allocation2 + $0x150] sm:$0xff] %v2324
      %2403 = vst [vmem:[#allocation2 + $0x158] sm:$0xff] %v2325
      %2404 = vst.msk [vmem:[#allocation2 + $0x160] sm:$0xff] %vm884, %v2326
      %2405 = vst [vmem:[#allocation2 + $0x168] sm:$0xff] %v2327
      %2406 = vst [vmem:[#allocation2 + $0x170] sm:$0xff] %v2328
      %2407 = vst.msk [vmem:[#allocation2 + $0x178] sm:$0xff] %vm884, %v2329
      %2408 = vst [vmem:[#allocation2 + $0x180] sm:$0xff] %v2330
      %2409 = vst [vmem:[#allocation2 + $0x188] sm:$0xff] %v2331
      %2410 = vst.msk [vmem:[#allocation2 + $0x190] sm:$0xff] %vm884, %v2332
      %2411 = vst [vmem:[#allocation2 + $0x198] sm:$0xff] %v2333
      %2412 = vst [vmem:[#allocation2 + $0x1a0] sm:$0xff] %v2334
      %2413 = vst.msk [vmem:[#allocation2 + $0x1a8] sm:$0xff] %vm884, %v2335
      %2414 = vst [vmem:[#allocation2 + $0x1b0] sm:$0xff] %v2336
      %2415 = vst [vmem:[#allocation2 + $0x1b8] sm:$0xff] %v2337
      %2416 = vst.msk [vmem:[#allocation2 + $0x1c0] sm:$0xff] %vm884, %v2338
      %2417 = vst [vmem:[#allocation2 + $0x1c8] sm:$0xff] %v2339
      %2418 = vst [vmem:[#allocation2 + $0x1d0] sm:$0xff] %v2340
      %2419 = vst.msk [vmem:[#allocation2 + $0x1d8] sm:$0xff] %vm884, %v2341
      %2420 = vst [vmem:[#allocation2 + $0x1e0] sm:$0xff] %v2342
      %2421 = vst [vmem:[#allocation2 + $0x1e8] sm:$0xff] %v2343
      %2422 = vst.msk [vmem:[#allocation2 + $0x1f0] sm:$0xff] %vm884, %v2344
      %2423 = vst [vmem:[#allocation2 + $0x1f8] sm:$0xff] %v2345
      %2424 = vst [vmem:[#allocation2 + $0x200] sm:$0xff] %v2346
      %2425 = vst.msk [vmem:[#allocation2 + $0x208] sm:$0xff] %vm884, %v2347
      %2426 = vst [vmem:[#allocation2 + $0x210] sm:$0xff] %v2348
      %2427 = vst [vmem:[#allocation2 + $0x218] sm:$0xff] %v2349
      %2428 = vst.msk [vmem:[#allocation2 + $0x220] sm:$0xff] %vm884, %v2350
      %2429 = vst [vmem:[#allocation2 + $0x228] sm:$0xff] %v2351
      %2430 = vst [vmem:[#allocation2 + $0x230] sm:$0xff] %v2352
      %2431 = vst.msk [vmem:[#allocation2 + $0x238] sm:$0xff] %vm884, %v2353
      %2432 = vst [vmem:[#allocation2 + $0x240] sm:$0xff] %v2354
      %2433 = vst [vmem:[#allocation2 + $0x248] sm:$0xff] %v2355
      %2434 = vst.msk [vmem:[#allocation2 + $0x250] sm:$0xff] %vm884, %v2356
      %2435 = vst [vmem:[#allocation2 + $0x258] sm:$0x3f] %v2357
      %2436 = vst [vmem:[#allocation2 + $0x260] sm:$0x3f] %v2358
      %2437 = vst.msk [vmem:[#allocation2 + $0x268] sm:$0x3f] %vm960, %v2359
      %v2438 = vld [vmem:[#allocation2] sm:$0xff]
      %v2439 = vld [vmem:[#allocation2 + $0x8] sm:$0xff]
      %v2440 = vld [vmem:[#allocation2 + $0x10] sm:$0xff]
      %v2441 = vld [vmem:[#allocation2 + $0x18] sm:$0xff]
      %v2442 = vld [vmem:[#allocation2 + $0x20] sm:$0xff]
      %v2443 = vld [vmem:[#allocation2 + $0x28] sm:$0xff]
      %v2444 = vld [vmem:[#allocation2 + $0x30] sm:$0xff]
      %v2445 = vld [vmem:[#allocation2 + $0x38] sm:$0xff]
      %v2446 = vld [vmem:[#allocation2 + $0x40] sm:$0xff]
      %v2447 = vld [vmem:[#allocation2 + $0x48] sm:$0xff]
      %v2448 = vld [vmem:[#allocation2 + $0x50] sm:$0xff]
      %v2449 = vld [vmem:[#allocation2 + $0x58] sm:$0xff]
      %v2450 = vld [vmem:[#allocation2 + $0x60] sm:$0xff]
      %v2451 = vld [vmem:[#allocation2 + $0x68] sm:$0xff]
      %v2452 = vld [vmem:[#allocation2 + $0x70] sm:$0xff]
      %v2453 = vld [vmem:[#allocation2 + $0x78] sm:$0xff]
      %v2454 = vld [vmem:[#allocation2 + $0x80] sm:$0xff]
      %v2455 = vld [vmem:[#allocation2 + $0x88] sm:$0xff]
      %v2456 = vld [vmem:[#allocation2 + $0x90] sm:$0xff]
      %v2457 = vld [vmem:[#allocation2 + $0x98] sm:$0xff]
      %v2458 = vld [vmem:[#allocation2 + $0xa0] sm:$0xff]
      %v2459 = vld [vmem:[#allocation2 + $0xa8] sm:$0xff]
      %v2460 = vld [vmem:[#allocation2 + $0xb0] sm:$0xff]
      %v2461 = vld [vmem:[#allocation2 + $0xb8] sm:$0xff]
      %v2462 = vld [vmem:[#allocation2 + $0xc0] sm:$0xff]
      %v2463 = vld [vmem:[#allocation2 + $0xc8] sm:$0xff]
      %v2464 = vld [vmem:[#allocation2 + $0xd0] sm:$0xff]
      %v2465 = vld [vmem:[#allocation2 + $0xd8] sm:$0xff]
      %v2466 = vld [vmem:[#allocation2 + $0xe0] sm:$0xff]
      %v2467 = vld [vmem:[#allocation2 + $0xe8] sm:$0xff]
      %v2468 = vld [vmem:[#allocation2 + $0xf0] sm:$0xff]
      %v2469 = vld [vmem:[#allocation2 + $0xf8] sm:$0xff]
      %v2470 = vld [vmem:[#allocation2 + $0x100] sm:$0xff]
      %v2471 = vld [vmem:[#allocation2 + $0x108] sm:$0xff]
      %v2472 = vld [vmem:[#allocation2 + $0x110] sm:$0xff]
      %v2473 = vld [vmem:[#allocation2 + $0x118] sm:$0xff]
      %v2474 = vld [vmem:[#allocation2 + $0x120] sm:$0xff]
      %v2475 = vld [vmem:[#allocation2 + $0x128] sm:$0xff]
      %v2476 = vld [vmem:[#allocation2 + $0x130] sm:$0xff]
      %v2477 = vld [vmem:[#allocation2 + $0x138] sm:$0xff]
      %v2478 = vld [vmem:[#allocation2 + $0x140] sm:$0xff]
      %v2479 = vld [vmem:[#allocation2 + $0x148] sm:$0xff]
      %v2480 = vld [vmem:[#allocation2 + $0x150] sm:$0xff]
      %v2481 = vld [vmem:[#allocation2 + $0x158] sm:$0xff]
      %v2482 = vld [vmem:[#allocation2 + $0x160] sm:$0xff]
      %v2483 = vld [vmem:[#allocation2 + $0x168] sm:$0xff]
      %v2484 = vld [vmem:[#allocation2 + $0x170] sm:$0xff]
      %v2485 = vld [vmem:[#allocation2 + $0x178] sm:$0xff]
      %v2486 = vld [vmem:[#allocation2 + $0x180] sm:$0xff]
      %v2487 = vld [vmem:[#allocation2 + $0x188] sm:$0xff]
      %v2488 = vld [vmem:[#allocation2 + $0x190] sm:$0xff]
      %v2489 = vld [vmem:[#allocation2 + $0x198] sm:$0xff]
      %v2490 = vld [vmem:[#allocation2 + $0x1a0] sm:$0xff]
      %v2491 = vld [vmem:[#allocation2 + $0x1a8] sm:$0xff]
      %v2492 = vld [vmem:[#allocation2 + $0x1b0] sm:$0xff]
      %v2493 = vld [vmem:[#allocation2 + $0x1b8] sm:$0xff]
      %v2494 = vld [vmem:[#allocation2 + $0x1c0] sm:$0xff]
      %v2495 = vld [vmem:[#allocation2 + $0x1c8] sm:$0xff]
      %v2496 = vld [vmem:[#allocation2 + $0x1d0] sm:$0xff]
      %v2497 = vld [vmem:[#allocation2 + $0x1d8] sm:$0xff]
      %v2498 = vld [vmem:[#allocation2 + $0x1e0] sm:$0xff]
      %v2499 = vld [vmem:[#allocation2 + $0x1e8] sm:$0xff]
      %v2500 = vld [vmem:[#allocation2 + $0x1f0] sm:$0xff]
      %v2501 = vld [vmem:[#allocation2 + $0x1f8] sm:$0xff]
      %v2502 = vld [vmem:[#allocation2 + $0x200] sm:$0xff]
      %v2503 = vld [vmem:[#allocation2 + $0x208] sm:$0xff]
      %v2504 = vld [vmem:[#allocation2 + $0x210] sm:$0xff]
      %v2505 = vld [vmem:[#allocation2 + $0x218] sm:$0xff]
      %v2506 = vld [vmem:[#allocation2 + $0x220] sm:$0xff]
      %v2507 = vld [vmem:[#allocation2 + $0x228] sm:$0xff]
      %v2508 = vld [vmem:[#allocation2 + $0x230] sm:$0xff]
      %v2509 = vld [vmem:[#allocation2 + $0x238] sm:$0xff]
      %v2510 = vld [vmem:[#allocation2 + $0x240] sm:$0xff]
      %v2511 = vld [vmem:[#allocation2 + $0x248] sm:$0xff]
      %v2512 = vld [vmem:[#allocation2 + $0x250] sm:$0xff]
      %v2513 = vld [vmem:[#allocation2 + $0x258] sm:$0x3f]
      %v2514 = vld [vmem:[#allocation2 + $0x260] sm:$0x3f]
      %v2515 = vld [vmem:[#allocation2 + $0x268] sm:$0x3f]
      %v2516 = vld [vmem:[%s2] sm:$0x7]
      %v2518 = vperm.slane %v2516, 0
      %v2519 = vperm.slane %v2516, 1
      %v2520 = vperm.slane %v2516, 2
      %v2524 = vadd.f32 %v2438, %v2518
      %v2525 = vadd.f32 %v2439, %v2519
      %v2526 = vadd.f32 %v2440, %v2520
      %v2527 = vadd.f32 %v2441, %v2518
      %v2528 = vadd.f32 %v2442, %v2519
      %v2529 = vadd.f32 %v2443, %v2520
      %v2530 = vadd.f32 %v2444, %v2518
      %v2531 = vadd.f32 %v2445, %v2519
      %v2532 = vadd.f32 %v2446, %v2520
      %v2533 = vadd.f32 %v2447, %v2518
      %v2534 = vadd.f32 %v2448, %v2519
      %v2535 = vadd.f32 %v2449, %v2520
      %v2536 = vadd.f32 %v2450, %v2518
      %v2537 = vadd.f32 %v2451, %v2519
      %v2538 = vadd.f32 %v2452, %v2520
      %v2539 = vadd.f32 %v2453, %v2518
      %v2540 = vadd.f32 %v2454, %v2519
      %v2541 = vadd.f32 %v2455, %v2520
      %v2542 = vadd.f32 %v2456, %v2518
      %v2543 = vadd.f32 %v2457, %v2519
      %v2544 = vadd.f32 %v2458, %v2520
      %v2545 = vadd.f32 %v2459, %v2518
      %v2546 = vadd.f32 %v2460, %v2519
      %v2547 = vadd.f32 %v2461, %v2520
      %v2548 = vadd.f32 %v2462, %v2518
      %v2549 = vadd.f32 %v2463, %v2519
      %v2550 = vadd.f32 %v2464, %v2520
      %v2551 = vadd.f32 %v2465, %v2518
      %v2552 = vadd.f32 %v2466, %v2519
      %v2553 = vadd.f32 %v2467, %v2520
      %v2554 = vadd.f32 %v2468, %v2518
      %v2555 = vadd.f32 %v2469, %v2519
      %v2556 = vadd.f32 %v2470, %v2520
      %v2557 = vadd.f32 %v2471, %v2518
      %v2558 = vadd.f32 %v2472, %v2519
      %v2559 = vadd.f32 %v2473, %v2520
      %v2560 = vadd.f32 %v2474, %v2518
      %v2561 = vadd.f32 %v2475, %v2519
      %v2562 = vadd.f32 %v2476, %v2520
      %v2563 = vadd.f32 %v2477, %v2518
      %v2564 = vadd.f32 %v2478, %v2519
      %v2565 = vadd.f32 %v2479, %v2520
      %v2566 = vadd.f32 %v2480, %v2518
      %v2567 = vadd.f32 %v2481, %v2519
      %v2568 = vadd.f32 %v2482, %v2520
      %v2569 = vadd.f32 %v2483, %v2518
      %v2570 = vadd.f32 %v2484, %v2519
      %v2571 = vadd.f32 %v2485, %v2520
      %v2572 = vadd.f32 %v2486, %v2518
      %v2573 = vadd.f32 %v2487, %v2519
      %v2574 = vadd.f32 %v2488, %v2520
      %v2575 = vadd.f32 %v2489, %v2518
      %v2576 = vadd.f32 %v2490, %v2519
      %v2577 = vadd.f32 %v2491, %v2520
      %v2578 = vadd.f32 %v2492, %v2518
      %v2579 = vadd.f32 %v2493, %v2519
      %v2580 = vadd.f32 %v2494, %v2520
      %v2581 = vadd.f32 %v2495, %v2518
      %v2582 = vadd.f32 %v2496, %v2519
      %v2583 = vadd.f32 %v2497, %v2520
      %v2584 = vadd.f32 %v2498, %v2518
      %v2585 = vadd.f32 %v2499, %v2519
      %v2586 = vadd.f32 %v2500, %v2520
      %v2587 = vadd.f32 %v2501, %v2518
      %v2588 = vadd.f32 %v2502, %v2519
      %v2589 = vadd.f32 %v2503, %v2520
      %v2590 = vadd.f32 %v2504, %v2518
      %v2591 = vadd.f32 %v2505, %v2519
      %v2592 = vadd.f32 %v2506, %v2520
      %v2593 = vadd.f32 %v2507, %v2518
      %v2594 = vadd.f32 %v2508, %v2519
      %v2595 = vadd.f32 %v2509, %v2520
      %v2596 = vadd.f32 %v2510, %v2518
      %v2597 = vadd.f32 %v2511, %v2519
      %v2598 = vadd.f32 %v2512, %v2520
      %v2599 = vadd.f32 %v2513, %v2518
      %v2600 = vadd.f32 %v2514, %v2519
      %v2601 = vadd.f32 %v2515, %v2520
      %v2602 = vxor.u32 %v2524, 2147483648
      %v2603 = vxor.u32 %v2525, 2147483648
      %v2604 = vxor.u32 %v2526, 2147483648
      %v2605 = vxor.u32 %v2527, 2147483648
      %v2606 = vxor.u32 %v2528, 2147483648
      %v2607 = vxor.u32 %v2529, 2147483648
      %v2608 = vxor.u32 %v2530, 2147483648
      %v2609 = vxor.u32 %v2531, 2147483648
      %v2610 = vxor.u32 %v2532, 2147483648
      %v2611 = vxor.u32 %v2533, 2147483648
      %v2612 = vxor.u32 %v2534, 2147483648
      %v2613 = vxor.u32 %v2535, 2147483648
      %v2614 = vxor.u32 %v2536, 2147483648
      %v2615 = vxor.u32 %v2537, 2147483648
      %v2616 = vxor.u32 %v2538, 2147483648
      %v2617 = vxor.u32 %v2539, 2147483648
      %v2618 = vxor.u32 %v2540, 2147483648
      %v2619 = vxor.u32 %v2541, 2147483648
      %v2620 = vxor.u32 %v2542, 2147483648
      %v2621 = vxor.u32 %v2543, 2147483648
      %v2622 = vxor.u32 %v2544, 2147483648
      %v2623 = vxor.u32 %v2545, 2147483648
      %v2624 = vxor.u32 %v2546, 2147483648
      %v2625 = vxor.u32 %v2547, 2147483648
      %v2626 = vxor.u32 %v2548, 2147483648
      %v2627 = vxor.u32 %v2549, 2147483648
      %v2628 = vxor.u32 %v2550, 2147483648
      %v2629 = vxor.u32 %v2551, 2147483648
      %v2630 = vxor.u32 %v2552, 2147483648
      %v2631 = vxor.u32 %v2553, 2147483648
      %v2632 = vxor.u32 %v2554, 2147483648
      %v2633 = vxor.u32 %v2555, 2147483648
      %v2634 = vxor.u32 %v2556, 2147483648
      %v2635 = vxor.u32 %v2557, 2147483648
      %v2636 = vxor.u32 %v2558, 2147483648
      %v2637 = vxor.u32 %v2559, 2147483648
      %v2638 = vxor.u32 %v2560, 2147483648
      %v2639 = vxor.u32 %v2561, 2147483648
      %v2640 = vxor.u32 %v2562, 2147483648
      %v2641 = vxor.u32 %v2563, 2147483648
      %v2642 = vxor.u32 %v2564, 2147483648
      %v2643 = vxor.u32 %v2565, 2147483648
      %v2644 = vxor.u32 %v2566, 2147483648
      %v2645 = vxor.u32 %v2567, 2147483648
      %v2646 = vxor.u32 %v2568, 2147483648
      %v2647 = vxor.u32 %v2569, 2147483648
      %v2648 = vxor.u32 %v2570, 2147483648
      %v2649 = vxor.u32 %v2571, 2147483648
      %v2650 = vxor.u32 %v2572, 2147483648
      %v2651 = vxor.u32 %v2573, 2147483648
      %v2652 = vxor.u32 %v2574, 2147483648
      %v2653 = vxor.u32 %v2575, 2147483648
      %v2654 = vxor.u32 %v2576, 2147483648
      %v2655 = vxor.u32 %v2577, 2147483648
      %v2656 = vxor.u32 %v2578, 2147483648
      %v2657 = vxor.u32 %v2579, 2147483648
      %v2658 = vxor.u32 %v2580, 2147483648
      %v2659 = vxor.u32 %v2581, 2147483648
      %v2660 = vxor.u32 %v2582, 2147483648
      %v2661 = vxor.u32 %v2583, 2147483648
      %v2662 = vxor.u32 %v2584, 2147483648
      %v2663 = vxor.u32 %v2585, 2147483648
      %v2664 = vxor.u32 %v2586, 2147483648
      %v2665 = vxor.u32 %v2587, 2147483648
      %v2666 = vxor.u32 %v2588, 2147483648
      %v2667 = vxor.u32 %v2589, 2147483648
      %v2668 = vxor.u32 %v2590, 2147483648
      %v2669 = vxor.u32 %v2591, 2147483648
      %v2670 = vxor.u32 %v2592, 2147483648
      %v2671 = vxor.u32 %v2593, 2147483648
      %v2672 = vxor.u32 %v2594, 2147483648
      %v2673 = vxor.u32 %v2595, 2147483648
      %v2674 = vxor.u32 %v2596, 2147483648
      %v2675 = vxor.u32 %v2597, 2147483648
      %v2676 = vxor.u32 %v2598, 2147483648
      %v2677 = vxor.u32 %v2599, 2147483648
      %v2678 = vxor.u32 %v2600, 2147483648
      %v2679 = vxor.u32 %v2601, 2147483648
      %v2680 = vmul.f32 %v2602, 1.442695
      %v2681 = vpow.pop %v2680
      %v2682 = vmul.f32 %v2603, 1.442695
      %v2683 = vpow.pop %v2682
      %v2684 = vmul.f32 %v2604, 1.442695
      %v2685 = vpow.pop %v2684
      %v2686 = vmul.f32 %v2605, 1.442695
      %v2687 = vpow.pop %v2686
      %v2688 = vmul.f32 %v2606, 1.442695
      %v2689 = vpow.pop %v2688
      %v2690 = vmul.f32 %v2607, 1.442695
      %v2691 = vpow.pop %v2690
      %v2692 = vmul.f32 %v2608, 1.442695
      %v2693 = vpow.pop %v2692
      %v2694 = vmul.f32 %v2609, 1.442695
      %v2695 = vpow.pop %v2694
      %v2696 = vmul.f32 %v2610, 1.442695
      %v2697 = vpow.pop %v2696
      %v2698 = vmul.f32 %v2611, 1.442695
      %v2699 = vpow.pop %v2698
      %v2700 = vmul.f32 %v2612, 1.442695
      %v2701 = vpow.pop %v2700
      %v2702 = vmul.f32 %v2613, 1.442695
      %v2703 = vpow.pop %v2702
      %v2704 = vmul.f32 %v2614, 1.442695
      %v2705 = vpow.pop %v2704
      %v2706 = vmul.f32 %v2615, 1.442695
      %v2707 = vpow.pop %v2706
      %v2708 = vmul.f32 %v2616, 1.442695
      %v2709 = vpow.pop %v2708
      %v2710 = vmul.f32 %v2617, 1.442695
      %v2711 = vpow.pop %v2710
      %v2712 = vmul.f32 %v2618, 1.442695
      %v2713 = vpow.pop %v2712
      %v2714 = vmul.f32 %v2619, 1.442695
      %v2715 = vpow.pop %v2714
      %v2716 = vmul.f32 %v2620, 1.442695
      %v2717 = vpow.pop %v2716
      %v2718 = vmul.f32 %v2621, 1.442695
      %v2719 = vpow.pop %v2718
      %v2720 = vmul.f32 %v2622, 1.442695
      %v2721 = vpow.pop %v2720
      %v2722 = vmul.f32 %v2623, 1.442695
      %v2723 = vpow.pop %v2722
      %v2724 = vmul.f32 %v2624, 1.442695
      %v2725 = vpow.pop %v2724
      %v2726 = vmul.f32 %v2625, 1.442695
      %v2727 = vpow.pop %v2726
      %v2728 = vmul.f32 %v2626, 1.442695
      %v2729 = vpow.pop %v2728
      %v2730 = vmul.f32 %v2627, 1.442695
      %v2731 = vpow.pop %v2730
      %v2732 = vmul.f32 %v2628, 1.442695
      %v2733 = vpow.pop %v2732
      %v2734 = vmul.f32 %v2629, 1.442695
      %v2735 = vpow.pop %v2734
      %v2736 = vmul.f32 %v2630, 1.442695
      %v2737 = vpow.pop %v2736
      %v2738 = vmul.f32 %v2631, 1.442695
      %v2739 = vpow.pop %v2738
      %v2740 = vmul.f32 %v2632, 1.442695
      %v2741 = vpow.pop %v2740
      %v2742 = vmul.f32 %v2633, 1.442695
      %v2743 = vpow.pop %v2742
      %v2744 = vmul.f32 %v2634, 1.442695
      %v2745 = vpow.pop %v2744
      %v2746 = vmul.f32 %v2635, 1.442695
      %v2747 = vpow.pop %v2746
      %v2748 = vmul.f32 %v2636, 1.442695
      %v2749 = vpow.pop %v2748
      %v2750 = vmul.f32 %v2637, 1.442695
      %v2751 = vpow.pop %v2750
      %v2752 = vmul.f32 %v2638, 1.442695
      %v2753 = vpow.pop %v2752
      %v2754 = vmul.f32 %v2639, 1.442695
      %v2755 = vpow.pop %v2754
      %v2756 = vmul.f32 %v2640, 1.442695
      %v2757 = vpow.pop %v2756
      %v2758 = vmul.f32 %v2641, 1.442695
      %v2759 = vpow.pop %v2758
      %v2760 = vmul.f32 %v2642, 1.442695
      %v2761 = vpow.pop %v2760
      %v2762 = vmul.f32 %v2643, 1.442695
      %v2763 = vpow.pop %v2762
      %v2764 = vmul.f32 %v2644, 1.442695
      %v2765 = vpow.pop %v2764
      %v2766 = vmul.f32 %v2645, 1.442695
      %v2767 = vpow.pop %v2766
      %v2768 = vmul.f32 %v2646, 1.442695
      %v2769 = vpow.pop %v2768
      %v2770 = vmul.f32 %v2647, 1.442695
      %v2771 = vpow.pop %v2770
      %v2772 = vmul.f32 %v2648, 1.442695
      %v2773 = vpow.pop %v2772
      %v2774 = vmul.f32 %v2649, 1.442695
      %v2775 = vpow.pop %v2774
      %v2776 = vmul.f32 %v2650, 1.442695
      %v2777 = vpow.pop %v2776
      %v2778 = vmul.f32 %v2651, 1.442695
      %v2779 = vpow.pop %v2778
      %v2780 = vmul.f32 %v2652, 1.442695
      %v2781 = vpow.pop %v2780
      %v2782 = vmul.f32 %v2653, 1.442695
      %v2783 = vpow.pop %v2782
      %v2784 = vmul.f32 %v2654, 1.442695
      %v2785 = vpow.pop %v2784
      %v2786 = vmul.f32 %v2655, 1.442695
      %v2787 = vpow.pop %v2786
      %v2788 = vmul.f32 %v2656, 1.442695
      %v2789 = vpow.pop %v2788
      %v2790 = vmul.f32 %v2657, 1.442695
      %v2791 = vpow.pop %v2790
      %v2792 = vmul.f32 %v2658, 1.442695
      %v2793 = vpow.pop %v2792
      %v2794 = vmul.f32 %v2659, 1.442695
      %v2795 = vpow.pop %v2794
      %v2796 = vmul.f32 %v2660, 1.442695
      %v2797 = vpow.pop %v2796
      %v2798 = vmul.f32 %v2661, 1.442695
      %v2799 = vpow.pop %v2798
      %v2800 = vmul.f32 %v2662, 1.442695
      %v2801 = vpow.pop %v2800
      %v2802 = vmul.f32 %v2663, 1.442695
      %v2803 = vpow.pop %v2802
      %v2804 = vmul.f32 %v2664, 1.442695
      %v2805 = vpow.pop %v2804
      %v2806 = vmul.f32 %v2665, 1.442695
      %v2807 = vpow.pop %v2806
      %v2808 = vmul.f32 %v2666, 1.442695
      %v2809 = vpow.pop %v2808
      %v2810 = vmul.f32 %v2667, 1.442695
      %v2811 = vpow.pop %v2810
      %v2812 = vmul.f32 %v2668, 1.442695
      %v2813 = vpow.pop %v2812
      %v2814 = vmul.f32 %v2669, 1.442695
      %v2815 = vpow.pop %v2814
      %v2816 = vmul.f32 %v2670, 1.442695
      %v2817 = vpow.pop %v2816
      %v2818 = vmul.f32 %v2671, 1.442695
      %v2819 = vpow.pop %v2818
      %v2820 = vmul.f32 %v2672, 1.442695
      %v2821 = vpow.pop %v2820
      %v2822 = vmul.f32 %v2673, 1.442695
      %v2823 = vpow.pop %v2822
      %v2824 = vmul.f32 %v2674, 1.442695
      %v2825 = vpow.pop %v2824
      %v2826 = vmul.f32 %v2675, 1.442695
      %v2827 = vpow.pop %v2826
      %v2828 = vmul.f32 %v2676, 1.442695
      %v2829 = vpow.pop %v2828
      %v2830 = vmul.f32 %v2677, 1.442695
      %v2831 = vpow.pop %v2830
      %v2832 = vmul.f32 %v2678, 1.442695
      %v2833 = vpow.pop %v2832
      %v2834 = vmul.f32 %v2679, 1.442695
      %v2835 = vpow.pop %v2834
      %v2836 = vadd.f32 %v2681, 1.0
      %v2837 = vadd.f32 %v2683, 1.0
      %v2838 = vadd.f32 %v2685, 1.0
      %v2839 = vadd.f32 %v2687, 1.0
      %v2840 = vadd.f32 %v2689, 1.0
      %v2841 = vadd.f32 %v2691, 1.0
      %v2842 = vadd.f32 %v2693, 1.0
      %v2843 = vadd.f32 %v2695, 1.0
      %v2844 = vadd.f32 %v2697, 1.0
      %v2845 = vadd.f32 %v2699, 1.0
      %v2846 = vadd.f32 %v2701, 1.0
      %v2847 = vadd.f32 %v2703, 1.0
      %v2848 = vadd.f32 %v2705, 1.0
      %v2849 = vadd.f32 %v2707, 1.0
      %v2850 = vadd.f32 %v2709, 1.0
      %v2851 = vadd.f32 %v2711, 1.0
      %v2852 = vadd.f32 %v2713, 1.0
      %v2853 = vadd.f32 %v2715, 1.0
      %v2854 = vadd.f32 %v2717, 1.0
      %v2855 = vadd.f32 %v2719, 1.0
      %v2856 = vadd.f32 %v2721, 1.0
      %v2857 = vadd.f32 %v2723, 1.0
      %v2858 = vadd.f32 %v2725, 1.0
      %v2859 = vadd.f32 %v2727, 1.0
      %v2860 = vadd.f32 %v2729, 1.0
      %v2861 = vadd.f32 %v2731, 1.0
      %v2862 = vadd.f32 %v2733, 1.0
      %v2863 = vadd.f32 %v2735, 1.0
      %v2864 = vadd.f32 %v2737, 1.0
      %v2865 = vadd.f32 %v2739, 1.0
      %v2866 = vadd.f32 %v2741, 1.0
      %v2867 = vadd.f32 %v2743, 1.0
      %v2868 = vadd.f32 %v2745, 1.0
      %v2869 = vadd.f32 %v2747, 1.0
      %v2870 = vadd.f32 %v2749, 1.0
      %v2871 = vadd.f32 %v2751, 1.0
      %v2872 = vadd.f32 %v2753, 1.0
      %v2873 = vadd.f32 %v2755, 1.0
      %v2874 = vadd.f32 %v2757, 1.0
      %v2875 = vadd.f32 %v2759, 1.0
      %v2876 = vadd.f32 %v2761, 1.0
      %v2877 = vadd.f32 %v2763, 1.0
      %v2878 = vadd.f32 %v2765, 1.0
      %v2879 = vadd.f32 %v2767, 1.0
      %v2880 = vadd.f32 %v2769, 1.0
      %v2881 = vadd.f32 %v2771, 1.0
      %v2882 = vadd.f32 %v2773, 1.0
      %v2883 = vadd.f32 %v2775, 1.0
      %v2884 = vadd.f32 %v2777, 1.0
      %v2885 = vadd.f32 %v2779, 1.0
      %v2886 = vadd.f32 %v2781, 1.0
      %v2887 = vadd.f32 %v2783, 1.0
      %v2888 = vadd.f32 %v2785, 1.0
      %v2889 = vadd.f32 %v2787, 1.0
      %v2890 = vadd.f32 %v2789, 1.0
      %v2891 = vadd.f32 %v2791, 1.0
      %v2892 = vadd.f32 %v2793, 1.0
      %v2893 = vadd.f32 %v2795, 1.0
      %v2894 = vadd.f32 %v2797, 1.0
      %v2895 = vadd.f32 %v2799, 1.0
      %v2896 = vadd.f32 %v2801, 1.0
      %v2897 = vadd.f32 %v2803, 1.0
      %v2898 = vadd.f32 %v2805, 1.0
      %v2899 = vadd.f32 %v2807, 1.0
      %v2900 = vadd.f32 %v2809, 1.0
      %v2901 = vadd.f32 %v2811, 1.0
      %v2902 = vadd.f32 %v2813, 1.0
      %v2903 = vadd.f32 %v2815, 1.0
      %v2904 = vadd.f32 %v2817, 1.0
      %v2905 = vadd.f32 %v2819, 1.0
      %v2906 = vadd.f32 %v2821, 1.0
      %v2907 = vadd.f32 %v2823, 1.0
      %v2908 = vadd.f32 %v2825, 1.0
      %v2909 = vadd.f32 %v2827, 1.0
      %v2910 = vadd.f32 %v2829, 1.0
      %v2911 = vadd.f32 %v2831, 1.0
      %v2912 = vadd.f32 %v2833, 1.0
      %v2913 = vadd.f32 %v2835, 1.0
      %v2914 = vrcp.pop %v2836
      %v2915 = vmul.f32 %v2836, %v2914
      %v2916 = vsub.f32 1.0, %v2915
      %v2917 = vmul.f32 %v2914, %v2916
      %v2918 = vadd.f32 %v2914, %v2917
      %vm2919 = vweird.f32 %v2836
      %vm2920 = vweird.f32 %v2914
      %vm2921 = vmor %vm2919, %vm2920
      %v2922 = vsel %vm2921, %v2914, %v2918
      %v2923 = vand.u32 2147483647, %v2836
      %vm2924 = vcmp.eq.f32.partialorder %v2923, 8.507059e+37
      %v2925 = vand.u32 %v2836, 2147483648
      %v2926 = vor.u32 1.1754944e-38, %v2925
      %v2927 = vsel %vm2924, %v2926, %v2922
      %v2928 = vmul.f32 1.0, %v2927
      %v2929 = vrcp.pop %v2837
      %v2930 = vmul.f32 %v2837, %v2929
      %v2931 = vsub.f32 1.0, %v2930
      %v2932 = vmul.f32 %v2929, %v2931
      %v2933 = vadd.f32 %v2929, %v2932
      %vm2934 = vweird.f32 %v2837
      %vm2935 = vweird.f32 %v2929
      %vm2936 = vmor %vm2934, %vm2935
      %v2937 = vsel %vm2936, %v2929, %v2933
      %v2938 = vand.u32 2147483647, %v2837
      %vm2939 = vcmp.eq.f32.partialorder %v2938, 8.507059e+37
      %v2940 = vand.u32 %v2837, 2147483648
      %v2941 = vor.u32 1.1754944e-38, %v2940
      %v2942 = vsel %vm2939, %v2941, %v2937
      %v2943 = vmul.f32 1.0, %v2942
      %v2944 = vrcp.pop %v2838
      %v2945 = vmul.f32 %v2838, %v2944
      %v2946 = vsub.f32 1.0, %v2945
      %v2947 = vmul.f32 %v2944, %v2946
      %v2948 = vadd.f32 %v2944, %v2947
      %vm2949 = vweird.f32 %v2838
      %vm2950 = vweird.f32 %v2944
      %vm2951 = vmor %vm2949, %vm2950
      %v2952 = vsel %vm2951, %v2944, %v2948
      %v2953 = vand.u32 2147483647, %v2838
      %vm2954 = vcmp.eq.f32.partialorder %v2953, 8.507059e+37
      %v2955 = vand.u32 %v2838, 2147483648
      %v2956 = vor.u32 1.1754944e-38, %v2955
      %v2957 = vsel %vm2954, %v2956, %v2952
      %v2958 = vmul.f32 1.0, %v2957
      %v2959 = vrcp.pop %v2839
      %v2960 = vmul.f32 %v2839, %v2959
      %v2961 = vsub.f32 1.0, %v2960
      %v2962 = vmul.f32 %v2959, %v2961
      %v2963 = vadd.f32 %v2959, %v2962
      %vm2964 = vweird.f32 %v2839
      %vm2965 = vweird.f32 %v2959
      %vm2966 = vmor %vm2964, %vm2965
      %v2967 = vsel %vm2966, %v2959, %v2963
      %v2968 = vand.u32 2147483647, %v2839
      %vm2969 = vcmp.eq.f32.partialorder %v2968, 8.507059e+37
      %v2970 = vand.u32 %v2839, 2147483648
      %v2971 = vor.u32 1.1754944e-38, %v2970
      %v2972 = vsel %vm2969, %v2971, %v2967
      %v2973 = vmul.f32 1.0, %v2972
      %v2974 = vrcp.pop %v2840
      %v2975 = vmul.f32 %v2840, %v2974
      %v2976 = vsub.f32 1.0, %v2975
      %v2977 = vmul.f32 %v2974, %v2976
      %v2978 = vadd.f32 %v2974, %v2977
      %vm2979 = vweird.f32 %v2840
      %vm2980 = vweird.f32 %v2974
      %vm2981 = vmor %vm2979, %vm2980
      %v2982 = vsel %vm2981, %v2974, %v2978
      %v2983 = vand.u32 2147483647, %v2840
      %vm2984 = vcmp.eq.f32.partialorder %v2983, 8.507059e+37
      %v2985 = vand.u32 %v2840, 2147483648
      %v2986 = vor.u32 1.1754944e-38, %v2985
      %v2987 = vsel %vm2984, %v2986, %v2982
      %v2988 = vmul.f32 1.0, %v2987
      %v2989 = vrcp.pop %v2841
      %v2990 = vmul.f32 %v2841, %v2989
      %v2991 = vsub.f32 1.0, %v2990
      %v2992 = vmul.f32 %v2989, %v2991
      %v2993 = vadd.f32 %v2989, %v2992
      %vm2994 = vweird.f32 %v2841
      %vm2995 = vweird.f32 %v2989
      %vm2996 = vmor %vm2994, %vm2995
      %v2997 = vsel %vm2996, %v2989, %v2993
      %v2998 = vand.u32 2147483647, %v2841
      %vm2999 = vcmp.eq.f32.partialorder %v2998, 8.507059e+37
      %v3000 = vand.u32 %v2841, 2147483648
      %v3001 = vor.u32 1.1754944e-38, %v3000
      %v3002 = vsel %vm2999, %v3001, %v2997
      %v3003 = vmul.f32 1.0, %v3002
      %v3004 = vrcp.pop %v2842
      %v3005 = vmul.f32 %v2842, %v3004
      %v3006 = vsub.f32 1.0, %v3005
      %v3007 = vmul.f32 %v3004, %v3006
      %v3008 = vadd.f32 %v3004, %v3007
      %vm3009 = vweird.f32 %v2842
      %vm3010 = vweird.f32 %v3004
      %vm3011 = vmor %vm3009, %vm3010
      %v3012 = vsel %vm3011, %v3004, %v3008
      %v3013 = vand.u32 2147483647, %v2842
      %vm3014 = vcmp.eq.f32.partialorder %v3013, 8.507059e+37
      %v3015 = vand.u32 %v2842, 2147483648
      %v3016 = vor.u32 1.1754944e-38, %v3015
      %v3017 = vsel %vm3014, %v3016, %v3012
      %v3018 = vmul.f32 1.0, %v3017
      %v3019 = vrcp.pop %v2843
      %v3020 = vmul.f32 %v2843, %v3019
      %v3021 = vsub.f32 1.0, %v3020
      %v3022 = vmul.f32 %v3019, %v3021
      %v3023 = vadd.f32 %v3019, %v3022
      %vm3024 = vweird.f32 %v2843
      %vm3025 = vweird.f32 %v3019
      %vm3026 = vmor %vm3024, %vm3025
      %v3027 = vsel %vm3026, %v3019, %v3023
      %v3028 = vand.u32 2147483647, %v2843
      %vm3029 = vcmp.eq.f32.partialorder %v3028, 8.507059e+37
      %v3030 = vand.u32 %v2843, 2147483648
      %v3031 = vor.u32 1.1754944e-38, %v3030
      %v3032 = vsel %vm3029, %v3031, %v3027
      %v3033 = vmul.f32 1.0, %v3032
      %v3034 = vrcp.pop %v2844
      %v3035 = vmul.f32 %v2844, %v3034
      %v3036 = vsub.f32 1.0, %v3035
      %v3037 = vmul.f32 %v3034, %v3036
      %v3038 = vadd.f32 %v3034, %v3037
      %vm3039 = vweird.f32 %v2844
      %vm3040 = vweird.f32 %v3034
      %vm3041 = vmor %vm3039, %vm3040
      %v3042 = vsel %vm3041, %v3034, %v3038
      %v3043 = vand.u32 2147483647, %v2844
      %vm3044 = vcmp.eq.f32.partialorder %v3043, 8.507059e+37
      %v3045 = vand.u32 %v2844, 2147483648
      %v3046 = vor.u32 1.1754944e-38, %v3045
      %v3047 = vsel %vm3044, %v3046, %v3042
      %v3048 = vmul.f32 1.0, %v3047
      %v3049 = vrcp.pop %v2845
      %v3050 = vmul.f32 %v2845, %v3049
      %v3051 = vsub.f32 1.0, %v3050
      %v3052 = vmul.f32 %v3049, %v3051
      %v3053 = vadd.f32 %v3049, %v3052
      %vm3054 = vweird.f32 %v2845
      %vm3055 = vweird.f32 %v3049
      %vm3056 = vmor %vm3054, %vm3055
      %v3057 = vsel %vm3056, %v3049, %v3053
      %v3058 = vand.u32 2147483647, %v2845
      %vm3059 = vcmp.eq.f32.partialorder %v3058, 8.507059e+37
      %v3060 = vand.u32 %v2845, 2147483648
      %v3061 = vor.u32 1.1754944e-38, %v3060
      %v3062 = vsel %vm3059, %v3061, %v3057
      %v3063 = vmul.f32 1.0, %v3062
      %v3064 = vrcp.pop %v2846
      %v3065 = vmul.f32 %v2846, %v3064
      %v3066 = vsub.f32 1.0, %v3065
      %v3067 = vmul.f32 %v3064, %v3066
      %v3068 = vadd.f32 %v3064, %v3067
      %vm3069 = vweird.f32 %v2846
      %vm3070 = vweird.f32 %v3064
      %vm3071 = vmor %vm3069, %vm3070
      %v3072 = vsel %vm3071, %v3064, %v3068
      %v3073 = vand.u32 2147483647, %v2846
      %vm3074 = vcmp.eq.f32.partialorder %v3073, 8.507059e+37
      %v3075 = vand.u32 %v2846, 2147483648
      %v3076 = vor.u32 1.1754944e-38, %v3075
      %v3077 = vsel %vm3074, %v3076, %v3072
      %v3078 = vmul.f32 1.0, %v3077
      %v3079 = vrcp.pop %v2847
      %v3080 = vmul.f32 %v2847, %v3079
      %v3081 = vsub.f32 1.0, %v3080
      %v3082 = vmul.f32 %v3079, %v3081
      %v3083 = vadd.f32 %v3079, %v3082
      %vm3084 = vweird.f32 %v2847
      %vm3085 = vweird.f32 %v3079
      %vm3086 = vmor %vm3084, %vm3085
      %v3087 = vsel %vm3086, %v3079, %v3083
      %v3088 = vand.u32 2147483647, %v2847
      %vm3089 = vcmp.eq.f32.partialorder %v3088, 8.507059e+37
      %v3090 = vand.u32 %v2847, 2147483648
      %v3091 = vor.u32 1.1754944e-38, %v3090
      %v3092 = vsel %vm3089, %v3091, %v3087
      %v3093 = vmul.f32 1.0, %v3092
      %v3094 = vrcp.pop %v2848
      %v3095 = vmul.f32 %v2848, %v3094
      %v3096 = vsub.f32 1.0, %v3095
      %v3097 = vmul.f32 %v3094, %v3096
      %v3098 = vadd.f32 %v3094, %v3097
      %vm3099 = vweird.f32 %v2848
      %vm3100 = vweird.f32 %v3094
      %vm3101 = vmor %vm3099, %vm3100
      %v3102 = vsel %vm3101, %v3094, %v3098
      %v3103 = vand.u32 2147483647, %v2848
      %vm3104 = vcmp.eq.f32.partialorder %v3103, 8.507059e+37
      %v3105 = vand.u32 %v2848, 2147483648
      %v3106 = vor.u32 1.1754944e-38, %v3105
      %v3107 = vsel %vm3104, %v3106, %v3102
      %v3108 = vmul.f32 1.0, %v3107
      %v3109 = vrcp.pop %v2849
      %v3110 = vmul.f32 %v2849, %v3109
      %v3111 = vsub.f32 1.0, %v3110
      %v3112 = vmul.f32 %v3109, %v3111
      %v3113 = vadd.f32 %v3109, %v3112
      %vm3114 = vweird.f32 %v2849
      %vm3115 = vweird.f32 %v3109
      %vm3116 = vmor %vm3114, %vm3115
      %v3117 = vsel %vm3116, %v3109, %v3113
      %v3118 = vand.u32 2147483647, %v2849
      %vm3119 = vcmp.eq.f32.partialorder %v3118, 8.507059e+37
      %v3120 = vand.u32 %v2849, 2147483648
      %v3121 = vor.u32 1.1754944e-38, %v3120
      %v3122 = vsel %vm3119, %v3121, %v3117
      %v3123 = vmul.f32 1.0, %v3122
      %v3124 = vrcp.pop %v2850
      %v3125 = vmul.f32 %v2850, %v3124
      %v3126 = vsub.f32 1.0, %v3125
      %v3127 = vmul.f32 %v3124, %v3126
      %v3128 = vadd.f32 %v3124, %v3127
      %vm3129 = vweird.f32 %v2850
      %vm3130 = vweird.f32 %v3124
      %vm3131 = vmor %vm3129, %vm3130
      %v3132 = vsel %vm3131, %v3124, %v3128
      %v3133 = vand.u32 2147483647, %v2850
      %vm3134 = vcmp.eq.f32.partialorder %v3133, 8.507059e+37
      %v3135 = vand.u32 %v2850, 2147483648
      %v3136 = vor.u32 1.1754944e-38, %v3135
      %v3137 = vsel %vm3134, %v3136, %v3132
      %v3138 = vmul.f32 1.0, %v3137
      %v3139 = vrcp.pop %v2851
      %v3140 = vmul.f32 %v2851, %v3139
      %v3141 = vsub.f32 1.0, %v3140
      %v3142 = vmul.f32 %v3139, %v3141
      %v3143 = vadd.f32 %v3139, %v3142
      %vm3144 = vweird.f32 %v2851
      %vm3145 = vweird.f32 %v3139
      %vm3146 = vmor %vm3144, %vm3145
      %v3147 = vsel %vm3146, %v3139, %v3143
      %v3148 = vand.u32 2147483647, %v2851
      %vm3149 = vcmp.eq.f32.partialorder %v3148, 8.507059e+37
      %v3150 = vand.u32 %v2851, 2147483648
      %v3151 = vor.u32 1.1754944e-38, %v3150
      %v3152 = vsel %vm3149, %v3151, %v3147
      %v3153 = vmul.f32 1.0, %v3152
      %v3154 = vrcp.pop %v2852
      %v3155 = vmul.f32 %v2852, %v3154
      %v3156 = vsub.f32 1.0, %v3155
      %v3157 = vmul.f32 %v3154, %v3156
      %v3158 = vadd.f32 %v3154, %v3157
      %vm3159 = vweird.f32 %v2852
      %vm3160 = vweird.f32 %v3154
      %vm3161 = vmor %vm3159, %vm3160
      %v3162 = vsel %vm3161, %v3154, %v3158
      %v3163 = vand.u32 2147483647, %v2852
      %vm3164 = vcmp.eq.f32.partialorder %v3163, 8.507059e+37
      %v3165 = vand.u32 %v2852, 2147483648
      %v3166 = vor.u32 1.1754944e-38, %v3165
      %v3167 = vsel %vm3164, %v3166, %v3162
      %v3168 = vmul.f32 1.0, %v3167
      %v3169 = vrcp.pop %v2853
      %v3170 = vmul.f32 %v2853, %v3169
      %v3171 = vsub.f32 1.0, %v3170
      %v3172 = vmul.f32 %v3169, %v3171
      %v3173 = vadd.f32 %v3169, %v3172
      %vm3174 = vweird.f32 %v2853
      %vm3175 = vweird.f32 %v3169
      %vm3176 = vmor %vm3174, %vm3175
      %v3177 = vsel %vm3176, %v3169, %v3173
      %v3178 = vand.u32 2147483647, %v2853
      %vm3179 = vcmp.eq.f32.partialorder %v3178, 8.507059e+37
      %v3180 = vand.u32 %v2853, 2147483648
      %v3181 = vor.u32 1.1754944e-38, %v3180
      %v3182 = vsel %vm3179, %v3181, %v3177
      %v3183 = vmul.f32 1.0, %v3182
      %v3184 = vrcp.pop %v2854
      %v3185 = vmul.f32 %v2854, %v3184
      %v3186 = vsub.f32 1.0, %v3185
      %v3187 = vmul.f32 %v3184, %v3186
      %v3188 = vadd.f32 %v3184, %v3187
      %vm3189 = vweird.f32 %v2854
      %vm3190 = vweird.f32 %v3184
      %vm3191 = vmor %vm3189, %vm3190
      %v3192 = vsel %vm3191, %v3184, %v3188
      %v3193 = vand.u32 2147483647, %v2854
      %vm3194 = vcmp.eq.f32.partialorder %v3193, 8.507059e+37
      %v3195 = vand.u32 %v2854, 2147483648
      %v3196 = vor.u32 1.1754944e-38, %v3195
      %v3197 = vsel %vm3194, %v3196, %v3192
      %v3198 = vmul.f32 1.0, %v3197
      %v3199 = vrcp.pop %v2855
      %v3200 = vmul.f32 %v2855, %v3199
      %v3201 = vsub.f32 1.0, %v3200
      %v3202 = vmul.f32 %v3199, %v3201
      %v3203 = vadd.f32 %v3199, %v3202
      %vm3204 = vweird.f32 %v2855
      %vm3205 = vweird.f32 %v3199
      %vm3206 = vmor %vm3204, %vm3205
      %v3207 = vsel %vm3206, %v3199, %v3203
      %v3208 = vand.u32 2147483647, %v2855
      %vm3209 = vcmp.eq.f32.partialorder %v3208, 8.507059e+37
      %v3210 = vand.u32 %v2855, 2147483648
      %v3211 = vor.u32 1.1754944e-38, %v3210
      %v3212 = vsel %vm3209, %v3211, %v3207
      %v3213 = vmul.f32 1.0, %v3212
      %v3214 = vrcp.pop %v2856
      %v3215 = vmul.f32 %v2856, %v3214
      %v3216 = vsub.f32 1.0, %v3215
      %v3217 = vmul.f32 %v3214, %v3216
      %v3218 = vadd.f32 %v3214, %v3217
      %vm3219 = vweird.f32 %v2856
      %vm3220 = vweird.f32 %v3214
      %vm3221 = vmor %vm3219, %vm3220
      %v3222 = vsel %vm3221, %v3214, %v3218
      %v3223 = vand.u32 2147483647, %v2856
      %vm3224 = vcmp.eq.f32.partialorder %v3223, 8.507059e+37
      %v3225 = vand.u32 %v2856, 2147483648
      %v3226 = vor.u32 1.1754944e-38, %v3225
      %v3227 = vsel %vm3224, %v3226, %v3222
      %v3228 = vmul.f32 1.0, %v3227
      %v3229 = vrcp.pop %v2857
      %v3230 = vmul.f32 %v2857, %v3229
      %v3231 = vsub.f32 1.0, %v3230
      %v3232 = vmul.f32 %v3229, %v3231
      %v3233 = vadd.f32 %v3229, %v3232
      %vm3234 = vweird.f32 %v2857
      %vm3235 = vweird.f32 %v3229
      %vm3236 = vmor %vm3234, %vm3235
      %v3237 = vsel %vm3236, %v3229, %v3233
      %v3238 = vand.u32 2147483647, %v2857
      %vm3239 = vcmp.eq.f32.partialorder %v3238, 8.507059e+37
      %v3240 = vand.u32 %v2857, 2147483648
      %v3241 = vor.u32 1.1754944e-38, %v3240
      %v3242 = vsel %vm3239, %v3241, %v3237
      %v3243 = vmul.f32 1.0, %v3242
      %v3244 = vrcp.pop %v2858
      %v3245 = vmul.f32 %v2858, %v3244
      %v3246 = vsub.f32 1.0, %v3245
      %v3247 = vmul.f32 %v3244, %v3246
      %v3248 = vadd.f32 %v3244, %v3247
      %vm3249 = vweird.f32 %v2858
      %vm3250 = vweird.f32 %v3244
      %vm3251 = vmor %vm3249, %vm3250
      %v3252 = vsel %vm3251, %v3244, %v3248
      %v3253 = vand.u32 2147483647, %v2858
      %vm3254 = vcmp.eq.f32.partialorder %v3253, 8.507059e+37
      %v3255 = vand.u32 %v2858, 2147483648
      %v3256 = vor.u32 1.1754944e-38, %v3255
      %v3257 = vsel %vm3254, %v3256, %v3252
      %v3258 = vmul.f32 1.0, %v3257
      %v3259 = vrcp.pop %v2859
      %v3260 = vmul.f32 %v2859, %v3259
      %v3261 = vsub.f32 1.0, %v3260
      %v3262 = vmul.f32 %v3259, %v3261
      %v3263 = vadd.f32 %v3259, %v3262
      %vm3264 = vweird.f32 %v2859
      %vm3265 = vweird.f32 %v3259
      %vm3266 = vmor %vm3264, %vm3265
      %v3267 = vsel %vm3266, %v3259, %v3263
      %v3268 = vand.u32 2147483647, %v2859
      %vm3269 = vcmp.eq.f32.partialorder %v3268, 8.507059e+37
      %v3270 = vand.u32 %v2859, 2147483648
      %v3271 = vor.u32 1.1754944e-38, %v3270
      %v3272 = vsel %vm3269, %v3271, %v3267
      %v3273 = vmul.f32 1.0, %v3272
      %v3274 = vrcp.pop %v2860
      %v3275 = vmul.f32 %v2860, %v3274
      %v3276 = vsub.f32 1.0, %v3275
      %v3277 = vmul.f32 %v3274, %v3276
      %v3278 = vadd.f32 %v3274, %v3277
      %vm3279 = vweird.f32 %v2860
      %vm3280 = vweird.f32 %v3274
      %vm3281 = vmor %vm3279, %vm3280
      %v3282 = vsel %vm3281, %v3274, %v3278
      %v3283 = vand.u32 2147483647, %v2860
      %vm3284 = vcmp.eq.f32.partialorder %v3283, 8.507059e+37
      %v3285 = vand.u32 %v2860, 2147483648
      %v3286 = vor.u32 1.1754944e-38, %v3285
      %v3287 = vsel %vm3284, %v3286, %v3282
      %v3288 = vmul.f32 1.0, %v3287
      %v3289 = vrcp.pop %v2861
      %v3290 = vmul.f32 %v2861, %v3289
      %v3291 = vsub.f32 1.0, %v3290
      %v3292 = vmul.f32 %v3289, %v3291
      %v3293 = vadd.f32 %v3289, %v3292
      %vm3294 = vweird.f32 %v2861
      %vm3295 = vweird.f32 %v3289
      %vm3296 = vmor %vm3294, %vm3295
      %v3297 = vsel %vm3296, %v3289, %v3293
      %v3298 = vand.u32 2147483647, %v2861
      %vm3299 = vcmp.eq.f32.partialorder %v3298, 8.507059e+37
      %v3300 = vand.u32 %v2861, 2147483648
      %v3301 = vor.u32 1.1754944e-38, %v3300
      %v3302 = vsel %vm3299, %v3301, %v3297
      %v3303 = vmul.f32 1.0, %v3302
      %v3304 = vrcp.pop %v2862
      %v3305 = vmul.f32 %v2862, %v3304
      %v3306 = vsub.f32 1.0, %v3305
      %v3307 = vmul.f32 %v3304, %v3306
      %v3308 = vadd.f32 %v3304, %v3307
      %vm3309 = vweird.f32 %v2862
      %vm3310 = vweird.f32 %v3304
      %vm3311 = vmor %vm3309, %vm3310
      %v3312 = vsel %vm3311, %v3304, %v3308
      %v3313 = vand.u32 2147483647, %v2862
      %vm3314 = vcmp.eq.f32.partialorder %v3313, 8.507059e+37
      %v3315 = vand.u32 %v2862, 2147483648
      %v3316 = vor.u32 1.1754944e-38, %v3315
      %v3317 = vsel %vm3314, %v3316, %v3312
      %v3318 = vmul.f32 1.0, %v3317
      %v3319 = vrcp.pop %v2863
      %v3320 = vmul.f32 %v2863, %v3319
      %v3321 = vsub.f32 1.0, %v3320
      %v3322 = vmul.f32 %v3319, %v3321
      %v3323 = vadd.f32 %v3319, %v3322
      %vm3324 = vweird.f32 %v2863
      %vm3325 = vweird.f32 %v3319
      %vm3326 = vmor %vm3324, %vm3325
      %v3327 = vsel %vm3326, %v3319, %v3323
      %v3328 = vand.u32 2147483647, %v2863
      %vm3329 = vcmp.eq.f32.partialorder %v3328, 8.507059e+37
      %v3330 = vand.u32 %v2863, 2147483648
      %v3331 = vor.u32 1.1754944e-38, %v3330
      %v3332 = vsel %vm3329, %v3331, %v3327
      %v3333 = vmul.f32 1.0, %v3332
      %v3334 = vrcp.pop %v2864
      %v3335 = vmul.f32 %v2864, %v3334
      %v3336 = vsub.f32 1.0, %v3335
      %v3337 = vmul.f32 %v3334, %v3336
      %v3338 = vadd.f32 %v3334, %v3337
      %vm3339 = vweird.f32 %v2864
      %vm3340 = vweird.f32 %v3334
      %vm3341 = vmor %vm3339, %vm3340
      %v3342 = vsel %vm3341, %v3334, %v3338
      %v3343 = vand.u32 2147483647, %v2864
      %vm3344 = vcmp.eq.f32.partialorder %v3343, 8.507059e+37
      %v3345 = vand.u32 %v2864, 2147483648
      %v3346 = vor.u32 1.1754944e-38, %v3345
      %v3347 = vsel %vm3344, %v3346, %v3342
      %v3348 = vmul.f32 1.0, %v3347
      %v3349 = vrcp.pop %v2865
      %v3350 = vmul.f32 %v2865, %v3349
      %v3351 = vsub.f32 1.0, %v3350
      %v3352 = vmul.f32 %v3349, %v3351
      %v3353 = vadd.f32 %v3349, %v3352
      %vm3354 = vweird.f32 %v2865
      %vm3355 = vweird.f32 %v3349
      %vm3356 = vmor %vm3354, %vm3355
      %v3357 = vsel %vm3356, %v3349, %v3353
      %v3358 = vand.u32 2147483647, %v2865
      %vm3359 = vcmp.eq.f32.partialorder %v3358, 8.507059e+37
      %v3360 = vand.u32 %v2865, 2147483648
      %v3361 = vor.u32 1.1754944e-38, %v3360
      %v3362 = vsel %vm3359, %v3361, %v3357
      %v3363 = vmul.f32 1.0, %v3362
      %v3364 = vrcp.pop %v2866
      %v3365 = vmul.f32 %v2866, %v3364
      %v3366 = vsub.f32 1.0, %v3365
      %v3367 = vmul.f32 %v3364, %v3366
      %v3368 = vadd.f32 %v3364, %v3367
      %vm3369 = vweird.f32 %v2866
      %vm3370 = vweird.f32 %v3364
      %vm3371 = vmor %vm3369, %vm3370
      %v3372 = vsel %vm3371, %v3364, %v3368
      %v3373 = vand.u32 2147483647, %v2866
      %vm3374 = vcmp.eq.f32.partialorder %v3373, 8.507059e+37
      %v3375 = vand.u32 %v2866, 2147483648
      %v3376 = vor.u32 1.1754944e-38, %v3375
      %v3377 = vsel %vm3374, %v3376, %v3372
      %v3378 = vmul.f32 1.0, %v3377
      %v3379 = vrcp.pop %v2867
      %v3380 = vmul.f32 %v2867, %v3379
      %v3381 = vsub.f32 1.0, %v3380
      %v3382 = vmul.f32 %v3379, %v3381
      %v3383 = vadd.f32 %v3379, %v3382
      %vm3384 = vweird.f32 %v2867
      %vm3385 = vweird.f32 %v3379
      %vm3386 = vmor %vm3384, %vm3385
      %v3387 = vsel %vm3386, %v3379, %v3383
      %v3388 = vand.u32 2147483647, %v2867
      %vm3389 = vcmp.eq.f32.partialorder %v3388, 8.507059e+37
      %v3390 = vand.u32 %v2867, 2147483648
      %v3391 = vor.u32 1.1754944e-38, %v3390
      %v3392 = vsel %vm3389, %v3391, %v3387
      %v3393 = vmul.f32 1.0, %v3392
      %v3394 = vrcp.pop %v2868
      %v3395 = vmul.f32 %v2868, %v3394
      %v3396 = vsub.f32 1.0, %v3395
      %v3397 = vmul.f32 %v3394, %v3396
      %v3398 = vadd.f32 %v3394, %v3397
      %vm3399 = vweird.f32 %v2868
      %vm3400 = vweird.f32 %v3394
      %vm3401 = vmor %vm3399, %vm3400
      %v3402 = vsel %vm3401, %v3394, %v3398
      %v3403 = vand.u32 2147483647, %v2868
      %vm3404 = vcmp.eq.f32.partialorder %v3403, 8.507059e+37
      %v3405 = vand.u32 %v2868, 2147483648
      %v3406 = vor.u32 1.1754944e-38, %v3405
      %v3407 = vsel %vm3404, %v3406, %v3402
      %v3408 = vmul.f32 1.0, %v3407
      %v3409 = vrcp.pop %v2869
      %v3410 = vmul.f32 %v2869, %v3409
      %v3411 = vsub.f32 1.0, %v3410
      %v3412 = vmul.f32 %v3409, %v3411
      %v3413 = vadd.f32 %v3409, %v3412
      %vm3414 = vweird.f32 %v2869
      %vm3415 = vweird.f32 %v3409
      %vm3416 = vmor %vm3414, %vm3415
      %v3417 = vsel %vm3416, %v3409, %v3413
      %v3418 = vand.u32 2147483647, %v2869
      %vm3419 = vcmp.eq.f32.partialorder %v3418, 8.507059e+37
      %v3420 = vand.u32 %v2869, 2147483648
      %v3421 = vor.u32 1.1754944e-38, %v3420
      %v3422 = vsel %vm3419, %v3421, %v3417
      %v3423 = vmul.f32 1.0, %v3422
      %v3424 = vrcp.pop %v2870
      %v3425 = vmul.f32 %v2870, %v3424
      %v3426 = vsub.f32 1.0, %v3425
      %v3427 = vmul.f32 %v3424, %v3426
      %v3428 = vadd.f32 %v3424, %v3427
      %vm3429 = vweird.f32 %v2870
      %vm3430 = vweird.f32 %v3424
      %vm3431 = vmor %vm3429, %vm3430
      %v3432 = vsel %vm3431, %v3424, %v3428
      %v3433 = vand.u32 2147483647, %v2870
      %vm3434 = vcmp.eq.f32.partialorder %v3433, 8.507059e+37
      %v3435 = vand.u32 %v2870, 2147483648
      %v3436 = vor.u32 1.1754944e-38, %v3435
      %v3437 = vsel %vm3434, %v3436, %v3432
      %v3438 = vmul.f32 1.0, %v3437
      %v3439 = vrcp.pop %v2871
      %v3440 = vmul.f32 %v2871, %v3439
      %v3441 = vsub.f32 1.0, %v3440
      %v3442 = vmul.f32 %v3439, %v3441
      %v3443 = vadd.f32 %v3439, %v3442
      %vm3444 = vweird.f32 %v2871
      %vm3445 = vweird.f32 %v3439
      %vm3446 = vmor %vm3444, %vm3445
      %v3447 = vsel %vm3446, %v3439, %v3443
      %v3448 = vand.u32 2147483647, %v2871
      %vm3449 = vcmp.eq.f32.partialorder %v3448, 8.507059e+37
      %v3450 = vand.u32 %v2871, 2147483648
      %v3451 = vor.u32 1.1754944e-38, %v3450
      %v3452 = vsel %vm3449, %v3451, %v3447
      %v3453 = vmul.f32 1.0, %v3452
      %v3454 = vrcp.pop %v2872
      %v3455 = vmul.f32 %v2872, %v3454
      %v3456 = vsub.f32 1.0, %v3455
      %v3457 = vmul.f32 %v3454, %v3456
      %v3458 = vadd.f32 %v3454, %v3457
      %vm3459 = vweird.f32 %v2872
      %vm3460 = vweird.f32 %v3454
      %vm3461 = vmor %vm3459, %vm3460
      %v3462 = vsel %vm3461, %v3454, %v3458
      %v3463 = vand.u32 2147483647, %v2872
      %vm3464 = vcmp.eq.f32.partialorder %v3463, 8.507059e+37
      %v3465 = vand.u32 %v2872, 2147483648
      %v3466 = vor.u32 1.1754944e-38, %v3465
      %v3467 = vsel %vm3464, %v3466, %v3462
      %v3468 = vmul.f32 1.0, %v3467
      %v3469 = vrcp.pop %v2873
      %v3470 = vmul.f32 %v2873, %v3469
      %v3471 = vsub.f32 1.0, %v3470
      %v3472 = vmul.f32 %v3469, %v3471
      %v3473 = vadd.f32 %v3469, %v3472
      %vm3474 = vweird.f32 %v2873
      %vm3475 = vweird.f32 %v3469
      %vm3476 = vmor %vm3474, %vm3475
      %v3477 = vsel %vm3476, %v3469, %v3473
      %v3478 = vand.u32 2147483647, %v2873
      %vm3479 = vcmp.eq.f32.partialorder %v3478, 8.507059e+37
      %v3480 = vand.u32 %v2873, 2147483648
      %v3481 = vor.u32 1.1754944e-38, %v3480
      %v3482 = vsel %vm3479, %v3481, %v3477
      %v3483 = vmul.f32 1.0, %v3482
      %v3484 = vrcp.pop %v2874
      %v3485 = vmul.f32 %v2874, %v3484
      %v3486 = vsub.f32 1.0, %v3485
      %v3487 = vmul.f32 %v3484, %v3486
      %v3488 = vadd.f32 %v3484, %v3487
      %vm3489 = vweird.f32 %v2874
      %vm3490 = vweird.f32 %v3484
      %vm3491 = vmor %vm3489, %vm3490
      %v3492 = vsel %vm3491, %v3484, %v3488
      %v3493 = vand.u32 2147483647, %v2874
      %vm3494 = vcmp.eq.f32.partialorder %v3493, 8.507059e+37
      %v3495 = vand.u32 %v2874, 2147483648
      %v3496 = vor.u32 1.1754944e-38, %v3495
      %v3497 = vsel %vm3494, %v3496, %v3492
      %v3498 = vmul.f32 1.0, %v3497
      %v3499 = vrcp.pop %v2875
      %v3500 = vmul.f32 %v2875, %v3499
      %v3501 = vsub.f32 1.0, %v3500
      %v3502 = vmul.f32 %v3499, %v3501
      %v3503 = vadd.f32 %v3499, %v3502
      %vm3504 = vweird.f32 %v2875
      %vm3505 = vweird.f32 %v3499
      %vm3506 = vmor %vm3504, %vm3505
      %v3507 = vsel %vm3506, %v3499, %v3503
      %v3508 = vand.u32 2147483647, %v2875
      %vm3509 = vcmp.eq.f32.partialorder %v3508, 8.507059e+37
      %v3510 = vand.u32 %v2875, 2147483648
      %v3511 = vor.u32 1.1754944e-38, %v3510
      %v3512 = vsel %vm3509, %v3511, %v3507
      %v3513 = vmul.f32 1.0, %v3512
      %v3514 = vrcp.pop %v2876
      %v3515 = vmul.f32 %v2876, %v3514
      %v3516 = vsub.f32 1.0, %v3515
      %v3517 = vmul.f32 %v3514, %v3516
      %v3518 = vadd.f32 %v3514, %v3517
      %vm3519 = vweird.f32 %v2876
      %vm3520 = vweird.f32 %v3514
      %vm3521 = vmor %vm3519, %vm3520
      %v3522 = vsel %vm3521, %v3514, %v3518
      %v3523 = vand.u32 2147483647, %v2876
      %vm3524 = vcmp.eq.f32.partialorder %v3523, 8.507059e+37
      %v3525 = vand.u32 %v2876, 2147483648
      %v3526 = vor.u32 1.1754944e-38, %v3525
      %v3527 = vsel %vm3524, %v3526, %v3522
      %v3528 = vmul.f32 1.0, %v3527
      %v3529 = vrcp.pop %v2877
      %v3530 = vmul.f32 %v2877, %v3529
      %v3531 = vsub.f32 1.0, %v3530
      %v3532 = vmul.f32 %v3529, %v3531
      %v3533 = vadd.f32 %v3529, %v3532
      %vm3534 = vweird.f32 %v2877
      %vm3535 = vweird.f32 %v3529
      %vm3536 = vmor %vm3534, %vm3535
      %v3537 = vsel %vm3536, %v3529, %v3533
      %v3538 = vand.u32 2147483647, %v2877
      %vm3539 = vcmp.eq.f32.partialorder %v3538, 8.507059e+37
      %v3540 = vand.u32 %v2877, 2147483648
      %v3541 = vor.u32 1.1754944e-38, %v3540
      %v3542 = vsel %vm3539, %v3541, %v3537
      %v3543 = vmul.f32 1.0, %v3542
      %v3544 = vrcp.pop %v2878
      %v3545 = vmul.f32 %v2878, %v3544
      %v3546 = vsub.f32 1.0, %v3545
      %v3547 = vmul.f32 %v3544, %v3546
      %v3548 = vadd.f32 %v3544, %v3547
      %vm3549 = vweird.f32 %v2878
      %vm3550 = vweird.f32 %v3544
      %vm3551 = vmor %vm3549, %vm3550
      %v3552 = vsel %vm3551, %v3544, %v3548
      %v3553 = vand.u32 2147483647, %v2878
      %vm3554 = vcmp.eq.f32.partialorder %v3553, 8.507059e+37
      %v3555 = vand.u32 %v2878, 2147483648
      %v3556 = vor.u32 1.1754944e-38, %v3555
      %v3557 = vsel %vm3554, %v3556, %v3552
      %v3558 = vmul.f32 1.0, %v3557
      %v3559 = vrcp.pop %v2879
      %v3560 = vmul.f32 %v2879, %v3559
      %v3561 = vsub.f32 1.0, %v3560
      %v3562 = vmul.f32 %v3559, %v3561
      %v3563 = vadd.f32 %v3559, %v3562
      %vm3564 = vweird.f32 %v2879
      %vm3565 = vweird.f32 %v3559
      %vm3566 = vmor %vm3564, %vm3565
      %v3567 = vsel %vm3566, %v3559, %v3563
      %v3568 = vand.u32 2147483647, %v2879
      %vm3569 = vcmp.eq.f32.partialorder %v3568, 8.507059e+37
      %v3570 = vand.u32 %v2879, 2147483648
      %v3571 = vor.u32 1.1754944e-38, %v3570
      %v3572 = vsel %vm3569, %v3571, %v3567
      %v3573 = vmul.f32 1.0, %v3572
      %v3574 = vrcp.pop %v2880
      %v3575 = vmul.f32 %v2880, %v3574
      %v3576 = vsub.f32 1.0, %v3575
      %v3577 = vmul.f32 %v3574, %v3576
      %v3578 = vadd.f32 %v3574, %v3577
      %vm3579 = vweird.f32 %v2880
      %vm3580 = vweird.f32 %v3574
      %vm3581 = vmor %vm3579, %vm3580
      %v3582 = vsel %vm3581, %v3574, %v3578
      %v3583 = vand.u32 2147483647, %v2880
      %vm3584 = vcmp.eq.f32.partialorder %v3583, 8.507059e+37
      %v3585 = vand.u32 %v2880, 2147483648
      %v3586 = vor.u32 1.1754944e-38, %v3585
      %v3587 = vsel %vm3584, %v3586, %v3582
      %v3588 = vmul.f32 1.0, %v3587
      %v3589 = vrcp.pop %v2881
      %v3590 = vmul.f32 %v2881, %v3589
      %v3591 = vsub.f32 1.0, %v3590
      %v3592 = vmul.f32 %v3589, %v3591
      %v3593 = vadd.f32 %v3589, %v3592
      %vm3594 = vweird.f32 %v2881
      %vm3595 = vweird.f32 %v3589
      %vm3596 = vmor %vm3594, %vm3595
      %v3597 = vsel %vm3596, %v3589, %v3593
      %v3598 = vand.u32 2147483647, %v2881
      %vm3599 = vcmp.eq.f32.partialorder %v3598, 8.507059e+37
      %v3600 = vand.u32 %v2881, 2147483648
      %v3601 = vor.u32 1.1754944e-38, %v3600
      %v3602 = vsel %vm3599, %v3601, %v3597
      %v3603 = vmul.f32 1.0, %v3602
      %v3604 = vrcp.pop %v2882
      %v3605 = vmul.f32 %v2882, %v3604
      %v3606 = vsub.f32 1.0, %v3605
      %v3607 = vmul.f32 %v3604, %v3606
      %v3608 = vadd.f32 %v3604, %v3607
      %vm3609 = vweird.f32 %v2882
      %vm3610 = vweird.f32 %v3604
      %vm3611 = vmor %vm3609, %vm3610
      %v3612 = vsel %vm3611, %v3604, %v3608
      %v3613 = vand.u32 2147483647, %v2882
      %vm3614 = vcmp.eq.f32.partialorder %v3613, 8.507059e+37
      %v3615 = vand.u32 %v2882, 2147483648
      %v3616 = vor.u32 1.1754944e-38, %v3615
      %v3617 = vsel %vm3614, %v3616, %v3612
      %v3618 = vmul.f32 1.0, %v3617
      %v3619 = vrcp.pop %v2883
      %v3620 = vmul.f32 %v2883, %v3619
      %v3621 = vsub.f32 1.0, %v3620
      %v3622 = vmul.f32 %v3619, %v3621
      %v3623 = vadd.f32 %v3619, %v3622
      %vm3624 = vweird.f32 %v2883
      %vm3625 = vweird.f32 %v3619
      %vm3626 = vmor %vm3624, %vm3625
      %v3627 = vsel %vm3626, %v3619, %v3623
      %v3628 = vand.u32 2147483647, %v2883
      %vm3629 = vcmp.eq.f32.partialorder %v3628, 8.507059e+37
      %v3630 = vand.u32 %v2883, 2147483648
      %v3631 = vor.u32 1.1754944e-38, %v3630
      %v3632 = vsel %vm3629, %v3631, %v3627
      %v3633 = vmul.f32 1.0, %v3632
      %v3634 = vrcp.pop %v2884
      %v3635 = vmul.f32 %v2884, %v3634
      %v3636 = vsub.f32 1.0, %v3635
      %v3637 = vmul.f32 %v3634, %v3636
      %v3638 = vadd.f32 %v3634, %v3637
      %vm3639 = vweird.f32 %v2884
      %vm3640 = vweird.f32 %v3634
      %vm3641 = vmor %vm3639, %vm3640
      %v3642 = vsel %vm3641, %v3634, %v3638
      %v3643 = vand.u32 2147483647, %v2884
      %vm3644 = vcmp.eq.f32.partialorder %v3643, 8.507059e+37
      %v3645 = vand.u32 %v2884, 2147483648
      %v3646 = vor.u32 1.1754944e-38, %v3645
      %v3647 = vsel %vm3644, %v3646, %v3642
      %v3648 = vmul.f32 1.0, %v3647
      %v3649 = vrcp.pop %v2885
      %v3650 = vmul.f32 %v2885, %v3649
      %v3651 = vsub.f32 1.0, %v3650
      %v3652 = vmul.f32 %v3649, %v3651
      %v3653 = vadd.f32 %v3649, %v3652
      %vm3654 = vweird.f32 %v2885
      %vm3655 = vweird.f32 %v3649
      %vm3656 = vmor %vm3654, %vm3655
      %v3657 = vsel %vm3656, %v3649, %v3653
      %v3658 = vand.u32 2147483647, %v2885
      %vm3659 = vcmp.eq.f32.partialorder %v3658, 8.507059e+37
      %v3660 = vand.u32 %v2885, 2147483648
      %v3661 = vor.u32 1.1754944e-38, %v3660
      %v3662 = vsel %vm3659, %v3661, %v3657
      %v3663 = vmul.f32 1.0, %v3662
      %v3664 = vrcp.pop %v2886
      %v3665 = vmul.f32 %v2886, %v3664
      %v3666 = vsub.f32 1.0, %v3665
      %v3667 = vmul.f32 %v3664, %v3666
      %v3668 = vadd.f32 %v3664, %v3667
      %vm3669 = vweird.f32 %v2886
      %vm3670 = vweird.f32 %v3664
      %vm3671 = vmor %vm3669, %vm3670
      %v3672 = vsel %vm3671, %v3664, %v3668
      %v3673 = vand.u32 2147483647, %v2886
      %vm3674 = vcmp.eq.f32.partialorder %v3673, 8.507059e+37
      %v3675 = vand.u32 %v2886, 2147483648
      %v3676 = vor.u32 1.1754944e-38, %v3675
      %v3677 = vsel %vm3674, %v3676, %v3672
      %v3678 = vmul.f32 1.0, %v3677
      %v3679 = vrcp.pop %v2887
      %v3680 = vmul.f32 %v2887, %v3679
      %v3681 = vsub.f32 1.0, %v3680
      %v3682 = vmul.f32 %v3679, %v3681
      %v3683 = vadd.f32 %v3679, %v3682
      %vm3684 = vweird.f32 %v2887
      %vm3685 = vweird.f32 %v3679
      %vm3686 = vmor %vm3684, %vm3685
      %v3687 = vsel %vm3686, %v3679, %v3683
      %v3688 = vand.u32 2147483647, %v2887
      %vm3689 = vcmp.eq.f32.partialorder %v3688, 8.507059e+37
      %v3690 = vand.u32 %v2887, 2147483648
      %v3691 = vor.u32 1.1754944e-38, %v3690
      %v3692 = vsel %vm3689, %v3691, %v3687
      %v3693 = vmul.f32 1.0, %v3692
      %v3694 = vrcp.pop %v2888
      %v3695 = vmul.f32 %v2888, %v3694
      %v3696 = vsub.f32 1.0, %v3695
      %v3697 = vmul.f32 %v3694, %v3696
      %v3698 = vadd.f32 %v3694, %v3697
      %vm3699 = vweird.f32 %v2888
      %vm3700 = vweird.f32 %v3694
      %vm3701 = vmor %vm3699, %vm3700
      %v3702 = vsel %vm3701, %v3694, %v3698
      %v3703 = vand.u32 2147483647, %v2888
      %vm3704 = vcmp.eq.f32.partialorder %v3703, 8.507059e+37
      %v3705 = vand.u32 %v2888, 2147483648
      %v3706 = vor.u32 1.1754944e-38, %v3705
      %v3707 = vsel %vm3704, %v3706, %v3702
      %v3708 = vmul.f32 1.0, %v3707
      %v3709 = vrcp.pop %v2889
      %v3710 = vmul.f32 %v2889, %v3709
      %v3711 = vsub.f32 1.0, %v3710
      %v3712 = vmul.f32 %v3709, %v3711
      %v3713 = vadd.f32 %v3709, %v3712
      %vm3714 = vweird.f32 %v2889
      %vm3715 = vweird.f32 %v3709
      %vm3716 = vmor %vm3714, %vm3715
      %v3717 = vsel %vm3716, %v3709, %v3713
      %v3718 = vand.u32 2147483647, %v2889
      %vm3719 = vcmp.eq.f32.partialorder %v3718, 8.507059e+37
      %v3720 = vand.u32 %v2889, 2147483648
      %v3721 = vor.u32 1.1754944e-38, %v3720
      %v3722 = vsel %vm3719, %v3721, %v3717
      %v3723 = vmul.f32 1.0, %v3722
      %v3724 = vrcp.pop %v2890
      %v3725 = vmul.f32 %v2890, %v3724
      %v3726 = vsub.f32 1.0, %v3725
      %v3727 = vmul.f32 %v3724, %v3726
      %v3728 = vadd.f32 %v3724, %v3727
      %vm3729 = vweird.f32 %v2890
      %vm3730 = vweird.f32 %v3724
      %vm3731 = vmor %vm3729, %vm3730
      %v3732 = vsel %vm3731, %v3724, %v3728
      %v3733 = vand.u32 2147483647, %v2890
      %vm3734 = vcmp.eq.f32.partialorder %v3733, 8.507059e+37
      %v3735 = vand.u32 %v2890, 2147483648
      %v3736 = vor.u32 1.1754944e-38, %v3735
      %v3737 = vsel %vm3734, %v3736, %v3732
      %v3738 = vmul.f32 1.0, %v3737
      %v3739 = vrcp.pop %v2891
      %v3740 = vmul.f32 %v2891, %v3739
      %v3741 = vsub.f32 1.0, %v3740
      %v3742 = vmul.f32 %v3739, %v3741
      %v3743 = vadd.f32 %v3739, %v3742
      %vm3744 = vweird.f32 %v2891
      %vm3745 = vweird.f32 %v3739
      %vm3746 = vmor %vm3744, %vm3745
      %v3747 = vsel %vm3746, %v3739, %v3743
      %v3748 = vand.u32 2147483647, %v2891
      %vm3749 = vcmp.eq.f32.partialorder %v3748, 8.507059e+37
      %v3750 = vand.u32 %v2891, 2147483648
      %v3751 = vor.u32 1.1754944e-38, %v3750
      %v3752 = vsel %vm3749, %v3751, %v3747
      %v3753 = vmul.f32 1.0, %v3752
      %v3754 = vrcp.pop %v2892
      %v3755 = vmul.f32 %v2892, %v3754
      %v3756 = vsub.f32 1.0, %v3755
      %v3757 = vmul.f32 %v3754, %v3756
      %v3758 = vadd.f32 %v3754, %v3757
      %vm3759 = vweird.f32 %v2892
      %vm3760 = vweird.f32 %v3754
      %vm3761 = vmor %vm3759, %vm3760
      %v3762 = vsel %vm3761, %v3754, %v3758
      %v3763 = vand.u32 2147483647, %v2892
      %vm3764 = vcmp.eq.f32.partialorder %v3763, 8.507059e+37
      %v3765 = vand.u32 %v2892, 2147483648
      %v3766 = vor.u32 1.1754944e-38, %v3765
      %v3767 = vsel %vm3764, %v3766, %v3762
      %v3768 = vmul.f32 1.0, %v3767
      %v3769 = vrcp.pop %v2893
      %v3770 = vmul.f32 %v2893, %v3769
      %v3771 = vsub.f32 1.0, %v3770
      %v3772 = vmul.f32 %v3769, %v3771
      %v3773 = vadd.f32 %v3769, %v3772
      %vm3774 = vweird.f32 %v2893
      %vm3775 = vweird.f32 %v3769
      %vm3776 = vmor %vm3774, %vm3775
      %v3777 = vsel %vm3776, %v3769, %v3773
      %v3778 = vand.u32 2147483647, %v2893
      %vm3779 = vcmp.eq.f32.partialorder %v3778, 8.507059e+37
      %v3780 = vand.u32 %v2893, 2147483648
      %v3781 = vor.u32 1.1754944e-38, %v3780
      %v3782 = vsel %vm3779, %v3781, %v3777
      %v3783 = vmul.f32 1.0, %v3782
      %v3784 = vrcp.pop %v2894
      %v3785 = vmul.f32 %v2894, %v3784
      %v3786 = vsub.f32 1.0, %v3785
      %v3787 = vmul.f32 %v3784, %v3786
      %v3788 = vadd.f32 %v3784, %v3787
      %vm3789 = vweird.f32 %v2894
      %vm3790 = vweird.f32 %v3784
      %vm3791 = vmor %vm3789, %vm3790
      %v3792 = vsel %vm3791, %v3784, %v3788
      %v3793 = vand.u32 2147483647, %v2894
      %vm3794 = vcmp.eq.f32.partialorder %v3793, 8.507059e+37
      %v3795 = vand.u32 %v2894, 2147483648
      %v3796 = vor.u32 1.1754944e-38, %v3795
      %v3797 = vsel %vm3794, %v3796, %v3792
      %v3798 = vmul.f32 1.0, %v3797
      %v3799 = vrcp.pop %v2895
      %v3800 = vmul.f32 %v2895, %v3799
      %v3801 = vsub.f32 1.0, %v3800
      %v3802 = vmul.f32 %v3799, %v3801
      %v3803 = vadd.f32 %v3799, %v3802
      %vm3804 = vweird.f32 %v2895
      %vm3805 = vweird.f32 %v3799
      %vm3806 = vmor %vm3804, %vm3805
      %v3807 = vsel %vm3806, %v3799, %v3803
      %v3808 = vand.u32 2147483647, %v2895
      %vm3809 = vcmp.eq.f32.partialorder %v3808, 8.507059e+37
      %v3810 = vand.u32 %v2895, 2147483648
      %v3811 = vor.u32 1.1754944e-38, %v3810
      %v3812 = vsel %vm3809, %v3811, %v3807
      %v3813 = vmul.f32 1.0, %v3812
      %v3814 = vrcp.pop %v2896
      %v3815 = vmul.f32 %v2896, %v3814
      %v3816 = vsub.f32 1.0, %v3815
      %v3817 = vmul.f32 %v3814, %v3816
      %v3818 = vadd.f32 %v3814, %v3817
      %vm3819 = vweird.f32 %v2896
      %vm3820 = vweird.f32 %v3814
      %vm3821 = vmor %vm3819, %vm3820
      %v3822 = vsel %vm3821, %v3814, %v3818
      %v3823 = vand.u32 2147483647, %v2896
      %vm3824 = vcmp.eq.f32.partialorder %v3823, 8.507059e+37
      %v3825 = vand.u32 %v2896, 2147483648
      %v3826 = vor.u32 1.1754944e-38, %v3825
      %v3827 = vsel %vm3824, %v3826, %v3822
      %v3828 = vmul.f32 1.0, %v3827
      %v3829 = vrcp.pop %v2897
      %v3830 = vmul.f32 %v2897, %v3829
      %v3831 = vsub.f32 1.0, %v3830
      %v3832 = vmul.f32 %v3829, %v3831
      %v3833 = vadd.f32 %v3829, %v3832
      %vm3834 = vweird.f32 %v2897
      %vm3835 = vweird.f32 %v3829
      %vm3836 = vmor %vm3834, %vm3835
      %v3837 = vsel %vm3836, %v3829, %v3833
      %v3838 = vand.u32 2147483647, %v2897
      %vm3839 = vcmp.eq.f32.partialorder %v3838, 8.507059e+37
      %v3840 = vand.u32 %v2897, 2147483648
      %v3841 = vor.u32 1.1754944e-38, %v3840
      %v3842 = vsel %vm3839, %v3841, %v3837
      %v3843 = vmul.f32 1.0, %v3842
      %v3844 = vrcp.pop %v2898
      %v3845 = vmul.f32 %v2898, %v3844
      %v3846 = vsub.f32 1.0, %v3845
      %v3847 = vmul.f32 %v3844, %v3846
      %v3848 = vadd.f32 %v3844, %v3847
      %vm3849 = vweird.f32 %v2898
      %vm3850 = vweird.f32 %v3844
      %vm3851 = vmor %vm3849, %vm3850
      %v3852 = vsel %vm3851, %v3844, %v3848
      %v3853 = vand.u32 2147483647, %v2898
      %vm3854 = vcmp.eq.f32.partialorder %v3853, 8.507059e+37
      %v3855 = vand.u32 %v2898, 2147483648
      %v3856 = vor.u32 1.1754944e-38, %v3855
      %v3857 = vsel %vm3854, %v3856, %v3852
      %v3858 = vmul.f32 1.0, %v3857
      %v3859 = vrcp.pop %v2899
      %v3860 = vmul.f32 %v2899, %v3859
      %v3861 = vsub.f32 1.0, %v3860
      %v3862 = vmul.f32 %v3859, %v3861
      %v3863 = vadd.f32 %v3859, %v3862
      %vm3864 = vweird.f32 %v2899
      %vm3865 = vweird.f32 %v3859
      %vm3866 = vmor %vm3864, %vm3865
      %v3867 = vsel %vm3866, %v3859, %v3863
      %v3868 = vand.u32 2147483647, %v2899
      %vm3869 = vcmp.eq.f32.partialorder %v3868, 8.507059e+37
      %v3870 = vand.u32 %v2899, 2147483648
      %v3871 = vor.u32 1.1754944e-38, %v3870
      %v3872 = vsel %vm3869, %v3871, %v3867
      %v3873 = vmul.f32 1.0, %v3872
      %v3874 = vrcp.pop %v2900
      %v3875 = vmul.f32 %v2900, %v3874
      %v3876 = vsub.f32 1.0, %v3875
      %v3877 = vmul.f32 %v3874, %v3876
      %v3878 = vadd.f32 %v3874, %v3877
      %vm3879 = vweird.f32 %v2900
      %vm3880 = vweird.f32 %v3874
      %vm3881 = vmor %vm3879, %vm3880
      %v3882 = vsel %vm3881, %v3874, %v3878
      %v3883 = vand.u32 2147483647, %v2900
      %vm3884 = vcmp.eq.f32.partialorder %v3883, 8.507059e+37
      %v3885 = vand.u32 %v2900, 2147483648
      %v3886 = vor.u32 1.1754944e-38, %v3885
      %v3887 = vsel %vm3884, %v3886, %v3882
      %v3888 = vmul.f32 1.0, %v3887
      %v3889 = vrcp.pop %v2901
      %v3890 = vmul.f32 %v2901, %v3889
      %v3891 = vsub.f32 1.0, %v3890
      %v3892 = vmul.f32 %v3889, %v3891
      %v3893 = vadd.f32 %v3889, %v3892
      %vm3894 = vweird.f32 %v2901
      %vm3895 = vweird.f32 %v3889
      %vm3896 = vmor %vm3894, %vm3895
      %v3897 = vsel %vm3896, %v3889, %v3893
      %v3898 = vand.u32 2147483647, %v2901
      %vm3899 = vcmp.eq.f32.partialorder %v3898, 8.507059e+37
      %v3900 = vand.u32 %v2901, 2147483648
      %v3901 = vor.u32 1.1754944e-38, %v3900
      %v3902 = vsel %vm3899, %v3901, %v3897
      %v3903 = vmul.f32 1.0, %v3902
      %v3904 = vrcp.pop %v2902
      %v3905 = vmul.f32 %v2902, %v3904
      %v3906 = vsub.f32 1.0, %v3905
      %v3907 = vmul.f32 %v3904, %v3906
      %v3908 = vadd.f32 %v3904, %v3907
      %vm3909 = vweird.f32 %v2902
      %vm3910 = vweird.f32 %v3904
      %vm3911 = vmor %vm3909, %vm3910
      %v3912 = vsel %vm3911, %v3904, %v3908
      %v3913 = vand.u32 2147483647, %v2902
      %vm3914 = vcmp.eq.f32.partialorder %v3913, 8.507059e+37
      %v3915 = vand.u32 %v2902, 2147483648
      %v3916 = vor.u32 1.1754944e-38, %v3915
      %v3917 = vsel %vm3914, %v3916, %v3912
      %v3918 = vmul.f32 1.0, %v3917
      %v3919 = vrcp.pop %v2903
      %v3920 = vmul.f32 %v2903, %v3919
      %v3921 = vsub.f32 1.0, %v3920
      %v3922 = vmul.f32 %v3919, %v3921
      %v3923 = vadd.f32 %v3919, %v3922
      %vm3924 = vweird.f32 %v2903
      %vm3925 = vweird.f32 %v3919
      %vm3926 = vmor %vm3924, %vm3925
      %v3927 = vsel %vm3926, %v3919, %v3923
      %v3928 = vand.u32 2147483647, %v2903
      %vm3929 = vcmp.eq.f32.partialorder %v3928, 8.507059e+37
      %v3930 = vand.u32 %v2903, 2147483648
      %v3931 = vor.u32 1.1754944e-38, %v3930
      %v3932 = vsel %vm3929, %v3931, %v3927
      %v3933 = vmul.f32 1.0, %v3932
      %v3934 = vrcp.pop %v2904
      %v3935 = vmul.f32 %v2904, %v3934
      %v3936 = vsub.f32 1.0, %v3935
      %v3937 = vmul.f32 %v3934, %v3936
      %v3938 = vadd.f32 %v3934, %v3937
      %vm3939 = vweird.f32 %v2904
      %vm3940 = vweird.f32 %v3934
      %vm3941 = vmor %vm3939, %vm3940
      %v3942 = vsel %vm3941, %v3934, %v3938
      %v3943 = vand.u32 2147483647, %v2904
      %vm3944 = vcmp.eq.f32.partialorder %v3943, 8.507059e+37
      %v3945 = vand.u32 %v2904, 2147483648
      %v3946 = vor.u32 1.1754944e-38, %v3945
      %v3947 = vsel %vm3944, %v3946, %v3942
      %v3948 = vmul.f32 1.0, %v3947
      %v3949 = vrcp.pop %v2905
      %v3950 = vmul.f32 %v2905, %v3949
      %v3951 = vsub.f32 1.0, %v3950
      %v3952 = vmul.f32 %v3949, %v3951
      %v3953 = vadd.f32 %v3949, %v3952
      %vm3954 = vweird.f32 %v2905
      %vm3955 = vweird.f32 %v3949
      %vm3956 = vmor %vm3954, %vm3955
      %v3957 = vsel %vm3956, %v3949, %v3953
      %v3958 = vand.u32 2147483647, %v2905
      %vm3959 = vcmp.eq.f32.partialorder %v3958, 8.507059e+37
      %v3960 = vand.u32 %v2905, 2147483648
      %v3961 = vor.u32 1.1754944e-38, %v3960
      %v3962 = vsel %vm3959, %v3961, %v3957
      %v3963 = vmul.f32 1.0, %v3962
      %v3964 = vrcp.pop %v2906
      %v3965 = vmul.f32 %v2906, %v3964
      %v3966 = vsub.f32 1.0, %v3965
      %v3967 = vmul.f32 %v3964, %v3966
      %v3968 = vadd.f32 %v3964, %v3967
      %vm3969 = vweird.f32 %v2906
      %vm3970 = vweird.f32 %v3964
      %vm3971 = vmor %vm3969, %vm3970
      %v3972 = vsel %vm3971, %v3964, %v3968
      %v3973 = vand.u32 2147483647, %v2906
      %vm3974 = vcmp.eq.f32.partialorder %v3973, 8.507059e+37
      %v3975 = vand.u32 %v2906, 2147483648
      %v3976 = vor.u32 1.1754944e-38, %v3975
      %v3977 = vsel %vm3974, %v3976, %v3972
      %v3978 = vmul.f32 1.0, %v3977
      %v3979 = vrcp.pop %v2907
      %v3980 = vmul.f32 %v2907, %v3979
      %v3981 = vsub.f32 1.0, %v3980
      %v3982 = vmul.f32 %v3979, %v3981
      %v3983 = vadd.f32 %v3979, %v3982
      %vm3984 = vweird.f32 %v2907
      %vm3985 = vweird.f32 %v3979
      %vm3986 = vmor %vm3984, %vm3985
      %v3987 = vsel %vm3986, %v3979, %v3983
      %v3988 = vand.u32 2147483647, %v2907
      %vm3989 = vcmp.eq.f32.partialorder %v3988, 8.507059e+37
      %v3990 = vand.u32 %v2907, 2147483648
      %v3991 = vor.u32 1.1754944e-38, %v3990
      %v3992 = vsel %vm3989, %v3991, %v3987
      %v3993 = vmul.f32 1.0, %v3992
      %v3994 = vrcp.pop %v2908
      %v3995 = vmul.f32 %v2908, %v3994
      %v3996 = vsub.f32 1.0, %v3995
      %v3997 = vmul.f32 %v3994, %v3996
      %v3998 = vadd.f32 %v3994, %v3997
      %vm3999 = vweird.f32 %v2908
      %vm4000 = vweird.f32 %v3994
      %vm4001 = vmor %vm3999, %vm4000
      %v4002 = vsel %vm4001, %v3994, %v3998
      %v4003 = vand.u32 2147483647, %v2908
      %vm4004 = vcmp.eq.f32.partialorder %v4003, 8.507059e+37
      %v4005 = vand.u32 %v2908, 2147483648
      %v4006 = vor.u32 1.1754944e-38, %v4005
      %v4007 = vsel %vm4004, %v4006, %v4002
      %v4008 = vmul.f32 1.0, %v4007
      %v4009 = vrcp.pop %v2909
      %v4010 = vmul.f32 %v2909, %v4009
      %v4011 = vsub.f32 1.0, %v4010
      %v4012 = vmul.f32 %v4009, %v4011
      %v4013 = vadd.f32 %v4009, %v4012
      %vm4014 = vweird.f32 %v2909
      %vm4015 = vweird.f32 %v4009
      %vm4016 = vmor %vm4014, %vm4015
      %v4017 = vsel %vm4016, %v4009, %v4013
      %v4018 = vand.u32 2147483647, %v2909
      %vm4019 = vcmp.eq.f32.partialorder %v4018, 8.507059e+37
      %v4020 = vand.u32 %v2909, 2147483648
      %v4021 = vor.u32 1.1754944e-38, %v4020
      %v4022 = vsel %vm4019, %v4021, %v4017
      %v4023 = vmul.f32 1.0, %v4022
      %v4024 = vrcp.pop %v2910
      %v4025 = vmul.f32 %v2910, %v4024
      %v4026 = vsub.f32 1.0, %v4025
      %v4027 = vmul.f32 %v4024, %v4026
      %v4028 = vadd.f32 %v4024, %v4027
      %vm4029 = vweird.f32 %v2910
      %vm4030 = vweird.f32 %v4024
      %vm4031 = vmor %vm4029, %vm4030
      %v4032 = vsel %vm4031, %v4024, %v4028
      %v4033 = vand.u32 2147483647, %v2910
      %vm4034 = vcmp.eq.f32.partialorder %v4033, 8.507059e+37
      %v4035 = vand.u32 %v2910, 2147483648
      %v4036 = vor.u32 1.1754944e-38, %v4035
      %v4037 = vsel %vm4034, %v4036, %v4032
      %v4038 = vmul.f32 1.0, %v4037
      %v4039 = vrcp.pop %v2911
      %v4040 = vmul.f32 %v2911, %v4039
      %v4041 = vsub.f32 1.0, %v4040
      %v4042 = vmul.f32 %v4039, %v4041
      %v4043 = vadd.f32 %v4039, %v4042
      %vm4044 = vweird.f32 %v2911
      %vm4045 = vweird.f32 %v4039
      %vm4046 = vmor %vm4044, %vm4045
      %v4047 = vsel %vm4046, %v4039, %v4043
      %v4048 = vand.u32 2147483647, %v2911
      %vm4049 = vcmp.eq.f32.partialorder %v4048, 8.507059e+37
      %v4050 = vand.u32 %v2911, 2147483648
      %v4051 = vor.u32 1.1754944e-38, %v4050
      %v4052 = vsel %vm4049, %v4051, %v4047
      %v4053 = vmul.f32 1.0, %v4052
      %v4054 = vrcp.pop %v2912
      %v4055 = vmul.f32 %v2912, %v4054
      %v4056 = vsub.f32 1.0, %v4055
      %v4057 = vmul.f32 %v4054, %v4056
      %v4058 = vadd.f32 %v4054, %v4057
      %vm4059 = vweird.f32 %v2912
      %vm4060 = vweird.f32 %v4054
      %vm4061 = vmor %vm4059, %vm4060
      %v4062 = vsel %vm4061, %v4054, %v4058
      %v4063 = vand.u32 2147483647, %v2912
      %vm4064 = vcmp.eq.f32.partialorder %v4063, 8.507059e+37
      %v4065 = vand.u32 %v2912, 2147483648
      %v4066 = vor.u32 1.1754944e-38, %v4065
      %v4067 = vsel %vm4064, %v4066, %v4062
      %v4068 = vmul.f32 1.0, %v4067
      %v4069 = vrcp.pop %v2913
      %v4070 = vmul.f32 %v2913, %v4069
      %v4071 = vsub.f32 1.0, %v4070
      %v4072 = vmul.f32 %v4069, %v4071
      %v4073 = vadd.f32 %v4069, %v4072
      %vm4074 = vweird.f32 %v2913
      %vm4075 = vweird.f32 %v4069
      %vm4076 = vmor %vm4074, %vm4075
      %v4077 = vsel %vm4076, %v4069, %v4073
      %v4078 = vand.u32 2147483647, %v2913
      %vm4079 = vcmp.eq.f32.partialorder %v4078, 8.507059e+37
      %v4080 = vand.u32 %v2913, 2147483648
      %v4081 = vor.u32 1.1754944e-38, %v4080
      %v4082 = vsel %vm4079, %v4081, %v4077
      %v4083 = vmul.f32 1.0, %v4082
      %4084 = vst [vmem:[#allocation2] sm:$0xff] %v2928
      %4085 = vst [vmem:[#allocation2 + $0x8] sm:$0xff] %v2943
      %4086 = vst.msk [vmem:[#allocation2 + $0x10] sm:$0xff] %vm884, %v2958
      %4087 = vst [vmem:[#allocation2 + $0x18] sm:$0xff] %v2973
      %4088 = vst [vmem:[#allocation2 + $0x20] sm:$0xff] %v2988
      %4089 = vst.msk [vmem:[#allocation2 + $0x28] sm:$0xff] %vm884, %v3003
      %4090 = vst [vmem:[#allocation2 + $0x30] sm:$0xff] %v3018
      %4091 = vst [vmem:[#allocation2 + $0x38] sm:$0xff] %v3033
      %4092 = vst.msk [vmem:[#allocation2 + $0x40] sm:$0xff] %vm884, %v3048
      %4093 = vst [vmem:[#allocation2 + $0x48] sm:$0xff] %v3063
      %4094 = vst [vmem:[#allocation2 + $0x50] sm:$0xff] %v3078
      %4095 = vst.msk [vmem:[#allocation2 + $0x58] sm:$0xff] %vm884, %v3093
      %4096 = vst [vmem:[#allocation2 + $0x60] sm:$0xff] %v3108
      %4097 = vst [vmem:[#allocation2 + $0x68] sm:$0xff] %v3123
      %4098 = vst.msk [vmem:[#allocation2 + $0x70] sm:$0xff] %vm884, %v3138
      %4099 = vst [vmem:[#allocation2 + $0x78] sm:$0xff] %v3153
      %4100 = vst [vmem:[#allocation2 + $0x80] sm:$0xff] %v3168
      %4101 = vst.msk [vmem:[#allocation2 + $0x88] sm:$0xff] %vm884, %v3183
      %4102 = vst [vmem:[#allocation2 + $0x90] sm:$0xff] %v3198
      %4103 = vst [vmem:[#allocation2 + $0x98] sm:$0xff] %v3213
      %4104 = vst.msk [vmem:[#allocation2 + $0xa0] sm:$0xff] %vm884, %v3228
      %4105 = vst [vmem:[#allocation2 + $0xa8] sm:$0xff] %v3243
      %4106 = vst [vmem:[#allocation2 + $0xb0] sm:$0xff] %v3258
      %4107 = vst.msk [vmem:[#allocation2 + $0xb8] sm:$0xff] %vm884, %v3273
      %4108 = vst [vmem:[#allocation2 + $0xc0] sm:$0xff] %v3288
      %4109 = vst [vmem:[#allocation2 + $0xc8] sm:$0xff] %v3303
      %4110 = vst.msk [vmem:[#allocation2 + $0xd0] sm:$0xff] %vm884, %v3318
      %4111 = vst [vmem:[#allocation2 + $0xd8] sm:$0xff] %v3333
      %4112 = vst [vmem:[#allocation2 + $0xe0] sm:$0xff] %v3348
      %4113 = vst.msk [vmem:[#allocation2 + $0xe8] sm:$0xff] %vm884, %v3363
      %4114 = vst [vmem:[#allocation2 + $0xf0] sm:$0xff] %v3378
      %4115 = vst [vmem:[#allocation2 + $0xf8] sm:$0xff] %v3393
      %4116 = vst.msk [vmem:[#allocation2 + $0x100] sm:$0xff] %vm884, %v3408
      %4117 = vst [vmem:[#allocation2 + $0x108] sm:$0xff] %v3423
      %4118 = vst [vmem:[#allocation2 + $0x110] sm:$0xff] %v3438
      %4119 = vst.msk [vmem:[#allocation2 + $0x118] sm:$0xff] %vm884, %v3453
      %4120 = vst [vmem:[#allocation2 + $0x120] sm:$0xff] %v3468
      %4121 = vst [vmem:[#allocation2 + $0x128] sm:$0xff] %v3483
      %4122 = vst.msk [vmem:[#allocation2 + $0x130] sm:$0xff] %vm884, %v3498
      %4123 = vst [vmem:[#allocation2 + $0x138] sm:$0xff] %v3513
      %4124 = vst [vmem:[#allocation2 + $0x140] sm:$0xff] %v3528
      %4125 = vst.msk [vmem:[#allocation2 + $0x148] sm:$0xff] %vm884, %v3543
      %4126 = vst [vmem:[#allocation2 + $0x150] sm:$0xff] %v3558
      %4127 = vst [vmem:[#allocation2 + $0x158] sm:$0xff] %v3573
      %4128 = vst.msk [vmem:[#allocation2 + $0x160] sm:$0xff] %vm884, %v3588
      %4129 = vst [vmem:[#allocation2 + $0x168] sm:$0xff] %v3603
      %4130 = vst [vmem:[#allocation2 + $0x170] sm:$0xff] %v3618
      %4131 = vst.msk [vmem:[#allocation2 + $0x178] sm:$0xff] %vm884, %v3633
      %4132 = vst [vmem:[#allocation2 + $0x180] sm:$0xff] %v3648
      %4133 = vst [vmem:[#allocation2 + $0x188] sm:$0xff] %v3663
      %4134 = vst.msk [vmem:[#allocation2 + $0x190] sm:$0xff] %vm884, %v3678
      %4135 = vst [vmem:[#allocation2 + $0x198] sm:$0xff] %v3693
      %4136 = vst [vmem:[#allocation2 + $0x1a0] sm:$0xff] %v3708
      %4137 = vst.msk [vmem:[#allocation2 + $0x1a8] sm:$0xff] %vm884, %v3723
      %4138 = vst [vmem:[#allocation2 + $0x1b0] sm:$0xff] %v3738
      %4139 = vst [vmem:[#allocation2 + $0x1b8] sm:$0xff] %v3753
      %4140 = vst.msk [vmem:[#allocation2 + $0x1c0] sm:$0xff] %vm884, %v3768
      %4141 = vst [vmem:[#allocation2 + $0x1c8] sm:$0xff] %v3783
      %4142 = vst [vmem:[#allocation2 + $0x1d0] sm:$0xff] %v3798
      %4143 = vst.msk [vmem:[#allocation2 + $0x1d8] sm:$0xff] %vm884, %v3813
      %4144 = vst [vmem:[#allocation2 + $0x1e0] sm:$0xff] %v3828
      %4145 = vst [vmem:[#allocation2 + $0x1e8] sm:$0xff] %v3843
      %4146 = vst.msk [vmem:[#allocation2 + $0x1f0] sm:$0xff] %vm884, %v3858
      %4147 = vst [vmem:[#allocation2 + $0x1f8] sm:$0xff] %v3873
      %4148 = vst [vmem:[#allocation2 + $0x200] sm:$0xff] %v3888
      %4149 = vst.msk [vmem:[#allocation2 + $0x208] sm:$0xff] %vm884, %v3903
      %4150 = vst [vmem:[#allocation2 + $0x210] sm:$0xff] %v3918
      %4151 = vst [vmem:[#allocation2 + $0x218] sm:$0xff] %v3933
      %4152 = vst.msk [vmem:[#allocation2 + $0x220] sm:$0xff] %vm884, %v3948
      %4153 = vst [vmem:[#allocation2 + $0x228] sm:$0xff] %v3963
      %4154 = vst [vmem:[#allocation2 + $0x230] sm:$0xff] %v3978
      %4155 = vst.msk [vmem:[#allocation2 + $0x238] sm:$0xff] %vm884, %v3993
      %4156 = vst [vmem:[#allocation2 + $0x240] sm:$0xff] %v4008
      %4157 = vst [vmem:[#allocation2 + $0x248] sm:$0xff] %v4023
      %4158 = vst.msk [vmem:[#allocation2 + $0x250] sm:$0xff] %vm884, %v4038
      %4159 = vst [vmem:[#allocation2 + $0x258] sm:$0x3f] %v4053
      %4160 = vst [vmem:[#allocation2 + $0x260] sm:$0x3f] %v4068
      %4161 = vst.msk [vmem:[#allocation2 + $0x268] sm:$0x3f] %vm960, %v4083
      %v4162 = vld [vmem:[#allocation2] sm:$0xff]
      %v4163 = vld [vmem:[#allocation2 + $0x8] sm:$0xff]
      %v4164 = vld [vmem:[#allocation2 + $0x10] sm:$0xff]
      %v4165 = vld [vmem:[#allocation2 + $0x18] sm:$0xff]
      %v4166 = vld [vmem:[#allocation2 + $0x20] sm:$0xff]
      %v4167 = vld [vmem:[#allocation2 + $0x28] sm:$0xff]
      %v4168 = vld [vmem:[#allocation2 + $0x30] sm:$0xff]
      %v4169 = vld [vmem:[#allocation2 + $0x38] sm:$0xff]
      %v4170 = vld [vmem:[#allocation2 + $0x40] sm:$0xff]
      %v4171 = vld [vmem:[#allocation2 + $0x48] sm:$0xff]
      %v4172 = vld [vmem:[#allocation2 + $0x50] sm:$0xff]
      %v4173 = vld [vmem:[#allocation2 + $0x58] sm:$0xff]
      %v4174 = vld [vmem:[#allocation2 + $0x60] sm:$0xff]
      %v4175 = vld [vmem:[#allocation2 + $0x68] sm:$0xff]
      %v4176 = vld [vmem:[#allocation2 + $0x70] sm:$0xff]
      %v4177 = vld [vmem:[#allocation2 + $0x78] sm:$0xff]
      %v4178 = vld [vmem:[#allocation2 + $0x80] sm:$0xff]
      %v4179 = vld [vmem:[#allocation2 + $0x88] sm:$0xff]
      %v4180 = vld [vmem:[#allocation2 + $0x90] sm:$0xff]
      %v4181 = vld [vmem:[#allocation2 + $0x98] sm:$0xff]
      %v4182 = vld [vmem:[#allocation2 + $0xa0] sm:$0xff]
      %v4183 = vld [vmem:[#allocation2 + $0xa8] sm:$0xff]
      %v4184 = vld [vmem:[#allocation2 + $0xb0] sm:$0xff]
      %v4185 = vld [vmem:[#allocation2 + $0xb8] sm:$0xff]
      %v4186 = vld [vmem:[#allocation2 + $0xc0] sm:$0xff]
      %v4187 = vld [vmem:[#allocation2 + $0xc8] sm:$0xff]
      %v4188 = vld [vmem:[#allocation2 + $0xd0] sm:$0xff]
      %v4189 = vld [vmem:[#allocation2 + $0xd8] sm:$0xff]
      %v4190 = vld [vmem:[#allocation2 + $0xe0] sm:$0xff]
      %v4191 = vld [vmem:[#allocation2 + $0xe8] sm:$0xff]
      %v4192 = vld [vmem:[#allocation2 + $0xf0] sm:$0xff]
      %v4193 = vld [vmem:[#allocation2 + $0xf8] sm:$0xff]
      %v4194 = vld [vmem:[#allocation2 + $0x100] sm:$0xff]
      %v4195 = vld [vmem:[#allocation2 + $0x108] sm:$0xff]
      %v4196 = vld [vmem:[#allocation2 + $0x110] sm:$0xff]
      %v4197 = vld [vmem:[#allocation2 + $0x118] sm:$0xff]
      %v4198 = vld [vmem:[#allocation2 + $0x120] sm:$0xff]
      %v4199 = vld [vmem:[#allocation2 + $0x128] sm:$0xff]
      %v4200 = vld [vmem:[#allocation2 + $0x130] sm:$0xff]
      %v4201 = vld [vmem:[#allocation2 + $0x138] sm:$0xff]
      %v4202 = vld [vmem:[#allocation2 + $0x140] sm:$0xff]
      %v4203 = vld [vmem:[#allocation2 + $0x148] sm:$0xff]
      %v4204 = vld [vmem:[#allocation2 + $0x150] sm:$0xff]
      %v4205 = vld [vmem:[#allocation2 + $0x158] sm:$0xff]
      %v4206 = vld [vmem:[#allocation2 + $0x160] sm:$0xff]
      %v4207 = vld [vmem:[#allocation2 + $0x168] sm:$0xff]
      %v4208 = vld [vmem:[#allocation2 + $0x170] sm:$0xff]
      %v4209 = vld [vmem:[#allocation2 + $0x178] sm:$0xff]
      %v4210 = vld [vmem:[#allocation2 + $0x180] sm:$0xff]
      %v4211 = vld [vmem:[#allocation2 + $0x188] sm:$0xff]
      %v4212 = vld [vmem:[#allocation2 + $0x190] sm:$0xff]
      %v4213 = vld [vmem:[#allocation2 + $0x198] sm:$0xff]
      %v4214 = vld [vmem:[#allocation2 + $0x1a0] sm:$0xff]
      %v4215 = vld [vmem:[#allocation2 + $0x1a8] sm:$0xff]
      %v4216 = vld [vmem:[#allocation2 + $0x1b0] sm:$0xff]
      %v4217 = vld [vmem:[#allocation2 + $0x1b8] sm:$0xff]
      %v4218 = vld [vmem:[#allocation2 + $0x1c0] sm:$0xff]
      %v4219 = vld [vmem:[#allocation2 + $0x1c8] sm:$0xff]
      %v4220 = vld [vmem:[#allocation2 + $0x1d0] sm:$0xff]
      %v4221 = vld [vmem:[#allocation2 + $0x1d8] sm:$0xff]
      %v4222 = vld [vmem:[#allocation2 + $0x1e0] sm:$0xff]
      %v4223 = vld [vmem:[#allocation2 + $0x1e8] sm:$0xff]
      %v4224 = vld [vmem:[#allocation2 + $0x1f0] sm:$0xff]
      %v4225 = vld [vmem:[#allocation2 + $0x1f8] sm:$0xff]
      %v4226 = vld [vmem:[#allocation2 + $0x200] sm:$0xff]
      %v4227 = vld [vmem:[#allocation2 + $0x208] sm:$0xff]
      %v4228 = vld [vmem:[#allocation2 + $0x210] sm:$0xff]
      %v4229 = vld [vmem:[#allocation2 + $0x218] sm:$0xff]
      %v4230 = vld [vmem:[#allocation2 + $0x220] sm:$0xff]
      %v4231 = vld [vmem:[#allocation2 + $0x228] sm:$0xff]
      %v4232 = vld [vmem:[#allocation2 + $0x230] sm:$0xff]
      %v4233 = vld [vmem:[#allocation2 + $0x238] sm:$0xff]
      %v4234 = vld [vmem:[#allocation2 + $0x240] sm:$0xff]
      %v4235 = vld [vmem:[#allocation2 + $0x248] sm:$0xff]
      %v4236 = vld [vmem:[#allocation2 + $0x250] sm:$0xff]
      %v4237 = vld [vmem:[#allocation2 + $0x258] sm:$0x1f]
      %v4238 = vld [vmem:[#allocation2 + $0x260] sm:$0x1f]
      %v4239 = vld [vmem:[#allocation2 + $0x268] sm:$0x1f]
      %v4240 = vld [vmem:[#allocation2] sm:$0xfe]
      %v4241 = vld [vmem:[#allocation2 + $0x8] sm:$0xfe]
      %v4242 = vld [vmem:[#allocation2 + $0x10] sm:$0xfe]
      %v4243 = vld [vmem:[#allocation2 + $0x258] sm:$0x3f]
      %v4244 = vld [vmem:[#allocation2 + $0x260] sm:$0x3f]
      %v4245 = vld [vmem:[#allocation2 + $0x268] sm:$0x3f]
      %vm4324 = vcmask 1046528
      %v4325 = vrot.slane %v4240, 1
      %v4326 = vrot.slane %v4165, 1
      %v4327 = vsel %vm4324, %v4325, %v4326
      %v4328 = vrot.slane %v4241, 1
      %v4329 = vrot.slane %v4166, 1
      %v4330 = vsel %vm4324, %v4328, %v4329
      %v4331 = vrot.slane %v4242, 1
      %v4332 = vrot.slane %v4167, 1
      %v4333 = vsel %vm4324, %v4331, %v4332
      %v4334 = vrot.slane %v4168, 1
      %v4335 = vsel %vm4324, %v4326, %v4334
      %v4336 = vrot.slane %v4169, 1
      %v4337 = vsel %vm4324, %v4329, %v4336
      %v4338 = vrot.slane %v4170, 1
      %v4339 = vsel %vm4324, %v4332, %v4338
      %v4340 = vrot.slane %v4171, 1
      %v4341 = vsel %vm4324, %v4334, %v4340
      %v4342 = vrot.slane %v4172, 1
      %v4343 = vsel %vm4324, %v4336, %v4342
      %v4344 = vrot.slane %v4173, 1
      %v4345 = vsel %vm4324, %v4338, %v4344
      %v4346 = vrot.slane %v4174, 1
      %v4347 = vsel %vm4324, %v4340, %v4346
      %v4348 = vrot.slane %v4175, 1
      %v4349 = vsel %vm4324, %v4342, %v4348
      %v4350 = vrot.slane %v4176, 1
      %v4351 = vsel %vm4324, %v4344, %v4350
      %v4352 = vrot.slane %v4177, 1
      %v4353 = vsel %vm4324, %v4346, %v4352
      %v4354 = vrot.slane %v4178, 1
      %v4355 = vsel %vm4324, %v4348, %v4354
      %v4356 = vrot.slane %v4179, 1
      %v4357 = vsel %vm4324, %v4350, %v4356
      %v4358 = vrot.slane %v4180, 1
      %v4359 = vsel %vm4324, %v4352, %v4358
      %v4360 = vrot.slane %v4181, 1
      %v4361 = vsel %vm4324, %v4354, %v4360
      %v4362 = vrot.slane %v4182, 1
      %v4363 = vsel %vm4324, %v4356, %v4362
      %v4364 = vrot.slane %v4183, 1
      %v4365 = vsel %vm4324, %v4358, %v4364
      %v4366 = vrot.slane %v4184, 1
      %v4367 = vsel %vm4324, %v4360, %v4366
      %v4368 = vrot.slane %v4185, 1
      %v4369 = vsel %vm4324, %v4362, %v4368
      %v4370 = vrot.slane %v4186, 1
      %v4371 = vsel %vm4324, %v4364, %v4370
      %v4372 = vrot.slane %v4187, 1
      %v4373 = vsel %vm4324, %v4366, %v4372
      %v4374 = vrot.slane %v4188, 1
      %v4375 = vsel %vm4324, %v4368, %v4374
      %v4376 = vrot.slane %v4189, 1
      %v4377 = vsel %vm4324, %v4370, %v4376
      %v4378 = vrot.slane %v4190, 1
      %v4379 = vsel %vm4324, %v4372, %v4378
      %v4380 = vrot.slane %v4191, 1
      %v4381 = vsel %vm4324, %v4374, %v4380
      %v4382 = vrot.slane %v4192, 1
      %v4383 = vsel %vm4324, %v4376, %v4382
      %v4384 = vrot.slane %v4193, 1
      %v4385 = vsel %vm4324, %v4378, %v4384
      %v4386 = vrot.slane %v4194, 1
      %v4387 = vsel %vm4324, %v4380, %v4386
      %v4388 = vrot.slane %v4195, 1
      %v4389 = vsel %vm4324, %v4382, %v4388
      %v4390 = vrot.slane %v4196, 1
      %v4391 = vsel %vm4324, %v4384, %v4390
      %v4392 = vrot.slane %v4197, 1
      %v4393 = vsel %vm4324, %v4386, %v4392
      %v4394 = vrot.slane %v4198, 1
      %v4395 = vsel %vm4324, %v4388, %v4394
      %v4396 = vrot.slane %v4199, 1
      %v4397 = vsel %vm4324, %v4390, %v4396
      %v4398 = vrot.slane %v4200, 1
      %v4399 = vsel %vm4324, %v4392, %v4398
      %v4400 = vrot.slane %v4201, 1
      %v4401 = vsel %vm4324, %v4394, %v4400
      %v4402 = vrot.slane %v4202, 1
      %v4403 = vsel %vm4324, %v4396, %v4402
      %v4404 = vrot.slane %v4203, 1
      %v4405 = vsel %vm4324, %v4398, %v4404
      %v4406 = vrot.slane %v4204, 1
      %v4407 = vsel %vm4324, %v4400, %v4406
      %v4408 = vrot.slane %v4205, 1
      %v4409 = vsel %vm4324, %v4402, %v4408
      %v4410 = vrot.slane %v4206, 1
      %v4411 = vsel %vm4324, %v4404, %v4410
      %v4412 = vrot.slane %v4207, 1
      %v4413 = vsel %vm4324, %v4406, %v4412
      %v4414 = vrot.slane %v4208, 1
      %v4415 = vsel %vm4324, %v4408, %v4414
      %v4416 = vrot.slane %v4209, 1
      %v4417 = vsel %vm4324, %v4410, %v4416
      %v4418 = vrot.slane %v4210, 1
      %v4419 = vsel %vm4324, %v4412, %v4418
      %v4420 = vrot.slane %v4211, 1
      %v4421 = vsel %vm4324, %v4414, %v4420
      %v4422 = vrot.slane %v4212, 1
      %v4423 = vsel %vm4324, %v4416, %v4422
      %v4424 = vrot.slane %v4213, 1
      %v4425 = vsel %vm4324, %v4418, %v4424
      %v4426 = vrot.slane %v4214, 1
      %v4427 = vsel %vm4324, %v4420, %v4426
      %v4428 = vrot.slane %v4215, 1
      %v4429 = vsel %vm4324, %v4422, %v4428
      %v4430 = vrot.slane %v4216, 1
      %v4431 = vsel %vm4324, %v4424, %v4430
      %v4432 = vrot.slane %v4217, 1
      %v4433 = vsel %vm4324, %v4426, %v4432
      %v4434 = vrot.slane %v4218, 1
      %v4435 = vsel %vm4324, %v4428, %v4434
      %v4436 = vrot.slane %v4219, 1
      %v4437 = vsel %vm4324, %v4430, %v4436
      %v4438 = vrot.slane %v4220, 1
      %v4439 = vsel %vm4324, %v4432, %v4438
      %v4440 = vrot.slane %v4221, 1
      %v4441 = vsel %vm4324, %v4434, %v4440
      %v4442 = vrot.slane %v4222, 1
      %v4443 = vsel %vm4324, %v4436, %v4442
      %v4444 = vrot.slane %v4223, 1
      %v4445 = vsel %vm4324, %v4438, %v4444
      %v4446 = vrot.slane %v4224, 1
      %v4447 = vsel %vm4324, %v4440, %v4446
      %v4448 = vrot.slane %v4225, 1
      %v4449 = vsel %vm4324, %v4442, %v4448
      %v4450 = vrot.slane %v4226, 1
      %v4451 = vsel %vm4324, %v4444, %v4450
      %v4452 = vrot.slane %v4227, 1
      %v4453 = vsel %vm4324, %v4446, %v4452
      %v4454 = vrot.slane %v4228, 1
      %v4455 = vsel %vm4324, %v4448, %v4454
      %v4456 = vrot.slane %v4229, 1
      %v4457 = vsel %vm4324, %v4450, %v4456
      %v4458 = vrot.slane %v4230, 1
      %v4459 = vsel %vm4324, %v4452, %v4458
      %v4460 = vrot.slane %v4231, 1
      %v4461 = vsel %vm4324, %v4454, %v4460
      %v4462 = vrot.slane %v4232, 1
      %v4463 = vsel %vm4324, %v4456, %v4462
      %v4464 = vrot.slane %v4233, 1
      %v4465 = vsel %vm4324, %v4458, %v4464
      %v4466 = vrot.slane %v4234, 1
      %v4467 = vsel %vm4324, %v4460, %v4466
      %v4468 = vrot.slane %v4235, 1
      %v4469 = vsel %vm4324, %v4462, %v4468
      %v4470 = vrot.slane %v4236, 1
      %v4471 = vsel %vm4324, %v4464, %v4470
      %v4472 = vrot.slane %v4243, 1
      %v4473 = vsel %vm4324, %v4466, %v4472
      %v4474 = vrot.slane %v4244, 1
      %v4475 = vsel %vm4324, %v4468, %v4474
      %v4476 = vrot.slane %v4245, 1
      %v4477 = vsel %vm4324, %v4470, %v4476
      %v4556 = vmax.f32 %v4162, %v4327
      %v4557 = vmax.f32 %v4163, %v4330
      %v4558 = vmax.f32 %v4164, %v4333
      %v4559 = vmax.f32 %v4165, %v4335
      %v4560 = vmax.f32 %v4166, %v4337
      %v4561 = vmax.f32 %v4167, %v4339
      %v4562 = vmax.f32 %v4168, %v4341
      %v4563 = vmax.f32 %v4169, %v4343
      %v4564 = vmax.f32 %v4170, %v4345
      %v4565 = vmax.f32 %v4171, %v4347
      %v4566 = vmax.f32 %v4172, %v4349
      %v4567 = vmax.f32 %v4173, %v4351
      %v4568 = vmax.f32 %v4174, %v4353
      %v4569 = vmax.f32 %v4175, %v4355
      %v4570 = vmax.f32 %v4176, %v4357
      %v4571 = vmax.f32 %v4177, %v4359
      %v4572 = vmax.f32 %v4178, %v4361
      %v4573 = vmax.f32 %v4179, %v4363
      %v4574 = vmax.f32 %v4180, %v4365
      %v4575 = vmax.f32 %v4181, %v4367
      %v4576 = vmax.f32 %v4182, %v4369
      %v4577 = vmax.f32 %v4183, %v4371
      %v4578 = vmax.f32 %v4184, %v4373
      %v4579 = vmax.f32 %v4185, %v4375
      %v4580 = vmax.f32 %v4186, %v4377
      %v4581 = vmax.f32 %v4187, %v4379
      %v4582 = vmax.f32 %v4188, %v4381
      %v4583 = vmax.f32 %v4189, %v4383
      %v4584 = vmax.f32 %v4190, %v4385
      %v4585 = vmax.f32 %v4191, %v4387
      %v4586 = vmax.f32 %v4192, %v4389
      %v4587 = vmax.f32 %v4193, %v4391
      %v4588 = vmax.f32 %v4194, %v4393
      %v4589 = vmax.f32 %v4195, %v4395
      %v4590 = vmax.f32 %v4196, %v4397
      %v4591 = vmax.f32 %v4197, %v4399
      %v4592 = vmax.f32 %v4198, %v4401
      %v4593 = vmax.f32 %v4199, %v4403
      %v4594 = vmax.f32 %v4200, %v4405
      %v4595 = vmax.f32 %v4201, %v4407
      %v4596 = vmax.f32 %v4202, %v4409
      %v4597 = vmax.f32 %v4203, %v4411
      %v4598 = vmax.f32 %v4204, %v4413
      %v4599 = vmax.f32 %v4205, %v4415
      %v4600 = vmax.f32 %v4206, %v4417
      %v4601 = vmax.f32 %v4207, %v4419
      %v4602 = vmax.f32 %v4208, %v4421
      %v4603 = vmax.f32 %v4209, %v4423
      %v4604 = vmax.f32 %v4210, %v4425
      %v4605 = vmax.f32 %v4211, %v4427
      %v4606 = vmax.f32 %v4212, %v4429
      %v4607 = vmax.f32 %v4213, %v4431
      %v4608 = vmax.f32 %v4214, %v4433
      %v4609 = vmax.f32 %v4215, %v4435
      %v4610 = vmax.f32 %v4216, %v4437
      %v4611 = vmax.f32 %v4217, %v4439
      %v4612 = vmax.f32 %v4218, %v4441
      %v4613 = vmax.f32 %v4219, %v4443
      %v4614 = vmax.f32 %v4220, %v4445
      %v4615 = vmax.f32 %v4221, %v4447
      %v4616 = vmax.f32 %v4222, %v4449
      %v4617 = vmax.f32 %v4223, %v4451
      %v4618 = vmax.f32 %v4224, %v4453
      %v4619 = vmax.f32 %v4225, %v4455
      %v4620 = vmax.f32 %v4226, %v4457
      %v4621 = vmax.f32 %v4227, %v4459
      %v4622 = vmax.f32 %v4228, %v4461
      %v4623 = vmax.f32 %v4229, %v4463
      %v4624 = vmax.f32 %v4230, %v4465
      %v4625 = vmax.f32 %v4231, %v4467
      %v4626 = vmax.f32 %v4232, %v4469
      %v4627 = vmax.f32 %v4233, %v4471
      %v4628 = vmax.f32 %v4234, %v4473
      %v4629 = vmax.f32 %v4235, %v4475
      %v4630 = vmax.f32 %v4236, %v4477
      %v4631 = vmax.f32 %v4237, %v4472
      %v4632 = vmax.f32 %v4238, %v4474
      %v4633 = vmax.f32 %v4239, %v4476
      %4712 = vrot.lane.b32.xlu0 %v4556, 112
      %v4713 = vpop.permute.xlu0 %4712
      %4714 = vrot.lane.b32.xlu0 %v4557, 112
      %v4715 = vpop.permute.xlu0 %4714
      %4716 = vrot.lane.b32.xlu0 %v4558, 112
      %v4717 = vpop.permute.xlu0 %4716
      %4718 = vrot.lane.b32.xlu0 %v4559, 112
      %v4719 = vpop.permute.xlu0 %4718
      %4720 = vrot.lane.b32.xlu0 %v4560, 112
      %v4721 = vpop.permute.xlu0 %4720
      %4722 = vrot.lane.b32.xlu0 %v4561, 112
      %v4723 = vpop.permute.xlu0 %4722
      %4724 = vrot.lane.b32.xlu0 %v4562, 112
      %v4725 = vpop.permute.xlu0 %4724
      %4726 = vrot.lane.b32.xlu0 %v4563, 112
      %v4727 = vpop.permute.xlu0 %4726
      %4728 = vrot.lane.b32.xlu0 %v4564, 112
      %v4729 = vpop.permute.xlu0 %4728
      %4730 = vrot.lane.b32.xlu0 %v4565, 112
      %v4731 = vpop.permute.xlu0 %4730
      %4732 = vrot.lane.b32.xlu0 %v4566, 112
      %v4733 = vpop.permute.xlu0 %4732
      %4734 = vrot.lane.b32.xlu0 %v4567, 112
      %v4735 = vpop.permute.xlu0 %4734
      %4736 = vrot.lane.b32.xlu0 %v4568, 112
      %v4737 = vpop.permute.xlu0 %4736
      %4738 = vrot.lane.b32.xlu0 %v4569, 112
      %v4739 = vpop.permute.xlu0 %4738
      %4740 = vrot.lane.b32.xlu0 %v4570, 112
      %v4741 = vpop.permute.xlu0 %4740
      %4742 = vrot.lane.b32.xlu0 %v4571, 112
      %v4743 = vpop.permute.xlu0 %4742
      %4744 = vrot.lane.b32.xlu0 %v4572, 112
      %v4745 = vpop.permute.xlu0 %4744
      %4746 = vrot.lane.b32.xlu0 %v4573, 112
      %v4747 = vpop.permute.xlu0 %4746
      %4748 = vrot.lane.b32.xlu0 %v4574, 112
      %v4749 = vpop.permute.xlu0 %4748
      %4750 = vrot.lane.b32.xlu0 %v4575, 112
      %v4751 = vpop.permute.xlu0 %4750
      %4752 = vrot.lane.b32.xlu0 %v4576, 112
      %v4753 = vpop.permute.xlu0 %4752
      %4754 = vrot.lane.b32.xlu0 %v4577, 112
      %v4755 = vpop.permute.xlu0 %4754
      %4756 = vrot.lane.b32.xlu0 %v4578, 112
      %v4757 = vpop.permute.xlu0 %4756
      %4758 = vrot.lane.b32.xlu0 %v4579, 112
      %v4759 = vpop.permute.xlu0 %4758
      %4760 = vrot.lane.b32.xlu0 %v4580, 112
      %v4761 = vpop.permute.xlu0 %4760
      %4762 = vrot.lane.b32.xlu0 %v4581, 112
      %v4763 = vpop.permute.xlu0 %4762
      %4764 = vrot.lane.b32.xlu0 %v4582, 112
      %v4765 = vpop.permute.xlu0 %4764
      %4766 = vrot.lane.b32.xlu0 %v4583, 112
      %v4767 = vpop.permute.xlu0 %4766
      %4768 = vrot.lane.b32.xlu0 %v4584, 112
      %v4769 = vpop.permute.xlu0 %4768
      %4770 = vrot.lane.b32.xlu0 %v4585, 112
      %v4771 = vpop.permute.xlu0 %4770
      %4772 = vrot.lane.b32.xlu0 %v4586, 112
      %v4773 = vpop.permute.xlu0 %4772
      %4774 = vrot.lane.b32.xlu0 %v4587, 112
      %v4775 = vpop.permute.xlu0 %4774
      %4776 = vrot.lane.b32.xlu0 %v4588, 112
      %v4777 = vpop.permute.xlu0 %4776
      %4778 = vrot.lane.b32.xlu0 %v4589, 112
      %v4779 = vpop.permute.xlu0 %4778
      %4780 = vrot.lane.b32.xlu0 %v4590, 112
      %v4781 = vpop.permute.xlu0 %4780
      %4782 = vrot.lane.b32.xlu0 %v4591, 112
      %v4783 = vpop.permute.xlu0 %4782
      %4784 = vrot.lane.b32.xlu0 %v4592, 112
      %v4785 = vpop.permute.xlu0 %4784
      %4786 = vrot.lane.b32.xlu0 %v4593, 112
      %v4787 = vpop.permute.xlu0 %4786
      %4788 = vrot.lane.b32.xlu0 %v4594, 112
      %v4789 = vpop.permute.xlu0 %4788
      %4790 = vrot.lane.b32.xlu0 %v4595, 112
      %v4791 = vpop.permute.xlu0 %4790
      %4792 = vrot.lane.b32.xlu0 %v4596, 112
      %v4793 = vpop.permute.xlu0 %4792
      %4794 = vrot.lane.b32.xlu0 %v4597, 112
      %v4795 = vpop.permute.xlu0 %4794
      %4796 = vrot.lane.b32.xlu0 %v4598, 112
      %v4797 = vpop.permute.xlu0 %4796
      %4798 = vrot.lane.b32.xlu0 %v4599, 112
      %v4799 = vpop.permute.xlu0 %4798
      %4800 = vrot.lane.b32.xlu0 %v4600, 112
      %v4801 = vpop.permute.xlu0 %4800
      %4802 = vrot.lane.b32.xlu0 %v4601, 112
      %v4803 = vpop.permute.xlu0 %4802
      %4804 = vrot.lane.b32.xlu0 %v4602, 112
      %v4805 = vpop.permute.xlu0 %4804
      %4806 = vrot.lane.b32.xlu0 %v4603, 112
      %v4807 = vpop.permute.xlu0 %4806
      %4808 = vrot.lane.b32.xlu0 %v4604, 112
      %v4809 = vpop.permute.xlu0 %4808
      %4810 = vrot.lane.b32.xlu0 %v4605, 112
      %v4811 = vpop.permute.xlu0 %4810
      %4812 = vrot.lane.b32.xlu0 %v4606, 112
      %v4813 = vpop.permute.xlu0 %4812
      %4814 = vrot.lane.b32.xlu0 %v4607, 112
      %v4815 = vpop.permute.xlu0 %4814
      %4816 = vrot.lane.b32.xlu0 %v4608, 112
      %v4817 = vpop.permute.xlu0 %4816
      %4818 = vrot.lane.b32.xlu0 %v4609, 112
      %v4819 = vpop.permute.xlu0 %4818
      %4820 = vrot.lane.b32.xlu0 %v4610, 112
      %v4821 = vpop.permute.xlu0 %4820
      %4822 = vrot.lane.b32.xlu0 %v4611, 112
      %v4823 = vpop.permute.xlu0 %4822
      %4824 = vrot.lane.b32.xlu0 %v4612, 112
      %v4825 = vpop.permute.xlu0 %4824
      %4826 = vrot.lane.b32.xlu0 %v4613, 112
      %v4827 = vpop.permute.xlu0 %4826
      %4828 = vrot.lane.b32.xlu0 %v4614, 112
      %v4829 = vpop.permute.xlu0 %4828
      %4830 = vrot.lane.b32.xlu0 %v4615, 112
      %v4831 = vpop.permute.xlu0 %4830
      %4832 = vrot.lane.b32.xlu0 %v4616, 112
      %v4833 = vpop.permute.xlu0 %4832
      %4834 = vrot.lane.b32.xlu0 %v4617, 112
      %v4835 = vpop.permute.xlu0 %4834
      %4836 = vrot.lane.b32.xlu0 %v4618, 112
      %v4837 = vpop.permute.xlu0 %4836
      %4838 = vrot.lane.b32.xlu0 %v4619, 112
      %v4839 = vpop.permute.xlu0 %4838
      %4840 = vrot.lane.b32.xlu0 %v4620, 112
      %v4841 = vpop.permute.xlu0 %4840
      %4842 = vrot.lane.b32.xlu0 %v4621, 112
      %v4843 = vpop.permute.xlu0 %4842
      %4844 = vrot.lane.b32.xlu0 %v4622, 112
      %v4845 = vpop.permute.xlu0 %4844
      %4846 = vrot.lane.b32.xlu0 %v4623, 112
      %v4847 = vpop.permute.xlu0 %4846
      %4848 = vrot.lane.b32.xlu0 %v4624, 112
      %v4849 = vpop.permute.xlu0 %4848
      %4850 = vrot.lane.b32.xlu0 %v4625, 112
      %v4851 = vpop.permute.xlu0 %4850
      %4852 = vrot.lane.b32.xlu0 %v4626, 112
      %v4853 = vpop.permute.xlu0 %4852
      %4854 = vrot.lane.b32.xlu0 %v4627, 112
      %v4855 = vpop.permute.xlu0 %4854
      %4856 = vrot.lane.b32.xlu0 %v4628, 112
      %v4857 = vpop.permute.xlu0 %4856
      %4858 = vrot.lane.b32.xlu0 %v4629, 112
      %v4859 = vpop.permute.xlu0 %4858
      %4860 = vrot.lane.b32.xlu0 %v4630, 112
      %v4861 = vpop.permute.xlu0 %4860
      %4862 = vrot.lane.b32.xlu0 %v4631, 112
      %v4863 = vpop.permute.xlu0 %4862
      %4864 = vrot.lane.b32.xlu0 %v4632, 112
      %v4865 = vpop.permute.xlu0 %4864
      %4866 = vrot.lane.b32.xlu0 %v4633, 112
      %v4867 = vpop.permute.xlu0 %4866
      %vm4868 = vcmask 916480
      %v4869 = vsel %vm4868, %v4713, %v4715
      %v4870 = vsel %vm4868, %v4715, %v4717
      %v4871 = vsel %vm4868, %v4719, %v4721
      %v4872 = vsel %vm4868, %v4721, %v4723
      %v4873 = vsel %vm4868, %v4725, %v4727
      %v4874 = vsel %vm4868, %v4727, %v4729
      %v4875 = vsel %vm4868, %v4731, %v4733
      %v4876 = vsel %vm4868, %v4733, %v4735
      %v4877 = vsel %vm4868, %v4737, %v4739
      %v4878 = vsel %vm4868, %v4739, %v4741
      %v4879 = vsel %vm4868, %v4743, %v4745
      %v4880 = vsel %vm4868, %v4745, %v4747
      %v4881 = vsel %vm4868, %v4749, %v4751
      %v4882 = vsel %vm4868, %v4751, %v4753
      %v4883 = vsel %vm4868, %v4755, %v4757
      %v4884 = vsel %vm4868, %v4757, %v4759
      %v4885 = vsel %vm4868, %v4761, %v4763
      %v4886 = vsel %vm4868, %v4763, %v4765
      %v4887 = vsel %vm4868, %v4767, %v4769
      %v4888 = vsel %vm4868, %v4769, %v4771
      %v4889 = vsel %vm4868, %v4773, %v4775
      %v4890 = vsel %vm4868, %v4775, %v4777
      %v4891 = vsel %vm4868, %v4779, %v4781
      %v4892 = vsel %vm4868, %v4781, %v4783
      %v4893 = vsel %vm4868, %v4785, %v4787
      %v4894 = vsel %vm4868, %v4787, %v4789
      %v4895 = vsel %vm4868, %v4791, %v4793
      %v4896 = vsel %vm4868, %v4793, %v4795
      %v4897 = vsel %vm4868, %v4797, %v4799
      %v4898 = vsel %vm4868, %v4799, %v4801
      %v4899 = vsel %vm4868, %v4803, %v4805
      %v4900 = vsel %vm4868, %v4805, %v4807
      %v4901 = vsel %vm4868, %v4809, %v4811
      %v4902 = vsel %vm4868, %v4811, %v4813
      %v4903 = vsel %vm4868, %v4815, %v4817
      %v4904 = vsel %vm4868, %v4817, %v4819
      %v4905 = vsel %vm4868, %v4821, %v4823
      %v4906 = vsel %vm4868, %v4823, %v4825
      %v4907 = vsel %vm4868, %v4827, %v4829
      %v4908 = vsel %vm4868, %v4829, %v4831
      %v4909 = vsel %vm4868, %v4833, %v4835
      %v4910 = vsel %vm4868, %v4835, %v4837
      %v4911 = vsel %vm4868, %v4839, %v4841
      %v4912 = vsel %vm4868, %v4841, %v4843
      %v4913 = vsel %vm4868, %v4845, %v4847
      %v4914 = vsel %vm4868, %v4847, %v4849
      %v4915 = vsel %vm4868, %v4851, %v4853
      %v4916 = vsel %vm4868, %v4853, %v4855
      %v4917 = vsel %vm4868, %v4857, %v4859
      %v4918 = vsel %vm4868, %v4859, %v4861
      %v4919 = vsel %vm4868, %v4863, %v4865
      %v4920 = vsel %vm4868, %v4865, %v4867
      %v4999 = vmax.f32 %v4556, %v4869
      %v5000 = vmax.f32 %v4557, %v4870
      %v5001 = vmax.f32 %v4558, %v4717
      %v5002 = vmax.f32 %v4559, %v4871
      %v5003 = vmax.f32 %v4560, %v4872
      %v5004 = vmax.f32 %v4561, %v4723
      %v5005 = vmax.f32 %v4562, %v4873
      %v5006 = vmax.f32 %v4563, %v4874
      %v5007 = vmax.f32 %v4564, %v4729
      %v5008 = vmax.f32 %v4565, %v4875
      %v5009 = vmax.f32 %v4566, %v4876
      %v5010 = vmax.f32 %v4567, %v4735
      %v5011 = vmax.f32 %v4568, %v4877
      %v5012 = vmax.f32 %v4569, %v4878
      %v5013 = vmax.f32 %v4570, %v4741
      %v5014 = vmax.f32 %v4571, %v4879
      %v5015 = vmax.f32 %v4572, %v4880
      %v5016 = vmax.f32 %v4573, %v4747
      %v5017 = vmax.f32 %v4574, %v4881
      %v5018 = vmax.f32 %v4575, %v4882
      %v5019 = vmax.f32 %v4576, %v4753
      %v5020 = vmax.f32 %v4577, %v4883
      %v5021 = vmax.f32 %v4578, %v4884
      %v5022 = vmax.f32 %v4579, %v4759
      %v5023 = vmax.f32 %v4580, %v4885
      %v5024 = vmax.f32 %v4581, %v4886
      %v5025 = vmax.f32 %v4582, %v4765
      %v5026 = vmax.f32 %v4583, %v4887
      %v5027 = vmax.f32 %v4584, %v4888
      %v5028 = vmax.f32 %v4585, %v4771
      %v5029 = vmax.f32 %v4586, %v4889
      %v5030 = vmax.f32 %v4587, %v4890
      %v5031 = vmax.f32 %v4588, %v4777
      %v5032 = vmax.f32 %v4589, %v4891
      %v5033 = vmax.f32 %v4590, %v4892
      %v5034 = vmax.f32 %v4591, %v4783
      %v5035 = vmax.f32 %v4592, %v4893
      %v5036 = vmax.f32 %v4593, %v4894
      %v5037 = vmax.f32 %v4594, %v4789
      %v5038 = vmax.f32 %v4595, %v4895
      %v5039 = vmax.f32 %v4596, %v4896
      %v5040 = vmax.f32 %v4597, %v4795
      %v5041 = vmax.f32 %v4598, %v4897
      %v5042 = vmax.f32 %v4599, %v4898
      %v5043 = vmax.f32 %v4600, %v4801
      %v5044 = vmax.f32 %v4601, %v4899
      %v5045 = vmax.f32 %v4602, %v4900
      %v5046 = vmax.f32 %v4603, %v4807
      %v5047 = vmax.f32 %v4604, %v4901
      %v5048 = vmax.f32 %v4605, %v4902
      %v5049 = vmax.f32 %v4606, %v4813
      %v5050 = vmax.f32 %v4607, %v4903
      %v5051 = vmax.f32 %v4608, %v4904
      %v5052 = vmax.f32 %v4609, %v4819
      %v5053 = vmax.f32 %v4610, %v4905
      %v5054 = vmax.f32 %v4611, %v4906
      %v5055 = vmax.f32 %v4612, %v4825
      %v5056 = vmax.f32 %v4613, %v4907
      %v5057 = vmax.f32 %v4614, %v4908
      %v5058 = vmax.f32 %v4615, %v4831
      %v5059 = vmax.f32 %v4616, %v4909
      %v5060 = vmax.f32 %v4617, %v4910
      %v5061 = vmax.f32 %v4618, %v4837
      %v5062 = vmax.f32 %v4619, %v4911
      %v5063 = vmax.f32 %v4620, %v4912
      %v5064 = vmax.f32 %v4621, %v4843
      %v5065 = vmax.f32 %v4622, %v4913
      %v5066 = vmax.f32 %v4623, %v4914
      %v5067 = vmax.f32 %v4624, %v4849
      %v5068 = vmax.f32 %v4625, %v4915
      %v5069 = vmax.f32 %v4626, %v4916
      %v5070 = vmax.f32 %v4627, %v4855
      %v5071 = vmax.f32 %v4628, %v4917
      %v5072 = vmax.f32 %v4629, %v4918
      %v5073 = vmax.f32 %v4630, %v4861
      %v5074 = vmax.f32 %v4631, %v4919
      %v5075 = vmax.f32 %v4632, %v4920
      %v5076 = vmax.f32 %v4633, %v4867
      %v5077 = vpack.c.bf16 %v5002, %v4999
      %v5078 = vpack.c.bf16 %v5003, %v5000
      %v5079 = vpack.c.bf16 %v5004, %v5001
      %v5080 = vpack.c.bf16 %v5008, %v5005
      %v5081 = vpack.c.bf16 %v5009, %v5006
      %v5082 = vpack.c.bf16 %v5010, %v5007
      %v5083 = vpack.c.bf16 %v5014, %v5011
      %v5084 = vpack.c.bf16 %v5015, %v5012
      %v5085 = vpack.c.bf16 %v5016, %v5013
      %v5086 = vpack.c.bf16 %v5020, %v5017
      %v5087 = vpack.c.bf16 %v5021, %v5018
      %v5088 = vpack.c.bf16 %v5022, %v5019
      %v5089 = vpack.c.bf16 %v5026, %v5023
      %v5090 = vpack.c.bf16 %v5027, %v5024
      %v5091 = vpack.c.bf16 %v5028, %v5025
      %v5092 = vpack.c.bf16 %v5032, %v5029
      %v5093 = vpack.c.bf16 %v5033, %v5030
      %v5094 = vpack.c.bf16 %v5034, %v5031
      %v5095 = vpack.c.bf16 %v5038, %v5035
      %v5096 = vpack.c.bf16 %v5039, %v5036
      %v5097 = vpack.c.bf16 %v5040, %v5037
      %v5098 = vpack.c.bf16 %v5044, %v5041
      %v5099 = vpack.c.bf16 %v5045, %v5042
      %v5100 = vpack.c.bf16 %v5046, %v5043
      %v5101 = vpack.c.bf16 %v5050, %v5047
      %v5102 = vpack.c.bf16 %v5051, %v5048
      %v5103 = vpack.c.bf16 %v5052, %v5049
      %v5104 = vpack.c.bf16 %v5056, %v5053
      %v5105 = vpack.c.bf16 %v5057, %v5054
      %v5106 = vpack.c.bf16 %v5058, %v5055
      %v5107 = vpack.c.bf16 %v5062, %v5059
      %v5108 = vpack.c.bf16 %v5063, %v5060
      %v5109 = vpack.c.bf16 %v5064, %v5061
      %v5110 = vpack.c.bf16 %v5068, %v5065
      %v5111 = vpack.c.bf16 %v5069, %v5066
      %v5112 = vpack.c.bf16 %v5070, %v5067
      %v5113 = vpack.c.bf16 %v5074, %v5071
      %v5114 = vpack.c.bf16 %v5075, %v5072
      %v5115 = vpack.c.bf16 %v5076, %v5073
      %v5116 = vld [vmem:[%s3] sm:$0xff]
      %v5117 = vld [vmem:[%s3 + $0x8] sm:$0xff]
      %v5118 = vld [vmem:[%s3 + $0x10] sm:$0xff]
      %v5119 = vld [vmem:[%s3 + $0x18] sm:$0xff]
      %v5120 = vld [vmem:[%s3 + $0x20] sm:$0xff]
      %v5121 = vld [vmem:[%s3 + $0x28] sm:$0xff]
      %v5122 = vld [vmem:[%s3 + $0x30] sm:$0xff]
      %v5123 = vld [vmem:[%s3 + $0x38] sm:$0xff]
      %v5124 = vld [vmem:[%s3 + $0x40] sm:$0xff]
      %v5125 = vld [vmem:[%s3 + $0x48] sm:$0xff]
      %v5126 = vld [vmem:[%s3 + $0x50] sm:$0xff]
      %v5127 = vld [vmem:[%s3 + $0x58] sm:$0xff]
      %v5128 = vld [vmem:[%s3 + $0x60] sm:$0xff]
      %v5129 = vld [vmem:[%s3 + $0x68] sm:$0xff]
      %v5144 = vunpack.c.l.b16 %v5116
      %v5145 = vunpack.c.h.b16 %v5116
      %v5146 = vunpack.c.l.b16 %v5117
      %v5147 = vunpack.c.h.b16 %v5117
      %v5148 = vunpack.c.l.b16 %v5118
      %v5149 = vunpack.c.h.b16 %v5118
      %v5150 = vunpack.c.l.b16 %v5119
      %v5151 = vunpack.c.h.b16 %v5119
      %v5152 = vunpack.c.l.b16 %v5120
      %v5153 = vunpack.c.h.b16 %v5120
      %v5154 = vunpack.c.l.b16 %v5121
      %v5155 = vunpack.c.h.b16 %v5121
      %v5156 = vunpack.c.l.b16 %v5122
      %v5157 = vunpack.c.h.b16 %v5122
      %v5158 = vunpack.c.l.b16 %v5123
      %v5159 = vunpack.c.h.b16 %v5123
      %v5160 = vunpack.c.l.b16 %v5124
      %v5161 = vunpack.c.h.b16 %v5124
      %v5162 = vunpack.c.l.b16 %v5125
      %v5163 = vunpack.c.h.b16 %v5125
      %v5164 = vunpack.c.l.b16 %v5126
      %v5165 = vunpack.c.h.b16 %v5126
      %v5166 = vunpack.c.l.b16 %v5127
      %v5167 = vunpack.c.h.b16 %v5127
      %v5168 = vunpack.c.l.b16 %v5128
      %v5169 = vunpack.c.h.b16 %v5128
      %v5170 = vunpack.c.l.b16 %v5129
      %v5171 = vunpack.c.h.b16 %v5129
      %v5172 = vpack.c.b16 %v5146, %v5144
      %v5173 = vpack.c.b16 %v5147, %v5145
      %v5174 = vpack.c.b16 %v5150, %v5148
      %v5175 = vpack.c.b16 %v5151, %v5149
      %v5176 = vpack.c.b16 %v5154, %v5152
      %v5177 = vpack.c.b16 %v5155, %v5153
      %v5178 = vpack.c.b16 %v5158, %v5156
      %v5179 = vpack.c.b16 %v5159, %v5157
      %v5180 = vpack.c.b16 %v5162, %v5160
      %v5181 = vpack.c.b16 %v5163, %v5161
      %v5182 = vpack.c.b16 %v5166, %v5164
      %v5183 = vpack.c.b16 %v5167, %v5165
      %v5184 = vpack.c.b16 %v5170, %v5168
      %v5185 = vpack.c.b16 %v5171, %v5169
      %vm5193 = vcmask 629760
      %v5195 = vsel %vm5193, %v5173, 0
      %v5198 = vsel %vm5193, %v5175, 0
      %v5201 = vsel %vm5193, %v5177, 0
      %v5204 = vsel %vm5193, %v5179, 0
      %v5207 = vsel %vm5193, %v5181, 0
      %v5210 = vsel %vm5193, %v5183, 0
      %v5213 = vsel %vm5193, %v5185, 0
      %v5215 = vsel %vm650, 4294967295, 65535
      %v5216 = vsel %vm4324, %v5215, 0
      %v5218 = vand.u32 %v5113, %v5216
      %v5221 = vand.u32 %v5114, %v5216
      %v5224 = vand.u32 %v5115, %v5216
      %5226 = vmatpush.bf16.msra.mxu0 %v5098
      %5227 = vmatpush.bf16.msra.mxu0 %v5095
      %5228 = vmatpush.bf16.msra.mxu0 %v5092
      %5229 = vmatpush.bf16.msra.mxu0 %v5089
      %5230 = vmatpush.bf16.msra.mxu0 %v5086
      %5231 = vmatpush.bf16.msra.mxu0 %v5083
      %5232 = vmatpush.bf16.msra.mxu0 %v5080
      %5233 = vmatpush.bf16.msra.mxu0 %v5077
      %5234 = vmatmul.bf16.gmra.mxu0 %v5172
      %v5235 = vpop.f32.mrf.mxu0
      %v5236 = vadd.f32 0.0, %v5235
      %v5237 = vpop.f32.mrf.mxu0
      %v5238 = vadd.f32 0.0, %v5237
      %5239 = vmatmul.bf16.gmra.mxu0 %v5174
      %v5240 = vpop.f32.mrf.mxu0
      %v5241 = vadd.f32 0.0, %v5240
      %v5242 = vpop.f32.mrf.mxu0
      %v5243 = vadd.f32 0.0, %v5242
      %5244 = vmatmul.bf16.gmra.mxu0 %v5176
      %v5245 = vpop.f32.mrf.mxu0
      %v5246 = vadd.f32 0.0, %v5245
      %v5247 = vpop.f32.mrf.mxu0
      %v5248 = vadd.f32 0.0, %v5247
      %5249 = vmatmul.bf16.gmra.mxu0 %v5178
      %v5250 = vpop.f32.mrf.mxu0
      %v5251 = vadd.f32 0.0, %v5250
      %v5252 = vpop.f32.mrf.mxu0
      %v5253 = vadd.f32 0.0, %v5252
      %5254 = vmatmul.bf16.gmra.mxu0 %v5180
      %v5255 = vpop.f32.mrf.mxu0
      %v5256 = vadd.f32 0.0, %v5255
      %v5257 = vpop.f32.mrf.mxu0
      %v5258 = vadd.f32 0.0, %v5257
      %5259 = vmatmul.bf16.gmra.mxu0 %v5182
      %v5260 = vpop.f32.mrf.mxu0
      %v5261 = vadd.f32 0.0, %v5260
      %v5262 = vpop.f32.mrf.mxu0
      %v5263 = vadd.f32 0.0, %v5262
      %5264 = vmatmul.bf16.gmra.mxu0 %v5184
      %v5265 = vpop.f32.mrf.mxu0
      %v5266 = vadd.f32 0.0, %v5265
      %v5267 = vpop.f32.mrf.mxu0
      %v5268 = vadd.f32 0.0, %v5267
      %5269 = vdwg.mxu0
      %5270 = vmatpush.bf16.msra.mxu0 0
      %5271 = vmatpush.bf16.msra.mxu0 0
      %5272 = vmatpush.bf16.msra.mxu0 0
      %5273 = vmatpush.bf16.msra.mxu0 %v5218
      %5274 = vmatpush.bf16.msra.mxu0 %v5110
      %5275 = vmatpush.bf16.msra.mxu0 %v5107
      %5276 = vmatpush.bf16.msra.mxu0 %v5104
      %5277 = vmatpush.bf16.msra.mxu0 %v5101
      %5278 = vmatmul.bf16.gmra.mxu0 %v5195
      %v5279 = vpop.f32.mrf.mxu0
      %v5280 = vadd.f32 %v5236, %v5279
      %v5281 = vpop.f32.mrf.mxu0
      %v5282 = vadd.f32 %v5238, %v5281
      %5283 = vmatmul.bf16.gmra.mxu0 %v5198
      %v5284 = vpop.f32.mrf.mxu0
      %v5285 = vadd.f32 %v5241, %v5284
      %v5286 = vpop.f32.mrf.mxu0
      %v5287 = vadd.f32 %v5243, %v5286
      %5288 = vmatmul.bf16.gmra.mxu0 %v5201
      %v5289 = vpop.f32.mrf.mxu0
      %v5290 = vadd.f32 %v5246, %v5289
      %v5291 = vpop.f32.mrf.mxu0
      %v5292 = vadd.f32 %v5248, %v5291
      %5293 = vmatmul.bf16.gmra.mxu0 %v5204
      %v5294 = vpop.f32.mrf.mxu0
      %v5295 = vadd.f32 %v5251, %v5294
      %v5296 = vpop.f32.mrf.mxu0
      %v5297 = vadd.f32 %v5253, %v5296
      %5298 = vmatmul.bf16.gmra.mxu0 %v5207
      %v5299 = vpop.f32.mrf.mxu0
      %v5300 = vadd.f32 %v5256, %v5299
      %v5301 = vpop.f32.mrf.mxu0
      %v5302 = vadd.f32 %v5258, %v5301
      %5303 = vmatmul.bf16.gmra.mxu0 %v5210
      %v5304 = vpop.f32.mrf.mxu0
      %v5305 = vadd.f32 %v5261, %v5304
      %v5306 = vpop.f32.mrf.mxu0
      %v5307 = vadd.f32 %v5263, %v5306
      %5308 = vmatmul.bf16.gmra.mxu0 %v5213
      %v5309 = vpop.f32.mrf.mxu0
      %v5310 = vadd.f32 %v5266, %v5309
      %v5311 = vpop.f32.mrf.mxu0
      %v5312 = vadd.f32 %v5268, %v5311
      %5313 = vdwg.mxu0
      %5314 = vmatpush.bf16.msra.mxu0 %v5099
      %5315 = vmatpush.bf16.msra.mxu0 %v5096
      %5316 = vmatpush.bf16.msra.mxu0 %v5093
      %5317 = vmatpush.bf16.msra.mxu0 %v5090
      %5318 = vmatpush.bf16.msra.mxu0 %v5087
      %5319 = vmatpush.bf16.msra.mxu0 %v5084
      %5320 = vmatpush.bf16.msra.mxu0 %v5081
      %5321 = vmatpush.bf16.msra.mxu0 %v5078
      %5322 = vmatmul.bf16.gmra.mxu0 %v5172
      %v5323 = vpop.f32.mrf.mxu0
      %v5324 = vadd.f32 0.0, %v5323
      %v5325 = vpop.f32.mrf.mxu0
      %v5326 = vadd.f32 0.0, %v5325
      %5327 = vmatmul.bf16.gmra.mxu0 %v5174
      %v5328 = vpop.f32.mrf.mxu0
      %v5329 = vadd.f32 0.0, %v5328
      %v5330 = vpop.f32.mrf.mxu0
      %v5331 = vadd.f32 0.0, %v5330
      %5332 = vmatmul.bf16.gmra.mxu0 %v5176
      %v5333 = vpop.f32.mrf.mxu0
      %v5334 = vadd.f32 0.0, %v5333
      %v5335 = vpop.f32.mrf.mxu0
      %v5336 = vadd.f32 0.0, %v5335
      %5337 = vmatmul.bf16.gmra.mxu0 %v5178
      %v5338 = vpop.f32.mrf.mxu0
      %v5339 = vadd.f32 0.0, %v5338
      %v5340 = vpop.f32.mrf.mxu0
      %v5341 = vadd.f32 0.0, %v5340
      %5342 = vmatmul.bf16.gmra.mxu0 %v5180
      %v5343 = vpop.f32.mrf.mxu0
      %v5344 = vadd.f32 0.0, %v5343
      %v5345 = vpop.f32.mrf.mxu0
      %v5346 = vadd.f32 0.0, %v5345
      %5347 = vmatmul.bf16.gmra.mxu0 %v5182
      %v5348 = vpop.f32.mrf.mxu0
      %v5349 = vadd.f32 0.0, %v5348
      %v5350 = vpop.f32.mrf.mxu0
      %v5351 = vadd.f32 0.0, %v5350
      %5352 = vmatmul.bf16.gmra.mxu0 %v5184
      %v5353 = vpop.f32.mrf.mxu0
      %v5354 = vadd.f32 0.0, %v5353
      %v5355 = vpop.f32.mrf.mxu0
      %v5356 = vadd.f32 0.0, %v5355
      %5357 = vdwg.mxu0
      %5358 = vmatpush.bf16.msra.mxu0 0
      %5359 = vmatpush.bf16.msra.mxu0 0
      %5360 = vmatpush.bf16.msra.mxu0 0
      %5361 = vmatpush.bf16.msra.mxu0 %v5221
      %5362 = vmatpush.bf16.msra.mxu0 %v5111
      %5363 = vmatpush.bf16.msra.mxu0 %v5108
      %5364 = vmatpush.bf16.msra.mxu0 %v5105
      %5365 = vmatpush.bf16.msra.mxu0 %v5102
      %5366 = vmatmul.bf16.gmra.mxu0 %v5195
      %v5367 = vpop.f32.mrf.mxu0
      %v5368 = vadd.f32 %v5324, %v5367
      %v5369 = vpop.f32.mrf.mxu0
      %v5370 = vadd.f32 %v5326, %v5369
      %5371 = vmatmul.bf16.gmra.mxu0 %v5198
      %v5372 = vpop.f32.mrf.mxu0
      %v5373 = vadd.f32 %v5329, %v5372
      %v5374 = vpop.f32.mrf.mxu0
      %v5375 = vadd.f32 %v5331, %v5374
      %5376 = vmatmul.bf16.gmra.mxu0 %v5201
      %v5377 = vpop.f32.mrf.mxu0
      %v5378 = vadd.f32 %v5334, %v5377
      %v5379 = vpop.f32.mrf.mxu0
      %v5380 = vadd.f32 %v5336, %v5379
      %5381 = vmatmul.bf16.gmra.mxu0 %v5204
      %v5382 = vpop.f32.mrf.mxu0
      %v5383 = vadd.f32 %v5339, %v5382
      %v5384 = vpop.f32.mrf.mxu0
      %v5385 = vadd.f32 %v5341, %v5384
      %5386 = vmatmul.bf16.gmra.mxu0 %v5207
      %v5387 = vpop.f32.mrf.mxu0
      %v5388 = vadd.f32 %v5344, %v5387
      %v5389 = vpop.f32.mrf.mxu0
      %v5390 = vadd.f32 %v5346, %v5389
      %5391 = vmatmul.bf16.gmra.mxu0 %v5210
      %v5392 = vpop.f32.mrf.mxu0
      %v5393 = vadd.f32 %v5349, %v5392
      %v5394 = vpop.f32.mrf.mxu0
      %v5395 = vadd.f32 %v5351, %v5394
      %5396 = vmatmul.bf16.gmra.mxu0 %v5213
      %v5397 = vpop.f32.mrf.mxu0
      %v5398 = vadd.f32 %v5354, %v5397
      %v5399 = vpop.f32.mrf.mxu0
      %v5400 = vadd.f32 %v5356, %v5399
      %5401 = vdwg.mxu0
      %5402 = vmatpush.bf16.msra.mxu0 %v5100
      %5403 = vmatpush.bf16.msra.mxu0 %v5097
      %5404 = vmatpush.bf16.msra.mxu0 %v5094
      %5405 = vmatpush.bf16.msra.mxu0 %v5091
      %5406 = vmatpush.bf16.msra.mxu0 %v5088
      %5407 = vmatpush.bf16.msra.mxu0 %v5085
      %5408 = vmatpush.bf16.msra.mxu0 %v5082
      %5409 = vmatpush.bf16.msra.mxu0 %v5079
      %5410 = vmatmul.bf16.gmra.mxu0 %v5172
      %v5411 = vpop.f32.mrf.mxu0
      %v5412 = vadd.f32 0.0, %v5411
      %v5413 = vpop.f32.mrf.mxu0
      %v5414 = vadd.f32 0.0, %v5413
      %5415 = vmatmul.bf16.gmra.mxu0 %v5174
      %v5416 = vpop.f32.mrf.mxu0
      %v5417 = vadd.f32 0.0, %v5416
      %v5418 = vpop.f32.mrf.mxu0
      %v5419 = vadd.f32 0.0, %v5418
      %5420 = vmatmul.bf16.gmra.mxu0 %v5176
      %v5421 = vpop.f32.mrf.mxu0
      %v5422 = vadd.f32 0.0, %v5421
      %v5423 = vpop.f32.mrf.mxu0
      %v5424 = vadd.f32 0.0, %v5423
      %5425 = vmatmul.bf16.gmra.mxu0 %v5178
      %v5426 = vpop.f32.mrf.mxu0
      %v5427 = vadd.f32 0.0, %v5426
      %v5428 = vpop.f32.mrf.mxu0
      %v5429 = vadd.f32 0.0, %v5428
      %5430 = vmatmul.bf16.gmra.mxu0 %v5180
      %v5431 = vpop.f32.mrf.mxu0
      %v5432 = vadd.f32 0.0, %v5431
      %v5433 = vpop.f32.mrf.mxu0
      %v5434 = vadd.f32 0.0, %v5433
      %5435 = vmatmul.bf16.gmra.mxu0 %v5182
      %v5436 = vpop.f32.mrf.mxu0
      %v5437 = vadd.f32 0.0, %v5436
      %v5438 = vpop.f32.mrf.mxu0
      %v5439 = vadd.f32 0.0, %v5438
      %5440 = vmatmul.bf16.gmra.mxu0 %v5184
      %v5441 = vpop.f32.mrf.mxu0
      %v5442 = vadd.f32 0.0, %v5441
      %v5443 = vpop.f32.mrf.mxu0
      %v5444 = vadd.f32 0.0, %v5443
      %5445 = vdwg.mxu0
      %5446 = vmatpush.bf16.msra.mxu0 0
      %5447 = vmatpush.bf16.msra.mxu0 0
      %5448 = vmatpush.bf16.msra.mxu0 0
      %5449 = vmatpush.bf16.msra.mxu0 %v5224
      %5450 = vmatpush.bf16.msra.mxu0 %v5112
      %5451 = vmatpush.bf16.msra.mxu0 %v5109
      %5452 = vmatpush.bf16.msra.mxu0 %v5106
      %5453 = vmatpush.bf16.msra.mxu0 %v5103
      %5454 = vmatmul.bf16.gmra.mxu0 %v5195
      %v5455 = vpop.f32.mrf.mxu0
      %v5456 = vadd.f32 %v5412, %v5455
      %v5457 = vpop.f32.mrf.mxu0
      %v5458 = vadd.f32 %v5414, %v5457
      %5459 = vmatmul.bf16.gmra.mxu0 %v5198
      %v5460 = vpop.f32.mrf.mxu0
      %v5461 = vadd.f32 %v5417, %v5460
      %v5462 = vpop.f32.mrf.mxu0
      %v5463 = vadd.f32 %v5419, %v5462
      %5464 = vmatmul.bf16.gmra.mxu0 %v5201
      %v5465 = vpop.f32.mrf.mxu0
      %v5466 = vadd.f32 %v5422, %v5465
      %v5467 = vpop.f32.mrf.mxu0
      %v5468 = vadd.f32 %v5424, %v5467
      %5469 = vmatmul.bf16.gmra.mxu0 %v5204
      %v5470 = vpop.f32.mrf.mxu0
      %v5471 = vadd.f32 %v5427, %v5470
      %v5472 = vpop.f32.mrf.mxu0
      %v5473 = vadd.f32 %v5429, %v5472
      %5474 = vmatmul.bf16.gmra.mxu0 %v5207
      %v5475 = vpop.f32.mrf.mxu0
      %v5476 = vadd.f32 %v5432, %v5475
      %v5477 = vpop.f32.mrf.mxu0
      %v5478 = vadd.f32 %v5434, %v5477
      %5479 = vmatmul.bf16.gmra.mxu0 %v5210
      %v5480 = vpop.f32.mrf.mxu0
      %v5481 = vadd.f32 %v5437, %v5480
      %v5482 = vpop.f32.mrf.mxu0
      %v5483 = vadd.f32 %v5439, %v5482
      %5484 = vmatmul.bf16.gmra.mxu0 %v5213
      %v5485 = vpop.f32.mrf.mxu0
      %v5486 = vadd.f32 %v5442, %v5485
      %v5487 = vpop.f32.mrf.mxu0
      %v5488 = vadd.f32 %v5444, %v5487
      %5489 = vdwg.mxu0
      %v5490 = vpack.c.bf16 %v5282, %v5280
      %v5491 = vpack.c.bf16 %v5370, %v5368
      %v5492 = vpack.c.bf16 %v5458, %v5456
      %v5493 = vpack.c.bf16 %v5287, %v5285
      %v5494 = vpack.c.bf16 %v5375, %v5373
      %v5495 = vpack.c.bf16 %v5463, %v5461
      %v5496 = vpack.c.bf16 %v5292, %v5290
      %v5497 = vpack.c.bf16 %v5380, %v5378
      %v5498 = vpack.c.bf16 %v5468, %v5466
      %v5499 = vpack.c.bf16 %v5297, %v5295
      %v5500 = vpack.c.bf16 %v5385, %v5383
      %v5501 = vpack.c.bf16 %v5473, %v5471
      %v5502 = vpack.c.bf16 %v5302, %v5300
      %v5503 = vpack.c.bf16 %v5390, %v5388
      %v5504 = vpack.c.bf16 %v5478, %v5476
      %v5505 = vpack.c.bf16 %v5307, %v5305
      %v5506 = vpack.c.bf16 %v5395, %v5393
      %v5507 = vpack.c.bf16 %v5483, %v5481
      %v5508 = vpack.c.bf16 %v5312, %v5310
      %v5509 = vpack.c.bf16 %v5400, %v5398
      %v5510 = vpack.c.bf16 %v5488, %v5486
      %v5511 = vld [vmem:[%s4] sm:$0xff]
      %v5512 = vld [vmem:[%s4 + $0x8] sm:$0xff]
      %v5513 = vld [vmem:[%s4 + $0x10] sm:$0xff]
      %v5514 = vld [vmem:[%s4 + $0x18] sm:$0xff]
      %v5515 = vld [vmem:[%s4 + $0x20] sm:$0xff]
      %v5516 = vld [vmem:[%s4 + $0x28] sm:$0xff]
      %v5517 = vld [vmem:[%s4 + $0x30] sm:$0xff]
      %v5518 = vld [vmem:[%s4 + $0x38] sm:$0xff]
      %v5519 = vld [vmem:[%s4 + $0x40] sm:$0xff]
      %v5520 = vld [vmem:[%s4 + $0x48] sm:$0xff]
      %v5521 = vld [vmem:[%s4 + $0x50] sm:$0xff]
      %v5522 = vld [vmem:[%s4 + $0x58] sm:$0xff]
      %v5523 = vld [vmem:[%s4 + $0x60] sm:$0xff]
      %v5524 = vld [vmem:[%s4 + $0x68] sm:$0xff]
      %v5525 = vld [vmem:[%s4 + $0x70] sm:$0xff]
      %v5526 = vld [vmem:[%s4 + $0x78] sm:$0xff]
      %v5527 = vld [vmem:[%s4 + $0x80] sm:$0xff]
      %v5528 = vld [vmem:[%s4 + $0x88] sm:$0xff]
      %v5529 = vld [vmem:[%s4 + $0x90] sm:$0xff]
      %v5530 = vld [vmem:[%s4 + $0x98] sm:$0xff]
      %v5531 = vld [vmem:[%s4 + $0xa0] sm:$0xff]
      %v5532 = vld [vmem:[%s4 + $0xa8] sm:$0xff]
      %v5533 = vld [vmem:[%s4 + $0xb0] sm:$0xff]
      %v5534 = vld [vmem:[%s4 + $0xb8] sm:$0xff]
      %v5535 = vld [vmem:[%s4 + $0xc0] sm:$0xff]
      %v5536 = vld [vmem:[%s4 + $0xc8] sm:$0xff]
      %v5537 = vld [vmem:[%s4 + $0xd0] sm:$0xff]
      %v5538 = vld [vmem:[%s4 + $0xd8] sm:$0xff]
      %v5539 = vld [vmem:[%s4 + $0xe0] sm:$0xff]
      %v5540 = vld [vmem:[%s4 + $0xe8] sm:$0xff]
      %v5541 = vld [vmem:[%s4 + $0xf0] sm:$0xff]
      %v5542 = vld [vmem:[%s4 + $0xf8] sm:$0xff]
      %v5543 = vld [vmem:[%s4 + $0x100] sm:$0xff]
      %v5544 = vld [vmem:[%s4 + $0x108] sm:$0xff]
      %v5545 = vld [vmem:[%s4 + $0x110] sm:$0xff]
      %v5546 = vld [vmem:[%s4 + $0x118] sm:$0xff]
      %v5547 = vld [vmem:[%s4 + $0x120] sm:$0xff]
      %v5548 = vld [vmem:[%s4 + $0x128] sm:$0xff]
      %v5587 = vunpack.c.l.b16 %v5511
      %v5588 = vunpack.c.h.b16 %v5511
      %v5589 = vunpack.c.l.b16 %v5512
      %v5590 = vunpack.c.h.b16 %v5512
      %v5591 = vunpack.c.l.b16 %v5513
      %v5592 = vunpack.c.h.b16 %v5513
      %v5593 = vunpack.c.l.b16 %v5514
      %v5594 = vunpack.c.h.b16 %v5514
      %v5595 = vunpack.c.l.b16 %v5515
      %v5596 = vunpack.c.h.b16 %v5515
      %v5597 = vunpack.c.l.b16 %v5516
      %v5598 = vunpack.c.h.b16 %v5516
      %v5599 = vunpack.c.l.b16 %v5517
      %v5600 = vunpack.c.h.b16 %v5517
      %v5601 = vunpack.c.l.b16 %v5518
      %v5602 = vunpack.c.h.b16 %v5518
      %v5603 = vunpack.c.l.b16 %v5519
      %v5604 = vunpack.c.h.b16 %v5519
      %v5605 = vunpack.c.l.b16 %v5520
      %v5606 = vunpack.c.h.b16 %v5520
      %v5607 = vunpack.c.l.b16 %v5521
      %v5608 = vunpack.c.h.b16 %v5521
      %v5609 = vunpack.c.l.b16 %v5522
      %v5610 = vunpack.c.h.b16 %v5522
      %v5611 = vunpack.c.l.b16 %v5523
      %v5612 = vunpack.c.h.b16 %v5523
      %v5613 = vunpack.c.l.b16 %v5524
      %v5614 = vunpack.c.h.b16 %v5524
      %v5615 = vunpack.c.l.b16 %v5525
      %v5616 = vunpack.c.h.b16 %v5525
      %v5617 = vunpack.c.l.b16 %v5526
      %v5618 = vunpack.c.h.b16 %v5526
      %v5619 = vunpack.c.l.b16 %v5527
      %v5620 = vunpack.c.h.b16 %v5527
      %v5621 = vunpack.c.l.b16 %v5528
      %v5622 = vunpack.c.h.b16 %v5528
      %v5623 = vunpack.c.l.b16 %v5529
      %v5624 = vunpack.c.h.b16 %v5529
      %v5625 = vunpack.c.l.b16 %v5530
      %v5626 = vunpack.c.h.b16 %v5530
      %v5627 = vunpack.c.l.b16 %v5531
      %v5628 = vunpack.c.h.b16 %v5531
      %v5629 = vunpack.c.l.b16 %v5532
      %v5630 = vunpack.c.h.b16 %v5532
      %v5631 = vunpack.c.l.b16 %v5533
      %v5632 = vunpack.c.h.b16 %v5533
      %v5633 = vunpack.c.l.b16 %v5534
      %v5634 = vunpack.c.h.b16 %v5534
      %v5635 = vunpack.c.l.b16 %v5535
      %v5636 = vunpack.c.h.b16 %v5535
      %v5637 = vunpack.c.l.b16 %v5536
      %v5638 = vunpack.c.h.b16 %v5536
      %v5639 = vunpack.c.l.b16 %v5537
      %v5640 = vunpack.c.h.b16 %v5537
      %v5641 = vunpack.c.l.b16 %v5538
      %v5642 = vunpack.c.h.b16 %v5538
      %v5643 = vunpack.c.l.b16 %v5539
      %v5644 = vunpack.c.h.b16 %v5539
      %v5645 = vunpack.c.l.b16 %v5540
      %v5646 = vunpack.c.h.b16 %v5540
      %v5647 = vunpack.c.l.b16 %v5541
      %v5648 = vunpack.c.h.b16 %v5541
      %v5649 = vunpack.c.l.b16 %v5542
      %v5650 = vunpack.c.h.b16 %v5542
      %v5651 = vunpack.c.l.b16 %v5543
      %v5652 = vunpack.c.h.b16 %v5543
      %v5653 = vunpack.c.l.b16 %v5544
      %v5654 = vunpack.c.h.b16 %v5544
      %v5655 = vunpack.c.l.b16 %v5545
      %v5656 = vunpack.c.h.b16 %v5545
      %v5657 = vunpack.c.l.b16 %v5546
      %v5658 = vunpack.c.h.b16 %v5546
      %v5659 = vunpack.c.l.b16 %v5547
      %v5660 = vunpack.c.h.b16 %v5547
      %v5661 = vunpack.c.l.b16 %v5548
      %v5662 = vunpack.c.h.b16 %v5548
      %v5663 = vpack.c.b16 %v5589, %v5587
      %v5664 = vpack.c.b16 %v5590, %v5588
      %v5665 = vpack.c.b16 %v5593, %v5591
      %v5666 = vpack.c.b16 %v5594, %v5592
      %v5667 = vpack.c.b16 %v5597, %v5595
      %v5668 = vpack.c.b16 %v5598, %v5596
      %v5669 = vpack.c.b16 %v5601, %v5599
      %v5670 = vpack.c.b16 %v5602, %v5600
      %v5671 = vpack.c.b16 %v5605, %v5603
      %v5672 = vpack.c.b16 %v5606, %v5604
      %v5673 = vpack.c.b16 %v5609, %v5607
      %v5674 = vpack.c.b16 %v5610, %v5608
      %v5675 = vpack.c.b16 %v5613, %v5611
      %v5676 = vpack.c.b16 %v5614, %v5612
      %v5677 = vpack.c.b16 %v5617, %v5615
      %v5678 = vpack.c.b16 %v5618, %v5616
      %v5679 = vpack.c.b16 %v5621, %v5619
      %v5680 = vpack.c.b16 %v5622, %v5620
      %v5681 = vpack.c.b16 %v5625, %v5623
      %v5682 = vpack.c.b16 %v5626, %v5624
      %v5683 = vpack.c.b16 %v5629, %v5627
      %v5684 = vpack.c.b16 %v5630, %v5628
      %v5685 = vpack.c.b16 %v5633, %v5631
      %v5686 = vpack.c.b16 %v5634, %v5632
      %v5687 = vpack.c.b16 %v5637, %v5635
      %v5688 = vpack.c.b16 %v5638, %v5636
      %v5689 = vpack.c.b16 %v5641, %v5639
      %v5690 = vpack.c.b16 %v5642, %v5640
      %v5691 = vpack.c.b16 %v5645, %v5643
      %v5692 = vpack.c.b16 %v5646, %v5644
      %v5693 = vpack.c.b16 %v5649, %v5647
      %v5694 = vpack.c.b16 %v5650, %v5648
      %v5695 = vpack.c.b16 %v5653, %v5651
      %v5696 = vpack.c.b16 %v5654, %v5652
      %v5697 = vpack.c.b16 %v5657, %v5655
      %v5698 = vpack.c.b16 %v5658, %v5656
      %v5699 = vpack.c.b16 %v5661, %v5659
      %v5700 = vpack.c.b16 %v5662, %v5660
      %vm5739 = vcmask 392192
      %v5741 = vsel %vm5739, %v5492, 0
      %v5744 = vsel %vm5739, %v5495, 0
      %v5747 = vsel %vm5739, %v5498, 0
      %v5750 = vsel %vm5739, %v5501, 0
      %v5753 = vsel %vm5739, %v5504, 0
      %v5756 = vsel %vm5739, %v5507, 0
      %v5759 = vsel %vm5739, %v5510, 0
      %5761 = vmatpush.bf16.msra.mxu0 %v5677
      %5762 = vmatpush.bf16.msra.mxu0 %v5675
      %5763 = vmatpush.bf16.msra.mxu0 %v5673
      %5764 = vmatpush.bf16.msra.mxu0 %v5671
      %5765 = vmatpush.bf16.msra.mxu0 %v5669
      %5766 = vmatpush.bf16.msra.mxu0 %v5667
      %5767 = vmatpush.bf16.msra.mxu0 %v5665
      %5768 = vmatpush.bf16.msra.mxu0 %v5663
      %5769 = vmatmul.bf16.gmra.mxu0 %v5490
      %v5770 = vpop.f32.mrf.mxu0
      %v5771 = vadd.f32 0.0, %v5770
      %v5772 = vpop.f32.mrf.mxu0
      %v5773 = vadd.f32 0.0, %v5772
      %5774 = vmatmul.bf16.gmra.mxu0 %v5493
      %v5775 = vpop.f32.mrf.mxu0
      %v5776 = vadd.f32 0.0, %v5775
      %v5777 = vpop.f32.mrf.mxu0
      %v5778 = vadd.f32 0.0, %v5777
      %5779 = vmatmul.bf16.gmra.mxu0 %v5496
      %v5780 = vpop.f32.mrf.mxu0
      %v5781 = vadd.f32 0.0, %v5780
      %v5782 = vpop.f32.mrf.mxu0
      %v5783 = vadd.f32 0.0, %v5782
      %5784 = vmatmul.bf16.gmra.mxu0 %v5499
      %v5785 = vpop.f32.mrf.mxu0
      %v5786 = vadd.f32 0.0, %v5785
      %v5787 = vpop.f32.mrf.mxu0
      %v5788 = vadd.f32 0.0, %v5787
      %5789 = vmatmul.bf16.gmra.mxu0 %v5502
      %v5790 = vpop.f32.mrf.mxu0
      %v5791 = vadd.f32 0.0, %v5790
      %v5792 = vpop.f32.mrf.mxu0
      %v5793 = vadd.f32 0.0, %v5792
      %5794 = vmatmul.bf16.gmra.mxu0 %v5505
      %v5795 = vpop.f32.mrf.mxu0
      %v5796 = vadd.f32 0.0, %v5795
      %v5797 = vpop.f32.mrf.mxu0
      %v5798 = vadd.f32 0.0, %v5797
      %5799 = vmatmul.bf16.gmra.mxu0 %v5508
      %v5800 = vpop.f32.mrf.mxu0
      %v5801 = vadd.f32 0.0, %v5800
      %v5802 = vpop.f32.mrf.mxu0
      %v5803 = vadd.f32 0.0, %v5802
      %5804 = vdwg.mxu0
      %5805 = vmatpush.bf16.msra.mxu0 %v5693
      %5806 = vmatpush.bf16.msra.mxu0 %v5691
      %5807 = vmatpush.bf16.msra.mxu0 %v5689
      %5808 = vmatpush.bf16.msra.mxu0 %v5687
      %5809 = vmatpush.bf16.msra.mxu0 %v5685
      %5810 = vmatpush.bf16.msra.mxu0 %v5683
      %5811 = vmatpush.bf16.msra.mxu0 %v5681
      %5812 = vmatpush.bf16.msra.mxu0 %v5679
      %5813 = vmatmul.bf16.gmra.mxu0 %v5491
      %v5814 = vpop.f32.mrf.mxu0
      %v5815 = vadd.f32 %v5771, %v5814
      %v5816 = vpop.f32.mrf.mxu0
      %v5817 = vadd.f32 %v5773, %v5816
      %5818 = vmatmul.bf16.gmra.mxu0 %v5494
      %v5819 = vpop.f32.mrf.mxu0
      %v5820 = vadd.f32 %v5776, %v5819
      %v5821 = vpop.f32.mrf.mxu0
      %v5822 = vadd.f32 %v5778, %v5821
      %5823 = vmatmul.bf16.gmra.mxu0 %v5497
      %v5824 = vpop.f32.mrf.mxu0
      %v5825 = vadd.f32 %v5781, %v5824
      %v5826 = vpop.f32.mrf.mxu0
      %v5827 = vadd.f32 %v5783, %v5826
      %5828 = vmatmul.bf16.gmra.mxu0 %v5500
      %v5829 = vpop.f32.mrf.mxu0
      %v5830 = vadd.f32 %v5786, %v5829
      %v5831 = vpop.f32.mrf.mxu0
      %v5832 = vadd.f32 %v5788, %v5831
      %5833 = vmatmul.bf16.gmra.mxu0 %v5503
      %v5834 = vpop.f32.mrf.mxu0
      %v5835 = vadd.f32 %v5791, %v5834
      %v5836 = vpop.f32.mrf.mxu0
      %v5837 = vadd.f32 %v5793, %v5836
      %5838 = vmatmul.bf16.gmra.mxu0 %v5506
      %v5839 = vpop.f32.mrf.mxu0
      %v5840 = vadd.f32 %v5796, %v5839
      %v5841 = vpop.f32.mrf.mxu0
      %v5842 = vadd.f32 %v5798, %v5841
      %5843 = vmatmul.bf16.gmra.mxu0 %v5509
      %v5844 = vpop.f32.mrf.mxu0
      %v5845 = vadd.f32 %v5801, %v5844
      %v5846 = vpop.f32.mrf.mxu0
      %v5847 = vadd.f32 %v5803, %v5846
      %5848 = vdwg.mxu0
      %5849 = vmatpush.bf16.msra.mxu0 0
      %5850 = vmatpush.bf16.msra.mxu0 0
      %5851 = vmatpush.bf16.msra.mxu0 0
      %5852 = vmatpush.bf16.msra.mxu0 0
      %5853 = vmatpush.bf16.msra.mxu0 0
      %5854 = vmatpush.bf16.msra.mxu0 %v5699
      %5855 = vmatpush.bf16.msra.mxu0 %v5697
      %5856 = vmatpush.bf16.msra.mxu0 %v5695
      %5857 = vmatmul.bf16.gmra.mxu0 %v5741
      %v5858 = vpop.f32.mrf.mxu0
      %v5859 = vadd.f32 %v5815, %v5858
      %v5860 = vpop.f32.mrf.mxu0
      %v5861 = vadd.f32 %v5817, %v5860
      %5862 = vmatmul.bf16.gmra.mxu0 %v5744
      %v5863 = vpop.f32.mrf.mxu0
      %v5864 = vadd.f32 %v5820, %v5863
      %v5865 = vpop.f32.mrf.mxu0
      %v5866 = vadd.f32 %v5822, %v5865
      %5867 = vmatmul.bf16.gmra.mxu0 %v5747
      %v5868 = vpop.f32.mrf.mxu0
      %v5869 = vadd.f32 %v5825, %v5868
      %v5870 = vpop.f32.mrf.mxu0
      %v5871 = vadd.f32 %v5827, %v5870
      %5872 = vmatmul.bf16.gmra.mxu0 %v5750
      %v5873 = vpop.f32.mrf.mxu0
      %v5874 = vadd.f32 %v5830, %v5873
      %v5875 = vpop.f32.mrf.mxu0
      %v5876 = vadd.f32 %v5832, %v5875
      %5877 = vmatmul.bf16.gmra.mxu0 %v5753
      %v5878 = vpop.f32.mrf.mxu0
      %v5879 = vadd.f32 %v5835, %v5878
      %v5880 = vpop.f32.mrf.mxu0
      %v5881 = vadd.f32 %v5837, %v5880
      %5882 = vmatmul.bf16.gmra.mxu0 %v5756
      %v5883 = vpop.f32.mrf.mxu0
      %v5884 = vadd.f32 %v5840, %v5883
      %v5885 = vpop.f32.mrf.mxu0
      %v5886 = vadd.f32 %v5842, %v5885
      %5887 = vmatmul.bf16.gmra.mxu0 %v5759
      %v5888 = vpop.f32.mrf.mxu0
      %v5889 = vadd.f32 %v5845, %v5888
      %v5890 = vpop.f32.mrf.mxu0
      %v5891 = vadd.f32 %v5847, %v5890
      %5892 = vdwg.mxu0
      %5893 = vmatpush.bf16.msra.mxu0 %v5678
      %5894 = vmatpush.bf16.msra.mxu0 %v5676
      %5895 = vmatpush.bf16.msra.mxu0 %v5674
      %5896 = vmatpush.bf16.msra.mxu0 %v5672
      %5897 = vmatpush.bf16.msra.mxu0 %v5670
      %5898 = vmatpush.bf16.msra.mxu0 %v5668
      %5899 = vmatpush.bf16.msra.mxu0 %v5666
      %5900 = vmatpush.bf16.msra.mxu0 %v5664
      %5901 = vmatmul.bf16.gmra.mxu0 %v5490
      %v5902 = vpop.f32.mrf.mxu0
      %v5903 = vadd.f32 0.0, %v5902
      %v5904 = vpop.f32.mrf.mxu0
      %v5905 = vadd.f32 0.0, %v5904
      %5906 = vmatmul.bf16.gmra.mxu0 %v5493
      %v5907 = vpop.f32.mrf.mxu0
      %v5908 = vadd.f32 0.0, %v5907
      %v5909 = vpop.f32.mrf.mxu0
      %v5910 = vadd.f32 0.0, %v5909
      %5911 = vmatmul.bf16.gmra.mxu0 %v5496
      %v5912 = vpop.f32.mrf.mxu0
      %v5913 = vadd.f32 0.0, %v5912
      %v5914 = vpop.f32.mrf.mxu0
      %v5915 = vadd.f32 0.0, %v5914
      %5916 = vmatmul.bf16.gmra.mxu0 %v5499
      %v5917 = vpop.f32.mrf.mxu0
      %v5918 = vadd.f32 0.0, %v5917
      %v5919 = vpop.f32.mrf.mxu0
      %v5920 = vadd.f32 0.0, %v5919
      %5921 = vmatmul.bf16.gmra.mxu0 %v5502
      %v5922 = vpop.f32.mrf.mxu0
      %v5923 = vadd.f32 0.0, %v5922
      %v5924 = vpop.f32.mrf.mxu0
      %v5925 = vadd.f32 0.0, %v5924
      %5926 = vmatmul.bf16.gmra.mxu0 %v5505
      %v5927 = vpop.f32.mrf.mxu0
      %v5928 = vadd.f32 0.0, %v5927
      %v5929 = vpop.f32.mrf.mxu0
      %v5930 = vadd.f32 0.0, %v5929
      %5931 = vmatmul.bf16.gmra.mxu0 %v5508
      %v5932 = vpop.f32.mrf.mxu0
      %v5933 = vadd.f32 0.0, %v5932
      %v5934 = vpop.f32.mrf.mxu0
      %v5935 = vadd.f32 0.0, %v5934
      %5936 = vdwg.mxu0
      %5937 = vmatpush.bf16.msra.mxu0 %v5694
      %5938 = vmatpush.bf16.msra.mxu0 %v5692
      %5939 = vmatpush.bf16.msra.mxu0 %v5690
      %5940 = vmatpush.bf16.msra.mxu0 %v5688
      %5941 = vmatpush.bf16.msra.mxu0 %v5686
      %5942 = vmatpush.bf16.msra.mxu0 %v5684
      %5943 = vmatpush.bf16.msra.mxu0 %v5682
      %5944 = vmatpush.bf16.msra.mxu0 %v5680
      %5945 = vmatmul.bf16.gmra.mxu0 %v5491
      %v5946 = vpop.f32.mrf.mxu0
      %v5947 = vadd.f32 %v5903, %v5946
      %v5948 = vpop.f32.mrf.mxu0
      %v5949 = vadd.f32 %v5905, %v5948
      %5950 = vmatmul.bf16.gmra.mxu0 %v5494
      %v5951 = vpop.f32.mrf.mxu0
      %v5952 = vadd.f32 %v5908, %v5951
      %v5953 = vpop.f32.mrf.mxu0
      %v5954 = vadd.f32 %v5910, %v5953
      %5955 = vmatmul.bf16.gmra.mxu0 %v5497
      %v5956 = vpop.f32.mrf.mxu0
      %v5957 = vadd.f32 %v5913, %v5956
      %v5958 = vpop.f32.mrf.mxu0
      %v5959 = vadd.f32 %v5915, %v5958
      %5960 = vmatmul.bf16.gmra.mxu0 %v5500
      %v5961 = vpop.f32.mrf.mxu0
      %v5962 = vadd.f32 %v5918, %v5961
      %v5963 = vpop.f32.mrf.mxu0
      %v5964 = vadd.f32 %v5920, %v5963
      %5965 = vmatmul.bf16.gmra.mxu0 %v5503
      %v5966 = vpop.f32.mrf.mxu0
      %v5967 = vadd.f32 %v5923, %v5966
      %v5968 = vpop.f32.mrf.mxu0
      %v5969 = vadd.f32 %v5925, %v5968
      %5970 = vmatmul.bf16.gmra.mxu0 %v5506
      %v5971 = vpop.f32.mrf.mxu0
      %v5972 = vadd.f32 %v5928, %v5971
      %v5973 = vpop.f32.mrf.mxu0
      %v5974 = vadd.f32 %v5930, %v5973
      %5975 = vmatmul.bf16.gmra.mxu0 %v5509
      %v5976 = vpop.f32.mrf.mxu0
      %v5977 = vadd.f32 %v5933, %v5976
      %v5978 = vpop.f32.mrf.mxu0
      %v5979 = vadd.f32 %v5935, %v5978
      %5980 = vdwg.mxu0
      %5981 = vmatpush.bf16.msra.mxu0 0
      %5982 = vmatpush.bf16.msra.mxu0 0
      %5983 = vmatpush.bf16.msra.mxu0 0
      %5984 = vmatpush.bf16.msra.mxu0 0
      %5985 = vmatpush.bf16.msra.mxu0 0
      %5986 = vmatpush.bf16.msra.mxu0 %v5700
      %5987 = vmatpush.bf16.msra.mxu0 %v5698
      %5988 = vmatpush.bf16.msra.mxu0 %v5696
      %5989 = vmatmul.bf16.gmra.mxu0 %v5741
      %v5990 = vpop.f32.mrf.mxu0
      %v5991 = vadd.f32 %v5947, %v5990
      %v5992 = vpop.f32.mrf.mxu0
      %v5993 = vadd.f32 %v5949, %v5992
      %5994 = vmatmul.bf16.gmra.mxu0 %v5744
      %v5995 = vpop.f32.mrf.mxu0
      %v5996 = vadd.f32 %v5952, %v5995
      %v5997 = vpop.f32.mrf.mxu0
      %v5998 = vadd.f32 %v5954, %v5997
      %5999 = vmatmul.bf16.gmra.mxu0 %v5747
      %v6000 = vpop.f32.mrf.mxu0
      %v6001 = vadd.f32 %v5957, %v6000
      %v6002 = vpop.f32.mrf.mxu0
      %v6003 = vadd.f32 %v5959, %v6002
      %6004 = vmatmul.bf16.gmra.mxu0 %v5750
      %v6005 = vpop.f32.mrf.mxu0
      %v6006 = vadd.f32 %v5962, %v6005
      %v6007 = vpop.f32.mrf.mxu0
      %v6008 = vadd.f32 %v5964, %v6007
      %6009 = vmatmul.bf16.gmra.mxu0 %v5753
      %v6010 = vpop.f32.mrf.mxu0
      %v6011 = vadd.f32 %v5967, %v6010
      %v6012 = vpop.f32.mrf.mxu0
      %v6013 = vadd.f32 %v5969, %v6012
      %6014 = vmatmul.bf16.gmra.mxu0 %v5756
      %v6015 = vpop.f32.mrf.mxu0
      %v6016 = vadd.f32 %v5972, %v6015
      %v6017 = vpop.f32.mrf.mxu0
      %v6018 = vadd.f32 %v5974, %v6017
      %6019 = vmatmul.bf16.gmra.mxu0 %v5759
      %v6020 = vpop.f32.mrf.mxu0
      %v6021 = vadd.f32 %v5977, %v6020
      %v6022 = vpop.f32.mrf.mxu0
      %v6023 = vadd.f32 %v5979, %v6022
      %6024 = vdwg.mxu0
      %v6025 = vpack.c.bf16 %v5991, %v5859
      %v6026 = vpack.c.bf16 %v5993, %v5861
      %v6027 = vpack.c.bf16 %v5996, %v5864
      %v6028 = vpack.c.bf16 %v5998, %v5866
      %v6029 = vpack.c.bf16 %v6001, %v5869
      %v6030 = vpack.c.bf16 %v6003, %v5871
      %v6031 = vpack.c.bf16 %v6006, %v5874
      %v6032 = vpack.c.bf16 %v6008, %v5876
      %v6033 = vpack.c.bf16 %v6011, %v5879
      %v6034 = vpack.c.bf16 %v6013, %v5881
      %v6035 = vpack.c.bf16 %v6016, %v5884
      %v6036 = vpack.c.bf16 %v6018, %v5886
      %v6037 = vpack.c.bf16 %v6021, %v5889
      %v6038 = vpack.c.bf16 %v6023, %v5891
      %vm6039 = vcmask 1043456
      %vm6040 = vcmask 261124
      %vm6041 = vmor %vm6040, %vm6039
      %6042 = vst.msk [vmem:[#allocation3] sm:$0xff] %vm6041, %v6025
      %6043 = vst.msk [vmem:[#allocation3 + $0x8] sm:$0xff] %vm6041, %v6026
      %6044 = vst.msk [vmem:[#allocation3 + $0x10] sm:$0xff] %vm6041, %v6027
      %6045 = vst.msk [vmem:[#allocation3 + $0x18] sm:$0xff] %vm6041, %v6028
      %6046 = vst.msk [vmem:[#allocation3 + $0x20] sm:$0xff] %vm6041, %v6029
      %6047 = vst.msk [vmem:[#allocation3 + $0x28] sm:$0xff] %vm6041, %v6030
      %6048 = vst.msk [vmem:[#allocation3 + $0x30] sm:$0xff] %vm6041, %v6031
      %6049 = vst.msk [vmem:[#allocation3 + $0x38] sm:$0xff] %vm6041, %v6032
      %6050 = vst.msk [vmem:[#allocation3 + $0x40] sm:$0xff] %vm6041, %v6033
      %6051 = vst.msk [vmem:[#allocation3 + $0x48] sm:$0xff] %vm6041, %v6034
      %6052 = vst.msk [vmem:[#allocation3 + $0x50] sm:$0xff] %vm6041, %v6035
      %6053 = vst.msk [vmem:[#allocation3 + $0x58] sm:$0xff] %vm6041, %v6036
      %6054 = vst.msk [vmem:[#allocation3 + $0x60] sm:$0xff] %vm6041, %v6037
      %6055 = vst.msk [vmem:[#allocation3 + $0x68] sm:$0xff] %vm6041, %v6038
      %v6056 = vld [vmem:[#allocation3] sm:$0xff]
      %v6057 = vld [vmem:[#allocation3 + $0x8] sm:$0xff]
      %v6058 = vld [vmem:[#allocation3 + $0x10] sm:$0xff]
      %v6059 = vld [vmem:[#allocation3 + $0x18] sm:$0xff]
      %v6060 = vld [vmem:[#allocation3 + $0x20] sm:$0xff]
      %v6061 = vld [vmem:[#allocation3 + $0x28] sm:$0xff]
      %v6062 = vld [vmem:[#allocation3 + $0x30] sm:$0xff]
      %v6063 = vld [vmem:[#allocation3 + $0x38] sm:$0xff]
      %v6064 = vld [vmem:[#allocation3 + $0x40] sm:$0xff]
      %v6065 = vld [vmem:[#allocation3 + $0x48] sm:$0xff]
      %v6066 = vld [vmem:[#allocation3 + $0x50] sm:$0xff]
      %v6067 = vld [vmem:[#allocation3 + $0x58] sm:$0xff]
      %v6068 = vld [vmem:[#allocation3 + $0x60] sm:$0xff]
      %v6069 = vld [vmem:[#allocation3 + $0x68] sm:$0x77]
      %v6070 = vld [vmem:[%s5] sm:$0xff]
      %v6071 = vld [vmem:[%s5 + $0x8] sm:$0xf]
      %v6072 = vld [vmem:[%s5 + $0xc] sm:$0xff]
      %v6073 = vld [vmem:[%s5 + $0x14] sm:$0xf]
      %v6074 = vld [vmem:[%s5 + $0x18] sm:$0xff]
      %v6075 = vld [vmem:[%s5 + $0x20] sm:$0xf]
      %v6076 = vld [vmem:[%s5 + $0x24] sm:$0xff]
      %v6077 = vld [vmem:[%s5 + $0x2c] sm:$0xf]
      %v6078 = vld [vmem:[%s5 + $0x30] sm:$0xff]
      %v6079 = vld [vmem:[%s5 + $0x38] sm:$0xf]
      %v6080 = vld [vmem:[%s5 + $0x3c] sm:$0xff]
      %v6081 = vld [vmem:[%s5 + $0x44] sm:$0xf]
      %v6082 = vld [vmem:[%s5 + $0x48] sm:$0xff]
      %v6083 = vld [vmem:[%s5 + $0x50] sm:$0xf]
      %v6084 = vld [vmem:[%s5 + $0x54] sm:$0xff]
      %v6085 = vld [vmem:[%s5 + $0x5c] sm:$0xf]
      %v6086 = vld [vmem:[%s5 + $0x60] sm:$0xff]
      %v6087 = vld [vmem:[%s5 + $0x68] sm:$0xf]
      %v6088 = vld [vmem:[%s5 + $0x6c] sm:$0xff]
      %v6089 = vld [vmem:[%s5 + $0x74] sm:$0xf]
      %v6090 = vld [vmem:[%s5 + $0x78] sm:$0xff]
      %v6091 = vld [vmem:[%s5 + $0x80] sm:$0xf]
      %v6092 = vld [vmem:[%s5 + $0x84] sm:$0xff]
      %v6093 = vld [vmem:[%s5 + $0x8c] sm:$0xf]
      %v6094 = vld [vmem:[%s5 + $0x90] sm:$0xff]
      %v6095 = vld [vmem:[%s5 + $0x98] sm:$0xf]
      %v6096 = vld [vmem:[%s5 + $0x9c] sm:$0xff]
      %v6097 = vld [vmem:[%s5 + $0xa4] sm:$0xf]
      %v6098 = vld [vmem:[%s5 + $0xa8] sm:$0xff]
      %v6099 = vld [vmem:[%s5 + $0xb0] sm:$0xf]
      %v6100 = vld [vmem:[%s5 + $0xb4] sm:$0xff]
      %v6101 = vld [vmem:[%s5 + $0xbc] sm:$0xf]
      %v6102 = vld [vmem:[%s5 + $0xc0] sm:$0xff]
      %v6103 = vld [vmem:[%s5 + $0xc8] sm:$0xf]
      %v6104 = vld [vmem:[%s5 + $0xcc] sm:$0xff]
      %v6105 = vld [vmem:[%s5 + $0xd4] sm:$0xf]
      %v6106 = vld [vmem:[%s5 + $0xd8] sm:$0xff]
      %v6107 = vld [vmem:[%s5 + $0xe0] sm:$0xf]
      %v6108 = vld [vmem:[%s5 + $0xe4] sm:$0xff]
      %v6109 = vld [vmem:[%s5 + $0xec] sm:$0xf]
      %v6124 = vunpack.c.l.b16 %v6056
      %v6125 = vunpack.c.h.b16 %v6056
      %v6126 = vunpack.c.l.b16 %v6057
      %v6127 = vunpack.c.h.b16 %v6057
      %v6128 = vunpack.c.l.b16 %v6058
      %v6129 = vunpack.c.h.b16 %v6058
      %v6130 = vunpack.c.l.b16 %v6059
      %v6131 = vunpack.c.h.b16 %v6059
      %v6132 = vunpack.c.l.b16 %v6060
      %v6133 = vunpack.c.h.b16 %v6060
      %v6134 = vunpack.c.l.b16 %v6061
      %v6135 = vunpack.c.h.b16 %v6061
      %v6136 = vunpack.c.l.b16 %v6062
      %v6137 = vunpack.c.h.b16 %v6062
      %v6138 = vunpack.c.l.b16 %v6063
      %v6139 = vunpack.c.h.b16 %v6063
      %v6140 = vunpack.c.l.b16 %v6064
      %v6141 = vunpack.c.h.b16 %v6064
      %v6142 = vunpack.c.l.b16 %v6065
      %v6143 = vunpack.c.h.b16 %v6065
      %v6144 = vunpack.c.l.b16 %v6066
      %v6145 = vunpack.c.h.b16 %v6066
      %v6146 = vunpack.c.l.b16 %v6067
      %v6147 = vunpack.c.h.b16 %v6067
      %v6148 = vunpack.c.l.b16 %v6068
      %v6149 = vunpack.c.h.b16 %v6068
      %v6150 = vunpack.c.l.b16 %v6069
      %v6151 = vunpack.c.h.b16 %v6069
      %v6152 = vpack.c.b16 %v6126, %v6124
      %v6153 = vpack.c.b16 %v6127, %v6125
      %v6154 = vpack.c.b16 %v6130, %v6128
      %v6155 = vpack.c.b16 %v6131, %v6129
      %v6156 = vpack.c.b16 %v6134, %v6132
      %v6157 = vpack.c.b16 %v6135, %v6133
      %v6158 = vpack.c.b16 %v6138, %v6136
      %v6159 = vpack.c.b16 %v6139, %v6137
      %v6160 = vpack.c.b16 %v6142, %v6140
      %v6161 = vpack.c.b16 %v6143, %v6141
      %v6162 = vpack.c.b16 %v6146, %v6144
      %v6163 = vpack.c.b16 %v6147, %v6145
      %v6164 = vpack.c.b16 %v6150, %v6148
      %v6165 = vpack.c.b16 %v6151, %v6149
      %v6213 = vunpack.c.l.b16 %v6070
      %v6214 = vunpack.c.h.b16 %v6070
      %v6215 = vunpack.c.l.b16 %v6071
      %v6216 = vunpack.c.l.b16 %v6072
      %v6217 = vunpack.c.h.b16 %v6072
      %v6218 = vunpack.c.l.b16 %v6073
      %v6219 = vunpack.c.l.b16 %v6074
      %v6220 = vunpack.c.h.b16 %v6074
      %v6221 = vunpack.c.l.b16 %v6075
      %v6222 = vunpack.c.l.b16 %v6076
      %v6223 = vunpack.c.h.b16 %v6076
      %v6224 = vunpack.c.l.b16 %v6077
      %v6225 = vunpack.c.l.b16 %v6078
      %v6226 = vunpack.c.h.b16 %v6078
      %v6227 = vunpack.c.l.b16 %v6079
      %v6228 = vunpack.c.l.b16 %v6080
      %v6229 = vunpack.c.h.b16 %v6080
      %v6230 = vunpack.c.l.b16 %v6081
      %v6231 = vunpack.c.l.b16 %v6082
      %v6232 = vunpack.c.h.b16 %v6082
      %v6233 = vunpack.c.l.b16 %v6083
      %v6234 = vunpack.c.l.b16 %v6084
      %v6235 = vunpack.c.h.b16 %v6084
      %v6236 = vunpack.c.l.b16 %v6085
      %v6237 = vunpack.c.l.b16 %v6086
      %v6238 = vunpack.c.h.b16 %v6086
      %v6239 = vunpack.c.l.b16 %v6087
      %v6240 = vunpack.c.l.b16 %v6088
      %v6241 = vunpack.c.h.b16 %v6088
      %v6242 = vunpack.c.l.b16 %v6089
      %v6243 = vunpack.c.l.b16 %v6090
      %v6244 = vunpack.c.h.b16 %v6090
      %v6245 = vunpack.c.l.b16 %v6091
      %v6246 = vunpack.c.l.b16 %v6092
      %v6247 = vunpack.c.h.b16 %v6092
      %v6248 = vunpack.c.l.b16 %v6093
      %v6249 = vunpack.c.l.b16 %v6094
      %v6250 = vunpack.c.h.b16 %v6094
      %v6251 = vunpack.c.l.b16 %v6095
      %v6252 = vunpack.c.l.b16 %v6096
      %v6253 = vunpack.c.h.b16 %v6096
      %v6254 = vunpack.c.l.b16 %v6097
      %v6255 = vunpack.c.l.b16 %v6098
      %v6256 = vunpack.c.h.b16 %v6098
      %v6257 = vunpack.c.l.b16 %v6099
      %v6258 = vunpack.c.l.b16 %v6100
      %v6259 = vunpack.c.h.b16 %v6100
      %v6260 = vunpack.c.l.b16 %v6101
      %v6261 = vunpack.c.l.b16 %v6102
      %v6262 = vunpack.c.h.b16 %v6102
      %v6263 = vunpack.c.l.b16 %v6103
      %v6264 = vunpack.c.l.b16 %v6104
      %v6265 = vunpack.c.h.b16 %v6104
      %v6266 = vunpack.c.l.b16 %v6105
      %v6267 = vunpack.c.l.b16 %v6106
      %v6268 = vunpack.c.h.b16 %v6106
      %v6269 = vunpack.c.l.b16 %v6107
      %v6270 = vunpack.c.l.b16 %v6108
      %v6271 = vunpack.c.h.b16 %v6108
      %v6272 = vunpack.c.l.b16 %v6109
      %v6273 = vpack.c.b16 %v6216, %v6213
      %v6274 = vpack.c.b16 %v6217, %v6214
      %v6275 = vpack.c.b16 %v6218, %v6215
      %v6276 = vpack.c.b16 %v6222, %v6219
      %v6277 = vpack.c.b16 %v6223, %v6220
      %v6278 = vpack.c.b16 %v6224, %v6221
      %v6279 = vpack.c.b16 %v6228, %v6225
      %v6280 = vpack.c.b16 %v6229, %v6226
      %v6281 = vpack.c.b16 %v6230, %v6227
      %v6282 = vpack.c.b16 %v6234, %v6231
      %v6283 = vpack.c.b16 %v6235, %v6232
      %v6284 = vpack.c.b16 %v6236, %v6233
      %v6285 = vpack.c.b16 %v6240, %v6237
      %v6286 = vpack.c.b16 %v6241, %v6238
      %v6287 = vpack.c.b16 %v6242, %v6239
      %v6288 = vpack.c.b16 %v6246, %v6243
      %v6289 = vpack.c.b16 %v6247, %v6244
      %v6290 = vpack.c.b16 %v6248, %v6245
      %v6291 = vpack.c.b16 %v6252, %v6249
      %v6292 = vpack.c.b16 %v6253, %v6250
      %v6293 = vpack.c.b16 %v6254, %v6251
      %v6294 = vpack.c.b16 %v6258, %v6255
      %v6295 = vpack.c.b16 %v6259, %v6256
      %v6296 = vpack.c.b16 %v6260, %v6257
      %v6297 = vpack.c.b16 %v6264, %v6261
      %v6298 = vpack.c.b16 %v6265, %v6262
      %v6299 = vpack.c.b16 %v6266, %v6263
      %v6300 = vpack.c.b16 %v6270, %v6267
      %v6301 = vpack.c.b16 %v6271, %v6268
      %v6302 = vpack.c.b16 %v6272, %v6269
      %vm6333 = vcmask 261120
      %v6335 = vsel %vm6333, %v6153, 0
      %v6338 = vsel %vm6333, %v6155, 0
      %v6341 = vsel %vm6333, %v6157, 0
      %v6344 = vsel %vm6333, %v6159, 0
      %v6347 = vsel %vm6333, %v6161, 0
      %v6350 = vsel %vm6333, %v6163, 0
      %v6353 = vsel %vm6333, %v6165, 0
      %6355 = vmatpush.bf16.msra.mxu0 %v6294
      %6356 = vmatpush.bf16.msra.mxu0 %v6291
      %6357 = vmatpush.bf16.msra.mxu0 %v6288
      %6358 = vmatpush.bf16.msra.mxu0 %v6285
      %6359 = vmatpush.bf16.msra.mxu0 %v6282
      %6360 = vmatpush.bf16.msra.mxu0 %v6279
      %6361 = vmatpush.bf16.msra.mxu0 %v6276
      %6362 = vmatpush.bf16.msra.mxu0 %v6273
      %6363 = vmatmul.bf16.gmra.mxu0 %v6152
      %v6364 = vpop.f32.mrf.mxu0
      %v6365 = vadd.f32 0.0, %v6364
      %v6366 = vpop.f32.mrf.mxu0
      %v6367 = vadd.f32 0.0, %v6366
      %6368 = vmatmul.bf16.gmra.mxu0 %v6154
      %v6369 = vpop.f32.mrf.mxu0
      %v6370 = vadd.f32 0.0, %v6369
      %v6371 = vpop.f32.mrf.mxu0
      %v6372 = vadd.f32 0.0, %v6371
      %6373 = vmatmul.bf16.gmra.mxu0 %v6156
      %v6374 = vpop.f32.mrf.mxu0
      %v6375 = vadd.f32 0.0, %v6374
      %v6376 = vpop.f32.mrf.mxu0
      %v6377 = vadd.f32 0.0, %v6376
      %6378 = vmatmul.bf16.gmra.mxu0 %v6158
      %v6379 = vpop.f32.mrf.mxu0
      %v6380 = vadd.f32 0.0, %v6379
      %v6381 = vpop.f32.mrf.mxu0
      %v6382 = vadd.f32 0.0, %v6381
      %6383 = vmatmul.bf16.gmra.mxu0 %v6160
      %v6384 = vpop.f32.mrf.mxu0
      %v6385 = vadd.f32 0.0, %v6384
      %v6386 = vpop.f32.mrf.mxu0
      %v6387 = vadd.f32 0.0, %v6386
      %6388 = vmatmul.bf16.gmra.mxu0 %v6162
      %v6389 = vpop.f32.mrf.mxu0
      %v6390 = vadd.f32 0.0, %v6389
      %v6391 = vpop.f32.mrf.mxu0
      %v6392 = vadd.f32 0.0, %v6391
      %6393 = vmatmul.bf16.gmra.mxu0 %v6164
      %v6394 = vpop.f32.mrf.mxu0
      %v6395 = vadd.f32 0.0, %v6394
      %v6396 = vpop.f32.mrf.mxu0
      %v6397 = vadd.f32 0.0, %v6396
      %6398 = vdwg.mxu0
      %6399 = vmatpush.bf16.msra.mxu0 0
      %6400 = vmatpush.bf16.msra.mxu0 0
      %6401 = vmatpush.bf16.msra.mxu0 0
      %6402 = vmatpush.bf16.msra.mxu0 0
      %6403 = vmatpush.bf16.msra.mxu0 0
      %6404 = vmatpush.bf16.msra.mxu0 0
      %6405 = vmatpush.bf16.msra.mxu0 %v6300
      %6406 = vmatpush.bf16.msra.mxu0 %v6297
      %6407 = vmatmul.bf16.gmra.mxu0 %v6335
      %v6408 = vpop.f32.mrf.mxu0
      %v6409 = vadd.f32 %v6365, %v6408
      %v6410 = vpop.f32.mrf.mxu0
      %v6411 = vadd.f32 %v6367, %v6410
      %6412 = vmatmul.bf16.gmra.mxu0 %v6338
      %v6413 = vpop.f32.mrf.mxu0
      %v6414 = vadd.f32 %v6370, %v6413
      %v6415 = vpop.f32.mrf.mxu0
      %v6416 = vadd.f32 %v6372, %v6415
      %6417 = vmatmul.bf16.gmra.mxu0 %v6341
      %v6418 = vpop.f32.mrf.mxu0
      %v6419 = vadd.f32 %v6375, %v6418
      %v6420 = vpop.f32.mrf.mxu0
      %v6421 = vadd.f32 %v6377, %v6420
      %6422 = vmatmul.bf16.gmra.mxu0 %v6344
      %v6423 = vpop.f32.mrf.mxu0
      %v6424 = vadd.f32 %v6380, %v6423
      %v6425 = vpop.f32.mrf.mxu0
      %v6426 = vadd.f32 %v6382, %v6425
      %6427 = vmatmul.bf16.gmra.mxu0 %v6347
      %v6428 = vpop.f32.mrf.mxu0
      %v6429 = vadd.f32 %v6385, %v6428
      %v6430 = vpop.f32.mrf.mxu0
      %v6431 = vadd.f32 %v6387, %v6430
      %6432 = vmatmul.bf16.gmra.mxu0 %v6350
      %v6433 = vpop.f32.mrf.mxu0
      %v6434 = vadd.f32 %v6390, %v6433
      %v6435 = vpop.f32.mrf.mxu0
      %v6436 = vadd.f32 %v6392, %v6435
      %6437 = vmatmul.bf16.gmra.mxu0 %v6353
      %v6438 = vpop.f32.mrf.mxu0
      %v6439 = vadd.f32 %v6395, %v6438
      %v6440 = vpop.f32.mrf.mxu0
      %v6441 = vadd.f32 %v6397, %v6440
      %6442 = vdwg.mxu0
      %6443 = vmatpush.bf16.msra.mxu0 %v6295
      %6444 = vmatpush.bf16.msra.mxu0 %v6292
      %6445 = vmatpush.bf16.msra.mxu0 %v6289
      %6446 = vmatpush.bf16.msra.mxu0 %v6286
      %6447 = vmatpush.bf16.msra.mxu0 %v6283
      %6448 = vmatpush.bf16.msra.mxu0 %v6280
      %6449 = vmatpush.bf16.msra.mxu0 %v6277
      %6450 = vmatpush.bf16.msra.mxu0 %v6274
      %6451 = vmatmul.bf16.gmra.mxu0 %v6152
      %v6452 = vpop.f32.mrf.mxu0
      %v6453 = vadd.f32 0.0, %v6452
      %v6454 = vpop.f32.mrf.mxu0
      %v6455 = vadd.f32 0.0, %v6454
      %6456 = vmatmul.bf16.gmra.mxu0 %v6154
      %v6457 = vpop.f32.mrf.mxu0
      %v6458 = vadd.f32 0.0, %v6457
      %v6459 = vpop.f32.mrf.mxu0
      %v6460 = vadd.f32 0.0, %v6459
      %6461 = vmatmul.bf16.gmra.mxu0 %v6156
      %v6462 = vpop.f32.mrf.mxu0
      %v6463 = vadd.f32 0.0, %v6462
      %v6464 = vpop.f32.mrf.mxu0
      %v6465 = vadd.f32 0.0, %v6464
      %6466 = vmatmul.bf16.gmra.mxu0 %v6158
      %v6467 = vpop.f32.mrf.mxu0
      %v6468 = vadd.f32 0.0, %v6467
      %v6469 = vpop.f32.mrf.mxu0
      %v6470 = vadd.f32 0.0, %v6469
      %6471 = vmatmul.bf16.gmra.mxu0 %v6160
      %v6472 = vpop.f32.mrf.mxu0
      %v6473 = vadd.f32 0.0, %v6472
      %v6474 = vpop.f32.mrf.mxu0
      %v6475 = vadd.f32 0.0, %v6474
      %6476 = vmatmul.bf16.gmra.mxu0 %v6162
      %v6477 = vpop.f32.mrf.mxu0
      %v6478 = vadd.f32 0.0, %v6477
      %v6479 = vpop.f32.mrf.mxu0
      %v6480 = vadd.f32 0.0, %v6479
      %6481 = vmatmul.bf16.gmra.mxu0 %v6164
      %v6482 = vpop.f32.mrf.mxu0
      %v6483 = vadd.f32 0.0, %v6482
      %v6484 = vpop.f32.mrf.mxu0
      %v6485 = vadd.f32 0.0, %v6484
      %6486 = vdwg.mxu0
      %6487 = vmatpush.bf16.msra.mxu0 0
      %6488 = vmatpush.bf16.msra.mxu0 0
      %6489 = vmatpush.bf16.msra.mxu0 0
      %6490 = vmatpush.bf16.msra.mxu0 0
      %6491 = vmatpush.bf16.msra.mxu0 0
      %6492 = vmatpush.bf16.msra.mxu0 0
      %6493 = vmatpush.bf16.msra.mxu0 %v6301
      %6494 = vmatpush.bf16.msra.mxu0 %v6298
      %6495 = vmatmul.bf16.gmra.mxu0 %v6335
      %v6496 = vpop.f32.mrf.mxu0
      %v6497 = vadd.f32 %v6453, %v6496
      %v6498 = vpop.f32.mrf.mxu0
      %v6499 = vadd.f32 %v6455, %v6498
      %6500 = vmatmul.bf16.gmra.mxu0 %v6338
      %v6501 = vpop.f32.mrf.mxu0
      %v6502 = vadd.f32 %v6458, %v6501
      %v6503 = vpop.f32.mrf.mxu0
      %v6504 = vadd.f32 %v6460, %v6503
      %6505 = vmatmul.bf16.gmra.mxu0 %v6341
      %v6506 = vpop.f32.mrf.mxu0
      %v6507 = vadd.f32 %v6463, %v6506
      %v6508 = vpop.f32.mrf.mxu0
      %v6509 = vadd.f32 %v6465, %v6508
      %6510 = vmatmul.bf16.gmra.mxu0 %v6344
      %v6511 = vpop.f32.mrf.mxu0
      %v6512 = vadd.f32 %v6468, %v6511
      %v6513 = vpop.f32.mrf.mxu0
      %v6514 = vadd.f32 %v6470, %v6513
      %6515 = vmatmul.bf16.gmra.mxu0 %v6347
      %v6516 = vpop.f32.mrf.mxu0
      %v6517 = vadd.f32 %v6473, %v6516
      %v6518 = vpop.f32.mrf.mxu0
      %v6519 = vadd.f32 %v6475, %v6518
      %6520 = vmatmul.bf16.gmra.mxu0 %v6350
      %v6521 = vpop.f32.mrf.mxu0
      %v6522 = vadd.f32 %v6478, %v6521
      %v6523 = vpop.f32.mrf.mxu0
      %v6524 = vadd.f32 %v6480, %v6523
      %6525 = vmatmul.bf16.gmra.mxu0 %v6353
      %v6526 = vpop.f32.mrf.mxu0
      %v6527 = vadd.f32 %v6483, %v6526
      %v6528 = vpop.f32.mrf.mxu0
      %v6529 = vadd.f32 %v6485, %v6528
      %6530 = vdwg.mxu0
      %6531 = vmatpush.bf16.msra.mxu0 %v6296
      %6532 = vmatpush.bf16.msra.mxu0 %v6293
      %6533 = vmatpush.bf16.msra.mxu0 %v6290
      %6534 = vmatpush.bf16.msra.mxu0 %v6287
      %6535 = vmatpush.bf16.msra.mxu0 %v6284
      %6536 = vmatpush.bf16.msra.mxu0 %v6281
      %6537 = vmatpush.bf16.msra.mxu0 %v6278
      %6538 = vmatpush.bf16.msra.mxu0 %v6275
      %6539 = vmatmul.bf16.gmra.mxu0 %v6152
      %v6540 = vpop.f32.mrf.mxu0
      %v6541 = vadd.f32 0.0, %v6540
      %v6542 = vpop.f32.mrf.mxu0
      %v6543 = vadd.f32 0.0, %v6542
      %6544 = vmatmul.bf16.gmra.mxu0 %v6154
      %v6545 = vpop.f32.mrf.mxu0
      %v6546 = vadd.f32 0.0, %v6545
      %v6547 = vpop.f32.mrf.mxu0
      %v6548 = vadd.f32 0.0, %v6547
      %6549 = vmatmul.bf16.gmra.mxu0 %v6156
      %v6550 = vpop.f32.mrf.mxu0
      %v6551 = vadd.f32 0.0, %v6550
      %v6552 = vpop.f32.mrf.mxu0
      %v6553 = vadd.f32 0.0, %v6552
      %6554 = vmatmul.bf16.gmra.mxu0 %v6158
      %v6555 = vpop.f32.mrf.mxu0
      %v6556 = vadd.f32 0.0, %v6555
      %v6557 = vpop.f32.mrf.mxu0
      %v6558 = vadd.f32 0.0, %v6557
      %6559 = vmatmul.bf16.gmra.mxu0 %v6160
      %v6560 = vpop.f32.mrf.mxu0
      %v6561 = vadd.f32 0.0, %v6560
      %v6562 = vpop.f32.mrf.mxu0
      %v6563 = vadd.f32 0.0, %v6562
      %6564 = vmatmul.bf16.gmra.mxu0 %v6162
      %v6565 = vpop.f32.mrf.mxu0
      %v6566 = vadd.f32 0.0, %v6565
      %v6567 = vpop.f32.mrf.mxu0
      %v6568 = vadd.f32 0.0, %v6567
      %6569 = vmatmul.bf16.gmra.mxu0 %v6164
      %v6570 = vpop.f32.mrf.mxu0
      %v6571 = vadd.f32 0.0, %v6570
      %v6572 = vpop.f32.mrf.mxu0
      %v6573 = vadd.f32 0.0, %v6572
      %6574 = vdwg.mxu0
      %6575 = vmatpush.bf16.msra.mxu0 0
      %6576 = vmatpush.bf16.msra.mxu0 0
      %6577 = vmatpush.bf16.msra.mxu0 0
      %6578 = vmatpush.bf16.msra.mxu0 0
      %6579 = vmatpush.bf16.msra.mxu0 0
      %6580 = vmatpush.bf16.msra.mxu0 0
      %6581 = vmatpush.bf16.msra.mxu0 %v6302
      %6582 = vmatpush.bf16.msra.mxu0 %v6299
      %6583 = vmatmul.bf16.gmra.mxu0 %v6335
      %v6584 = vpop.f32.mrf.mxu0
      %v6585 = vadd.f32 %v6541, %v6584
      %v6586 = vpop.f32.mrf.mxu0
      %v6587 = vadd.f32 %v6543, %v6586
      %6588 = vmatmul.bf16.gmra.mxu0 %v6338
      %v6589 = vpop.f32.mrf.mxu0
      %v6590 = vadd.f32 %v6546, %v6589
      %v6591 = vpop.f32.mrf.mxu0
      %v6592 = vadd.f32 %v6548, %v6591
      %6593 = vmatmul.bf16.gmra.mxu0 %v6341
      %v6594 = vpop.f32.mrf.mxu0
      %v6595 = vadd.f32 %v6551, %v6594
      %v6596 = vpop.f32.mrf.mxu0
      %v6597 = vadd.f32 %v6553, %v6596
      %6598 = vmatmul.bf16.gmra.mxu0 %v6344
      %v6599 = vpop.f32.mrf.mxu0
      %v6600 = vadd.f32 %v6556, %v6599
      %v6601 = vpop.f32.mrf.mxu0
      %v6602 = vadd.f32 %v6558, %v6601
      %6603 = vmatmul.bf16.gmra.mxu0 %v6347
      %v6604 = vpop.f32.mrf.mxu0
      %v6605 = vadd.f32 %v6561, %v6604
      %v6606 = vpop.f32.mrf.mxu0
      %v6607 = vadd.f32 %v6563, %v6606
      %6608 = vmatmul.bf16.gmra.mxu0 %v6350
      %v6609 = vpop.f32.mrf.mxu0
      %v6610 = vadd.f32 %v6566, %v6609
      %v6611 = vpop.f32.mrf.mxu0
      %v6612 = vadd.f32 %v6568, %v6611
      %6613 = vmatmul.bf16.gmra.mxu0 %v6353
      %v6614 = vpop.f32.mrf.mxu0
      %v6615 = vadd.f32 %v6571, %v6614
      %v6616 = vpop.f32.mrf.mxu0
      %v6617 = vadd.f32 %v6573, %v6616
      %6618 = vdwg.mxu0
      %6619 = vst [vmem:[#allocation4] sm:$0xff] %v6409
      %6620 = vst [vmem:[#allocation4 + $0x8] sm:$0xff] %v6497
      %6621 = vst.msk [vmem:[#allocation4 + $0x10] sm:$0xff] %vm884, %v6585
      %6622 = vst [vmem:[#allocation4 + $0x18] sm:$0xff] %v6411
      %6623 = vst [vmem:[#allocation4 + $0x20] sm:$0xff] %v6499
      %6624 = vst.msk [vmem:[#allocation4 + $0x28] sm:$0xff] %vm884, %v6587
      %6625 = vst [vmem:[#allocation4 + $0x30] sm:$0xff] %v6414
      %6626 = vst [vmem:[#allocation4 + $0x38] sm:$0xff] %v6502
      %6627 = vst.msk [vmem:[#allocation4 + $0x40] sm:$0xff] %vm884, %v6590
      %6628 = vst [vmem:[#allocation4 + $0x48] sm:$0xff] %v6416
      %6629 = vst [vmem:[#allocation4 + $0x50] sm:$0xff] %v6504
      %6630 = vst.msk [vmem:[#allocation4 + $0x58] sm:$0xff] %vm884, %v6592
      %6631 = vst [vmem:[#allocation4 + $0x60] sm:$0xff] %v6419
      %6632 = vst [vmem:[#allocation4 + $0x68] sm:$0xff] %v6507
      %6633 = vst.msk [vmem:[#allocation4 + $0x70] sm:$0xff] %vm884, %v6595
      %6634 = vst [vmem:[#allocation4 + $0x78] sm:$0xff] %v6421
      %6635 = vst [vmem:[#allocation4 + $0x80] sm:$0xff] %v6509
      %6636 = vst.msk [vmem:[#allocation4 + $0x88] sm:$0xff] %vm884, %v6597
      %6637 = vst [vmem:[#allocation4 + $0x90] sm:$0xff] %v6424
      %6638 = vst [vmem:[#allocation4 + $0x98] sm:$0xff] %v6512
      %6639 = vst.msk [vmem:[#allocation4 + $0xa0] sm:$0xff] %vm884, %v6600
      %6640 = vst [vmem:[#allocation4 + $0xa8] sm:$0xff] %v6426
      %6641 = vst [vmem:[#allocation4 + $0xb0] sm:$0xff] %v6514
      %6642 = vst.msk [vmem:[#allocation4 + $0xb8] sm:$0xff] %vm884, %v6602
      %6643 = vst [vmem:[#allocation4 + $0xc0] sm:$0xff] %v6429
      %6644 = vst [vmem:[#allocation4 + $0xc8] sm:$0xff] %v6517
      %6645 = vst.msk [vmem:[#allocation4 + $0xd0] sm:$0xff] %vm884, %v6605
      %6646 = vst [vmem:[#allocation4 + $0xd8] sm:$0xff] %v6431
      %6647 = vst [vmem:[#allocation4 + $0xe0] sm:$0xff] %v6519
      %6648 = vst.msk [vmem:[#allocation4 + $0xe8] sm:$0xff] %vm884, %v6607
      %6649 = vst [vmem:[#allocation4 + $0xf0] sm:$0xff] %v6434
      %6650 = vst [vmem:[#allocation4 + $0xf8] sm:$0xff] %v6522
      %6651 = vst.msk [vmem:[#allocation4 + $0x100] sm:$0xff] %vm884, %v6610
      %6652 = vst [vmem:[#allocation4 + $0x108] sm:$0xff] %v6436
      %6653 = vst [vmem:[#allocation4 + $0x110] sm:$0xff] %v6524
      %6654 = vst.msk [vmem:[#allocation4 + $0x118] sm:$0xff] %vm884, %v6612
      %6655 = vst [vmem:[#allocation4 + $0x120] sm:$0xff] %v6439
      %6656 = vst [vmem:[#allocation4 + $0x128] sm:$0xff] %v6527
      %6657 = vst.msk [vmem:[#allocation4 + $0x130] sm:$0xff] %vm884, %v6615
      %6658 = vst [vmem:[#allocation4 + $0x138] sm:$0x3f] %v6441
      %6659 = vst [vmem:[#allocation4 + $0x140] sm:$0x3f] %v6529
      %6660 = vst.msk [vmem:[#allocation4 + $0x148] sm:$0x3f] %vm960, %v6617
      %v6661 = vld [vmem:[#allocation4] sm:$0xff]
      %v6662 = vld [vmem:[#allocation4 + $0x8] sm:$0xff]
      %v6663 = vld [vmem:[#allocation4 + $0x10] sm:$0xff]
      %v6664 = vld [vmem:[#allocation4 + $0x18] sm:$0xff]
      %v6665 = vld [vmem:[#allocation4 + $0x20] sm:$0xff]
      %v6666 = vld [vmem:[#allocation4 + $0x28] sm:$0xff]
      %v6667 = vld [vmem:[#allocation4 + $0x30] sm:$0xff]
      %v6668 = vld [vmem:[#allocation4 + $0x38] sm:$0xff]
      %v6669 = vld [vmem:[#allocation4 + $0x40] sm:$0xff]
      %v6670 = vld [vmem:[#allocation4 + $0x48] sm:$0xff]
      %v6671 = vld [vmem:[#allocation4 + $0x50] sm:$0xff]
      %v6672 = vld [vmem:[#allocation4 + $0x58] sm:$0xff]
      %v6673 = vld [vmem:[#allocation4 + $0x60] sm:$0xff]
      %v6674 = vld [vmem:[#allocation4 + $0x68] sm:$0xff]
      %v6675 = vld [vmem:[#allocation4 + $0x70] sm:$0xff]
      %v6676 = vld [vmem:[#allocation4 + $0x78] sm:$0xff]
      %v6677 = vld [vmem:[#allocation4 + $0x80] sm:$0xff]
      %v6678 = vld [vmem:[#allocation4 + $0x88] sm:$0xff]
      %v6679 = vld [vmem:[#allocation4 + $0x90] sm:$0xff]
      %v6680 = vld [vmem:[#allocation4 + $0x98] sm:$0xff]
      %v6681 = vld [vmem:[#allocation4 + $0xa0] sm:$0xff]
      %v6682 = vld [vmem:[#allocation4 + $0xa8] sm:$0xff]
      %v6683 = vld [vmem:[#allocation4 + $0xb0] sm:$0xff]
      %v6684 = vld [vmem:[#allocation4 + $0xb8] sm:$0xff]
      %v6685 = vld [vmem:[#allocation4 + $0xc0] sm:$0xff]
      %v6686 = vld [vmem:[#allocation4 + $0xc8] sm:$0xff]
      %v6687 = vld [vmem:[#allocation4 + $0xd0] sm:$0xff]
      %v6688 = vld [vmem:[#allocation4 + $0xd8] sm:$0xff]
      %v6689 = vld [vmem:[#allocation4 + $0xe0] sm:$0xff]
      %v6690 = vld [vmem:[#allocation4 + $0xe8] sm:$0xff]
      %v6691 = vld [vmem:[#allocation4 + $0xf0] sm:$0xff]
      %v6692 = vld [vmem:[#allocation4 + $0xf8] sm:$0xff]
      %v6693 = vld [vmem:[#allocation4 + $0x100] sm:$0xff]
      %v6694 = vld [vmem:[#allocation4 + $0x108] sm:$0xff]
      %v6695 = vld [vmem:[#allocation4 + $0x110] sm:$0xff]
      %v6696 = vld [vmem:[#allocation4 + $0x118] sm:$0xff]
      %v6697 = vld [vmem:[#allocation4 + $0x120] sm:$0xff]
      %v6698 = vld [vmem:[#allocation4 + $0x128] sm:$0xff]
      %v6699 = vld [vmem:[#allocation4 + $0x130] sm:$0xff]
      %v6700 = vld [vmem:[#allocation4 + $0x138] sm:$0x3f]
      %v6701 = vld [vmem:[#allocation4 + $0x140] sm:$0x3f]
      %v6702 = vld [vmem:[#allocation4 + $0x148] sm:$0x3f]
      %v6703 = vld [vmem:[#allocation3] sm:$0xff]
      %v6704 = vld [vmem:[#allocation3 + $0x8] sm:$0xff]
      %v6705 = vld [vmem:[#allocation3 + $0x10] sm:$0xff]
      %v6706 = vld [vmem:[#allocation3 + $0x18] sm:$0xff]
      %v6707 = vld [vmem:[#allocation3 + $0x20] sm:$0xff]
      %v6708 = vld [vmem:[#allocation3 + $0x28] sm:$0xff]
      %v6709 = vld [vmem:[#allocation3 + $0x30] sm:$0xff]
      %v6710 = vld [vmem:[#allocation3 + $0x38] sm:$0xff]
      %v6711 = vld [vmem:[#allocation3 + $0x40] sm:$0xff]
      %v6712 = vld [vmem:[#allocation3 + $0x48] sm:$0xff]
      %v6713 = vld [vmem:[#allocation3 + $0x50] sm:$0xff]
      %v6714 = vld [vmem:[#allocation3 + $0x58] sm:$0xff]
      %v6715 = vld [vmem:[#allocation3 + $0x60] sm:$0xff]
      %v6716 = vld [vmem:[#allocation3 + $0x68] sm:$0xff]
      %s6717 = scalar_lea.vmem %s5, 240
      %v6718 = vld [vmem:[%s6717] sm:$0xff]
      %v6719 = vld [vmem:[%s6717 + $0x8] sm:$0xf]
      %v6720 = vld [vmem:[%s6717 + $0xc] sm:$0xff]
      %v6721 = vld [vmem:[%s6717 + $0x14] sm:$0xf]
      %v6722 = vld [vmem:[%s6717 + $0x18] sm:$0xff]
      %v6723 = vld [vmem:[%s6717 + $0x20] sm:$0xf]
      %v6724 = vld [vmem:[%s6717 + $0x24] sm:$0xff]
      %v6725 = vld [vmem:[%s6717 + $0x2c] sm:$0xf]
      %v6726 = vld [vmem:[%s6717 + $0x30] sm:$0xff]
      %v6727 = vld [vmem:[%s6717 + $0x38] sm:$0xf]
      %v6728 = vld [vmem:[%s6717 + $0x3c] sm:$0xff]
      %v6729 = vld [vmem:[%s6717 + $0x44] sm:$0xf]
      %v6730 = vld [vmem:[%s6717 + $0x48] sm:$0xff]
      %v6731 = vld [vmem:[%s6717 + $0x50] sm:$0xf]
      %v6732 = vld [vmem:[%s6717 + $0x54] sm:$0xff]
      %v6733 = vld [vmem:[%s6717 + $0x5c] sm:$0xf]
      %v6734 = vld [vmem:[%s6717 + $0x60] sm:$0xff]
      %v6735 = vld [vmem:[%s6717 + $0x68] sm:$0xf]
      %v6736 = vld [vmem:[%s6717 + $0x6c] sm:$0xff]
      %v6737 = vld [vmem:[%s6717 + $0x74] sm:$0xf]
      %v6738 = vld [vmem:[%s6717 + $0x78] sm:$0xff]
      %v6739 = vld [vmem:[%s6717 + $0x80] sm:$0xf]
      %v6740 = vld [vmem:[%s6717 + $0x84] sm:$0xff]
      %v6741 = vld [vmem:[%s6717 + $0x8c] sm:$0xf]
      %v6742 = vld [vmem:[%s6717 + $0x90] sm:$0xff]
      %v6743 = vld [vmem:[%s6717 + $0x98] sm:$0xf]
      %v6744 = vld [vmem:[%s6717 + $0x9c] sm:$0xff]
      %v6745 = vld [vmem:[%s6717 + $0xa4] sm:$0xf]
      %v6746 = vld [vmem:[%s6717 + $0xa8] sm:$0xff]
      %v6747 = vld [vmem:[%s6717 + $0xb0] sm:$0xf]
      %v6748 = vld [vmem:[%s6717 + $0xb4] sm:$0xff]
      %v6749 = vld [vmem:[%s6717 + $0xbc] sm:$0xf]
      %v6750 = vld [vmem:[%s6717 + $0xc0] sm:$0xff]
      %v6751 = vld [vmem:[%s6717 + $0xc8] sm:$0xf]
      %v6752 = vld [vmem:[%s6717 + $0xcc] sm:$0xff]
      %v6753 = vld [vmem:[%s6717 + $0xd4] sm:$0xf]
      %v6754 = vld [vmem:[%s6717 + $0xd8] sm:$0xff]
      %v6755 = vld [vmem:[%s6717 + $0xe0] sm:$0xf]
      %v6756 = vld [vmem:[%s6717 + $0xe4] sm:$0xff]
      %v6757 = vld [vmem:[%s6717 + $0xec] sm:$0xf]
      %v6772 = vunpack.c.l.b16 %v6703
      %v6773 = vunpack.c.h.b16 %v6703
      %v6774 = vunpack.c.l.b16 %v6704
      %v6775 = vunpack.c.h.b16 %v6704
      %v6776 = vunpack.c.l.b16 %v6705
      %v6777 = vunpack.c.h.b16 %v6705
      %v6778 = vunpack.c.l.b16 %v6706
      %v6779 = vunpack.c.h.b16 %v6706
      %v6780 = vunpack.c.l.b16 %v6707
      %v6781 = vunpack.c.h.b16 %v6707
      %v6782 = vunpack.c.l.b16 %v6708
      %v6783 = vunpack.c.h.b16 %v6708
      %v6784 = vunpack.c.l.b16 %v6709
      %v6785 = vunpack.c.h.b16 %v6709
      %v6786 = vunpack.c.l.b16 %v6710
      %v6787 = vunpack.c.h.b16 %v6710
      %v6788 = vunpack.c.l.b16 %v6711
      %v6789 = vunpack.c.h.b16 %v6711
      %v6790 = vunpack.c.l.b16 %v6712
      %v6791 = vunpack.c.h.b16 %v6712
      %v6792 = vunpack.c.l.b16 %v6713
      %v6793 = vunpack.c.h.b16 %v6713
      %v6794 = vunpack.c.l.b16 %v6714
      %v6795 = vunpack.c.h.b16 %v6714
      %v6796 = vunpack.c.l.b16 %v6715
      %v6797 = vunpack.c.h.b16 %v6715
      %v6798 = vunpack.c.l.b16 %v6716
      %v6799 = vunpack.c.h.b16 %v6716
      %v6800 = vpack.c.b16 %v6774, %v6772
      %v6801 = vpack.c.b16 %v6775, %v6773
      %v6802 = vpack.c.b16 %v6778, %v6776
      %v6803 = vpack.c.b16 %v6779, %v6777
      %v6804 = vpack.c.b16 %v6782, %v6780
      %v6805 = vpack.c.b16 %v6783, %v6781
      %v6806 = vpack.c.b16 %v6786, %v6784
      %v6807 = vpack.c.b16 %v6787, %v6785
      %v6808 = vpack.c.b16 %v6790, %v6788
      %v6809 = vpack.c.b16 %v6791, %v6789
      %v6810 = vpack.c.b16 %v6794, %v6792
      %v6811 = vpack.c.b16 %v6795, %v6793
      %v6812 = vpack.c.b16 %v6798, %v6796
      %v6813 = vpack.c.b16 %v6799, %v6797
      %v6815 = vshrl.u32 %v6800, 16
      %v6817 = vshll.u32 %v6800, 16
      %v6819 = vrot.slane %v6817, 1
      %v6820 = vor.u32 %v6815, %v6819
      %v6822 = vshll.u32 %v6802, 16
      %v6824 = vrot.slane %v6822, 1
      %v6825 = vsel %vm1148, %v6820, %v6824
      %v6827 = vshrl.u32 %v6801, 16
      %v6829 = vshll.u32 %v6801, 16
      %v6831 = vrot.slane %v6829, 1
      %v6832 = vor.u32 %v6827, %v6831
      %v6834 = vshll.u32 %v6803, 16
      %v6836 = vrot.slane %v6834, 1
      %v6837 = vsel %vm1148, %v6832, %v6836
      %v6838 = vshrl.u32 %v6802, 16
      %v6840 = vor.u32 %v6838, %v6824
      %v6842 = vshll.u32 %v6804, 16
      %v6844 = vrot.slane %v6842, 1
      %v6845 = vsel %vm1148, %v6840, %v6844
      %v6846 = vshrl.u32 %v6803, 16
      %v6848 = vor.u32 %v6846, %v6836
      %v6850 = vshll.u32 %v6805, 16
      %v6852 = vrot.slane %v6850, 1
      %v6853 = vsel %vm1148, %v6848, %v6852
      %v6854 = vshrl.u32 %v6804, 16
      %v6856 = vor.u32 %v6854, %v6844
      %v6858 = vshll.u32 %v6806, 16
      %v6860 = vrot.slane %v6858, 1
      %v6861 = vsel %vm1148, %v6856, %v6860
      %v6862 = vshrl.u32 %v6805, 16
      %v6864 = vor.u32 %v6862, %v6852
      %v6866 = vshll.u32 %v6807, 16
      %v6868 = vrot.slane %v6866, 1
      %v6869 = vsel %vm1148, %v6864, %v6868
      %v6870 = vshrl.u32 %v6806, 16
      %v6872 = vor.u32 %v6870, %v6860
      %v6874 = vshll.u32 %v6808, 16
      %v6876 = vrot.slane %v6874, 1
      %v6877 = vsel %vm1148, %v6872, %v6876
      %v6878 = vshrl.u32 %v6807, 16
      %v6880 = vor.u32 %v6878, %v6868
      %v6882 = vshll.u32 %v6809, 16
      %v6884 = vrot.slane %v6882, 1
      %v6885 = vsel %vm1148, %v6880, %v6884
      %v6886 = vshrl.u32 %v6808, 16
      %v6888 = vor.u32 %v6886, %v6876
      %v6890 = vshll.u32 %v6810, 16
      %v6892 = vrot.slane %v6890, 1
      %v6893 = vsel %vm1148, %v6888, %v6892
      %v6894 = vshrl.u32 %v6809, 16
      %v6896 = vor.u32 %v6894, %v6884
      %v6898 = vshll.u32 %v6811, 16
      %v6900 = vrot.slane %v6898, 1
      %v6901 = vsel %vm1148, %v6896, %v6900
      %v6902 = vshrl.u32 %v6810, 16
      %v6904 = vor.u32 %v6902, %v6892
      %v6906 = vshll.u32 %v6812, 16
      %v6908 = vrot.slane %v6906, 1
      %v6909 = vsel %vm1148, %v6904, %v6908
      %v6910 = vshrl.u32 %v6811, 16
      %v6912 = vor.u32 %v6910, %v6900
      %v6914 = vshll.u32 %v6813, 16
      %v6916 = vrot.slane %v6914, 1
      %v6917 = vsel %vm1148, %v6912, %v6916
      %v6918 = vshrl.u32 %v6812, 16
      %v6920 = vor.u32 %v6918, %v6908
      %v6921 = vshrl.u32 %v6813, 16
      %v6923 = vor.u32 %v6921, %v6916
      %v6971 = vunpack.c.l.b16 %v6718
      %v6972 = vunpack.c.h.b16 %v6718
      %v6973 = vunpack.c.l.b16 %v6719
      %v6974 = vunpack.c.l.b16 %v6720
      %v6975 = vunpack.c.h.b16 %v6720
      %v6976 = vunpack.c.l.b16 %v6721
      %v6977 = vunpack.c.l.b16 %v6722
      %v6978 = vunpack.c.h.b16 %v6722
      %v6979 = vunpack.c.l.b16 %v6723
      %v6980 = vunpack.c.l.b16 %v6724
      %v6981 = vunpack.c.h.b16 %v6724
      %v6982 = vunpack.c.l.b16 %v6725
      %v6983 = vunpack.c.l.b16 %v6726
      %v6984 = vunpack.c.h.b16 %v6726
      %v6985 = vunpack.c.l.b16 %v6727
      %v6986 = vunpack.c.l.b16 %v6728
      %v6987 = vunpack.c.h.b16 %v6728
      %v6988 = vunpack.c.l.b16 %v6729
      %v6989 = vunpack.c.l.b16 %v6730
      %v6990 = vunpack.c.h.b16 %v6730
      %v6991 = vunpack.c.l.b16 %v6731
      %v6992 = vunpack.c.l.b16 %v6732
      %v6993 = vunpack.c.h.b16 %v6732
      %v6994 = vunpack.c.l.b16 %v6733
      %v6995 = vunpack.c.l.b16 %v6734
      %v6996 = vunpack.c.h.b16 %v6734
      %v6997 = vunpack.c.l.b16 %v6735
      %v6998 = vunpack.c.l.b16 %v6736
      %v6999 = vunpack.c.h.b16 %v6736
      %v7000 = vunpack.c.l.b16 %v6737
      %v7001 = vunpack.c.l.b16 %v6738
      %v7002 = vunpack.c.h.b16 %v6738
      %v7003 = vunpack.c.l.b16 %v6739
      %v7004 = vunpack.c.l.b16 %v6740
      %v7005 = vunpack.c.h.b16 %v6740
      %v7006 = vunpack.c.l.b16 %v6741
      %v7007 = vunpack.c.l.b16 %v6742
      %v7008 = vunpack.c.h.b16 %v6742
      %v7009 = vunpack.c.l.b16 %v6743
      %v7010 = vunpack.c.l.b16 %v6744
      %v7011 = vunpack.c.h.b16 %v6744
      %v7012 = vunpack.c.l.b16 %v6745
      %v7013 = vunpack.c.l.b16 %v6746
      %v7014 = vunpack.c.h.b16 %v6746
      %v7015 = vunpack.c.l.b16 %v6747
      %v7016 = vunpack.c.l.b16 %v6748
      %v7017 = vunpack.c.h.b16 %v6748
      %v7018 = vunpack.c.l.b16 %v6749
      %v7019 = vunpack.c.l.b16 %v6750
      %v7020 = vunpack.c.h.b16 %v6750
      %v7021 = vunpack.c.l.b16 %v6751
      %v7022 = vunpack.c.l.b16 %v6752
      %v7023 = vunpack.c.h.b16 %v6752
      %v7024 = vunpack.c.l.b16 %v6753
      %v7025 = vunpack.c.l.b16 %v6754
      %v7026 = vunpack.c.h.b16 %v6754
      %v7027 = vunpack.c.l.b16 %v6755
      %v7028 = vunpack.c.l.b16 %v6756
      %v7029 = vunpack.c.h.b16 %v6756
      %v7030 = vunpack.c.l.b16 %v6757
      %v7031 = vpack.c.b16 %v6974, %v6971
      %v7032 = vpack.c.b16 %v6975, %v6972
      %v7033 = vpack.c.b16 %v6976, %v6973
      %v7034 = vpack.c.b16 %v6980, %v6977
      %v7035 = vpack.c.b16 %v6981, %v6978
      %v7036 = vpack.c.b16 %v6982, %v6979
      %v7037 = vpack.c.b16 %v6986, %v6983
      %v7038 = vpack.c.b16 %v6987, %v6984
      %v7039 = vpack.c.b16 %v6988, %v6985
      %v7040 = vpack.c.b16 %v6992, %v6989
      %v7041 = vpack.c.b16 %v6993, %v6990
      %v7042 = vpack.c.b16 %v6994, %v6991
      %v7043 = vpack.c.b16 %v6998, %v6995
      %v7044 = vpack.c.b16 %v6999, %v6996
      %v7045 = vpack.c.b16 %v7000, %v6997
      %v7046 = vpack.c.b16 %v7004, %v7001
      %v7047 = vpack.c.b16 %v7005, %v7002
      %v7048 = vpack.c.b16 %v7006, %v7003
      %v7049 = vpack.c.b16 %v7010, %v7007
      %v7050 = vpack.c.b16 %v7011, %v7008
      %v7051 = vpack.c.b16 %v7012, %v7009
      %v7052 = vpack.c.b16 %v7016, %v7013
      %v7053 = vpack.c.b16 %v7017, %v7014
      %v7054 = vpack.c.b16 %v7018, %v7015
      %v7055 = vpack.c.b16 %v7022, %v7019
      %v7056 = vpack.c.b16 %v7023, %v7020
      %v7057 = vpack.c.b16 %v7024, %v7021
      %v7058 = vpack.c.b16 %v7028, %v7025
      %v7059 = vpack.c.b16 %v7029, %v7026
      %v7060 = vpack.c.b16 %v7030, %v7027
      %v7092 = vsel %vm6333, %v6837, 0
      %v7095 = vsel %vm6333, %v6853, 0
      %v7098 = vsel %vm6333, %v6869, 0
      %v7101 = vsel %vm6333, %v6885, 0
      %v7104 = vsel %vm6333, %v6901, 0
      %v7107 = vsel %vm6333, %v6917, 0
      %v7110 = vsel %vm6333, %v6923, 0
      %7112 = vmatpush.bf16.msra.mxu0 %v7052
      %7113 = vmatpush.bf16.msra.mxu0 %v7049
      %7114 = vmatpush.bf16.msra.mxu0 %v7046
      %7115 = vmatpush.bf16.msra.mxu0 %v7043
      %7116 = vmatpush.bf16.msra.mxu0 %v7040
      %7117 = vmatpush.bf16.msra.mxu0 %v7037
      %7118 = vmatpush.bf16.msra.mxu0 %v7034
      %7119 = vmatpush.bf16.msra.mxu0 %v7031
      %7120 = vmatmul.bf16.gmra.mxu0 %v6825
      %v7121 = vpop.f32.mrf.mxu0
      %v7122 = vadd.f32 0.0, %v7121
      %v7123 = vpop.f32.mrf.mxu0
      %v7124 = vadd.f32 0.0, %v7123
      %7125 = vmatmul.bf16.gmra.mxu0 %v6845
      %v7126 = vpop.f32.mrf.mxu0
      %v7127 = vadd.f32 0.0, %v7126
      %v7128 = vpop.f32.mrf.mxu0
      %v7129 = vadd.f32 0.0, %v7128
      %7130 = vmatmul.bf16.gmra.mxu0 %v6861
      %v7131 = vpop.f32.mrf.mxu0
      %v7132 = vadd.f32 0.0, %v7131
      %v7133 = vpop.f32.mrf.mxu0
      %v7134 = vadd.f32 0.0, %v7133
      %7135 = vmatmul.bf16.gmra.mxu0 %v6877
      %v7136 = vpop.f32.mrf.mxu0
      %v7137 = vadd.f32 0.0, %v7136
      %v7138 = vpop.f32.mrf.mxu0
      %v7139 = vadd.f32 0.0, %v7138
      %7140 = vmatmul.bf16.gmra.mxu0 %v6893
      %v7141 = vpop.f32.mrf.mxu0
      %v7142 = vadd.f32 0.0, %v7141
      %v7143 = vpop.f32.mrf.mxu0
      %v7144 = vadd.f32 0.0, %v7143
      %7145 = vmatmul.bf16.gmra.mxu0 %v6909
      %v7146 = vpop.f32.mrf.mxu0
      %v7147 = vadd.f32 0.0, %v7146
      %v7148 = vpop.f32.mrf.mxu0
      %v7149 = vadd.f32 0.0, %v7148
      %7150 = vmatmul.bf16.gmra.mxu0 %v6920
      %v7151 = vpop.f32.mrf.mxu0
      %v7152 = vadd.f32 0.0, %v7151
      %v7153 = vpop.f32.mrf.mxu0
      %v7154 = vadd.f32 0.0, %v7153
      %7155 = vdwg.mxu0
      %7156 = vmatpush.bf16.msra.mxu0 0
      %7157 = vmatpush.bf16.msra.mxu0 0
      %7158 = vmatpush.bf16.msra.mxu0 0
      %7159 = vmatpush.bf16.msra.mxu0 0
      %7160 = vmatpush.bf16.msra.mxu0 0
      %7161 = vmatpush.bf16.msra.mxu0 0
      %7162 = vmatpush.bf16.msra.mxu0 %v7058
      %7163 = vmatpush.bf16.msra.mxu0 %v7055
      %7164 = vmatmul.bf16.gmra.mxu0 %v7092
      %v7165 = vpop.f32.mrf.mxu0
      %v7166 = vadd.f32 %v7122, %v7165
      %v7167 = vpop.f32.mrf.mxu0
      %v7168 = vadd.f32 %v7124, %v7167
      %7169 = vmatmul.bf16.gmra.mxu0 %v7095
      %v7170 = vpop.f32.mrf.mxu0
      %v7171 = vadd.f32 %v7127, %v7170
      %v7172 = vpop.f32.mrf.mxu0
      %v7173 = vadd.f32 %v7129, %v7172
      %7174 = vmatmul.bf16.gmra.mxu0 %v7098
      %v7175 = vpop.f32.mrf.mxu0
      %v7176 = vadd.f32 %v7132, %v7175
      %v7177 = vpop.f32.mrf.mxu0
      %v7178 = vadd.f32 %v7134, %v7177
      %7179 = vmatmul.bf16.gmra.mxu0 %v7101
      %v7180 = vpop.f32.mrf.mxu0
      %v7181 = vadd.f32 %v7137, %v7180
      %v7182 = vpop.f32.mrf.mxu0
      %v7183 = vadd.f32 %v7139, %v7182
      %7184 = vmatmul.bf16.gmra.mxu0 %v7104
      %v7185 = vpop.f32.mrf.mxu0
      %v7186 = vadd.f32 %v7142, %v7185
      %v7187 = vpop.f32.mrf.mxu0
      %v7188 = vadd.f32 %v7144, %v7187
      %7189 = vmatmul.bf16.gmra.mxu0 %v7107
      %v7190 = vpop.f32.mrf.mxu0
      %v7191 = vadd.f32 %v7147, %v7190
      %v7192 = vpop.f32.mrf.mxu0
      %v7193 = vadd.f32 %v7149, %v7192
      %7194 = vmatmul.bf16.gmra.mxu0 %v7110
      %v7195 = vpop.f32.mrf.mxu0
      %v7196 = vadd.f32 %v7152, %v7195
      %v7197 = vpop.f32.mrf.mxu0
      %v7198 = vadd.f32 %v7154, %v7197
      %7199 = vdwg.mxu0
      %7200 = vmatpush.bf16.msra.mxu0 %v7053
      %7201 = vmatpush.bf16.msra.mxu0 %v7050
      %7202 = vmatpush.bf16.msra.mxu0 %v7047
      %7203 = vmatpush.bf16.msra.mxu0 %v7044
      %7204 = vmatpush.bf16.msra.mxu0 %v7041
      %7205 = vmatpush.bf16.msra.mxu0 %v7038
      %7206 = vmatpush.bf16.msra.mxu0 %v7035
      %7207 = vmatpush.bf16.msra.mxu0 %v7032
      %7208 = vmatmul.bf16.gmra.mxu0 %v6825
      %v7209 = vpop.f32.mrf.mxu0
      %v7210 = vadd.f32 0.0, %v7209
      %v7211 = vpop.f32.mrf.mxu0
      %v7212 = vadd.f32 0.0, %v7211
      %7213 = vmatmul.bf16.gmra.mxu0 %v6845
      %v7214 = vpop.f32.mrf.mxu0
      %v7215 = vadd.f32 0.0, %v7214
      %v7216 = vpop.f32.mrf.mxu0
      %v7217 = vadd.f32 0.0, %v7216
      %7218 = vmatmul.bf16.gmra.mxu0 %v6861
      %v7219 = vpop.f32.mrf.mxu0
      %v7220 = vadd.f32 0.0, %v7219
      %v7221 = vpop.f32.mrf.mxu0
      %v7222 = vadd.f32 0.0, %v7221
      %7223 = vmatmul.bf16.gmra.mxu0 %v6877
      %v7224 = vpop.f32.mrf.mxu0
      %v7225 = vadd.f32 0.0, %v7224
      %v7226 = vpop.f32.mrf.mxu0
      %v7227 = vadd.f32 0.0, %v7226
      %7228 = vmatmul.bf16.gmra.mxu0 %v6893
      %v7229 = vpop.f32.mrf.mxu0
      %v7230 = vadd.f32 0.0, %v7229
      %v7231 = vpop.f32.mrf.mxu0
      %v7232 = vadd.f32 0.0, %v7231
      %7233 = vmatmul.bf16.gmra.mxu0 %v6909
      %v7234 = vpop.f32.mrf.mxu0
      %v7235 = vadd.f32 0.0, %v7234
      %v7236 = vpop.f32.mrf.mxu0
      %v7237 = vadd.f32 0.0, %v7236
      %7238 = vmatmul.bf16.gmra.mxu0 %v6920
      %v7239 = vpop.f32.mrf.mxu0
      %v7240 = vadd.f32 0.0, %v7239
      %v7241 = vpop.f32.mrf.mxu0
      %v7242 = vadd.f32 0.0, %v7241
      %7243 = vdwg.mxu0
      %7244 = vmatpush.bf16.msra.mxu0 0
      %7245 = vmatpush.bf16.msra.mxu0 0
      %7246 = vmatpush.bf16.msra.mxu0 0
      %7247 = vmatpush.bf16.msra.mxu0 0
      %7248 = vmatpush.bf16.msra.mxu0 0
      %7249 = vmatpush.bf16.msra.mxu0 0
      %7250 = vmatpush.bf16.msra.mxu0 %v7059
      %7251 = vmatpush.bf16.msra.mxu0 %v7056
      %7252 = vmatmul.bf16.gmra.mxu0 %v7092
      %v7253 = vpop.f32.mrf.mxu0
      %v7254 = vadd.f32 %v7210, %v7253
      %v7255 = vpop.f32.mrf.mxu0
      %v7256 = vadd.f32 %v7212, %v7255
      %7257 = vmatmul.bf16.gmra.mxu0 %v7095
      %v7258 = vpop.f32.mrf.mxu0
      %v7259 = vadd.f32 %v7215, %v7258
      %v7260 = vpop.f32.mrf.mxu0
      %v7261 = vadd.f32 %v7217, %v7260
      %7262 = vmatmul.bf16.gmra.mxu0 %v7098
      %v7263 = vpop.f32.mrf.mxu0
      %v7264 = vadd.f32 %v7220, %v7263
      %v7265 = vpop.f32.mrf.mxu0
      %v7266 = vadd.f32 %v7222, %v7265
      %7267 = vmatmul.bf16.gmra.mxu0 %v7101
      %v7268 = vpop.f32.mrf.mxu0
      %v7269 = vadd.f32 %v7225, %v7268
      %v7270 = vpop.f32.mrf.mxu0
      %v7271 = vadd.f32 %v7227, %v7270
      %7272 = vmatmul.bf16.gmra.mxu0 %v7104
      %v7273 = vpop.f32.mrf.mxu0
      %v7274 = vadd.f32 %v7230, %v7273
      %v7275 = vpop.f32.mrf.mxu0
      %v7276 = vadd.f32 %v7232, %v7275
      %7277 = vmatmul.bf16.gmra.mxu0 %v7107
      %v7278 = vpop.f32.mrf.mxu0
      %v7279 = vadd.f32 %v7235, %v7278
      %v7280 = vpop.f32.mrf.mxu0
      %v7281 = vadd.f32 %v7237, %v7280
      %7282 = vmatmul.bf16.gmra.mxu0 %v7110
      %v7283 = vpop.f32.mrf.mxu0
      %v7284 = vadd.f32 %v7240, %v7283
      %v7285 = vpop.f32.mrf.mxu0
      %v7286 = vadd.f32 %v7242, %v7285
      %7287 = vdwg.mxu0
      %7288 = vmatpush.bf16.msra.mxu0 %v7054
      %7289 = vmatpush.bf16.msra.mxu0 %v7051
      %7290 = vmatpush.bf16.msra.mxu0 %v7048
      %7291 = vmatpush.bf16.msra.mxu0 %v7045
      %7292 = vmatpush.bf16.msra.mxu0 %v7042
      %7293 = vmatpush.bf16.msra.mxu0 %v7039
      %7294 = vmatpush.bf16.msra.mxu0 %v7036
      %7295 = vmatpush.bf16.msra.mxu0 %v7033
      %7296 = vmatmul.bf16.gmra.mxu0 %v6825
      %v7297 = vpop.f32.mrf.mxu0
      %v7298 = vadd.f32 0.0, %v7297
      %v7299 = vpop.f32.mrf.mxu0
      %v7300 = vadd.f32 0.0, %v7299
      %7301 = vmatmul.bf16.gmra.mxu0 %v6845
      %v7302 = vpop.f32.mrf.mxu0
      %v7303 = vadd.f32 0.0, %v7302
      %v7304 = vpop.f32.mrf.mxu0
      %v7305 = vadd.f32 0.0, %v7304
      %7306 = vmatmul.bf16.gmra.mxu0 %v6861
      %v7307 = vpop.f32.mrf.mxu0
      %v7308 = vadd.f32 0.0, %v7307
      %v7309 = vpop.f32.mrf.mxu0
      %v7310 = vadd.f32 0.0, %v7309
      %7311 = vmatmul.bf16.gmra.mxu0 %v6877
      %v7312 = vpop.f32.mrf.mxu0
      %v7313 = vadd.f32 0.0, %v7312
      %v7314 = vpop.f32.mrf.mxu0
      %v7315 = vadd.f32 0.0, %v7314
      %7316 = vmatmul.bf16.gmra.mxu0 %v6893
      %v7317 = vpop.f32.mrf.mxu0
      %v7318 = vadd.f32 0.0, %v7317
      %v7319 = vpop.f32.mrf.mxu0
      %v7320 = vadd.f32 0.0, %v7319
      %7321 = vmatmul.bf16.gmra.mxu0 %v6909
      %v7322 = vpop.f32.mrf.mxu0
      %v7323 = vadd.f32 0.0, %v7322
      %v7324 = vpop.f32.mrf.mxu0
      %v7325 = vadd.f32 0.0, %v7324
      %7326 = vmatmul.bf16.gmra.mxu0 %v6920
      %v7327 = vpop.f32.mrf.mxu0
      %v7328 = vadd.f32 0.0, %v7327
      %v7329 = vpop.f32.mrf.mxu0
      %v7330 = vadd.f32 0.0, %v7329
      %7331 = vdwg.mxu0
      %7332 = vmatpush.bf16.msra.mxu0 0
      %7333 = vmatpush.bf16.msra.mxu0 0
      %7334 = vmatpush.bf16.msra.mxu0 0
      %7335 = vmatpush.bf16.msra.mxu0 0
      %7336 = vmatpush.bf16.msra.mxu0 0
      %7337 = vmatpush.bf16.msra.mxu0 0
      %7338 = vmatpush.bf16.msra.mxu0 %v7060
      %7339 = vmatpush.bf16.msra.mxu0 %v7057
      %7340 = vmatmul.bf16.gmra.mxu0 %v7092
      %v7341 = vpop.f32.mrf.mxu0
      %v7342 = vadd.f32 %v7298, %v7341
      %v7343 = vpop.f32.mrf.mxu0
      %v7344 = vadd.f32 %v7300, %v7343
      %7345 = vmatmul.bf16.gmra.mxu0 %v7095
      %v7346 = vpop.f32.mrf.mxu0
      %v7347 = vadd.f32 %v7303, %v7346
      %v7348 = vpop.f32.mrf.mxu0
      %v7349 = vadd.f32 %v7305, %v7348
      %7350 = vmatmul.bf16.gmra.mxu0 %v7098
      %v7351 = vpop.f32.mrf.mxu0
      %v7352 = vadd.f32 %v7308, %v7351
      %v7353 = vpop.f32.mrf.mxu0
      %v7354 = vadd.f32 %v7310, %v7353
      %7355 = vmatmul.bf16.gmra.mxu0 %v7101
      %v7356 = vpop.f32.mrf.mxu0
      %v7357 = vadd.f32 %v7313, %v7356
      %v7358 = vpop.f32.mrf.mxu0
      %v7359 = vadd.f32 %v7315, %v7358
      %7360 = vmatmul.bf16.gmra.mxu0 %v7104
      %v7361 = vpop.f32.mrf.mxu0
      %v7362 = vadd.f32 %v7318, %v7361
      %v7363 = vpop.f32.mrf.mxu0
      %v7364 = vadd.f32 %v7320, %v7363
      %7365 = vmatmul.bf16.gmra.mxu0 %v7107
      %v7366 = vpop.f32.mrf.mxu0
      %v7367 = vadd.f32 %v7323, %v7366
      %v7368 = vpop.f32.mrf.mxu0
      %v7369 = vadd.f32 %v7325, %v7368
      %7370 = vmatmul.bf16.gmra.mxu0 %v7110
      %v7371 = vpop.f32.mrf.mxu0
      %v7372 = vadd.f32 %v7328, %v7371
      %v7373 = vpop.f32.mrf.mxu0
      %v7374 = vadd.f32 %v7330, %v7373
      %7375 = vdwg.mxu0
      %v7376 = vadd.f32 %v6661, %v7166
      %v7377 = vadd.f32 %v6662, %v7254
      %v7378 = vadd.f32 %v6663, %v7342
      %v7379 = vadd.f32 %v6664, %v7168
      %v7380 = vadd.f32 %v6665, %v7256
      %v7381 = vadd.f32 %v6666, %v7344
      %v7382 = vadd.f32 %v6667, %v7171
      %v7383 = vadd.f32 %v6668, %v7259
      %v7384 = vadd.f32 %v6669, %v7347
      %v7385 = vadd.f32 %v6670, %v7173
      %v7386 = vadd.f32 %v6671, %v7261
      %v7387 = vadd.f32 %v6672, %v7349
      %v7388 = vadd.f32 %v6673, %v7176
      %v7389 = vadd.f32 %v6674, %v7264
      %v7390 = vadd.f32 %v6675, %v7352
      %v7391 = vadd.f32 %v6676, %v7178
      %v7392 = vadd.f32 %v6677, %v7266
      %v7393 = vadd.f32 %v6678, %v7354
      %v7394 = vadd.f32 %v6679, %v7181
      %v7395 = vadd.f32 %v6680, %v7269
      %v7396 = vadd.f32 %v6681, %v7357
      %v7397 = vadd.f32 %v6682, %v7183
      %v7398 = vadd.f32 %v6683, %v7271
      %v7399 = vadd.f32 %v6684, %v7359
      %v7400 = vadd.f32 %v6685, %v7186
      %v7401 = vadd.f32 %v6686, %v7274
      %v7402 = vadd.f32 %v6687, %v7362
      %v7403 = vadd.f32 %v6688, %v7188
      %v7404 = vadd.f32 %v6689, %v7276
      %v7405 = vadd.f32 %v6690, %v7364
      %v7406 = vadd.f32 %v6691, %v7191
      %v7407 = vadd.f32 %v6692, %v7279
      %v7408 = vadd.f32 %v6693, %v7367
      %v7409 = vadd.f32 %v6694, %v7193
      %v7410 = vadd.f32 %v6695, %v7281
      %v7411 = vadd.f32 %v6696, %v7369
      %v7412 = vadd.f32 %v6697, %v7196
      %v7413 = vadd.f32 %v6698, %v7284
      %v7414 = vadd.f32 %v6699, %v7372
      %v7415 = vadd.f32 %v6700, %v7198
      %v7416 = vadd.f32 %v6701, %v7286
      %v7417 = vadd.f32 %v6702, %v7374
      %7418 = vst [vmem:[#allocation4] sm:$0xff] %v7376
      %7419 = vst [vmem:[#allocation4 + $0x8] sm:$0xff] %v7377
      %7420 = vst.msk [vmem:[#allocation4 + $0x10] sm:$0xff] %vm884, %v7378
      %7421 = vst [vmem:[#allocation4 + $0x18] sm:$0xff] %v7379
      %7422 = vst [vmem:[#allocation4 + $0x20] sm:$0xff] %v7380
      %7423 = vst.msk [vmem:[#allocation4 + $0x28] sm:$0xff] %vm884, %v7381
      %7424 = vst [vmem:[#allocation4 + $0x30] sm:$0xff] %v7382
      %7425 = vst [vmem:[#allocation4 + $0x38] sm:$0xff] %v7383
      %7426 = vst.msk [vmem:[#allocation4 + $0x40] sm:$0xff] %vm884, %v7384
      %7427 = vst [vmem:[#allocation4 + $0x48] sm:$0xff] %v7385
      %7428 = vst [vmem:[#allocation4 + $0x50] sm:$0xff] %v7386
      %7429 = vst.msk [vmem:[#allocation4 + $0x58] sm:$0xff] %vm884, %v7387
      %7430 = vst [vmem:[#allocation4 + $0x60] sm:$0xff] %v7388
      %7431 = vst [vmem:[#allocation4 + $0x68] sm:$0xff] %v7389
      %7432 = vst.msk [vmem:[#allocation4 + $0x70] sm:$0xff] %vm884, %v7390
      %7433 = vst [vmem:[#allocation4 + $0x78] sm:$0xff] %v7391
      %7434 = vst [vmem:[#allocation4 + $0x80] sm:$0xff] %v7392
      %7435 = vst.msk [vmem:[#allocation4 + $0x88] sm:$0xff] %vm884, %v7393
      %7436 = vst [vmem:[#allocation4 + $0x90] sm:$0xff] %v7394
      %7437 = vst [vmem:[#allocation4 + $0x98] sm:$0xff] %v7395
      %7438 = vst.msk [vmem:[#allocation4 + $0xa0] sm:$0xff] %vm884, %v7396
      %7439 = vst [vmem:[#allocation4 + $0xa8] sm:$0xff] %v7397
      %7440 = vst [vmem:[#allocation4 + $0xb0] sm:$0xff] %v7398
      %7441 = vst.msk [vmem:[#allocation4 + $0xb8] sm:$0xff] %vm884, %v7399
      %7442 = vst [vmem:[#allocation4 + $0xc0] sm:$0xff] %v7400
      %7443 = vst [vmem:[#allocation4 + $0xc8] sm:$0xff] %v7401
      %7444 = vst.msk [vmem:[#allocation4 + $0xd0] sm:$0xff] %vm884, %v7402
      %7445 = vst [vmem:[#allocation4 + $0xd8] sm:$0xff] %v7403
      %7446 = vst [vmem:[#allocation4 + $0xe0] sm:$0xff] %v7404
      %7447 = vst.msk [vmem:[#allocation4 + $0xe8] sm:$0xff] %vm884, %v7405
      %7448 = vst [vmem:[#allocation4 + $0xf0] sm:$0xff] %v7406
      %7449 = vst [vmem:[#allocation4 + $0xf8] sm:$0xff] %v7407
      %7450 = vst.msk [vmem:[#allocation4 + $0x100] sm:$0xff] %vm884, %v7408
      %7451 = vst [vmem:[#allocation4 + $0x108] sm:$0xff] %v7409
      %7452 = vst [vmem:[#allocation4 + $0x110] sm:$0xff] %v7410
      %7453 = vst.msk [vmem:[#allocation4 + $0x118] sm:$0xff] %vm884, %v7411
      %7454 = vst [vmem:[#allocation4 + $0x120] sm:$0xff] %v7412
      %7455 = vst [vmem:[#allocation4 + $0x128] sm:$0xff] %v7413
      %7456 = vst.msk [vmem:[#allocation4 + $0x130] sm:$0xff] %vm884, %v7414
      %7457 = vst [vmem:[#allocation4 + $0x138] sm:$0x3f] %v7415
      %7458 = vst [vmem:[#allocation4 + $0x140] sm:$0x3f] %v7416
      %7459 = vst.msk [vmem:[#allocation4 + $0x148] sm:$0x3f] %vm960, %v7417
      %v7460 = vld [vmem:[#allocation4] sm:$0xff]
      %v7461 = vld [vmem:[#allocation4 + $0x8] sm:$0xff]
      %v7462 = vld [vmem:[#allocation4 + $0x10] sm:$0xff]
      %v7463 = vld [vmem:[#allocation4 + $0x18] sm:$0xff]
      %v7464 = vld [vmem:[#allocation4 + $0x20] sm:$0xff]
      %v7465 = vld [vmem:[#allocation4 + $0x28] sm:$0xff]
      %v7466 = vld [vmem:[#allocation4 + $0x30] sm:$0xff]
      %v7467 = vld [vmem:[#allocation4 + $0x38] sm:$0xff]
      %v7468 = vld [vmem:[#allocation4 + $0x40] sm:$0xff]
      %v7469 = vld [vmem:[#allocation4 + $0x48] sm:$0xff]
      %v7470 = vld [vmem:[#allocation4 + $0x50] sm:$0xff]
      %v7471 = vld [vmem:[#allocation4 + $0x58] sm:$0xff]
      %v7472 = vld [vmem:[#allocation4 + $0x60] sm:$0xff]
      %v7473 = vld [vmem:[#allocation4 + $0x68] sm:$0xff]
      %v7474 = vld [vmem:[#allocation4 + $0x70] sm:$0xff]
      %v7475 = vld [vmem:[#allocation4 + $0x78] sm:$0xff]
      %v7476 = vld [vmem:[#allocation4 + $0x80] sm:$0xff]
      %v7477 = vld [vmem:[#allocation4 + $0x88] sm:$0xff]
      %v7478 = vld [vmem:[#allocation4 + $0x90] sm:$0xff]
      %v7479 = vld [vmem:[#allocation4 + $0x98] sm:$0xff]
      %v7480 = vld [vmem:[#allocation4 + $0xa0] sm:$0xff]
      %v7481 = vld [vmem:[#allocation4 + $0xa8] sm:$0xff]
      %v7482 = vld [vmem:[#allocation4 + $0xb0] sm:$0xff]
      %v7483 = vld [vmem:[#allocation4 + $0xb8] sm:$0xff]
      %v7484 = vld [vmem:[#allocation4 + $0xc0] sm:$0xff]
      %v7485 = vld [vmem:[#allocation4 + $0xc8] sm:$0xff]
      %v7486 = vld [vmem:[#allocation4 + $0xd0] sm:$0xff]
      %v7487 = vld [vmem:[#allocation4 + $0xd8] sm:$0xff]
      %v7488 = vld [vmem:[#allocation4 + $0xe0] sm:$0xff]
      %v7489 = vld [vmem:[#allocation4 + $0xe8] sm:$0xff]
      %v7490 = vld [vmem:[#allocation4 + $0xf0] sm:$0xff]
      %v7491 = vld [vmem:[#allocation4 + $0xf8] sm:$0xff]
      %v7492 = vld [vmem:[#allocation4 + $0x100] sm:$0xff]
      %v7493 = vld [vmem:[#allocation4 + $0x108] sm:$0xff]
      %v7494 = vld [vmem:[#allocation4 + $0x110] sm:$0xff]
      %v7495 = vld [vmem:[#allocation4 + $0x118] sm:$0xff]
      %v7496 = vld [vmem:[#allocation4 + $0x120] sm:$0xff]
      %v7497 = vld [vmem:[#allocation4 + $0x128] sm:$0xff]
      %v7498 = vld [vmem:[#allocation4 + $0x130] sm:$0xff]
      %v7499 = vld [vmem:[#allocation4 + $0x138] sm:$0x3f]
      %v7500 = vld [vmem:[#allocation4 + $0x140] sm:$0x3f]
      %v7501 = vld [vmem:[#allocation4 + $0x148] sm:$0x3f]
      %v7502 = vld [vmem:[#allocation3] sm:$0xee]
      %v7503 = vld [vmem:[#allocation3 + $0x8] sm:$0xff]
      %v7504 = vld [vmem:[#allocation3 + $0x10] sm:$0xff]
      %v7505 = vld [vmem:[#allocation3 + $0x18] sm:$0xff]
      %v7506 = vld [vmem:[#allocation3 + $0x20] sm:$0xff]
      %v7507 = vld [vmem:[#allocation3 + $0x28] sm:$0xff]
      %v7508 = vld [vmem:[#allocation3 + $0x30] sm:$0xff]
      %v7509 = vld [vmem:[#allocation3 + $0x38] sm:$0xff]
      %v7510 = vld [vmem:[#allocation3 + $0x40] sm:$0xff]
      %v7511 = vld [vmem:[#allocation3 + $0x48] sm:$0xff]
      %v7512 = vld [vmem:[#allocation3 + $0x50] sm:$0xff]
      %v7513 = vld [vmem:[#allocation3 + $0x58] sm:$0xff]
      %v7514 = vld [vmem:[#allocation3 + $0x60] sm:$0xff]
      %v7515 = vld [vmem:[#allocation3 + $0x68] sm:$0xff]
      %s7516 = scalar_lea.vmem %s5, 480
      %v7517 = vld [vmem:[%s7516] sm:$0xff]
      %v7518 = vld [vmem:[%s7516 + $0x8] sm:$0xf]
      %v7519 = vld [vmem:[%s7516 + $0xc] sm:$0xff]
      %v7520 = vld [vmem:[%s7516 + $0x14] sm:$0xf]
      %v7521 = vld [vmem:[%s7516 + $0x18] sm:$0xff]
      %v7522 = vld [vmem:[%s7516 + $0x20] sm:$0xf]
      %v7523 = vld [vmem:[%s7516 + $0x24] sm:$0xff]
      %v7524 = vld [vmem:[%s7516 + $0x2c] sm:$0xf]
      %v7525 = vld [vmem:[%s7516 + $0x30] sm:$0xff]
      %v7526 = vld [vmem:[%s7516 + $0x38] sm:$0xf]
      %v7527 = vld [vmem:[%s7516 + $0x3c] sm:$0xff]
      %v7528 = vld [vmem:[%s7516 + $0x44] sm:$0xf]
      %v7529 = vld [vmem:[%s7516 + $0x48] sm:$0xff]
      %v7530 = vld [vmem:[%s7516 + $0x50] sm:$0xf]
      %v7531 = vld [vmem:[%s7516 + $0x54] sm:$0xff]
      %v7532 = vld [vmem:[%s7516 + $0x5c] sm:$0xf]
      %v7533 = vld [vmem:[%s7516 + $0x60] sm:$0xff]
      %v7534 = vld [vmem:[%s7516 + $0x68] sm:$0xf]
      %v7535 = vld [vmem:[%s7516 + $0x6c] sm:$0xff]
      %v7536 = vld [vmem:[%s7516 + $0x74] sm:$0xf]
      %v7537 = vld [vmem:[%s7516 + $0x78] sm:$0xff]
      %v7538 = vld [vmem:[%s7516 + $0x80] sm:$0xf]
      %v7539 = vld [vmem:[%s7516 + $0x84] sm:$0xff]
      %v7540 = vld [vmem:[%s7516 + $0x8c] sm:$0xf]
      %v7541 = vld [vmem:[%s7516 + $0x90] sm:$0xff]
      %v7542 = vld [vmem:[%s7516 + $0x98] sm:$0xf]
      %v7543 = vld [vmem:[%s7516 + $0x9c] sm:$0xff]
      %v7544 = vld [vmem:[%s7516 + $0xa4] sm:$0xf]
      %v7545 = vld [vmem:[%s7516 + $0xa8] sm:$0xff]
      %v7546 = vld [vmem:[%s7516 + $0xb0] sm:$0xf]
      %v7547 = vld [vmem:[%s7516 + $0xb4] sm:$0xff]
      %v7548 = vld [vmem:[%s7516 + $0xbc] sm:$0xf]
      %v7549 = vld [vmem:[%s7516 + $0xc0] sm:$0xff]
      %v7550 = vld [vmem:[%s7516 + $0xc8] sm:$0xf]
      %v7551 = vld [vmem:[%s7516 + $0xcc] sm:$0xff]
      %v7552 = vld [vmem:[%s7516 + $0xd4] sm:$0xf]
      %v7553 = vld [vmem:[%s7516 + $0xd8] sm:$0xff]
      %v7554 = vld [vmem:[%s7516 + $0xe0] sm:$0xf]
      %v7555 = vld [vmem:[%s7516 + $0xe4] sm:$0xff]
      %v7556 = vld [vmem:[%s7516 + $0xec] sm:$0xf]
      %v7571 = vunpack.c.l.b16 %v7502
      %v7572 = vunpack.c.h.b16 %v7502
      %v7573 = vunpack.c.l.b16 %v7503
      %v7574 = vunpack.c.h.b16 %v7503
      %v7575 = vunpack.c.l.b16 %v7504
      %v7576 = vunpack.c.h.b16 %v7504
      %v7577 = vunpack.c.l.b16 %v7505
      %v7578 = vunpack.c.h.b16 %v7505
      %v7579 = vunpack.c.l.b16 %v7506
      %v7580 = vunpack.c.h.b16 %v7506
      %v7581 = vunpack.c.l.b16 %v7507
      %v7582 = vunpack.c.h.b16 %v7507
      %v7583 = vunpack.c.l.b16 %v7508
      %v7584 = vunpack.c.h.b16 %v7508
      %v7585 = vunpack.c.l.b16 %v7509
      %v7586 = vunpack.c.h.b16 %v7509
      %v7587 = vunpack.c.l.b16 %v7510
      %v7588 = vunpack.c.h.b16 %v7510
      %v7589 = vunpack.c.l.b16 %v7511
      %v7590 = vunpack.c.h.b16 %v7511
      %v7591 = vunpack.c.l.b16 %v7512
      %v7592 = vunpack.c.h.b16 %v7512
      %v7593 = vunpack.c.l.b16 %v7513
      %v7594 = vunpack.c.h.b16 %v7513
      %v7595 = vunpack.c.l.b16 %v7514
      %v7596 = vunpack.c.h.b16 %v7514
      %v7597 = vunpack.c.l.b16 %v7515
      %v7598 = vunpack.c.h.b16 %v7515
      %v7599 = vpack.c.b16 %v7573, %v7571
      %v7600 = vpack.c.b16 %v7574, %v7572
      %v7601 = vpack.c.b16 %v7577, %v7575
      %v7602 = vpack.c.b16 %v7578, %v7576
      %v7603 = vpack.c.b16 %v7581, %v7579
      %v7604 = vpack.c.b16 %v7582, %v7580
      %v7605 = vpack.c.b16 %v7585, %v7583
      %v7606 = vpack.c.b16 %v7586, %v7584
      %v7607 = vpack.c.b16 %v7589, %v7587
      %v7608 = vpack.c.b16 %v7590, %v7588
      %v7609 = vpack.c.b16 %v7593, %v7591
      %v7610 = vpack.c.b16 %v7594, %v7592
      %v7611 = vpack.c.b16 %v7597, %v7595
      %v7612 = vpack.c.b16 %v7598, %v7596
      %v7613 = vrot.slane %v7599, 1
      %v7614 = vrot.slane %v7601, 1
      %v7615 = vsel %vm1925, %v7613, %v7614
      %v7616 = vrot.slane %v7600, 1
      %v7617 = vrot.slane %v7602, 1
      %v7618 = vsel %vm1925, %v7616, %v7617
      %v7619 = vrot.slane %v7603, 1
      %v7620 = vsel %vm1925, %v7614, %v7619
      %v7621 = vrot.slane %v7604, 1
      %v7622 = vsel %vm1925, %v7617, %v7621
      %v7623 = vrot.slane %v7605, 1
      %v7624 = vsel %vm1925, %v7619, %v7623
      %v7625 = vrot.slane %v7606, 1
      %v7626 = vsel %vm1925, %v7621, %v7625
      %v7627 = vrot.slane %v7607, 1
      %v7628 = vsel %vm1925, %v7623, %v7627
      %v7629 = vrot.slane %v7608, 1
      %v7630 = vsel %vm1925, %v7625, %v7629
      %v7631 = vrot.slane %v7609, 1
      %v7632 = vsel %vm1925, %v7627, %v7631
      %v7633 = vrot.slane %v7610, 1
      %v7634 = vsel %vm1925, %v7629, %v7633
      %v7635 = vrot.slane %v7611, 1
      %v7636 = vsel %vm1925, %v7631, %v7635
      %v7637 = vrot.slane %v7612, 1
      %v7638 = vsel %vm1925, %v7633, %v7637
      %v7686 = vunpack.c.l.b16 %v7517
      %v7687 = vunpack.c.h.b16 %v7517
      %v7688 = vunpack.c.l.b16 %v7518
      %v7689 = vunpack.c.l.b16 %v7519
      %v7690 = vunpack.c.h.b16 %v7519
      %v7691 = vunpack.c.l.b16 %v7520
      %v7692 = vunpack.c.l.b16 %v7521
      %v7693 = vunpack.c.h.b16 %v7521
      %v7694 = vunpack.c.l.b16 %v7522
      %v7695 = vunpack.c.l.b16 %v7523
      %v7696 = vunpack.c.h.b16 %v7523
      %v7697 = vunpack.c.l.b16 %v7524
      %v7698 = vunpack.c.l.b16 %v7525
      %v7699 = vunpack.c.h.b16 %v7525
      %v7700 = vunpack.c.l.b16 %v7526
      %v7701 = vunpack.c.l.b16 %v7527
      %v7702 = vunpack.c.h.b16 %v7527
      %v7703 = vunpack.c.l.b16 %v7528
      %v7704 = vunpack.c.l.b16 %v7529
      %v7705 = vunpack.c.h.b16 %v7529
      %v7706 = vunpack.c.l.b16 %v7530
      %v7707 = vunpack.c.l.b16 %v7531
      %v7708 = vunpack.c.h.b16 %v7531
      %v7709 = vunpack.c.l.b16 %v7532
      %v7710 = vunpack.c.l.b16 %v7533
      %v7711 = vunpack.c.h.b16 %v7533
      %v7712 = vunpack.c.l.b16 %v7534
      %v7713 = vunpack.c.l.b16 %v7535
      %v7714 = vunpack.c.h.b16 %v7535
      %v7715 = vunpack.c.l.b16 %v7536
      %v7716 = vunpack.c.l.b16 %v7537
      %v7717 = vunpack.c.h.b16 %v7537
      %v7718 = vunpack.c.l.b16 %v7538
      %v7719 = vunpack.c.l.b16 %v7539
      %v7720 = vunpack.c.h.b16 %v7539
      %v7721 = vunpack.c.l.b16 %v7540
      %v7722 = vunpack.c.l.b16 %v7541
      %v7723 = vunpack.c.h.b16 %v7541
      %v7724 = vunpack.c.l.b16 %v7542
      %v7725 = vunpack.c.l.b16 %v7543
      %v7726 = vunpack.c.h.b16 %v7543
      %v7727 = vunpack.c.l.b16 %v7544
      %v7728 = vunpack.c.l.b16 %v7545
      %v7729 = vunpack.c.h.b16 %v7545
      %v7730 = vunpack.c.l.b16 %v7546
      %v7731 = vunpack.c.l.b16 %v7547
      %v7732 = vunpack.c.h.b16 %v7547
      %v7733 = vunpack.c.l.b16 %v7548
      %v7734 = vunpack.c.l.b16 %v7549
      %v7735 = vunpack.c.h.b16 %v7549
      %v7736 = vunpack.c.l.b16 %v7550
      %v7737 = vunpack.c.l.b16 %v7551
      %v7738 = vunpack.c.h.b16 %v7551
      %v7739 = vunpack.c.l.b16 %v7552
      %v7740 = vunpack.c.l.b16 %v7553
      %v7741 = vunpack.c.h.b16 %v7553
      %v7742 = vunpack.c.l.b16 %v7554
      %v7743 = vunpack.c.l.b16 %v7555
      %v7744 = vunpack.c.h.b16 %v7555
      %v7745 = vunpack.c.l.b16 %v7556
      %v7746 = vpack.c.b16 %v7689, %v7686
      %v7747 = vpack.c.b16 %v7690, %v7687
      %v7748 = vpack.c.b16 %v7691, %v7688
      %v7749 = vpack.c.b16 %v7695, %v7692
      %v7750 = vpack.c.b16 %v7696, %v7693
      %v7751 = vpack.c.b16 %v7697, %v7694
      %v7752 = vpack.c.b16 %v7701, %v7698
      %v7753 = vpack.c.b16 %v7702, %v7699
      %v7754 = vpack.c.b16 %v7703, %v7700
      %v7755 = vpack.c.b16 %v7707, %v7704
      %v7756 = vpack.c.b16 %v7708, %v7705
      %v7757 = vpack.c.b16 %v7709, %v7706
      %v7758 = vpack.c.b16 %v7713, %v7710
      %v7759 = vpack.c.b16 %v7714, %v7711
      %v7760 = vpack.c.b16 %v7715, %v7712
      %v7761 = vpack.c.b16 %v7719, %v7716
      %v7762 = vpack.c.b16 %v7720, %v7717
      %v7763 = vpack.c.b16 %v7721, %v7718
      %v7764 = vpack.c.b16 %v7725, %v7722
      %v7765 = vpack.c.b16 %v7726, %v7723
      %v7766 = vpack.c.b16 %v7727, %v7724
      %v7767 = vpack.c.b16 %v7731, %v7728
      %v7768 = vpack.c.b16 %v7732, %v7729
      %v7769 = vpack.c.b16 %v7733, %v7730
      %v7770 = vpack.c.b16 %v7737, %v7734
      %v7771 = vpack.c.b16 %v7738, %v7735
      %v7772 = vpack.c.b16 %v7739, %v7736
      %v7773 = vpack.c.b16 %v7743, %v7740
      %v7774 = vpack.c.b16 %v7744, %v7741
      %v7775 = vpack.c.b16 %v7745, %v7742
      %v7807 = vsel %vm6333, %v7618, 0
      %v7810 = vsel %vm6333, %v7622, 0
      %v7813 = vsel %vm6333, %v7626, 0
      %v7816 = vsel %vm6333, %v7630, 0
      %v7819 = vsel %vm6333, %v7634, 0
      %v7822 = vsel %vm6333, %v7638, 0
      %v7825 = vsel %vm6333, %v7637, 0
      %7827 = vmatpush.bf16.msra.mxu0 %v7767
      %7828 = vmatpush.bf16.msra.mxu0 %v7764
      %7829 = vmatpush.bf16.msra.mxu0 %v7761
      %7830 = vmatpush.bf16.msra.mxu0 %v7758
      %7831 = vmatpush.bf16.msra.mxu0 %v7755
      %7832 = vmatpush.bf16.msra.mxu0 %v7752
      %7833 = vmatpush.bf16.msra.mxu0 %v7749
      %7834 = vmatpush.bf16.msra.mxu0 %v7746
      %7835 = vmatmul.bf16.gmra.mxu0 %v7615
      %v7836 = vpop.f32.mrf.mxu0
      %v7837 = vadd.f32 0.0, %v7836
      %v7838 = vpop.f32.mrf.mxu0
      %v7839 = vadd.f32 0.0, %v7838
      %7840 = vmatmul.bf16.gmra.mxu0 %v7620
      %v7841 = vpop.f32.mrf.mxu0
      %v7842 = vadd.f32 0.0, %v7841
      %v7843 = vpop.f32.mrf.mxu0
      %v7844 = vadd.f32 0.0, %v7843
      %7845 = vmatmul.bf16.gmra.mxu0 %v7624
      %v7846 = vpop.f32.mrf.mxu0
      %v7847 = vadd.f32 0.0, %v7846
      %v7848 = vpop.f32.mrf.mxu0
      %v7849 = vadd.f32 0.0, %v7848
      %7850 = vmatmul.bf16.gmra.mxu0 %v7628
      %v7851 = vpop.f32.mrf.mxu0
      %v7852 = vadd.f32 0.0, %v7851
      %v7853 = vpop.f32.mrf.mxu0
      %v7854 = vadd.f32 0.0, %v7853
      %7855 = vmatmul.bf16.gmra.mxu0 %v7632
      %v7856 = vpop.f32.mrf.mxu0
      %v7857 = vadd.f32 0.0, %v7856
      %v7858 = vpop.f32.mrf.mxu0
      %v7859 = vadd.f32 0.0, %v7858
      %7860 = vmatmul.bf16.gmra.mxu0 %v7636
      %v7861 = vpop.f32.mrf.mxu0
      %v7862 = vadd.f32 0.0, %v7861
      %v7863 = vpop.f32.mrf.mxu0
      %v7864 = vadd.f32 0.0, %v7863
      %7865 = vmatmul.bf16.gmra.mxu0 %v7635
      %v7866 = vpop.f32.mrf.mxu0
      %v7867 = vadd.f32 0.0, %v7866
      %v7868 = vpop.f32.mrf.mxu0
      %v7869 = vadd.f32 0.0, %v7868
      %7870 = vdwg.mxu0
      %7871 = vmatpush.bf16.msra.mxu0 0
      %7872 = vmatpush.bf16.msra.mxu0 0
      %7873 = vmatpush.bf16.msra.mxu0 0
      %7874 = vmatpush.bf16.msra.mxu0 0
      %7875 = vmatpush.bf16.msra.mxu0 0
      %7876 = vmatpush.bf16.msra.mxu0 0
      %7877 = vmatpush.bf16.msra.mxu0 %v7773
      %7878 = vmatpush.bf16.msra.mxu0 %v7770
      %7879 = vmatmul.bf16.gmra.mxu0 %v7807
      %v7880 = vpop.f32.mrf.mxu0
      %v7881 = vadd.f32 %v7837, %v7880
      %v7882 = vpop.f32.mrf.mxu0
      %v7883 = vadd.f32 %v7839, %v7882
      %7884 = vmatmul.bf16.gmra.mxu0 %v7810
      %v7885 = vpop.f32.mrf.mxu0
      %v7886 = vadd.f32 %v7842, %v7885
      %v7887 = vpop.f32.mrf.mxu0
      %v7888 = vadd.f32 %v7844, %v7887
      %7889 = vmatmul.bf16.gmra.mxu0 %v7813
      %v7890 = vpop.f32.mrf.mxu0
      %v7891 = vadd.f32 %v7847, %v7890
      %v7892 = vpop.f32.mrf.mxu0
      %v7893 = vadd.f32 %v7849, %v7892
      %7894 = vmatmul.bf16.gmra.mxu0 %v7816
      %v7895 = vpop.f32.mrf.mxu0
      %v7896 = vadd.f32 %v7852, %v7895
      %v7897 = vpop.f32.mrf.mxu0
      %v7898 = vadd.f32 %v7854, %v7897
      %7899 = vmatmul.bf16.gmra.mxu0 %v7819
      %v7900 = vpop.f32.mrf.mxu0
      %v7901 = vadd.f32 %v7857, %v7900
      %v7902 = vpop.f32.mrf.mxu0
      %v7903 = vadd.f32 %v7859, %v7902
      %7904 = vmatmul.bf16.gmra.mxu0 %v7822
      %v7905 = vpop.f32.mrf.mxu0
      %v7906 = vadd.f32 %v7862, %v7905
      %v7907 = vpop.f32.mrf.mxu0
      %v7908 = vadd.f32 %v7864, %v7907
      %7909 = vmatmul.bf16.gmra.mxu0 %v7825
      %v7910 = vpop.f32.mrf.mxu0
      %v7911 = vadd.f32 %v7867, %v7910
      %v7912 = vpop.f32.mrf.mxu0
      %v7913 = vadd.f32 %v7869, %v7912
      %7914 = vdwg.mxu0
      %7915 = vmatpush.bf16.msra.mxu0 %v7768
      %7916 = vmatpush.bf16.msra.mxu0 %v7765
      %7917 = vmatpush.bf16.msra.mxu0 %v7762
      %7918 = vmatpush.bf16.msra.mxu0 %v7759
      %7919 = vmatpush.bf16.msra.mxu0 %v7756
      %7920 = vmatpush.bf16.msra.mxu0 %v7753
      %7921 = vmatpush.bf16.msra.mxu0 %v7750
      %7922 = vmatpush.bf16.msra.mxu0 %v7747
      %7923 = vmatmul.bf16.gmra.mxu0 %v7615
      %v7924 = vpop.f32.mrf.mxu0
      %v7925 = vadd.f32 0.0, %v7924
      %v7926 = vpop.f32.mrf.mxu0
      %v7927 = vadd.f32 0.0, %v7926
      %7928 = vmatmul.bf16.gmra.mxu0 %v7620
      %v7929 = vpop.f32.mrf.mxu0
      %v7930 = vadd.f32 0.0, %v7929
      %v7931 = vpop.f32.mrf.mxu0
      %v7932 = vadd.f32 0.0, %v7931
      %7933 = vmatmul.bf16.gmra.mxu0 %v7624
      %v7934 = vpop.f32.mrf.mxu0
      %v7935 = vadd.f32 0.0, %v7934
      %v7936 = vpop.f32.mrf.mxu0
      %v7937 = vadd.f32 0.0, %v7936
      %7938 = vmatmul.bf16.gmra.mxu0 %v7628
      %v7939 = vpop.f32.mrf.mxu0
      %v7940 = vadd.f32 0.0, %v7939
      %v7941 = vpop.f32.mrf.mxu0
      %v7942 = vadd.f32 0.0, %v7941
      %7943 = vmatmul.bf16.gmra.mxu0 %v7632
      %v7944 = vpop.f32.mrf.mxu0
      %v7945 = vadd.f32 0.0, %v7944
      %v7946 = vpop.f32.mrf.mxu0
      %v7947 = vadd.f32 0.0, %v7946
      %7948 = vmatmul.bf16.gmra.mxu0 %v7636
      %v7949 = vpop.f32.mrf.mxu0
      %v7950 = vadd.f32 0.0, %v7949
      %v7951 = vpop.f32.mrf.mxu0
      %v7952 = vadd.f32 0.0, %v7951
      %7953 = vmatmul.bf16.gmra.mxu0 %v7635
      %v7954 = vpop.f32.mrf.mxu0
      %v7955 = vadd.f32 0.0, %v7954
      %v7956 = vpop.f32.mrf.mxu0
      %v7957 = vadd.f32 0.0, %v7956
      %7958 = vdwg.mxu0
      %7959 = vmatpush.bf16.msra.mxu0 0
      %7960 = vmatpush.bf16.msra.mxu0 0
      %7961 = vmatpush.bf16.msra.mxu0 0
      %7962 = vmatpush.bf16.msra.mxu0 0
      %7963 = vmatpush.bf16.msra.mxu0 0
      %7964 = vmatpush.bf16.msra.mxu0 0
      %7965 = vmatpush.bf16.msra.mxu0 %v7774
      %7966 = vmatpush.bf16.msra.mxu0 %v7771
      %7967 = vmatmul.bf16.gmra.mxu0 %v7807
      %v7968 = vpop.f32.mrf.mxu0
      %v7969 = vadd.f32 %v7925, %v7968
      %v7970 = vpop.f32.mrf.mxu0
      %v7971 = vadd.f32 %v7927, %v7970
      %7972 = vmatmul.bf16.gmra.mxu0 %v7810
      %v7973 = vpop.f32.mrf.mxu0
      %v7974 = vadd.f32 %v7930, %v7973
      %v7975 = vpop.f32.mrf.mxu0
      %v7976 = vadd.f32 %v7932, %v7975
      %7977 = vmatmul.bf16.gmra.mxu0 %v7813
      %v7978 = vpop.f32.mrf.mxu0
      %v7979 = vadd.f32 %v7935, %v7978
      %v7980 = vpop.f32.mrf.mxu0
      %v7981 = vadd.f32 %v7937, %v7980
      %7982 = vmatmul.bf16.gmra.mxu0 %v7816
      %v7983 = vpop.f32.mrf.mxu0
      %v7984 = vadd.f32 %v7940, %v7983
      %v7985 = vpop.f32.mrf.mxu0
      %v7986 = vadd.f32 %v7942, %v7985
      %7987 = vmatmul.bf16.gmra.mxu0 %v7819
      %v7988 = vpop.f32.mrf.mxu0
      %v7989 = vadd.f32 %v7945, %v7988
      %v7990 = vpop.f32.mrf.mxu0
      %v7991 = vadd.f32 %v7947, %v7990
      %7992 = vmatmul.bf16.gmra.mxu0 %v7822
      %v7993 = vpop.f32.mrf.mxu0
      %v7994 = vadd.f32 %v7950, %v7993
      %v7995 = vpop.f32.mrf.mxu0
      %v7996 = vadd.f32 %v7952, %v7995
      %7997 = vmatmul.bf16.gmra.mxu0 %v7825
      %v7998 = vpop.f32.mrf.mxu0
      %v7999 = vadd.f32 %v7955, %v7998
      %v8000 = vpop.f32.mrf.mxu0
      %v8001 = vadd.f32 %v7957, %v8000
      %8002 = vdwg.mxu0
      %8003 = vmatpush.bf16.msra.mxu0 %v7769
      %8004 = vmatpush.bf16.msra.mxu0 %v7766
      %8005 = vmatpush.bf16.msra.mxu0 %v7763
      %8006 = vmatpush.bf16.msra.mxu0 %v7760
      %8007 = vmatpush.bf16.msra.mxu0 %v7757
      %8008 = vmatpush.bf16.msra.mxu0 %v7754
      %8009 = vmatpush.bf16.msra.mxu0 %v7751
      %8010 = vmatpush.bf16.msra.mxu0 %v7748
      %8011 = vmatmul.bf16.gmra.mxu0 %v7615
      %v8012 = vpop.f32.mrf.mxu0
      %v8013 = vadd.f32 0.0, %v8012
      %v8014 = vpop.f32.mrf.mxu0
      %v8015 = vadd.f32 0.0, %v8014
      %8016 = vmatmul.bf16.gmra.mxu0 %v7620
      %v8017 = vpop.f32.mrf.mxu0
      %v8018 = vadd.f32 0.0, %v8017
      %v8019 = vpop.f32.mrf.mxu0
      %v8020 = vadd.f32 0.0, %v8019
      %8021 = vmatmul.bf16.gmra.mxu0 %v7624
      %v8022 = vpop.f32.mrf.mxu0
      %v8023 = vadd.f32 0.0, %v8022
      %v8024 = vpop.f32.mrf.mxu0
      %v8025 = vadd.f32 0.0, %v8024
      %8026 = vmatmul.bf16.gmra.mxu0 %v7628
      %v8027 = vpop.f32.mrf.mxu0
      %v8028 = vadd.f32 0.0, %v8027
      %v8029 = vpop.f32.mrf.mxu0
      %v8030 = vadd.f32 0.0, %v8029
      %8031 = vmatmul.bf16.gmra.mxu0 %v7632
      %v8032 = vpop.f32.mrf.mxu0
      %v8033 = vadd.f32 0.0, %v8032
      %v8034 = vpop.f32.mrf.mxu0
      %v8035 = vadd.f32 0.0, %v8034
      %8036 = vmatmul.bf16.gmra.mxu0 %v7636
      %v8037 = vpop.f32.mrf.mxu0
      %v8038 = vadd.f32 0.0, %v8037
      %v8039 = vpop.f32.mrf.mxu0
      %v8040 = vadd.f32 0.0, %v8039
      %8041 = vmatmul.bf16.gmra.mxu0 %v7635
      %v8042 = vpop.f32.mrf.mxu0
      %v8043 = vadd.f32 0.0, %v8042
      %v8044 = vpop.f32.mrf.mxu0
      %v8045 = vadd.f32 0.0, %v8044
      %8046 = vdwg.mxu0
      %8047 = vmatpush.bf16.msra.mxu0 0
      %8048 = vmatpush.bf16.msra.mxu0 0
      %8049 = vmatpush.bf16.msra.mxu0 0
      %8050 = vmatpush.bf16.msra.mxu0 0
      %8051 = vmatpush.bf16.msra.mxu0 0
      %8052 = vmatpush.bf16.msra.mxu0 0
      %8053 = vmatpush.bf16.msra.mxu0 %v7775
      %8054 = vmatpush.bf16.msra.mxu0 %v7772
      %8055 = vmatmul.bf16.gmra.mxu0 %v7807
      %v8056 = vpop.f32.mrf.mxu0
      %v8057 = vadd.f32 %v8013, %v8056
      %v8058 = vpop.f32.mrf.mxu0
      %v8059 = vadd.f32 %v8015, %v8058
      %8060 = vmatmul.bf16.gmra.mxu0 %v7810
      %v8061 = vpop.f32.mrf.mxu0
      %v8062 = vadd.f32 %v8018, %v8061
      %v8063 = vpop.f32.mrf.mxu0
      %v8064 = vadd.f32 %v8020, %v8063
      %8065 = vmatmul.bf16.gmra.mxu0 %v7813
      %v8066 = vpop.f32.mrf.mxu0
      %v8067 = vadd.f32 %v8023, %v8066
      %v8068 = vpop.f32.mrf.mxu0
      %v8069 = vadd.f32 %v8025, %v8068
      %8070 = vmatmul.bf16.gmra.mxu0 %v7816
      %v8071 = vpop.f32.mrf.mxu0
      %v8072 = vadd.f32 %v8028, %v8071
      %v8073 = vpop.f32.mrf.mxu0
      %v8074 = vadd.f32 %v8030, %v8073
      %8075 = vmatmul.bf16.gmra.mxu0 %v7819
      %v8076 = vpop.f32.mrf.mxu0
      %v8077 = vadd.f32 %v8033, %v8076
      %v8078 = vpop.f32.mrf.mxu0
      %v8079 = vadd.f32 %v8035, %v8078
      %8080 = vmatmul.bf16.gmra.mxu0 %v7822
      %v8081 = vpop.f32.mrf.mxu0
      %v8082 = vadd.f32 %v8038, %v8081
      %v8083 = vpop.f32.mrf.mxu0
      %v8084 = vadd.f32 %v8040, %v8083
      %8085 = vmatmul.bf16.gmra.mxu0 %v7825
      %v8086 = vpop.f32.mrf.mxu0
      %v8087 = vadd.f32 %v8043, %v8086
      %v8088 = vpop.f32.mrf.mxu0
      %v8089 = vadd.f32 %v8045, %v8088
      %8090 = vdwg.mxu0
      %v8091 = vadd.f32 %v7460, %v7881
      %v8092 = vadd.f32 %v7461, %v7969
      %v8093 = vadd.f32 %v7462, %v8057
      %v8094 = vadd.f32 %v7463, %v7883
      %v8095 = vadd.f32 %v7464, %v7971
      %v8096 = vadd.f32 %v7465, %v8059
      %v8097 = vadd.f32 %v7466, %v7886
      %v8098 = vadd.f32 %v7467, %v7974
      %v8099 = vadd.f32 %v7468, %v8062
      %v8100 = vadd.f32 %v7469, %v7888
      %v8101 = vadd.f32 %v7470, %v7976
      %v8102 = vadd.f32 %v7471, %v8064
      %v8103 = vadd.f32 %v7472, %v7891
      %v8104 = vadd.f32 %v7473, %v7979
      %v8105 = vadd.f32 %v7474, %v8067
      %v8106 = vadd.f32 %v7475, %v7893
      %v8107 = vadd.f32 %v7476, %v7981
      %v8108 = vadd.f32 %v7477, %v8069
      %v8109 = vadd.f32 %v7478, %v7896
      %v8110 = vadd.f32 %v7479, %v7984
      %v8111 = vadd.f32 %v7480, %v8072
      %v8112 = vadd.f32 %v7481, %v7898
      %v8113 = vadd.f32 %v7482, %v7986
      %v8114 = vadd.f32 %v7483, %v8074
      %v8115 = vadd.f32 %v7484, %v7901
      %v8116 = vadd.f32 %v7485, %v7989
      %v8117 = vadd.f32 %v7486, %v8077
      %v8118 = vadd.f32 %v7487, %v7903
      %v8119 = vadd.f32 %v7488, %v7991
      %v8120 = vadd.f32 %v7489, %v8079
      %v8121 = vadd.f32 %v7490, %v7906
      %v8122 = vadd.f32 %v7491, %v7994
      %v8123 = vadd.f32 %v7492, %v8082
      %v8124 = vadd.f32 %v7493, %v7908
      %v8125 = vadd.f32 %v7494, %v7996
      %v8126 = vadd.f32 %v7495, %v8084
      %v8127 = vadd.f32 %v7496, %v7911
      %v8128 = vadd.f32 %v7497, %v7999
      %v8129 = vadd.f32 %v7498, %v8087
      %v8130 = vadd.f32 %v7499, %v7913
      %v8131 = vadd.f32 %v7500, %v8001
      %v8132 = vadd.f32 %v7501, %v8089
      %8133 = vst [vmem:[#allocation4] sm:$0xff] %v8091
      %8134 = vst [vmem:[#allocation4 + $0x8] sm:$0xff] %v8092
      %8135 = vst.msk [vmem:[#allocation4 + $0x10] sm:$0xff] %vm884, %v8093
      %8136 = vst [vmem:[#allocation4 + $0x18] sm:$0xff] %v8094
      %8137 = vst [vmem:[#allocation4 + $0x20] sm:$0xff] %v8095
      %8138 = vst.msk [vmem:[#allocation4 + $0x28] sm:$0xff] %vm884, %v8096
      %8139 = vst [vmem:[#allocation4 + $0x30] sm:$0xff] %v8097
      %8140 = vst [vmem:[#allocation4 + $0x38] sm:$0xff] %v8098
      %8141 = vst.msk [vmem:[#allocation4 + $0x40] sm:$0xff] %vm884, %v8099
      %8142 = vst [vmem:[#allocation4 + $0x48] sm:$0xff] %v8100
      %8143 = vst [vmem:[#allocation4 + $0x50] sm:$0xff] %v8101
      %8144 = vst.msk [vmem:[#allocation4 + $0x58] sm:$0xff] %vm884, %v8102
      %8145 = vst [vmem:[#allocation4 + $0x60] sm:$0xff] %v8103
      %8146 = vst [vmem:[#allocation4 + $0x68] sm:$0xff] %v8104
      %8147 = vst.msk [vmem:[#allocation4 + $0x70] sm:$0xff] %vm884, %v8105
      %8148 = vst [vmem:[#allocation4 + $0x78] sm:$0xff] %v8106
      %8149 = vst [vmem:[#allocation4 + $0x80] sm:$0xff] %v8107
      %8150 = vst.msk [vmem:[#allocation4 + $0x88] sm:$0xff] %vm884, %v8108
      %8151 = vst [vmem:[#allocation4 + $0x90] sm:$0xff] %v8109
      %8152 = vst [vmem:[#allocation4 + $0x98] sm:$0xff] %v8110
      %8153 = vst.msk [vmem:[#allocation4 + $0xa0] sm:$0xff] %vm884, %v8111
      %8154 = vst [vmem:[#allocation4 + $0xa8] sm:$0xff] %v8112
      %8155 = vst [vmem:[#allocation4 + $0xb0] sm:$0xff] %v8113
      %8156 = vst.msk [vmem:[#allocation4 + $0xb8] sm:$0xff] %vm884, %v8114
      %8157 = vst [vmem:[#allocation4 + $0xc0] sm:$0xff] %v8115
      %8158 = vst [vmem:[#allocation4 + $0xc8] sm:$0xff] %v8116
      %8159 = vst.msk [vmem:[#allocation4 + $0xd0] sm:$0xff] %vm884, %v8117
      %8160 = vst [vmem:[#allocation4 + $0xd8] sm:$0xff] %v8118
      %8161 = vst [vmem:[#allocation4 + $0xe0] sm:$0xff] %v8119
      %8162 = vst.msk [vmem:[#allocation4 + $0xe8] sm:$0xff] %vm884, %v8120
      %8163 = vst [vmem:[#allocation4 + $0xf0] sm:$0xff] %v8121
      %8164 = vst [vmem:[#allocation4 + $0xf8] sm:$0xff] %v8122
      %8165 = vst.msk [vmem:[#allocation4 + $0x100] sm:$0xff] %vm884, %v8123
      %8166 = vst [vmem:[#allocation4 + $0x108] sm:$0xff] %v8124
      %8167 = vst [vmem:[#allocation4 + $0x110] sm:$0xff] %v8125
      %8168 = vst.msk [vmem:[#allocation4 + $0x118] sm:$0xff] %vm884, %v8126
      %8169 = vst [vmem:[#allocation4 + $0x120] sm:$0xff] %v8127
      %8170 = vst [vmem:[#allocation4 + $0x128] sm:$0xff] %v8128
      %8171 = vst.msk [vmem:[#allocation4 + $0x130] sm:$0xff] %vm884, %v8129
      %8172 = vst [vmem:[#allocation4 + $0x138] sm:$0x3f] %v8130
      %8173 = vst [vmem:[#allocation4 + $0x140] sm:$0x3f] %v8131
      %8174 = vst.msk [vmem:[#allocation4 + $0x148] sm:$0x3f] %vm960, %v8132
      %v8175 = vld [vmem:[#allocation4] sm:$0xff]
      %v8176 = vld [vmem:[#allocation4 + $0x8] sm:$0xff]
      %v8177 = vld [vmem:[#allocation4 + $0x10] sm:$0xff]
      %v8178 = vld [vmem:[#allocation4 + $0x18] sm:$0xff]
      %v8179 = vld [vmem:[#allocation4 + $0x20] sm:$0xff]
      %v8180 = vld [vmem:[#allocation4 + $0x28] sm:$0xff]
      %v8181 = vld [vmem:[#allocation4 + $0x30] sm:$0xff]
      %v8182 = vld [vmem:[#allocation4 + $0x38] sm:$0xff]
      %v8183 = vld [vmem:[#allocation4 + $0x40] sm:$0xff]
      %v8184 = vld [vmem:[#allocation4 + $0x48] sm:$0xff]
      %v8185 = vld [vmem:[#allocation4 + $0x50] sm:$0xff]
      %v8186 = vld [vmem:[#allocation4 + $0x58] sm:$0xff]
      %v8187 = vld [vmem:[#allocation4 + $0x60] sm:$0xff]
      %v8188 = vld [vmem:[#allocation4 + $0x68] sm:$0xff]
      %v8189 = vld [vmem:[#allocation4 + $0x70] sm:$0xff]
      %v8190 = vld [vmem:[#allocation4 + $0x78] sm:$0xff]
      %v8191 = vld [vmem:[#allocation4 + $0x80] sm:$0xff]
      %v8192 = vld [vmem:[#allocation4 + $0x88] sm:$0xff]
      %v8193 = vld [vmem:[#allocation4 + $0x90] sm:$0xff]
      %v8194 = vld [vmem:[#allocation4 + $0x98] sm:$0xff]
      %v8195 = vld [vmem:[#allocation4 + $0xa0] sm:$0xff]
      %v8196 = vld [vmem:[#allocation4 + $0xa8] sm:$0xff]
      %v8197 = vld [vmem:[#allocation4 + $0xb0] sm:$0xff]
      %v8198 = vld [vmem:[#allocation4 + $0xb8] sm:$0xff]
      %v8199 = vld [vmem:[#allocation4 + $0xc0] sm:$0xff]
      %v8200 = vld [vmem:[#allocation4 + $0xc8] sm:$0xff]
      %v8201 = vld [vmem:[#allocation4 + $0xd0] sm:$0xff]
      %v8202 = vld [vmem:[#allocation4 + $0xd8] sm:$0xff]
      %v8203 = vld [vmem:[#allocation4 + $0xe0] sm:$0xff]
      %v8204 = vld [vmem:[#allocation4 + $0xe8] sm:$0xff]
      %v8205 = vld [vmem:[#allocation4 + $0xf0] sm:$0xff]
      %v8206 = vld [vmem:[#allocation4 + $0xf8] sm:$0xff]
      %v8207 = vld [vmem:[#allocation4 + $0x100] sm:$0xff]
      %v8208 = vld [vmem:[#allocation4 + $0x108] sm:$0xff]
      %v8209 = vld [vmem:[#allocation4 + $0x110] sm:$0xff]
      %v8210 = vld [vmem:[#allocation4 + $0x118] sm:$0xff]
      %v8211 = vld [vmem:[#allocation4 + $0x120] sm:$0xff]
      %v8212 = vld [vmem:[#allocation4 + $0x128] sm:$0xff]
      %v8213 = vld [vmem:[#allocation4 + $0x130] sm:$0xff]
      %v8214 = vld [vmem:[#allocation4 + $0x138] sm:$0x3f]
      %v8215 = vld [vmem:[#allocation4 + $0x140] sm:$0x3f]
      %v8216 = vld [vmem:[#allocation4 + $0x148] sm:$0x3f]
      %v8217 = vld [vmem:[%s6] sm:$0x7]
      %v8219 = vperm.slane %v8217, 0
      %v8220 = vperm.slane %v8217, 1
      %v8221 = vperm.slane %v8217, 2
      %v8225 = vadd.f32 %v8175, %v8219
      %v8226 = vadd.f32 %v8176, %v8220
      %v8227 = vadd.f32 %v8177, %v8221
      %v8228 = vadd.f32 %v8178, %v8219
      %v8229 = vadd.f32 %v8179, %v8220
      %v8230 = vadd.f32 %v8180, %v8221
      %v8231 = vadd.f32 %v8181, %v8219
      %v8232 = vadd.f32 %v8182, %v8220
      %v8233 = vadd.f32 %v8183, %v8221
      %v8234 = vadd.f32 %v8184, %v8219
      %v8235 = vadd.f32 %v8185, %v8220
      %v8236 = vadd.f32 %v8186, %v8221
      %v8237 = vadd.f32 %v8187, %v8219
      %v8238 = vadd.f32 %v8188, %v8220
      %v8239 = vadd.f32 %v8189, %v8221
      %v8240 = vadd.f32 %v8190, %v8219
      %v8241 = vadd.f32 %v8191, %v8220
      %v8242 = vadd.f32 %v8192, %v8221
      %v8243 = vadd.f32 %v8193, %v8219
      %v8244 = vadd.f32 %v8194, %v8220
      %v8245 = vadd.f32 %v8195, %v8221
      %v8246 = vadd.f32 %v8196, %v8219
      %v8247 = vadd.f32 %v8197, %v8220
      %v8248 = vadd.f32 %v8198, %v8221
      %v8249 = vadd.f32 %v8199, %v8219
      %v8250 = vadd.f32 %v8200, %v8220
      %v8251 = vadd.f32 %v8201, %v8221
      %v8252 = vadd.f32 %v8202, %v8219
      %v8253 = vadd.f32 %v8203, %v8220
      %v8254 = vadd.f32 %v8204, %v8221
      %v8255 = vadd.f32 %v8205, %v8219
      %v8256 = vadd.f32 %v8206, %v8220
      %v8257 = vadd.f32 %v8207, %v8221
      %v8258 = vadd.f32 %v8208, %v8219
      %v8259 = vadd.f32 %v8209, %v8220
      %v8260 = vadd.f32 %v8210, %v8221
      %v8261 = vadd.f32 %v8211, %v8219
      %v8262 = vadd.f32 %v8212, %v8220
      %v8263 = vadd.f32 %v8213, %v8221
      %v8264 = vadd.f32 %v8214, %v8219
      %v8265 = vadd.f32 %v8215, %v8220
      %v8266 = vadd.f32 %v8216, %v8221
      %v8267 = vxor.u32 %v8225, 2147483648
      %v8268 = vxor.u32 %v8226, 2147483648
      %v8269 = vxor.u32 %v8227, 2147483648
      %v8270 = vxor.u32 %v8228, 2147483648
      %v8271 = vxor.u32 %v8229, 2147483648
      %v8272 = vxor.u32 %v8230, 2147483648
      %v8273 = vxor.u32 %v8231, 2147483648
      %v8274 = vxor.u32 %v8232, 2147483648
      %v8275 = vxor.u32 %v8233, 2147483648
      %v8276 = vxor.u32 %v8234, 2147483648
      %v8277 = vxor.u32 %v8235, 2147483648
      %v8278 = vxor.u32 %v8236, 2147483648
      %v8279 = vxor.u32 %v8237, 2147483648
      %v8280 = vxor.u32 %v8238, 2147483648
      %v8281 = vxor.u32 %v8239, 2147483648
      %v8282 = vxor.u32 %v8240, 2147483648
      %v8283 = vxor.u32 %v8241, 2147483648
      %v8284 = vxor.u32 %v8242, 2147483648
      %v8285 = vxor.u32 %v8243, 2147483648
      %v8286 = vxor.u32 %v8244, 2147483648
      %v8287 = vxor.u32 %v8245, 2147483648
      %v8288 = vxor.u32 %v8246, 2147483648
      %v8289 = vxor.u32 %v8247, 2147483648
      %v8290 = vxor.u32 %v8248, 2147483648
      %v8291 = vxor.u32 %v8249, 2147483648
      %v8292 = vxor.u32 %v8250, 2147483648
      %v8293 = vxor.u32 %v8251, 2147483648
      %v8294 = vxor.u32 %v8252, 2147483648
      %v8295 = vxor.u32 %v8253, 2147483648
      %v8296 = vxor.u32 %v8254, 2147483648
      %v8297 = vxor.u32 %v8255, 2147483648
      %v8298 = vxor.u32 %v8256, 2147483648
      %v8299 = vxor.u32 %v8257, 2147483648
      %v8300 = vxor.u32 %v8258, 2147483648
      %v8301 = vxor.u32 %v8259, 2147483648
      %v8302 = vxor.u32 %v8260, 2147483648
      %v8303 = vxor.u32 %v8261, 2147483648
      %v8304 = vxor.u32 %v8262, 2147483648
      %v8305 = vxor.u32 %v8263, 2147483648
      %v8306 = vxor.u32 %v8264, 2147483648
      %v8307 = vxor.u32 %v8265, 2147483648
      %v8308 = vxor.u32 %v8266, 2147483648
      %v8309 = vmul.f32 %v8267, 1.442695
      %v8310 = vpow.pop %v8309
      %v8311 = vmul.f32 %v8268, 1.442695
      %v8312 = vpow.pop %v8311
      %v8313 = vmul.f32 %v8269, 1.442695
      %v8314 = vpow.pop %v8313
      %v8315 = vmul.f32 %v8270, 1.442695
      %v8316 = vpow.pop %v8315
      %v8317 = vmul.f32 %v8271, 1.442695
      %v8318 = vpow.pop %v8317
      %v8319 = vmul.f32 %v8272, 1.442695
      %v8320 = vpow.pop %v8319
      %v8321 = vmul.f32 %v8273, 1.442695
      %v8322 = vpow.pop %v8321
      %v8323 = vmul.f32 %v8274, 1.442695
      %v8324 = vpow.pop %v8323
      %v8325 = vmul.f32 %v8275, 1.442695
      %v8326 = vpow.pop %v8325
      %v8327 = vmul.f32 %v8276, 1.442695
      %v8328 = vpow.pop %v8327
      %v8329 = vmul.f32 %v8277, 1.442695
      %v8330 = vpow.pop %v8329
      %v8331 = vmul.f32 %v8278, 1.442695
      %v8332 = vpow.pop %v8331
      %v8333 = vmul.f32 %v8279, 1.442695
      %v8334 = vpow.pop %v8333
      %v8335 = vmul.f32 %v8280, 1.442695
      %v8336 = vpow.pop %v8335
      %v8337 = vmul.f32 %v8281, 1.442695
      %v8338 = vpow.pop %v8337
      %v8339 = vmul.f32 %v8282, 1.442695
      %v8340 = vpow.pop %v8339
      %v8341 = vmul.f32 %v8283, 1.442695
      %v8342 = vpow.pop %v8341
      %v8343 = vmul.f32 %v8284, 1.442695
      %v8344 = vpow.pop %v8343
      %v8345 = vmul.f32 %v8285, 1.442695
      %v8346 = vpow.pop %v8345
      %v8347 = vmul.f32 %v8286, 1.442695
      %v8348 = vpow.pop %v8347
      %v8349 = vmul.f32 %v8287, 1.442695
      %v8350 = vpow.pop %v8349
      %v8351 = vmul.f32 %v8288, 1.442695
      %v8352 = vpow.pop %v8351
      %v8353 = vmul.f32 %v8289, 1.442695
      %v8354 = vpow.pop %v8353
      %v8355 = vmul.f32 %v8290, 1.442695
      %v8356 = vpow.pop %v8355
      %v8357 = vmul.f32 %v8291, 1.442695
      %v8358 = vpow.pop %v8357
      %v8359 = vmul.f32 %v8292, 1.442695
      %v8360 = vpow.pop %v8359
      %v8361 = vmul.f32 %v8293, 1.442695
      %v8362 = vpow.pop %v8361
      %v8363 = vmul.f32 %v8294, 1.442695
      %v8364 = vpow.pop %v8363
      %v8365 = vmul.f32 %v8295, 1.442695
      %v8366 = vpow.pop %v8365
      %v8367 = vmul.f32 %v8296, 1.442695
      %v8368 = vpow.pop %v8367
      %v8369 = vmul.f32 %v8297, 1.442695
      %v8370 = vpow.pop %v8369
      %v8371 = vmul.f32 %v8298, 1.442695
      %v8372 = vpow.pop %v8371
      %v8373 = vmul.f32 %v8299, 1.442695
      %v8374 = vpow.pop %v8373
      %v8375 = vmul.f32 %v8300, 1.442695
      %v8376 = vpow.pop %v8375
      %v8377 = vmul.f32 %v8301, 1.442695
      %v8378 = vpow.pop %v8377
      %v8379 = vmul.f32 %v8302, 1.442695
      %v8380 = vpow.pop %v8379
      %v8381 = vmul.f32 %v8303, 1.442695
      %v8382 = vpow.pop %v8381
      %v8383 = vmul.f32 %v8304, 1.442695
      %v8384 = vpow.pop %v8383
      %v8385 = vmul.f32 %v8305, 1.442695
      %v8386 = vpow.pop %v8385
      %v8387 = vmul.f32 %v8306, 1.442695
      %v8388 = vpow.pop %v8387
      %v8389 = vmul.f32 %v8307, 1.442695
      %v8390 = vpow.pop %v8389
      %v8391 = vmul.f32 %v8308, 1.442695
      %v8392 = vpow.pop %v8391
      %v8393 = vadd.f32 %v8310, 1.0
      %v8394 = vadd.f32 %v8312, 1.0
      %v8395 = vadd.f32 %v8314, 1.0
      %v8396 = vadd.f32 %v8316, 1.0
      %v8397 = vadd.f32 %v8318, 1.0
      %v8398 = vadd.f32 %v8320, 1.0
      %v8399 = vadd.f32 %v8322, 1.0
      %v8400 = vadd.f32 %v8324, 1.0
      %v8401 = vadd.f32 %v8326, 1.0
      %v8402 = vadd.f32 %v8328, 1.0
      %v8403 = vadd.f32 %v8330, 1.0
      %v8404 = vadd.f32 %v8332, 1.0
      %v8405 = vadd.f32 %v8334, 1.0
      %v8406 = vadd.f32 %v8336, 1.0
      %v8407 = vadd.f32 %v8338, 1.0
      %v8408 = vadd.f32 %v8340, 1.0
      %v8409 = vadd.f32 %v8342, 1.0
      %v8410 = vadd.f32 %v8344, 1.0
      %v8411 = vadd.f32 %v8346, 1.0
      %v8412 = vadd.f32 %v8348, 1.0
      %v8413 = vadd.f32 %v8350, 1.0
      %v8414 = vadd.f32 %v8352, 1.0
      %v8415 = vadd.f32 %v8354, 1.0
      %v8416 = vadd.f32 %v8356, 1.0
      %v8417 = vadd.f32 %v8358, 1.0
      %v8418 = vadd.f32 %v8360, 1.0
      %v8419 = vadd.f32 %v8362, 1.0
      %v8420 = vadd.f32 %v8364, 1.0
      %v8421 = vadd.f32 %v8366, 1.0
      %v8422 = vadd.f32 %v8368, 1.0
      %v8423 = vadd.f32 %v8370, 1.0
      %v8424 = vadd.f32 %v8372, 1.0
      %v8425 = vadd.f32 %v8374, 1.0
      %v8426 = vadd.f32 %v8376, 1.0
      %v8427 = vadd.f32 %v8378, 1.0
      %v8428 = vadd.f32 %v8380, 1.0
      %v8429 = vadd.f32 %v8382, 1.0
      %v8430 = vadd.f32 %v8384, 1.0
      %v8431 = vadd.f32 %v8386, 1.0
      %v8432 = vadd.f32 %v8388, 1.0
      %v8433 = vadd.f32 %v8390, 1.0
      %v8434 = vadd.f32 %v8392, 1.0
      %v8435 = vrcp.pop %v8393
      %v8436 = vmul.f32 %v8393, %v8435
      %v8437 = vsub.f32 1.0, %v8436
      %v8438 = vmul.f32 %v8435, %v8437
      %v8439 = vadd.f32 %v8435, %v8438
      %vm8440 = vweird.f32 %v8393
      %vm8441 = vweird.f32 %v8435
      %vm8442 = vmor %vm8440, %vm8441
      %v8443 = vsel %vm8442, %v8435, %v8439
      %v8444 = vand.u32 2147483647, %v8393
      %vm8445 = vcmp.eq.f32.partialorder %v8444, 8.507059e+37
      %v8446 = vand.u32 %v8393, 2147483648
      %v8447 = vor.u32 1.1754944e-38, %v8446
      %v8448 = vsel %vm8445, %v8447, %v8443
      %v8449 = vmul.f32 1.0, %v8448
      %v8450 = vrcp.pop %v8394
      %v8451 = vmul.f32 %v8394, %v8450
      %v8452 = vsub.f32 1.0, %v8451
      %v8453 = vmul.f32 %v8450, %v8452
      %v8454 = vadd.f32 %v8450, %v8453
      %vm8455 = vweird.f32 %v8394
      %vm8456 = vweird.f32 %v8450
      %vm8457 = vmor %vm8455, %vm8456
      %v8458 = vsel %vm8457, %v8450, %v8454
      %v8459 = vand.u32 2147483647, %v8394
      %vm8460 = vcmp.eq.f32.partialorder %v8459, 8.507059e+37
      %v8461 = vand.u32 %v8394, 2147483648
      %v8462 = vor.u32 1.1754944e-38, %v8461
      %v8463 = vsel %vm8460, %v8462, %v8458
      %v8464 = vmul.f32 1.0, %v8463
      %v8465 = vrcp.pop %v8395
      %v8466 = vmul.f32 %v8395, %v8465
      %v8467 = vsub.f32 1.0, %v8466
      %v8468 = vmul.f32 %v8465, %v8467
      %v8469 = vadd.f32 %v8465, %v8468
      %vm8470 = vweird.f32 %v8395
      %vm8471 = vweird.f32 %v8465
      %vm8472 = vmor %vm8470, %vm8471
      %v8473 = vsel %vm8472, %v8465, %v8469
      %v8474 = vand.u32 2147483647, %v8395
      %vm8475 = vcmp.eq.f32.partialorder %v8474, 8.507059e+37
      %v8476 = vand.u32 %v8395, 2147483648
      %v8477 = vor.u32 1.1754944e-38, %v8476
      %v8478 = vsel %vm8475, %v8477, %v8473
      %v8479 = vmul.f32 1.0, %v8478
      %v8480 = vrcp.pop %v8396
      %v8481 = vmul.f32 %v8396, %v8480
      %v8482 = vsub.f32 1.0, %v8481
      %v8483 = vmul.f32 %v8480, %v8482
      %v8484 = vadd.f32 %v8480, %v8483
      %vm8485 = vweird.f32 %v8396
      %vm8486 = vweird.f32 %v8480
      %vm8487 = vmor %vm8485, %vm8486
      %v8488 = vsel %vm8487, %v8480, %v8484
      %v8489 = vand.u32 2147483647, %v8396
      %vm8490 = vcmp.eq.f32.partialorder %v8489, 8.507059e+37
      %v8491 = vand.u32 %v8396, 2147483648
      %v8492 = vor.u32 1.1754944e-38, %v8491
      %v8493 = vsel %vm8490, %v8492, %v8488
      %v8494 = vmul.f32 1.0, %v8493
      %v8495 = vrcp.pop %v8397
      %v8496 = vmul.f32 %v8397, %v8495
      %v8497 = vsub.f32 1.0, %v8496
      %v8498 = vmul.f32 %v8495, %v8497
      %v8499 = vadd.f32 %v8495, %v8498
      %vm8500 = vweird.f32 %v8397
      %vm8501 = vweird.f32 %v8495
      %vm8502 = vmor %vm8500, %vm8501
      %v8503 = vsel %vm8502, %v8495, %v8499
      %v8504 = vand.u32 2147483647, %v8397
      %vm8505 = vcmp.eq.f32.partialorder %v8504, 8.507059e+37
      %v8506 = vand.u32 %v8397, 2147483648
      %v8507 = vor.u32 1.1754944e-38, %v8506
      %v8508 = vsel %vm8505, %v8507, %v8503
      %v8509 = vmul.f32 1.0, %v8508
      %v8510 = vrcp.pop %v8398
      %v8511 = vmul.f32 %v8398, %v8510
      %v8512 = vsub.f32 1.0, %v8511
      %v8513 = vmul.f32 %v8510, %v8512
      %v8514 = vadd.f32 %v8510, %v8513
      %vm8515 = vweird.f32 %v8398
      %vm8516 = vweird.f32 %v8510
      %vm8517 = vmor %vm8515, %vm8516
      %v8518 = vsel %vm8517, %v8510, %v8514
      %v8519 = vand.u32 2147483647, %v8398
      %vm8520 = vcmp.eq.f32.partialorder %v8519, 8.507059e+37
      %v8521 = vand.u32 %v8398, 2147483648
      %v8522 = vor.u32 1.1754944e-38, %v8521
      %v8523 = vsel %vm8520, %v8522, %v8518
      %v8524 = vmul.f32 1.0, %v8523
      %v8525 = vrcp.pop %v8399
      %v8526 = vmul.f32 %v8399, %v8525
      %v8527 = vsub.f32 1.0, %v8526
      %v8528 = vmul.f32 %v8525, %v8527
      %v8529 = vadd.f32 %v8525, %v8528
      %vm8530 = vweird.f32 %v8399
      %vm8531 = vweird.f32 %v8525
      %vm8532 = vmor %vm8530, %vm8531
      %v8533 = vsel %vm8532, %v8525, %v8529
      %v8534 = vand.u32 2147483647, %v8399
      %vm8535 = vcmp.eq.f32.partialorder %v8534, 8.507059e+37
      %v8536 = vand.u32 %v8399, 2147483648
      %v8537 = vor.u32 1.1754944e-38, %v8536
      %v8538 = vsel %vm8535, %v8537, %v8533
      %v8539 = vmul.f32 1.0, %v8538
      %v8540 = vrcp.pop %v8400
      %v8541 = vmul.f32 %v8400, %v8540
      %v8542 = vsub.f32 1.0, %v8541
      %v8543 = vmul.f32 %v8540, %v8542
      %v8544 = vadd.f32 %v8540, %v8543
      %vm8545 = vweird.f32 %v8400
      %vm8546 = vweird.f32 %v8540
      %vm8547 = vmor %vm8545, %vm8546
      %v8548 = vsel %vm8547, %v8540, %v8544
      %v8549 = vand.u32 2147483647, %v8400
      %vm8550 = vcmp.eq.f32.partialorder %v8549, 8.507059e+37
      %v8551 = vand.u32 %v8400, 2147483648
      %v8552 = vor.u32 1.1754944e-38, %v8551
      %v8553 = vsel %vm8550, %v8552, %v8548
      %v8554 = vmul.f32 1.0, %v8553
      %v8555 = vrcp.pop %v8401
      %v8556 = vmul.f32 %v8401, %v8555
      %v8557 = vsub.f32 1.0, %v8556
      %v8558 = vmul.f32 %v8555, %v8557
      %v8559 = vadd.f32 %v8555, %v8558
      %vm8560 = vweird.f32 %v8401
      %vm8561 = vweird.f32 %v8555
      %vm8562 = vmor %vm8560, %vm8561
      %v8563 = vsel %vm8562, %v8555, %v8559
      %v8564 = vand.u32 2147483647, %v8401
      %vm8565 = vcmp.eq.f32.partialorder %v8564, 8.507059e+37
      %v8566 = vand.u32 %v8401, 2147483648
      %v8567 = vor.u32 1.1754944e-38, %v8566
      %v8568 = vsel %vm8565, %v8567, %v8563
      %v8569 = vmul.f32 1.0, %v8568
      %v8570 = vrcp.pop %v8402
      %v8571 = vmul.f32 %v8402, %v8570
      %v8572 = vsub.f32 1.0, %v8571
      %v8573 = vmul.f32 %v8570, %v8572
      %v8574 = vadd.f32 %v8570, %v8573
      %vm8575 = vweird.f32 %v8402
      %vm8576 = vweird.f32 %v8570
      %vm8577 = vmor %vm8575, %vm8576
      %v8578 = vsel %vm8577, %v8570, %v8574
      %v8579 = vand.u32 2147483647, %v8402
      %vm8580 = vcmp.eq.f32.partialorder %v8579, 8.507059e+37
      %v8581 = vand.u32 %v8402, 2147483648
      %v8582 = vor.u32 1.1754944e-38, %v8581
      %v8583 = vsel %vm8580, %v8582, %v8578
      %v8584 = vmul.f32 1.0, %v8583
      %v8585 = vrcp.pop %v8403
      %v8586 = vmul.f32 %v8403, %v8585
      %v8587 = vsub.f32 1.0, %v8586
      %v8588 = vmul.f32 %v8585, %v8587
      %v8589 = vadd.f32 %v8585, %v8588
      %vm8590 = vweird.f32 %v8403
      %vm8591 = vweird.f32 %v8585
      %vm8592 = vmor %vm8590, %vm8591
      %v8593 = vsel %vm8592, %v8585, %v8589
      %v8594 = vand.u32 2147483647, %v8403
      %vm8595 = vcmp.eq.f32.partialorder %v8594, 8.507059e+37
      %v8596 = vand.u32 %v8403, 2147483648
      %v8597 = vor.u32 1.1754944e-38, %v8596
      %v8598 = vsel %vm8595, %v8597, %v8593
      %v8599 = vmul.f32 1.0, %v8598
      %v8600 = vrcp.pop %v8404
      %v8601 = vmul.f32 %v8404, %v8600
      %v8602 = vsub.f32 1.0, %v8601
      %v8603 = vmul.f32 %v8600, %v8602
      %v8604 = vadd.f32 %v8600, %v8603
      %vm8605 = vweird.f32 %v8404
      %vm8606 = vweird.f32 %v8600
      %vm8607 = vmor %vm8605, %vm8606
      %v8608 = vsel %vm8607, %v8600, %v8604
      %v8609 = vand.u32 2147483647, %v8404
      %vm8610 = vcmp.eq.f32.partialorder %v8609, 8.507059e+37
      %v8611 = vand.u32 %v8404, 2147483648
      %v8612 = vor.u32 1.1754944e-38, %v8611
      %v8613 = vsel %vm8610, %v8612, %v8608
      %v8614 = vmul.f32 1.0, %v8613
      %v8615 = vrcp.pop %v8405
      %v8616 = vmul.f32 %v8405, %v8615
      %v8617 = vsub.f32 1.0, %v8616
      %v8618 = vmul.f32 %v8615, %v8617
      %v8619 = vadd.f32 %v8615, %v8618
      %vm8620 = vweird.f32 %v8405
      %vm8621 = vweird.f32 %v8615
      %vm8622 = vmor %vm8620, %vm8621
      %v8623 = vsel %vm8622, %v8615, %v8619
      %v8624 = vand.u32 2147483647, %v8405
      %vm8625 = vcmp.eq.f32.partialorder %v8624, 8.507059e+37
      %v8626 = vand.u32 %v8405, 2147483648
      %v8627 = vor.u32 1.1754944e-38, %v8626
      %v8628 = vsel %vm8625, %v8627, %v8623
      %v8629 = vmul.f32 1.0, %v8628
      %v8630 = vrcp.pop %v8406
      %v8631 = vmul.f32 %v8406, %v8630
      %v8632 = vsub.f32 1.0, %v8631
      %v8633 = vmul.f32 %v8630, %v8632
      %v8634 = vadd.f32 %v8630, %v8633
      %vm8635 = vweird.f32 %v8406
      %vm8636 = vweird.f32 %v8630
      %vm8637 = vmor %vm8635, %vm8636
      %v8638 = vsel %vm8637, %v8630, %v8634
      %v8639 = vand.u32 2147483647, %v8406
      %vm8640 = vcmp.eq.f32.partialorder %v8639, 8.507059e+37
      %v8641 = vand.u32 %v8406, 2147483648
      %v8642 = vor.u32 1.1754944e-38, %v8641
      %v8643 = vsel %vm8640, %v8642, %v8638
      %v8644 = vmul.f32 1.0, %v8643
      %v8645 = vrcp.pop %v8407
      %v8646 = vmul.f32 %v8407, %v8645
      %v8647 = vsub.f32 1.0, %v8646
      %v8648 = vmul.f32 %v8645, %v8647
      %v8649 = vadd.f32 %v8645, %v8648
      %vm8650 = vweird.f32 %v8407
      %vm8651 = vweird.f32 %v8645
      %vm8652 = vmor %vm8650, %vm8651
      %v8653 = vsel %vm8652, %v8645, %v8649
      %v8654 = vand.u32 2147483647, %v8407
      %vm8655 = vcmp.eq.f32.partialorder %v8654, 8.507059e+37
      %v8656 = vand.u32 %v8407, 2147483648
      %v8657 = vor.u32 1.1754944e-38, %v8656
      %v8658 = vsel %vm8655, %v8657, %v8653
      %v8659 = vmul.f32 1.0, %v8658
      %v8660 = vrcp.pop %v8408
      %v8661 = vmul.f32 %v8408, %v8660
      %v8662 = vsub.f32 1.0, %v8661
      %v8663 = vmul.f32 %v8660, %v8662
      %v8664 = vadd.f32 %v8660, %v8663
      %vm8665 = vweird.f32 %v8408
      %vm8666 = vweird.f32 %v8660
      %vm8667 = vmor %vm8665, %vm8666
      %v8668 = vsel %vm8667, %v8660, %v8664
      %v8669 = vand.u32 2147483647, %v8408
      %vm8670 = vcmp.eq.f32.partialorder %v8669, 8.507059e+37
      %v8671 = vand.u32 %v8408, 2147483648
      %v8672 = vor.u32 1.1754944e-38, %v8671
      %v8673 = vsel %vm8670, %v8672, %v8668
      %v8674 = vmul.f32 1.0, %v8673
      %v8675 = vrcp.pop %v8409
      %v8676 = vmul.f32 %v8409, %v8675
      %v8677 = vsub.f32 1.0, %v8676
      %v8678 = vmul.f32 %v8675, %v8677
      %v8679 = vadd.f32 %v8675, %v8678
      %vm8680 = vweird.f32 %v8409
      %vm8681 = vweird.f32 %v8675
      %vm8682 = vmor %vm8680, %vm8681
      %v8683 = vsel %vm8682, %v8675, %v8679
      %v8684 = vand.u32 2147483647, %v8409
      %vm8685 = vcmp.eq.f32.partialorder %v8684, 8.507059e+37
      %v8686 = vand.u32 %v8409, 2147483648
      %v8687 = vor.u32 1.1754944e-38, %v8686
      %v8688 = vsel %vm8685, %v8687, %v8683
      %v8689 = vmul.f32 1.0, %v8688
      %v8690 = vrcp.pop %v8410
      %v8691 = vmul.f32 %v8410, %v8690
      %v8692 = vsub.f32 1.0, %v8691
      %v8693 = vmul.f32 %v8690, %v8692
      %v8694 = vadd.f32 %v8690, %v8693
      %vm8695 = vweird.f32 %v8410
      %vm8696 = vweird.f32 %v8690
      %vm8697 = vmor %vm8695, %vm8696
      %v8698 = vsel %vm8697, %v8690, %v8694
      %v8699 = vand.u32 2147483647, %v8410
      %vm8700 = vcmp.eq.f32.partialorder %v8699, 8.507059e+37
      %v8701 = vand.u32 %v8410, 2147483648
      %v8702 = vor.u32 1.1754944e-38, %v8701
      %v8703 = vsel %vm8700, %v8702, %v8698
      %v8704 = vmul.f32 1.0, %v8703
      %v8705 = vrcp.pop %v8411
      %v8706 = vmul.f32 %v8411, %v8705
      %v8707 = vsub.f32 1.0, %v8706
      %v8708 = vmul.f32 %v8705, %v8707
      %v8709 = vadd.f32 %v8705, %v8708
      %vm8710 = vweird.f32 %v8411
      %vm8711 = vweird.f32 %v8705
      %vm8712 = vmor %vm8710, %vm8711
      %v8713 = vsel %vm8712, %v8705, %v8709
      %v8714 = vand.u32 2147483647, %v8411
      %vm8715 = vcmp.eq.f32.partialorder %v8714, 8.507059e+37
      %v8716 = vand.u32 %v8411, 2147483648
      %v8717 = vor.u32 1.1754944e-38, %v8716
      %v8718 = vsel %vm8715, %v8717, %v8713
      %v8719 = vmul.f32 1.0, %v8718
      %v8720 = vrcp.pop %v8412
      %v8721 = vmul.f32 %v8412, %v8720
      %v8722 = vsub.f32 1.0, %v8721
      %v8723 = vmul.f32 %v8720, %v8722
      %v8724 = vadd.f32 %v8720, %v8723
      %vm8725 = vweird.f32 %v8412
      %vm8726 = vweird.f32 %v8720
      %vm8727 = vmor %vm8725, %vm8726
      %v8728 = vsel %vm8727, %v8720, %v8724
      %v8729 = vand.u32 2147483647, %v8412
      %vm8730 = vcmp.eq.f32.partialorder %v8729, 8.507059e+37
      %v8731 = vand.u32 %v8412, 2147483648
      %v8732 = vor.u32 1.1754944e-38, %v8731
      %v8733 = vsel %vm8730, %v8732, %v8728
      %v8734 = vmul.f32 1.0, %v8733
      %v8735 = vrcp.pop %v8413
      %v8736 = vmul.f32 %v8413, %v8735
      %v8737 = vsub.f32 1.0, %v8736
      %v8738 = vmul.f32 %v8735, %v8737
      %v8739 = vadd.f32 %v8735, %v8738
      %vm8740 = vweird.f32 %v8413
      %vm8741 = vweird.f32 %v8735
      %vm8742 = vmor %vm8740, %vm8741
      %v8743 = vsel %vm8742, %v8735, %v8739
      %v8744 = vand.u32 2147483647, %v8413
      %vm8745 = vcmp.eq.f32.partialorder %v8744, 8.507059e+37
      %v8746 = vand.u32 %v8413, 2147483648
      %v8747 = vor.u32 1.1754944e-38, %v8746
      %v8748 = vsel %vm8745, %v8747, %v8743
      %v8749 = vmul.f32 1.0, %v8748
      %v8750 = vrcp.pop %v8414
      %v8751 = vmul.f32 %v8414, %v8750
      %v8752 = vsub.f32 1.0, %v8751
      %v8753 = vmul.f32 %v8750, %v8752
      %v8754 = vadd.f32 %v8750, %v8753
      %vm8755 = vweird.f32 %v8414
      %vm8756 = vweird.f32 %v8750
      %vm8757 = vmor %vm8755, %vm8756
      %v8758 = vsel %vm8757, %v8750, %v8754
      %v8759 = vand.u32 2147483647, %v8414
      %vm8760 = vcmp.eq.f32.partialorder %v8759, 8.507059e+37
      %v8761 = vand.u32 %v8414, 2147483648
      %v8762 = vor.u32 1.1754944e-38, %v8761
      %v8763 = vsel %vm8760, %v8762, %v8758
      %v8764 = vmul.f32 1.0, %v8763
      %v8765 = vrcp.pop %v8415
      %v8766 = vmul.f32 %v8415, %v8765
      %v8767 = vsub.f32 1.0, %v8766
      %v8768 = vmul.f32 %v8765, %v8767
      %v8769 = vadd.f32 %v8765, %v8768
      %vm8770 = vweird.f32 %v8415
      %vm8771 = vweird.f32 %v8765
      %vm8772 = vmor %vm8770, %vm8771
      %v8773 = vsel %vm8772, %v8765, %v8769
      %v8774 = vand.u32 2147483647, %v8415
      %vm8775 = vcmp.eq.f32.partialorder %v8774, 8.507059e+37
      %v8776 = vand.u32 %v8415, 2147483648
      %v8777 = vor.u32 1.1754944e-38, %v8776
      %v8778 = vsel %vm8775, %v8777, %v8773
      %v8779 = vmul.f32 1.0, %v8778
      %v8780 = vrcp.pop %v8416
      %v8781 = vmul.f32 %v8416, %v8780
      %v8782 = vsub.f32 1.0, %v8781
      %v8783 = vmul.f32 %v8780, %v8782
      %v8784 = vadd.f32 %v8780, %v8783
      %vm8785 = vweird.f32 %v8416
      %vm8786 = vweird.f32 %v8780
      %vm8787 = vmor %vm8785, %vm8786
      %v8788 = vsel %vm8787, %v8780, %v8784
      %v8789 = vand.u32 2147483647, %v8416
      %vm8790 = vcmp.eq.f32.partialorder %v8789, 8.507059e+37
      %v8791 = vand.u32 %v8416, 2147483648
      %v8792 = vor.u32 1.1754944e-38, %v8791
      %v8793 = vsel %vm8790, %v8792, %v8788
      %v8794 = vmul.f32 1.0, %v8793
      %v8795 = vrcp.pop %v8417
      %v8796 = vmul.f32 %v8417, %v8795
      %v8797 = vsub.f32 1.0, %v8796
      %v8798 = vmul.f32 %v8795, %v8797
      %v8799 = vadd.f32 %v8795, %v8798
      %vm8800 = vweird.f32 %v8417
      %vm8801 = vweird.f32 %v8795
      %vm8802 = vmor %vm8800, %vm8801
      %v8803 = vsel %vm8802, %v8795, %v8799
      %v8804 = vand.u32 2147483647, %v8417
      %vm8805 = vcmp.eq.f32.partialorder %v8804, 8.507059e+37
      %v8806 = vand.u32 %v8417, 2147483648
      %v8807 = vor.u32 1.1754944e-38, %v8806
      %v8808 = vsel %vm8805, %v8807, %v8803
      %v8809 = vmul.f32 1.0, %v8808
      %v8810 = vrcp.pop %v8418
      %v8811 = vmul.f32 %v8418, %v8810
      %v8812 = vsub.f32 1.0, %v8811
      %v8813 = vmul.f32 %v8810, %v8812
      %v8814 = vadd.f32 %v8810, %v8813
      %vm8815 = vweird.f32 %v8418
      %vm8816 = vweird.f32 %v8810
      %vm8817 = vmor %vm8815, %vm8816
      %v8818 = vsel %vm8817, %v8810, %v8814
      %v8819 = vand.u32 2147483647, %v8418
      %vm8820 = vcmp.eq.f32.partialorder %v8819, 8.507059e+37
      %v8821 = vand.u32 %v8418, 2147483648
      %v8822 = vor.u32 1.1754944e-38, %v8821
      %v8823 = vsel %vm8820, %v8822, %v8818
      %v8824 = vmul.f32 1.0, %v8823
      %v8825 = vrcp.pop %v8419
      %v8826 = vmul.f32 %v8419, %v8825
      %v8827 = vsub.f32 1.0, %v8826
      %v8828 = vmul.f32 %v8825, %v8827
      %v8829 = vadd.f32 %v8825, %v8828
      %vm8830 = vweird.f32 %v8419
      %vm8831 = vweird.f32 %v8825
      %vm8832 = vmor %vm8830, %vm8831
      %v8833 = vsel %vm8832, %v8825, %v8829
      %v8834 = vand.u32 2147483647, %v8419
      %vm8835 = vcmp.eq.f32.partialorder %v8834, 8.507059e+37
      %v8836 = vand.u32 %v8419, 2147483648
      %v8837 = vor.u32 1.1754944e-38, %v8836
      %v8838 = vsel %vm8835, %v8837, %v8833
      %v8839 = vmul.f32 1.0, %v8838
      %v8840 = vrcp.pop %v8420
      %v8841 = vmul.f32 %v8420, %v8840
      %v8842 = vsub.f32 1.0, %v8841
      %v8843 = vmul.f32 %v8840, %v8842
      %v8844 = vadd.f32 %v8840, %v8843
      %vm8845 = vweird.f32 %v8420
      %vm8846 = vweird.f32 %v8840
      %vm8847 = vmor %vm8845, %vm8846
      %v8848 = vsel %vm8847, %v8840, %v8844
      %v8849 = vand.u32 2147483647, %v8420
      %vm8850 = vcmp.eq.f32.partialorder %v8849, 8.507059e+37
      %v8851 = vand.u32 %v8420, 2147483648
      %v8852 = vor.u32 1.1754944e-38, %v8851
      %v8853 = vsel %vm8850, %v8852, %v8848
      %v8854 = vmul.f32 1.0, %v8853
      %v8855 = vrcp.pop %v8421
      %v8856 = vmul.f32 %v8421, %v8855
      %v8857 = vsub.f32 1.0, %v8856
      %v8858 = vmul.f32 %v8855, %v8857
      %v8859 = vadd.f32 %v8855, %v8858
      %vm8860 = vweird.f32 %v8421
      %vm8861 = vweird.f32 %v8855
      %vm8862 = vmor %vm8860, %vm8861
      %v8863 = vsel %vm8862, %v8855, %v8859
      %v8864 = vand.u32 2147483647, %v8421
      %vm8865 = vcmp.eq.f32.partialorder %v8864, 8.507059e+37
      %v8866 = vand.u32 %v8421, 2147483648
      %v8867 = vor.u32 1.1754944e-38, %v8866
      %v8868 = vsel %vm8865, %v8867, %v8863
      %v8869 = vmul.f32 1.0, %v8868
      %v8870 = vrcp.pop %v8422
      %v8871 = vmul.f32 %v8422, %v8870
      %v8872 = vsub.f32 1.0, %v8871
      %v8873 = vmul.f32 %v8870, %v8872
      %v8874 = vadd.f32 %v8870, %v8873
      %vm8875 = vweird.f32 %v8422
      %vm8876 = vweird.f32 %v8870
      %vm8877 = vmor %vm8875, %vm8876
      %v8878 = vsel %vm8877, %v8870, %v8874
      %v8879 = vand.u32 2147483647, %v8422
      %vm8880 = vcmp.eq.f32.partialorder %v8879, 8.507059e+37
      %v8881 = vand.u32 %v8422, 2147483648
      %v8882 = vor.u32 1.1754944e-38, %v8881
      %v8883 = vsel %vm8880, %v8882, %v8878
      %v8884 = vmul.f32 1.0, %v8883
      %v8885 = vrcp.pop %v8423
      %v8886 = vmul.f32 %v8423, %v8885
      %v8887 = vsub.f32 1.0, %v8886
      %v8888 = vmul.f32 %v8885, %v8887
      %v8889 = vadd.f32 %v8885, %v8888
      %vm8890 = vweird.f32 %v8423
      %vm8891 = vweird.f32 %v8885
      %vm8892 = vmor %vm8890, %vm8891
      %v8893 = vsel %vm8892, %v8885, %v8889
      %v8894 = vand.u32 2147483647, %v8423
      %vm8895 = vcmp.eq.f32.partialorder %v8894, 8.507059e+37
      %v8896 = vand.u32 %v8423, 2147483648
      %v8897 = vor.u32 1.1754944e-38, %v8896
      %v8898 = vsel %vm8895, %v8897, %v8893
      %v8899 = vmul.f32 1.0, %v8898
      %v8900 = vrcp.pop %v8424
      %v8901 = vmul.f32 %v8424, %v8900
      %v8902 = vsub.f32 1.0, %v8901
      %v8903 = vmul.f32 %v8900, %v8902
      %v8904 = vadd.f32 %v8900, %v8903
      %vm8905 = vweird.f32 %v8424
      %vm8906 = vweird.f32 %v8900
      %vm8907 = vmor %vm8905, %vm8906
      %v8908 = vsel %vm8907, %v8900, %v8904
      %v8909 = vand.u32 2147483647, %v8424
      %vm8910 = vcmp.eq.f32.partialorder %v8909, 8.507059e+37
      %v8911 = vand.u32 %v8424, 2147483648
      %v8912 = vor.u32 1.1754944e-38, %v8911
      %v8913 = vsel %vm8910, %v8912, %v8908
      %v8914 = vmul.f32 1.0, %v8913
      %v8915 = vrcp.pop %v8425
      %v8916 = vmul.f32 %v8425, %v8915
      %v8917 = vsub.f32 1.0, %v8916
      %v8918 = vmul.f32 %v8915, %v8917
      %v8919 = vadd.f32 %v8915, %v8918
      %vm8920 = vweird.f32 %v8425
      %vm8921 = vweird.f32 %v8915
      %vm8922 = vmor %vm8920, %vm8921
      %v8923 = vsel %vm8922, %v8915, %v8919
      %v8924 = vand.u32 2147483647, %v8425
      %vm8925 = vcmp.eq.f32.partialorder %v8924, 8.507059e+37
      %v8926 = vand.u32 %v8425, 2147483648
      %v8927 = vor.u32 1.1754944e-38, %v8926
      %v8928 = vsel %vm8925, %v8927, %v8923
      %v8929 = vmul.f32 1.0, %v8928
      %v8930 = vrcp.pop %v8426
      %v8931 = vmul.f32 %v8426, %v8930
      %v8932 = vsub.f32 1.0, %v8931
      %v8933 = vmul.f32 %v8930, %v8932
      %v8934 = vadd.f32 %v8930, %v8933
      %vm8935 = vweird.f32 %v8426
      %vm8936 = vweird.f32 %v8930
      %vm8937 = vmor %vm8935, %vm8936
      %v8938 = vsel %vm8937, %v8930, %v8934
      %v8939 = vand.u32 2147483647, %v8426
      %vm8940 = vcmp.eq.f32.partialorder %v8939, 8.507059e+37
      %v8941 = vand.u32 %v8426, 2147483648
      %v8942 = vor.u32 1.1754944e-38, %v8941
      %v8943 = vsel %vm8940, %v8942, %v8938
      %v8944 = vmul.f32 1.0, %v8943
      %v8945 = vrcp.pop %v8427
      %v8946 = vmul.f32 %v8427, %v8945
      %v8947 = vsub.f32 1.0, %v8946
      %v8948 = vmul.f32 %v8945, %v8947
      %v8949 = vadd.f32 %v8945, %v8948
      %vm8950 = vweird.f32 %v8427
      %vm8951 = vweird.f32 %v8945
      %vm8952 = vmor %vm8950, %vm8951
      %v8953 = vsel %vm8952, %v8945, %v8949
      %v8954 = vand.u32 2147483647, %v8427
      %vm8955 = vcmp.eq.f32.partialorder %v8954, 8.507059e+37
      %v8956 = vand.u32 %v8427, 2147483648
      %v8957 = vor.u32 1.1754944e-38, %v8956
      %v8958 = vsel %vm8955, %v8957, %v8953
      %v8959 = vmul.f32 1.0, %v8958
      %v8960 = vrcp.pop %v8428
      %v8961 = vmul.f32 %v8428, %v8960
      %v8962 = vsub.f32 1.0, %v8961
      %v8963 = vmul.f32 %v8960, %v8962
      %v8964 = vadd.f32 %v8960, %v8963
      %vm8965 = vweird.f32 %v8428
      %vm8966 = vweird.f32 %v8960
      %vm8967 = vmor %vm8965, %vm8966
      %v8968 = vsel %vm8967, %v8960, %v8964
      %v8969 = vand.u32 2147483647, %v8428
      %vm8970 = vcmp.eq.f32.partialorder %v8969, 8.507059e+37
      %v8971 = vand.u32 %v8428, 2147483648
      %v8972 = vor.u32 1.1754944e-38, %v8971
      %v8973 = vsel %vm8970, %v8972, %v8968
      %v8974 = vmul.f32 1.0, %v8973
      %v8975 = vrcp.pop %v8429
      %v8976 = vmul.f32 %v8429, %v8975
      %v8977 = vsub.f32 1.0, %v8976
      %v8978 = vmul.f32 %v8975, %v8977
      %v8979 = vadd.f32 %v8975, %v8978
      %vm8980 = vweird.f32 %v8429
      %vm8981 = vweird.f32 %v8975
      %vm8982 = vmor %vm8980, %vm8981
      %v8983 = vsel %vm8982, %v8975, %v8979
      %v8984 = vand.u32 2147483647, %v8429
      %vm8985 = vcmp.eq.f32.partialorder %v8984, 8.507059e+37
      %v8986 = vand.u32 %v8429, 2147483648
      %v8987 = vor.u32 1.1754944e-38, %v8986
      %v8988 = vsel %vm8985, %v8987, %v8983
      %v8989 = vmul.f32 1.0, %v8988
      %v8990 = vrcp.pop %v8430
      %v8991 = vmul.f32 %v8430, %v8990
      %v8992 = vsub.f32 1.0, %v8991
      %v8993 = vmul.f32 %v8990, %v8992
      %v8994 = vadd.f32 %v8990, %v8993
      %vm8995 = vweird.f32 %v8430
      %vm8996 = vweird.f32 %v8990
      %vm8997 = vmor %vm8995, %vm8996
      %v8998 = vsel %vm8997, %v8990, %v8994
      %v8999 = vand.u32 2147483647, %v8430
      %vm9000 = vcmp.eq.f32.partialorder %v8999, 8.507059e+37
      %v9001 = vand.u32 %v8430, 2147483648
      %v9002 = vor.u32 1.1754944e-38, %v9001
      %v9003 = vsel %vm9000, %v9002, %v8998
      %v9004 = vmul.f32 1.0, %v9003
      %v9005 = vrcp.pop %v8431
      %v9006 = vmul.f32 %v8431, %v9005
      %v9007 = vsub.f32 1.0, %v9006
      %v9008 = vmul.f32 %v9005, %v9007
      %v9009 = vadd.f32 %v9005, %v9008
      %vm9010 = vweird.f32 %v8431
      %vm9011 = vweird.f32 %v9005
      %vm9012 = vmor %vm9010, %vm9011
      %v9013 = vsel %vm9012, %v9005, %v9009
      %v9014 = vand.u32 2147483647, %v8431
      %vm9015 = vcmp.eq.f32.partialorder %v9014, 8.507059e+37
      %v9016 = vand.u32 %v8431, 2147483648
      %v9017 = vor.u32 1.1754944e-38, %v9016
      %v9018 = vsel %vm9015, %v9017, %v9013
      %v9019 = vmul.f32 1.0, %v9018
      %v9020 = vrcp.pop %v8432
      %v9021 = vmul.f32 %v8432, %v9020
      %v9022 = vsub.f32 1.0, %v9021
      %v9023 = vmul.f32 %v9020, %v9022
      %v9024 = vadd.f32 %v9020, %v9023
      %vm9025 = vweird.f32 %v8432
      %vm9026 = vweird.f32 %v9020
      %vm9027 = vmor %vm9025, %vm9026
      %v9028 = vsel %vm9027, %v9020, %v9024
      %v9029 = vand.u32 2147483647, %v8432
      %vm9030 = vcmp.eq.f32.partialorder %v9029, 8.507059e+37
      %v9031 = vand.u32 %v8432, 2147483648
      %v9032 = vor.u32 1.1754944e-38, %v9031
      %v9033 = vsel %vm9030, %v9032, %v9028
      %v9034 = vmul.f32 1.0, %v9033
      %v9035 = vrcp.pop %v8433
      %v9036 = vmul.f32 %v8433, %v9035
      %v9037 = vsub.f32 1.0, %v9036
      %v9038 = vmul.f32 %v9035, %v9037
      %v9039 = vadd.f32 %v9035, %v9038
      %vm9040 = vweird.f32 %v8433
      %vm9041 = vweird.f32 %v9035
      %vm9042 = vmor %vm9040, %vm9041
      %v9043 = vsel %vm9042, %v9035, %v9039
      %v9044 = vand.u32 2147483647, %v8433
      %vm9045 = vcmp.eq.f32.partialorder %v9044, 8.507059e+37
      %v9046 = vand.u32 %v8433, 2147483648
      %v9047 = vor.u32 1.1754944e-38, %v9046
      %v9048 = vsel %vm9045, %v9047, %v9043
      %v9049 = vmul.f32 1.0, %v9048
      %v9050 = vrcp.pop %v8434
      %v9051 = vmul.f32 %v8434, %v9050
      %v9052 = vsub.f32 1.0, %v9051
      %v9053 = vmul.f32 %v9050, %v9052
      %v9054 = vadd.f32 %v9050, %v9053
      %vm9055 = vweird.f32 %v8434
      %vm9056 = vweird.f32 %v9050
      %vm9057 = vmor %vm9055, %vm9056
      %v9058 = vsel %vm9057, %v9050, %v9054
      %v9059 = vand.u32 2147483647, %v8434
      %vm9060 = vcmp.eq.f32.partialorder %v9059, 8.507059e+37
      %v9061 = vand.u32 %v8434, 2147483648
      %v9062 = vor.u32 1.1754944e-38, %v9061
      %v9063 = vsel %vm9060, %v9062, %v9058
      %v9064 = vmul.f32 1.0, %v9063
      %9065 = vst [vmem:[#allocation4] sm:$0xff] %v8449
      %9066 = vst [vmem:[#allocation4 + $0x8] sm:$0xff] %v8464
      %9067 = vst.msk [vmem:[#allocation4 + $0x10] sm:$0xff] %vm884, %v8479
      %9068 = vst [vmem:[#allocation4 + $0x18] sm:$0xff] %v8494
      %9069 = vst [vmem:[#allocation4 + $0x20] sm:$0xff] %v8509
      %9070 = vst.msk [vmem:[#allocation4 + $0x28] sm:$0xff] %vm884, %v8524
      %9071 = vst [vmem:[#allocation4 + $0x30] sm:$0xff] %v8539
      %9072 = vst [vmem:[#allocation4 + $0x38] sm:$0xff] %v8554
      %9073 = vst.msk [vmem:[#allocation4 + $0x40] sm:$0xff] %vm884, %v8569
      %9074 = vst [vmem:[#allocation4 + $0x48] sm:$0xff] %v8584
      %9075 = vst [vmem:[#allocation4 + $0x50] sm:$0xff] %v8599
      %9076 = vst.msk [vmem:[#allocation4 + $0x58] sm:$0xff] %vm884, %v8614
      %9077 = vst [vmem:[#allocation4 + $0x60] sm:$0xff] %v8629
      %9078 = vst [vmem:[#allocation4 + $0x68] sm:$0xff] %v8644
      %9079 = vst.msk [vmem:[#allocation4 + $0x70] sm:$0xff] %vm884, %v8659
      %9080 = vst [vmem:[#allocation4 + $0x78] sm:$0xff] %v8674
      %9081 = vst [vmem:[#allocation4 + $0x80] sm:$0xff] %v8689
      %9082 = vst.msk [vmem:[#allocation4 + $0x88] sm:$0xff] %vm884, %v8704
      %9083 = vst [vmem:[#allocation4 + $0x90] sm:$0xff] %v8719
      %9084 = vst [vmem:[#allocation4 + $0x98] sm:$0xff] %v8734
      %9085 = vst.msk [vmem:[#allocation4 + $0xa0] sm:$0xff] %vm884, %v8749
      %9086 = vst [vmem:[#allocation4 + $0xa8] sm:$0xff] %v8764
      %9087 = vst [vmem:[#allocation4 + $0xb0] sm:$0xff] %v8779
      %9088 = vst.msk [vmem:[#allocation4 + $0xb8] sm:$0xff] %vm884, %v8794
      %9089 = vst [vmem:[#allocation4 + $0xc0] sm:$0xff] %v8809
      %9090 = vst [vmem:[#allocation4 + $0xc8] sm:$0xff] %v8824
      %9091 = vst.msk [vmem:[#allocation4 + $0xd0] sm:$0xff] %vm884, %v8839
      %9092 = vst [vmem:[#allocation4 + $0xd8] sm:$0xff] %v8854
      %9093 = vst [vmem:[#allocation4 + $0xe0] sm:$0xff] %v8869
      %9094 = vst.msk [vmem:[#allocation4 + $0xe8] sm:$0xff] %vm884, %v8884
      %9095 = vst [vmem:[#allocation4 + $0xf0] sm:$0xff] %v8899
      %9096 = vst [vmem:[#allocation4 + $0xf8] sm:$0xff] %v8914
      %9097 = vst.msk [vmem:[#allocation4 + $0x100] sm:$0xff] %vm884, %v8929
      %9098 = vst [vmem:[#allocation4 + $0x108] sm:$0xff] %v8944
      %9099 = vst [vmem:[#allocation4 + $0x110] sm:$0xff] %v8959
      %9100 = vst.msk [vmem:[#allocation4 + $0x118] sm:$0xff] %vm884, %v8974
      %9101 = vst [vmem:[#allocation4 + $0x120] sm:$0xff] %v8989
      %9102 = vst [vmem:[#allocation4 + $0x128] sm:$0xff] %v9004
      %9103 = vst.msk [vmem:[#allocation4 + $0x130] sm:$0xff] %vm884, %v9019
      %9104 = vst [vmem:[#allocation4 + $0x138] sm:$0x3f] %v9034
      %9105 = vst [vmem:[#allocation4 + $0x140] sm:$0x3f] %v9049
      %9106 = vst.msk [vmem:[#allocation4 + $0x148] sm:$0x3f] %vm960, %v9064
      %v9107 = vld [vmem:[#allocation4] sm:$0xff]
      %v9108 = vld [vmem:[#allocation4 + $0x8] sm:$0xff]
      %v9109 = vld [vmem:[#allocation4 + $0x10] sm:$0xff]
      %v9110 = vld [vmem:[#allocation4 + $0x18] sm:$0xff]
      %v9111 = vld [vmem:[#allocation4 + $0x20] sm:$0xff]
      %v9112 = vld [vmem:[#allocation4 + $0x28] sm:$0xff]
      %v9113 = vld [vmem:[#allocation4 + $0x30] sm:$0xff]
      %v9114 = vld [vmem:[#allocation4 + $0x38] sm:$0xff]
      %v9115 = vld [vmem:[#allocation4 + $0x40] sm:$0xff]
      %v9116 = vld [vmem:[#allocation4 + $0x48] sm:$0xff]
      %v9117 = vld [vmem:[#allocation4 + $0x50] sm:$0xff]
      %v9118 = vld [vmem:[#allocation4 + $0x58] sm:$0xff]
      %v9119 = vld [vmem:[#allocation4 + $0x60] sm:$0xff]
      %v9120 = vld [vmem:[#allocation4 + $0x68] sm:$0xff]
      %v9121 = vld [vmem:[#allocation4 + $0x70] sm:$0xff]
      %v9122 = vld [vmem:[#allocation4 + $0x78] sm:$0xff]
      %v9123 = vld [vmem:[#allocation4 + $0x80] sm:$0xff]
      %v9124 = vld [vmem:[#allocation4 + $0x88] sm:$0xff]
      %v9125 = vld [vmem:[#allocation4 + $0x90] sm:$0xff]
      %v9126 = vld [vmem:[#allocation4 + $0x98] sm:$0xff]
      %v9127 = vld [vmem:[#allocation4 + $0xa0] sm:$0xff]
      %v9128 = vld [vmem:[#allocation4 + $0xa8] sm:$0xff]
      %v9129 = vld [vmem:[#allocation4 + $0xb0] sm:$0xff]
      %v9130 = vld [vmem:[#allocation4 + $0xb8] sm:$0xff]
      %v9131 = vld [vmem:[#allocation4 + $0xc0] sm:$0xff]
      %v9132 = vld [vmem:[#allocation4 + $0xc8] sm:$0xff]
      %v9133 = vld [vmem:[#allocation4 + $0xd0] sm:$0xff]
      %v9134 = vld [vmem:[#allocation4 + $0xd8] sm:$0xff]
      %v9135 = vld [vmem:[#allocation4 + $0xe0] sm:$0xff]
      %v9136 = vld [vmem:[#allocation4 + $0xe8] sm:$0xff]
      %v9137 = vld [vmem:[#allocation4 + $0xf0] sm:$0xff]
      %v9138 = vld [vmem:[#allocation4 + $0xf8] sm:$0xff]
      %v9139 = vld [vmem:[#allocation4 + $0x100] sm:$0xff]
      %v9140 = vld [vmem:[#allocation4 + $0x108] sm:$0xff]
      %v9141 = vld [vmem:[#allocation4 + $0x110] sm:$0xff]
      %v9142 = vld [vmem:[#allocation4 + $0x118] sm:$0xff]
      %v9143 = vld [vmem:[#allocation4 + $0x120] sm:$0xff]
      %v9144 = vld [vmem:[#allocation4 + $0x128] sm:$0xff]
      %v9145 = vld [vmem:[#allocation4 + $0x130] sm:$0xff]
      %v9146 = vld [vmem:[#allocation4 + $0x138] sm:$0x1f]
      %v9147 = vld [vmem:[#allocation4 + $0x140] sm:$0x1f]
      %v9148 = vld [vmem:[#allocation4 + $0x148] sm:$0x1f]
      %v9149 = vld [vmem:[#allocation4] sm:$0xfe]
      %v9150 = vld [vmem:[#allocation4 + $0x8] sm:$0xfe]
      %v9151 = vld [vmem:[#allocation4 + $0x10] sm:$0xfe]
      %v9152 = vld [vmem:[#allocation4 + $0x138] sm:$0x3f]
      %v9153 = vld [vmem:[#allocation4 + $0x140] sm:$0x3f]
      %v9154 = vld [vmem:[#allocation4 + $0x148] sm:$0x3f]
      %v9197 = vrot.slane %v9149, 1
      %v9198 = vrot.slane %v9110, 1
      %v9199 = vsel %vm4324, %v9197, %v9198
      %v9200 = vrot.slane %v9150, 1
      %v9201 = vrot.slane %v9111, 1
      %v9202 = vsel %vm4324, %v9200, %v9201
      %v9203 = vrot.slane %v9151, 1
      %v9204 = vrot.slane %v9112, 1
      %v9205 = vsel %vm4324, %v9203, %v9204
      %v9206 = vrot.slane %v9113, 1
      %v9207 = vsel %vm4324, %v9198, %v9206
      %v9208 = vrot.slane %v9114, 1
      %v9209 = vsel %vm4324, %v9201, %v9208
      %v9210 = vrot.slane %v9115, 1
      %v9211 = vsel %vm4324, %v9204, %v9210
      %v9212 = vrot.slane %v9116, 1
      %v9213 = vsel %vm4324, %v9206, %v9212
      %v9214 = vrot.slane %v9117, 1
      %v9215 = vsel %vm4324, %v9208, %v9214
      %v9216 = vrot.slane %v9118, 1
      %v9217 = vsel %vm4324, %v9210, %v9216
      %v9218 = vrot.slane %v9119, 1
      %v9219 = vsel %vm4324, %v9212, %v9218
      %v9220 = vrot.slane %v9120, 1
      %v9221 = vsel %vm4324, %v9214, %v9220
      %v9222 = vrot.slane %v9121, 1
      %v9223 = vsel %vm4324, %v9216, %v9222
      %v9224 = vrot.slane %v9122, 1
      %v9225 = vsel %vm4324, %v9218, %v9224
      %v9226 = vrot.slane %v9123, 1
      %v9227 = vsel %vm4324, %v9220, %v9226
      %v9228 = vrot.slane %v9124, 1
      %v9229 = vsel %vm4324, %v9222, %v9228
      %v9230 = vrot.slane %v9125, 1
      %v9231 = vsel %vm4324, %v9224, %v9230
      %v9232 = vrot.slane %v9126, 1
      %v9233 = vsel %vm4324, %v9226, %v9232
      %v9234 = vrot.slane %v9127, 1
      %v9235 = vsel %vm4324, %v9228, %v9234
      %v9236 = vrot.slane %v9128, 1
      %v9237 = vsel %vm4324, %v9230, %v9236
      %v9238 = vrot.slane %v9129, 1
      %v9239 = vsel %vm4324, %v9232, %v9238
      %v9240 = vrot.slane %v9130, 1
      %v9241 = vsel %vm4324, %v9234, %v9240
      %v9242 = vrot.slane %v9131, 1
      %v9243 = vsel %vm4324, %v9236, %v9242
      %v9244 = vrot.slane %v9132, 1
      %v9245 = vsel %vm4324, %v9238, %v9244
      %v9246 = vrot.slane %v9133, 1
      %v9247 = vsel %vm4324, %v9240, %v9246
      %v9248 = vrot.slane %v9134, 1
      %v9249 = vsel %vm4324, %v9242, %v9248
      %v9250 = vrot.slane %v9135, 1
      %v9251 = vsel %vm4324, %v9244, %v9250
      %v9252 = vrot.slane %v9136, 1
      %v9253 = vsel %vm4324, %v9246, %v9252
      %v9254 = vrot.slane %v9137, 1
      %v9255 = vsel %vm4324, %v9248, %v9254
      %v9256 = vrot.slane %v9138, 1
      %v9257 = vsel %vm4324, %v9250, %v9256
      %v9258 = vrot.slane %v9139, 1
      %v9259 = vsel %vm4324, %v9252, %v9258
      %v9260 = vrot.slane %v9140, 1
      %v9261 = vsel %vm4324, %v9254, %v9260
      %v9262 = vrot.slane %v9141, 1
      %v9263 = vsel %vm4324, %v9256, %v9262
      %v9264 = vrot.slane %v9142, 1
      %v9265 = vsel %vm4324, %v9258, %v9264
      %v9266 = vrot.slane %v9143, 1
      %v9267 = vsel %vm4324, %v9260, %v9266
      %v9268 = vrot.slane %v9144, 1
      %v9269 = vsel %vm4324, %v9262, %v9268
      %v9270 = vrot.slane %v9145, 1
      %v9271 = vsel %vm4324, %v9264, %v9270
      %v9272 = vrot.slane %v9152, 1
      %v9273 = vsel %vm4324, %v9266, %v9272
      %v9274 = vrot.slane %v9153, 1
      %v9275 = vsel %vm4324, %v9268, %v9274
      %v9276 = vrot.slane %v9154, 1
      %v9277 = vsel %vm4324, %v9270, %v9276
      %v9320 = vmax.f32 %v9107, %v9199
      %v9321 = vmax.f32 %v9108, %v9202
      %v9322 = vmax.f32 %v9109, %v9205
      %v9323 = vmax.f32 %v9110, %v9207
      %v9324 = vmax.f32 %v9111, %v9209
      %v9325 = vmax.f32 %v9112, %v9211
      %v9326 = vmax.f32 %v9113, %v9213
      %v9327 = vmax.f32 %v9114, %v9215
      %v9328 = vmax.f32 %v9115, %v9217
      %v9329 = vmax.f32 %v9116, %v9219
      %v9330 = vmax.f32 %v9117, %v9221
      %v9331 = vmax.f32 %v9118, %v9223
      %v9332 = vmax.f32 %v9119, %v9225
      %v9333 = vmax.f32 %v9120, %v9227
      %v9334 = vmax.f32 %v9121, %v9229
      %v9335 = vmax.f32 %v9122, %v9231
      %v9336 = vmax.f32 %v9123, %v9233
      %v9337 = vmax.f32 %v9124, %v9235
      %v9338 = vmax.f32 %v9125, %v9237
      %v9339 = vmax.f32 %v9126, %v9239
      %v9340 = vmax.f32 %v9127, %v9241
      %v9341 = vmax.f32 %v9128, %v9243
      %v9342 = vmax.f32 %v9129, %v9245
      %v9343 = vmax.f32 %v9130, %v9247
      %v9344 = vmax.f32 %v9131, %v9249
      %v9345 = vmax.f32 %v9132, %v9251
      %v9346 = vmax.f32 %v9133, %v9253
      %v9347 = vmax.f32 %v9134, %v9255
      %v9348 = vmax.f32 %v9135, %v9257
      %v9349 = vmax.f32 %v9136, %v9259
      %v9350 = vmax.f32 %v9137, %v9261
      %v9351 = vmax.f32 %v9138, %v9263
      %v9352 = vmax.f32 %v9139, %v9265
      %v9353 = vmax.f32 %v9140, %v9267
      %v9354 = vmax.f32 %v9141, %v9269
      %v9355 = vmax.f32 %v9142, %v9271
      %v9356 = vmax.f32 %v9143, %v9273
      %v9357 = vmax.f32 %v9144, %v9275
      %v9358 = vmax.f32 %v9145, %v9277
      %v9359 = vmax.f32 %v9146, %v9272
      %v9360 = vmax.f32 %v9147, %v9274
      %v9361 = vmax.f32 %v9148, %v9276
      %9404 = vrot.lane.b32.xlu0 %v9320, 96
      %v9405 = vpop.permute.xlu0 %9404
      %9406 = vrot.lane.b32.xlu0 %v9321, 96
      %v9407 = vpop.permute.xlu0 %9406
      %9408 = vrot.lane.b32.xlu0 %v9322, 96
      %v9409 = vpop.permute.xlu0 %9408
      %9410 = vrot.lane.b32.xlu0 %v9323, 96
      %v9411 = vpop.permute.xlu0 %9410
      %9412 = vrot.lane.b32.xlu0 %v9324, 96
      %v9413 = vpop.permute.xlu0 %9412
      %9414 = vrot.lane.b32.xlu0 %v9325, 96
      %v9415 = vpop.permute.xlu0 %9414
      %9416 = vrot.lane.b32.xlu0 %v9326, 96
      %v9417 = vpop.permute.xlu0 %9416
      %9418 = vrot.lane.b32.xlu0 %v9327, 96
      %v9419 = vpop.permute.xlu0 %9418
      %9420 = vrot.lane.b32.xlu0 %v9328, 96
      %v9421 = vpop.permute.xlu0 %9420
      %9422 = vrot.lane.b32.xlu0 %v9329, 96
      %v9423 = vpop.permute.xlu0 %9422
      %9424 = vrot.lane.b32.xlu0 %v9330, 96
      %v9425 = vpop.permute.xlu0 %9424
      %9426 = vrot.lane.b32.xlu0 %v9331, 96
      %v9427 = vpop.permute.xlu0 %9426
      %9428 = vrot.lane.b32.xlu0 %v9332, 96
      %v9429 = vpop.permute.xlu0 %9428
      %9430 = vrot.lane.b32.xlu0 %v9333, 96
      %v9431 = vpop.permute.xlu0 %9430
      %9432 = vrot.lane.b32.xlu0 %v9334, 96
      %v9433 = vpop.permute.xlu0 %9432
      %9434 = vrot.lane.b32.xlu0 %v9335, 96
      %v9435 = vpop.permute.xlu0 %9434
      %9436 = vrot.lane.b32.xlu0 %v9336, 96
      %v9437 = vpop.permute.xlu0 %9436
      %9438 = vrot.lane.b32.xlu0 %v9337, 96
      %v9439 = vpop.permute.xlu0 %9438
      %9440 = vrot.lane.b32.xlu0 %v9338, 96
      %v9441 = vpop.permute.xlu0 %9440
      %9442 = vrot.lane.b32.xlu0 %v9339, 96
      %v9443 = vpop.permute.xlu0 %9442
      %9444 = vrot.lane.b32.xlu0 %v9340, 96
      %v9445 = vpop.permute.xlu0 %9444
      %9446 = vrot.lane.b32.xlu0 %v9341, 96
      %v9447 = vpop.permute.xlu0 %9446
      %9448 = vrot.lane.b32.xlu0 %v9342, 96
      %v9449 = vpop.permute.xlu0 %9448
      %9450 = vrot.lane.b32.xlu0 %v9343, 96
      %v9451 = vpop.permute.xlu0 %9450
      %9452 = vrot.lane.b32.xlu0 %v9344, 96
      %v9453 = vpop.permute.xlu0 %9452
      %9454 = vrot.lane.b32.xlu0 %v9345, 96
      %v9455 = vpop.permute.xlu0 %9454
      %9456 = vrot.lane.b32.xlu0 %v9346, 96
      %v9457 = vpop.permute.xlu0 %9456
      %9458 = vrot.lane.b32.xlu0 %v9347, 96
      %v9459 = vpop.permute.xlu0 %9458
      %9460 = vrot.lane.b32.xlu0 %v9348, 96
      %v9461 = vpop.permute.xlu0 %9460
      %9462 = vrot.lane.b32.xlu0 %v9349, 96
      %v9463 = vpop.permute.xlu0 %9462
      %9464 = vrot.lane.b32.xlu0 %v9350, 96
      %v9465 = vpop.permute.xlu0 %9464
      %9466 = vrot.lane.b32.xlu0 %v9351, 96
      %v9467 = vpop.permute.xlu0 %9466
      %9468 = vrot.lane.b32.xlu0 %v9352, 96
      %v9469 = vpop.permute.xlu0 %9468
      %9470 = vrot.lane.b32.xlu0 %v9353, 96
      %v9471 = vpop.permute.xlu0 %9470
      %9472 = vrot.lane.b32.xlu0 %v9354, 96
      %v9473 = vpop.permute.xlu0 %9472
      %9474 = vrot.lane.b32.xlu0 %v9355, 96
      %v9475 = vpop.permute.xlu0 %9474
      %9476 = vrot.lane.b32.xlu0 %v9356, 96
      %v9477 = vpop.permute.xlu0 %9476
      %9478 = vrot.lane.b32.xlu0 %v9357, 96
      %v9479 = vpop.permute.xlu0 %9478
      %9480 = vrot.lane.b32.xlu0 %v9358, 96
      %v9481 = vpop.permute.xlu0 %9480
      %9482 = vrot.lane.b32.xlu0 %v9359, 96
      %v9483 = vpop.permute.xlu0 %9482
      %9484 = vrot.lane.b32.xlu0 %v9360, 96
      %v9485 = vpop.permute.xlu0 %9484
      %9486 = vrot.lane.b32.xlu0 %v9361, 96
      %v9487 = vpop.permute.xlu0 %9486
      %vm9488 = vcmask 785408
      %v9489 = vsel %vm9488, %v9405, %v9407
      %v9490 = vsel %vm9488, %v9407, %v9409
      %v9491 = vsel %vm9488, %v9411, %v9413
      %v9492 = vsel %vm9488, %v9413, %v9415
      %v9493 = vsel %vm9488, %v9417, %v9419
      %v9494 = vsel %vm9488, %v9419, %v9421
      %v9495 = vsel %vm9488, %v9423, %v9425
      %v9496 = vsel %vm9488, %v9425, %v9427
      %v9497 = vsel %vm9488, %v9429, %v9431
      %v9498 = vsel %vm9488, %v9431, %v9433
      %v9499 = vsel %vm9488, %v9435, %v9437
      %v9500 = vsel %vm9488, %v9437, %v9439
      %v9501 = vsel %vm9488, %v9441, %v9443
      %v9502 = vsel %vm9488, %v9443, %v9445
      %v9503 = vsel %vm9488, %v9447, %v9449
      %v9504 = vsel %vm9488, %v9449, %v9451
      %v9505 = vsel %vm9488, %v9453, %v9455
      %v9506 = vsel %vm9488, %v9455, %v9457
      %v9507 = vsel %vm9488, %v9459, %v9461
      %v9508 = vsel %vm9488, %v9461, %v9463
      %v9509 = vsel %vm9488, %v9465, %v9467
      %v9510 = vsel %vm9488, %v9467, %v9469
      %v9511 = vsel %vm9488, %v9471, %v9473
      %v9512 = vsel %vm9488, %v9473, %v9475
      %v9513 = vsel %vm9488, %v9477, %v9479
      %v9514 = vsel %vm9488, %v9479, %v9481
      %v9515 = vsel %vm9488, %v9483, %v9485
      %v9516 = vsel %vm9488, %v9485, %v9487
      %v9559 = vmax.f32 %v9320, %v9489
      %v9560 = vmax.f32 %v9321, %v9490
      %v9561 = vmax.f32 %v9322, %v9409
      %v9562 = vmax.f32 %v9323, %v9491
      %v9563 = vmax.f32 %v9324, %v9492
      %v9564 = vmax.f32 %v9325, %v9415
      %v9565 = vmax.f32 %v9326, %v9493
      %v9566 = vmax.f32 %v9327, %v9494
      %v9567 = vmax.f32 %v9328, %v9421
      %v9568 = vmax.f32 %v9329, %v9495
      %v9569 = vmax.f32 %v9330, %v9496
      %v9570 = vmax.f32 %v9331, %v9427
      %v9571 = vmax.f32 %v9332, %v9497
      %v9572 = vmax.f32 %v9333, %v9498
      %v9573 = vmax.f32 %v9334, %v9433
      %v9574 = vmax.f32 %v9335, %v9499
      %v9575 = vmax.f32 %v9336, %v9500
      %v9576 = vmax.f32 %v9337, %v9439
      %v9577 = vmax.f32 %v9338, %v9501
      %v9578 = vmax.f32 %v9339, %v9502
      %v9579 = vmax.f32 %v9340, %v9445
      %v9580 = vmax.f32 %v9341, %v9503
      %v9581 = vmax.f32 %v9342, %v9504
      %v9582 = vmax.f32 %v9343, %v9451
      %v9583 = vmax.f32 %v9344, %v9505
      %v9584 = vmax.f32 %v9345, %v9506
      %v9585 = vmax.f32 %v9346, %v9457
      %v9586 = vmax.f32 %v9347, %v9507
      %v9587 = vmax.f32 %v9348, %v9508
      %v9588 = vmax.f32 %v9349, %v9463
      %v9589 = vmax.f32 %v9350, %v9509
      %v9590 = vmax.f32 %v9351, %v9510
      %v9591 = vmax.f32 %v9352, %v9469
      %v9592 = vmax.f32 %v9353, %v9511
      %v9593 = vmax.f32 %v9354, %v9512
      %v9594 = vmax.f32 %v9355, %v9475
      %v9595 = vmax.f32 %v9356, %v9513
      %v9596 = vmax.f32 %v9357, %v9514
      %v9597 = vmax.f32 %v9358, %v9481
      %v9598 = vmax.f32 %v9359, %v9515
      %v9599 = vmax.f32 %v9360, %v9516
      %v9600 = vmax.f32 %v9361, %v9487
      %v9601 = vld [vmem:[%s7] sm:$0xff]
      %v9602 = vld [vmem:[%s7 + $0x8] sm:$0xff]
      %v9603 = vld [vmem:[%s7 + $0x10] sm:$0xff]
      %v9604 = vld [vmem:[%s7 + $0x18] sm:$0xff]
      %v9605 = vld [vmem:[%s7 + $0x20] sm:$0xff]
      %v9606 = vld [vmem:[%s7 + $0x28] sm:$0xff]
      %vm9607 = vcmask 891904
      %v9609 = vsel %vm9607, %v9601, 0
      %v9612 = vsel %vm9607, %v9602, 0
      %v9615 = vsel %vm9607, %v9603, 0
      %v9618 = vsel %vm9607, %v9604, 0
      %v9621 = vsel %vm9607, %v9605, 0
      %v9624 = vsel %vm9607, %v9606, 0
      %vm9626 = vcmask 1044480
      %v9628 = vsel %vm9626, %v9598, 0
      %v9631 = vsel %vm9626, %v9599, 0
      %v9634 = vsel %vm9626, %v9600, 0
      %9636 = vmatpush.msra.mxu0 0.0
      %9637 = vmatpush.msra.mxu0 0.0
      %9638 = vmatpush.msra.mxu0 %v9628
      %9639 = vmatpush.msra.mxu0 %v9595
      %9640 = vmatpush.msra.mxu0 %v9592
      %9641 = vmatpush.msra.mxu0 %v9589
      %9642 = vmatpush.msra.mxu0 %v9586
      %9643 = vmatpush.msra.mxu0 %v9583
      %9644 = vmatpush.msra.mxu0 %v9580
      %9645 = vmatpush.msra.mxu0 %v9577
      %9646 = vmatpush.msra.mxu0 %v9574
      %9647 = vmatpush.msra.mxu0 %v9571
      %9648 = vmatpush.msra.mxu0 %v9568
      %9649 = vmatpush.msra.mxu0 %v9565
      %9650 = vmatpush.msra.mxu0 %v9562
      %9651 = vmatpush.msra.mxu0 %v9559
      %9652 = vmatmul.f32.gmra.mxu0 %v9609
      %v9653 = vpop.f32.mrf.mxu0
      %v9654 = vadd.f32 0.0, %v9653
      %9655 = vmatmul.f32.gmra.mxu0 %v9612
      %v9656 = vpop.f32.mrf.mxu0
      %v9657 = vadd.f32 0.0, %v9656
      %9658 = vmatmul.f32.gmra.mxu0 %v9615
      %v9659 = vpop.f32.mrf.mxu0
      %v9660 = vadd.f32 0.0, %v9659
      %9661 = vmatmul.f32.gmra.mxu0 %v9618
      %v9662 = vpop.f32.mrf.mxu0
      %v9663 = vadd.f32 0.0, %v9662
      %9664 = vmatmul.f32.gmra.mxu0 %v9621
      %v9665 = vpop.f32.mrf.mxu0
      %v9666 = vadd.f32 0.0, %v9665
      %9667 = vmatmul.f32.gmra.mxu0 %v9624
      %v9668 = vpop.f32.mrf.mxu0
      %v9669 = vadd.f32 0.0, %v9668
      %9670 = vdwg.mxu0
      %9671 = vmatpush.msra.mxu0 0.0
      %9672 = vmatpush.msra.mxu0 0.0
      %9673 = vmatpush.msra.mxu0 %v9631
      %9674 = vmatpush.msra.mxu0 %v9596
      %9675 = vmatpush.msra.mxu0 %v9593
      %9676 = vmatpush.msra.mxu0 %v9590
      %9677 = vmatpush.msra.mxu0 %v9587
      %9678 = vmatpush.msra.mxu0 %v9584
      %9679 = vmatpush.msra.mxu0 %v9581
      %9680 = vmatpush.msra.mxu0 %v9578
      %9681 = vmatpush.msra.mxu0 %v9575
      %9682 = vmatpush.msra.mxu0 %v9572
      %9683 = vmatpush.msra.mxu0 %v9569
      %9684 = vmatpush.msra.mxu0 %v9566
      %9685 = vmatpush.msra.mxu0 %v9563
      %9686 = vmatpush.msra.mxu0 %v9560
      %9687 = vmatmul.f32.gmra.mxu0 %v9609
      %v9688 = vpop.f32.mrf.mxu0
      %v9689 = vadd.f32 0.0, %v9688
      %9690 = vmatmul.f32.gmra.mxu0 %v9612
      %v9691 = vpop.f32.mrf.mxu0
      %v9692 = vadd.f32 0.0, %v9691
      %9693 = vmatmul.f32.gmra.mxu0 %v9615
      %v9694 = vpop.f32.mrf.mxu0
      %v9695 = vadd.f32 0.0, %v9694
      %9696 = vmatmul.f32.gmra.mxu0 %v9618
      %v9697 = vpop.f32.mrf.mxu0
      %v9698 = vadd.f32 0.0, %v9697
      %9699 = vmatmul.f32.gmra.mxu0 %v9621
      %v9700 = vpop.f32.mrf.mxu0
      %v9701 = vadd.f32 0.0, %v9700
      %9702 = vmatmul.f32.gmra.mxu0 %v9624
      %v9703 = vpop.f32.mrf.mxu0
      %v9704 = vadd.f32 0.0, %v9703
      %9705 = vdwg.mxu0
      %9706 = vmatpush.msra.mxu0 0.0
      %9707 = vmatpush.msra.mxu0 0.0
      %9708 = vmatpush.msra.mxu0 %v9634
      %9709 = vmatpush.msra.mxu0 %v9597
      %9710 = vmatpush.msra.mxu0 %v9594
      %9711 = vmatpush.msra.mxu0 %v9591
      %9712 = vmatpush.msra.mxu0 %v9588
      %9713 = vmatpush.msra.mxu0 %v9585
      %9714 = vmatpush.msra.mxu0 %v9582
      %9715 = vmatpush.msra.mxu0 %v9579
      %9716 = vmatpush.msra.mxu0 %v9576
      %9717 = vmatpush.msra.mxu0 %v9573
      %9718 = vmatpush.msra.mxu0 %v9570
      %9719 = vmatpush.msra.mxu0 %v9567
      %9720 = vmatpush.msra.mxu0 %v9564
      %9721 = vmatpush.msra.mxu0 %v9561
      %9722 = vmatmul.f32.gmra.mxu0 %v9609
      %v9723 = vpop.f32.mrf.mxu0
      %v9724 = vadd.f32 0.0, %v9723
      %9725 = vmatmul.f32.gmra.mxu0 %v9612
      %v9726 = vpop.f32.mrf.mxu0
      %v9727 = vadd.f32 0.0, %v9726
      %9728 = vmatmul.f32.gmra.mxu0 %v9615
      %v9729 = vpop.f32.mrf.mxu0
      %v9730 = vadd.f32 0.0, %v9729
      %9731 = vmatmul.f32.gmra.mxu0 %v9618
      %v9732 = vpop.f32.mrf.mxu0
      %v9733 = vadd.f32 0.0, %v9732
      %9734 = vmatmul.f32.gmra.mxu0 %v9621
      %v9735 = vpop.f32.mrf.mxu0
      %v9736 = vadd.f32 0.0, %v9735
      %9737 = vmatmul.f32.gmra.mxu0 %v9624
      %v9738 = vpop.f32.mrf.mxu0
      %v9739 = vadd.f32 0.0, %v9738
      %9740 = vdwg.mxu0
      %v9741 = vld [vmem:[%s8] sm:$0xff]
      %v9742 = vld [vmem:[%s8 + $0x8] sm:$0xff]
      %v9743 = vld [vmem:[%s8 + $0x10] sm:$0xff]
      %v9744 = vld [vmem:[%s8 + $0x18] sm:$0xff]
      %v9745 = vld [vmem:[%s8 + $0x20] sm:$0xff]
      %v9746 = vld [vmem:[%s8 + $0x28] sm:$0xff]
      %v9747 = vld [vmem:[%s8 + $0x30] sm:$0xff]
      %v9748 = vld [vmem:[%s8 + $0x38] sm:$0xff]
      %v9749 = vld [vmem:[%s8 + $0x40] sm:$0xff]
      %v9750 = vld [vmem:[%s8 + $0x48] sm:$0xff]
      %v9751 = vld [vmem:[%s8 + $0x50] sm:$0xff]
      %v9752 = vld [vmem:[%s8 + $0x58] sm:$0xff]
      %v9753 = vld [vmem:[%s8 + $0x60] sm:$0xff]
      %v9754 = vld [vmem:[%s8 + $0x68] sm:$0xff]
      %v9755 = vld [vmem:[%s8 + $0x70] sm:$0xff]
      %v9756 = vld [vmem:[%s8 + $0x78] sm:$0xff]
      %v9757 = vld [vmem:[%s8 + $0x80] sm:$0xff]
      %v9758 = vld [vmem:[%s8 + $0x88] sm:$0xff]
      %v9759 = vld [vmem:[%s8 + $0x90] sm:$0xff]
      %v9760 = vld [vmem:[%s8 + $0x98] sm:$0xff]
      %v9761 = vld [vmem:[%s8 + $0xa0] sm:$0xff]
      %v9762 = vld [vmem:[%s8 + $0xa8] sm:$0xff]
      %v9763 = vld [vmem:[%s8 + $0xb0] sm:$0xff]
      %v9764 = vld [vmem:[%s8 + $0xb8] sm:$0xff]
      %v9765 = vld [vmem:[%s8 + $0xc0] sm:$0xff]
      %v9766 = vld [vmem:[%s8 + $0xc8] sm:$0xff]
      %v9767 = vld [vmem:[%s8 + $0xd0] sm:$0xff]
      %v9768 = vld [vmem:[%s8 + $0xd8] sm:$0xff]
      %v9769 = vld [vmem:[%s8 + $0xe0] sm:$0xff]
      %v9770 = vld [vmem:[%s8 + $0xe8] sm:$0xff]
      %v9771 = vld [vmem:[%s8 + $0xf0] sm:$0xff]
      %v9772 = vld [vmem:[%s8 + $0xf8] sm:$0xff]
      %v9773 = vld [vmem:[%s8 + $0x100] sm:$0xff]
      %v9774 = vld [vmem:[%s8 + $0x108] sm:$0xff]
      %v9775 = vld [vmem:[%s8 + $0x110] sm:$0xff]
      %v9776 = vld [vmem:[%s8 + $0x118] sm:$0xff]
      %v9777 = vld [vmem:[%s8 + $0x120] sm:$0xff]
      %v9778 = vld [vmem:[%s8 + $0x128] sm:$0xff]
      %v9779 = vld [vmem:[%s8 + $0x130] sm:$0xff]
      %v9780 = vld [vmem:[%s8 + $0x138] sm:$0xff]
      %v9781 = vld [vmem:[%s8 + $0x140] sm:$0xff]
      %v9782 = vld [vmem:[%s8 + $0x148] sm:$0xff]
      %v9783 = vld [vmem:[%s8 + $0x150] sm:$0xff]
      %v9784 = vld [vmem:[%s8 + $0x158] sm:$0xff]
      %v9785 = vld [vmem:[%s8 + $0x160] sm:$0xff]
      %v9786 = vld [vmem:[%s8 + $0x168] sm:$0xff]
      %v9787 = vld [vmem:[%s8 + $0x170] sm:$0xff]
      %v9788 = vld [vmem:[%s8 + $0x178] sm:$0xff]
      %v9789 = vld [vmem:[%s8 + $0x180] sm:$0xff]
      %v9790 = vld [vmem:[%s8 + $0x188] sm:$0xff]
      %v9791 = vld [vmem:[%s8 + $0x190] sm:$0xff]
      %v9792 = vld [vmem:[%s8 + $0x198] sm:$0xff]
      %v9793 = vld [vmem:[%s8 + $0x1a0] sm:$0xff]
      %v9794 = vld [vmem:[%s8 + $0x1a8] sm:$0xff]
      %v9795 = vld [vmem:[%s8 + $0x1b0] sm:$0xff]
      %v9796 = vld [vmem:[%s8 + $0x1b8] sm:$0xff]
      %v9797 = vld [vmem:[%s8 + $0x1c0] sm:$0xff]
      %v9798 = vld [vmem:[%s8 + $0x1c8] sm:$0xff]
      %v9799 = vld [vmem:[%s8 + $0x1d0] sm:$0xff]
      %v9800 = vld [vmem:[%s8 + $0x1d8] sm:$0xff]
      %v9801 = vld [vmem:[%s8 + $0x1e0] sm:$0xff]
      %v9802 = vld [vmem:[%s8 + $0x1e8] sm:$0xff]
      %v9803 = vld [vmem:[%s8 + $0x1f0] sm:$0xff]
      %v9804 = vld [vmem:[%s8 + $0x1f8] sm:$0xff]
      %v9805 = vld [vmem:[%s8 + $0x200] sm:$0xff]
      %v9806 = vld [vmem:[%s8 + $0x208] sm:$0xff]
      %v9807 = vld [vmem:[%s8 + $0x210] sm:$0xff]
      %v9808 = vld [vmem:[%s8 + $0x218] sm:$0xff]
      %v9809 = vld [vmem:[%s8 + $0x220] sm:$0xff]
      %v9810 = vld [vmem:[%s8 + $0x228] sm:$0xff]
      %v9811 = vld [vmem:[%s8 + $0x230] sm:$0xff]
      %v9812 = vld [vmem:[%s8 + $0x238] sm:$0xff]
      %v9814 = vsel %vm6333, %v9724, 0
      %v9817 = vsel %vm6333, %v9727, 0
      %v9820 = vsel %vm6333, %v9730, 0
      %v9823 = vsel %vm6333, %v9733, 0
      %v9826 = vsel %vm6333, %v9736, 0
      %v9829 = vsel %vm6333, %v9739, 0
      %9831 = vmatpush.msra.mxu0 %v9771
      %9832 = vmatpush.msra.mxu0 %v9769
      %9833 = vmatpush.msra.mxu0 %v9767
      %9834 = vmatpush.msra.mxu0 %v9765
      %9835 = vmatpush.msra.mxu0 %v9763
      %9836 = vmatpush.msra.mxu0 %v9761
      %9837 = vmatpush.msra.mxu0 %v9759
      %9838 = vmatpush.msra.mxu0 %v9757
      %9839 = vmatpush.msra.mxu0 %v9755
      %9840 = vmatpush.msra.mxu0 %v9753
      %9841 = vmatpush.msra.mxu0 %v9751
      %9842 = vmatpush.msra.mxu0 %v9749
      %9843 = vmatpush.msra.mxu0 %v9747
      %9844 = vmatpush.msra.mxu0 %v9745
      %9845 = vmatpush.msra.mxu0 %v9743
      %9846 = vmatpush.msra.mxu0 %v9741
      %9847 = vmatmul.f32.gmra.mxu0 %v9654
      %v9848 = vpop.f32.mrf.mxu0
      %v9849 = vadd.f32 0.0, %v9848
      %9850 = vmatmul.f32.gmra.mxu0 %v9657
      %v9851 = vpop.f32.mrf.mxu0
      %v9852 = vadd.f32 0.0, %v9851
      %9853 = vmatmul.f32.gmra.mxu0 %v9660
      %v9854 = vpop.f32.mrf.mxu0
      %v9855 = vadd.f32 0.0, %v9854
      %9856 = vmatmul.f32.gmra.mxu0 %v9663
      %v9857 = vpop.f32.mrf.mxu0
      %v9858 = vadd.f32 0.0, %v9857
      %9859 = vmatmul.f32.gmra.mxu0 %v9666
      %v9860 = vpop.f32.mrf.mxu0
      %v9861 = vadd.f32 0.0, %v9860
      %9862 = vmatmul.f32.gmra.mxu0 %v9669
      %v9863 = vpop.f32.mrf.mxu0
      %v9864 = vadd.f32 0.0, %v9863
      %9865 = vdwg.mxu0
      %9866 = vmatpush.msra.mxu0 %v9803
      %9867 = vmatpush.msra.mxu0 %v9801
      %9868 = vmatpush.msra.mxu0 %v9799
      %9869 = vmatpush.msra.mxu0 %v9797
      %9870 = vmatpush.msra.mxu0 %v9795
      %9871 = vmatpush.msra.mxu0 %v9793
      %9872 = vmatpush.msra.mxu0 %v9791
      %9873 = vmatpush.msra.mxu0 %v9789
      %9874 = vmatpush.msra.mxu0 %v9787
      %9875 = vmatpush.msra.mxu0 %v9785
      %9876 = vmatpush.msra.mxu0 %v9783
      %9877 = vmatpush.msra.mxu0 %v9781
      %9878 = vmatpush.msra.mxu0 %v9779
      %9879 = vmatpush.msra.mxu0 %v9777
      %9880 = vmatpush.msra.mxu0 %v9775
      %9881 = vmatpush.msra.mxu0 %v9773
      %9882 = vmatmul.f32.gmra.mxu0 %v9689
      %v9883 = vpop.f32.mrf.mxu0
      %v9884 = vadd.f32 %v9849, %v9883
      %9885 = vmatmul.f32.gmra.mxu0 %v9692
      %v9886 = vpop.f32.mrf.mxu0
      %v9887 = vadd.f32 %v9852, %v9886
      %9888 = vmatmul.f32.gmra.mxu0 %v9695
      %v9889 = vpop.f32.mrf.mxu0
      %v9890 = vadd.f32 %v9855, %v9889
      %9891 = vmatmul.f32.gmra.mxu0 %v9698
      %v9892 = vpop.f32.mrf.mxu0
      %v9893 = vadd.f32 %v9858, %v9892
      %9894 = vmatmul.f32.gmra.mxu0 %v9701
      %v9895 = vpop.f32.mrf.mxu0
      %v9896 = vadd.f32 %v9861, %v9895
      %9897 = vmatmul.f32.gmra.mxu0 %v9704
      %v9898 = vpop.f32.mrf.mxu0
      %v9899 = vadd.f32 %v9864, %v9898
      %9900 = vdwg.mxu0
      %9901 = vmatpush.msra.mxu0 0.0
      %9902 = vmatpush.msra.mxu0 0.0
      %9903 = vmatpush.msra.mxu0 0.0
      %9904 = vmatpush.msra.mxu0 0.0
      %9905 = vmatpush.msra.mxu0 0.0
      %9906 = vmatpush.msra.mxu0 0.0
      %9907 = vmatpush.msra.mxu0 0.0
      %9908 = vmatpush.msra.mxu0 0.0
      %9909 = vmatpush.msra.mxu0 0.0
      %9910 = vmatpush.msra.mxu0 0.0
      %9911 = vmatpush.msra.mxu0 0.0
      %9912 = vmatpush.msra.mxu0 0.0
      %9913 = vmatpush.msra.mxu0 %v9811
      %9914 = vmatpush.msra.mxu0 %v9809
      %9915 = vmatpush.msra.mxu0 %v9807
      %9916 = vmatpush.msra.mxu0 %v9805
      %9917 = vmatmul.f32.gmra.mxu0 %v9814
      %v9918 = vpop.f32.mrf.mxu0
      %v9919 = vadd.f32 %v9884, %v9918
      %9920 = vmatmul.f32.gmra.mxu0 %v9817
      %v9921 = vpop.f32.mrf.mxu0
      %v9922 = vadd.f32 %v9887, %v9921
      %9923 = vmatmul.f32.gmra.mxu0 %v9820
      %v9924 = vpop.f32.mrf.mxu0
      %v9925 = vadd.f32 %v9890, %v9924
      %9926 = vmatmul.f32.gmra.mxu0 %v9823
      %v9927 = vpop.f32.mrf.mxu0
      %v9928 = vadd.f32 %v9893, %v9927
      %9929 = vmatmul.f32.gmra.mxu0 %v9826
      %v9930 = vpop.f32.mrf.mxu0
      %v9931 = vadd.f32 %v9896, %v9930
      %9932 = vmatmul.f32.gmra.mxu0 %v9829
      %v9933 = vpop.f32.mrf.mxu0
      %v9934 = vadd.f32 %v9899, %v9933
      %9935 = vdwg.mxu0
      %9936 = vmatpush.msra.mxu0 %v9772
      %9937 = vmatpush.msra.mxu0 %v9770
      %9938 = vmatpush.msra.mxu0 %v9768
      %9939 = vmatpush.msra.mxu0 %v9766
      %9940 = vmatpush.msra.mxu0 %v9764
      %9941 = vmatpush.msra.mxu0 %v9762
      %9942 = vmatpush.msra.mxu0 %v9760
      %9943 = vmatpush.msra.mxu0 %v9758
      %9944 = vmatpush.msra.mxu0 %v9756
      %9945 = vmatpush.msra.mxu0 %v9754
      %9946 = vmatpush.msra.mxu0 %v9752
      %9947 = vmatpush.msra.mxu0 %v9750
      %9948 = vmatpush.msra.mxu0 %v9748
      %9949 = vmatpush.msra.mxu0 %v9746
      %9950 = vmatpush.msra.mxu0 %v9744
      %9951 = vmatpush.msra.mxu0 %v9742
      %9952 = vmatmul.f32.gmra.mxu0 %v9654
      %v9953 = vpop.f32.mrf.mxu0
      %v9954 = vadd.f32 0.0, %v9953
      %9955 = vmatmul.f32.gmra.mxu0 %v9657
      %v9956 = vpop.f32.mrf.mxu0
      %v9957 = vadd.f32 0.0, %v9956
      %9958 = vmatmul.f32.gmra.mxu0 %v9660
      %v9959 = vpop.f32.mrf.mxu0
      %v9960 = vadd.f32 0.0, %v9959
      %9961 = vmatmul.f32.gmra.mxu0 %v9663
      %v9962 = vpop.f32.mrf.mxu0
      %v9963 = vadd.f32 0.0, %v9962
      %9964 = vmatmul.f32.gmra.mxu0 %v9666
      %v9965 = vpop.f32.mrf.mxu0
      %v9966 = vadd.f32 0.0, %v9965
      %9967 = vmatmul.f32.gmra.mxu0 %v9669
      %v9968 = vpop.f32.mrf.mxu0
      %v9969 = vadd.f32 0.0, %v9968
      %9970 = vdwg.mxu0
      %9971 = vmatpush.msra.mxu0 %v9804
      %9972 = vmatpush.msra.mxu0 %v9802
      %9973 = vmatpush.msra.mxu0 %v9800
      %9974 = vmatpush.msra.mxu0 %v9798
      %9975 = vmatpush.msra.mxu0 %v9796
      %9976 = vmatpush.msra.mxu0 %v9794
      %9977 = vmatpush.msra.mxu0 %v9792
      %9978 = vmatpush.msra.mxu0 %v9790
      %9979 = vmatpush.msra.mxu0 %v9788
      %9980 = vmatpush.msra.mxu0 %v9786
      %9981 = vmatpush.msra.mxu0 %v9784
      %9982 = vmatpush.msra.mxu0 %v9782
      %9983 = vmatpush.msra.mxu0 %v9780
      %9984 = vmatpush.msra.mxu0 %v9778
      %9985 = vmatpush.msra.mxu0 %v9776
      %9986 = vmatpush.msra.mxu0 %v9774
      %9987 = vmatmul.f32.gmra.mxu0 %v9689
      %v9988 = vpop.f32.mrf.mxu0
      %v9989 = vadd.f32 %v9954, %v9988
      %9990 = vmatmul.f32.gmra.mxu0 %v9692
      %v9991 = vpop.f32.mrf.mxu0
      %v9992 = vadd.f32 %v9957, %v9991
      %9993 = vmatmul.f32.gmra.mxu0 %v9695
      %v9994 = vpop.f32.mrf.mxu0
      %v9995 = vadd.f32 %v9960, %v9994
      %9996 = vmatmul.f32.gmra.mxu0 %v9698
      %v9997 = vpop.f32.mrf.mxu0
      %v9998 = vadd.f32 %v9963, %v9997
      %9999 = vmatmul.f32.gmra.mxu0 %v9701
      %v10000 = vpop.f32.mrf.mxu0
      %v10001 = vadd.f32 %v9966, %v10000
      %10002 = vmatmul.f32.gmra.mxu0 %v9704
      %v10003 = vpop.f32.mrf.mxu0
      %v10004 = vadd.f32 %v9969, %v10003
      %10005 = vdwg.mxu0
      %10006 = vmatpush.msra.mxu0 0.0
      %10007 = vmatpush.msra.mxu0 0.0
      %10008 = vmatpush.msra.mxu0 0.0
      %10009 = vmatpush.msra.mxu0 0.0
      %10010 = vmatpush.msra.mxu0 0.0
      %10011 = vmatpush.msra.mxu0 0.0
      %10012 = vmatpush.msra.mxu0 0.0
      %10013 = vmatpush.msra.mxu0 0.0
      %10014 = vmatpush.msra.mxu0 0.0
      %10015 = vmatpush.msra.mxu0 0.0
      %10016 = vmatpush.msra.mxu0 0.0
      %10017 = vmatpush.msra.mxu0 0.0
      %10018 = vmatpush.msra.mxu0 %v9812
      %10019 = vmatpush.msra.mxu0 %v9810
      %10020 = vmatpush.msra.mxu0 %v9808
      %10021 = vmatpush.msra.mxu0 %v9806
      %10022 = vmatmul.f32.gmra.mxu0 %v9814
      %v10023 = vpop.f32.mrf.mxu0
      %v10024 = vadd.f32 %v9989, %v10023
      %10025 = vmatmul.f32.gmra.mxu0 %v9817
      %v10026 = vpop.f32.mrf.mxu0
      %v10027 = vadd.f32 %v9992, %v10026
      %10028 = vmatmul.f32.gmra.mxu0 %v9820
      %v10029 = vpop.f32.mrf.mxu0
      %v10030 = vadd.f32 %v9995, %v10029
      %10031 = vmatmul.f32.gmra.mxu0 %v9823
      %v10032 = vpop.f32.mrf.mxu0
      %v10033 = vadd.f32 %v9998, %v10032
      %10034 = vmatmul.f32.gmra.mxu0 %v9826
      %v10035 = vpop.f32.mrf.mxu0
      %v10036 = vadd.f32 %v10001, %v10035
      %10037 = vmatmul.f32.gmra.mxu0 %v9829
      %v10038 = vpop.f32.mrf.mxu0
      %v10039 = vadd.f32 %v10004, %v10038
      %10040 = vdwg.mxu0
      %10041 = vst [vmem:[#allocation5] sm:$0xff] %v9919
      %10042 = vst.msk [vmem:[#allocation5 + $0x8] sm:$0xff] %vm6333, %v10024
      %10043 = vst [vmem:[#allocation5 + $0x10] sm:$0xff] %v9922
      %10044 = vst.msk [vmem:[#allocation5 + $0x18] sm:$0xff] %vm6333, %v10027
      %10045 = vst [vmem:[#allocation5 + $0x20] sm:$0xff] %v9925
      %10046 = vst.msk [vmem:[#allocation5 + $0x28] sm:$0xff] %vm6333, %v10030
      %10047 = vst [vmem:[#allocation5 + $0x30] sm:$0xff] %v9928
      %10048 = vst.msk [vmem:[#allocation5 + $0x38] sm:$0xff] %vm6333, %v10033
      %10049 = vst [vmem:[#allocation5 + $0x40] sm:$0xff] %v9931
      %10050 = vst.msk [vmem:[#allocation5 + $0x48] sm:$0xff] %vm6333, %v10036
      %10051 = vst [vmem:[#allocation5 + $0x50] sm:$0xff] %v9934
      %10052 = vst.msk [vmem:[#allocation5 + $0x58] sm:$0xff] %vm6333, %v10039
      %v10053 = vld [vmem:[#allocation5] sm:$0xff]
      %v10054 = vld [vmem:[#allocation5 + $0x8] sm:$0xff]
      %v10055 = vld [vmem:[%s9] sm:$0xff]
      %v10056 = vld [vmem:[%s9 + $0x8] sm:$0xff]
      %v10057 = vld [vmem:[%s9 + $0x10] sm:$0xff]
      %v10058 = vld [vmem:[%s9 + $0x18] sm:$0xff]
      %v10059 = vld [vmem:[%s9 + $0x20] sm:$0xff]
      %v10060 = vld [vmem:[%s9 + $0x28] sm:$0xff]
      %v10061 = vld [vmem:[%s9 + $0x30] sm:$0xff]
      %v10062 = vld [vmem:[%s9 + $0x38] sm:$0xff]
      %v10063 = vld [vmem:[%s9 + $0x40] sm:$0xff]
      %v10064 = vld [vmem:[%s9 + $0x48] sm:$0xff]
      %v10065 = vld [vmem:[%s9 + $0x50] sm:$0xff]
      %v10066 = vld [vmem:[%s9 + $0x58] sm:$0xff]
      %v10067 = vld [vmem:[%s9 + $0x60] sm:$0xff]
      %v10068 = vld [vmem:[%s9 + $0x68] sm:$0xff]
      %v10069 = vld [vmem:[%s9 + $0x70] sm:$0xff]
      %v10070 = vld [vmem:[%s9 + $0x78] sm:$0xff]
      %v10071 = vld [vmem:[%s9 + $0x80] sm:$0xff]
      %v10072 = vld [vmem:[%s9 + $0x88] sm:$0xff]
      %v10073 = vld [vmem:[%s9 + $0x90] sm:$0xff]
      %v10074 = vld [vmem:[%s9 + $0x98] sm:$0xff]
      %v10075 = vld [vmem:[#allocation5 + $0x10] sm:$0xff]
      %v10076 = vld [vmem:[#allocation5 + $0x18] sm:$0xff]
      %s10077 = scalar_lea.vmem %s9, 160
      %v10078 = vld [vmem:[%s10077] sm:$0xff]
      %v10079 = vld [vmem:[%s10077 + $0x8] sm:$0xff]
      %v10080 = vld [vmem:[%s10077 + $0x10] sm:$0xff]
      %v10081 = vld [vmem:[%s10077 + $0x18] sm:$0xff]
      %v10082 = vld [vmem:[%s10077 + $0x20] sm:$0xff]
      %v10083 = vld [vmem:[%s10077 + $0x28] sm:$0xff]
      %v10084 = vld [vmem:[%s10077 + $0x30] sm:$0xff]
      %v10085 = vld [vmem:[%s10077 + $0x38] sm:$0xff]
      %v10086 = vld [vmem:[%s10077 + $0x40] sm:$0xff]
      %v10087 = vld [vmem:[%s10077 + $0x48] sm:$0xff]
      %v10088 = vld [vmem:[%s10077 + $0x50] sm:$0xff]
      %v10089 = vld [vmem:[%s10077 + $0x58] sm:$0xff]
      %v10090 = vld [vmem:[%s10077 + $0x60] sm:$0xff]
      %v10091 = vld [vmem:[%s10077 + $0x68] sm:$0xff]
      %v10092 = vld [vmem:[%s10077 + $0x70] sm:$0xff]
      %v10093 = vld [vmem:[%s10077 + $0x78] sm:$0xff]
      %v10094 = vld [vmem:[%s10077 + $0x80] sm:$0xff]
      %v10095 = vld [vmem:[%s10077 + $0x88] sm:$0xff]
      %v10096 = vld [vmem:[%s10077 + $0x90] sm:$0xff]
      %v10097 = vld [vmem:[%s10077 + $0x98] sm:$0xff]
      %v10099 = vsel %vm6333, %v10076, 0
      %10101 = vmatpush.msra.mxu0 %v10093
      %10102 = vmatpush.msra.mxu0 %v10092
      %10103 = vmatpush.msra.mxu0 %v10091
      %10104 = vmatpush.msra.mxu0 %v10090
      %10105 = vmatpush.msra.mxu0 %v10089
      %10106 = vmatpush.msra.mxu0 %v10088
      %10107 = vmatpush.msra.mxu0 %v10087
      %10108 = vmatpush.msra.mxu0 %v10086
      %10109 = vmatpush.msra.mxu0 %v10085
      %10110 = vmatpush.msra.mxu0 %v10084
      %10111 = vmatpush.msra.mxu0 %v10083
      %10112 = vmatpush.msra.mxu0 %v10082
      %10113 = vmatpush.msra.mxu0 %v10081
      %10114 = vmatpush.msra.mxu0 %v10080
      %10115 = vmatpush.msra.mxu0 %v10079
      %10116 = vmatpush.msra.mxu0 %v10078
      %10117 = vmatmul.f32.gmra.mxu0 %v10075
      %v10118 = vpop.f32.mrf.mxu0
      %v10119 = vadd.f32 0.0, %v10118
      %10120 = vdwg.mxu0
      %10121 = vmatpush.msra.mxu0 0.0
      %10122 = vmatpush.msra.mxu0 0.0
      %10123 = vmatpush.msra.mxu0 0.0
      %10124 = vmatpush.msra.mxu0 0.0
      %10125 = vmatpush.msra.mxu0 0.0
      %10126 = vmatpush.msra.mxu0 0.0
      %10127 = vmatpush.msra.mxu0 0.0
      %10128 = vmatpush.msra.mxu0 0.0
      %10129 = vmatpush.msra.mxu0 0.0
      %10130 = vmatpush.msra.mxu0 0.0
      %10131 = vmatpush.msra.mxu0 0.0
      %10132 = vmatpush.msra.mxu0 0.0
      %10133 = vmatpush.msra.mxu0 %v10097
      %10134 = vmatpush.msra.mxu0 %v10096
      %10135 = vmatpush.msra.mxu0 %v10095
      %10136 = vmatpush.msra.mxu0 %v10094
      %10137 = vmatmul.f32.gmra.mxu0 %v10099
      %v10138 = vpop.f32.mrf.mxu0
      %v10139 = vadd.f32 %v10119, %v10138
      %10140 = vdwg.mxu0
      %v10142 = vsel %vm6333, %v10054, 0
      %10144 = vmatpush.msra.mxu0 %v10070
      %10145 = vmatpush.msra.mxu0 %v10069
      %10146 = vmatpush.msra.mxu0 %v10068
      %10147 = vmatpush.msra.mxu0 %v10067
      %10148 = vmatpush.msra.mxu0 %v10066
      %10149 = vmatpush.msra.mxu0 %v10065
      %10150 = vmatpush.msra.mxu0 %v10064
      %10151 = vmatpush.msra.mxu0 %v10063
      %10152 = vmatpush.msra.mxu0 %v10062
      %10153 = vmatpush.msra.mxu0 %v10061
      %10154 = vmatpush.msra.mxu0 %v10060
      %10155 = vmatpush.msra.mxu0 %v10059
      %10156 = vmatpush.msra.mxu0 %v10058
      %10157 = vmatpush.msra.mxu0 %v10057
      %10158 = vmatpush.msra.mxu0 %v10056
      %10159 = vmatpush.msra.mxu0 %v10055
      %10160 = vmatmul.f32.gmra.mxu0 %v10053
      %v10161 = vpop.f32.mrf.mxu0
      %v10162 = vadd.f32 %v10139, %v10161
      %10163 = vdwg.mxu0
      %10164 = vmatpush.msra.mxu0 0.0
      %10165 = vmatpush.msra.mxu0 0.0
      %10166 = vmatpush.msra.mxu0 0.0
      %10167 = vmatpush.msra.mxu0 0.0
      %10168 = vmatpush.msra.mxu0 0.0
      %10169 = vmatpush.msra.mxu0 0.0
      %10170 = vmatpush.msra.mxu0 0.0
      %10171 = vmatpush.msra.mxu0 0.0
      %10172 = vmatpush.msra.mxu0 0.0
      %10173 = vmatpush.msra.mxu0 0.0
      %10174 = vmatpush.msra.mxu0 0.0
      %10175 = vmatpush.msra.mxu0 0.0
      %10176 = vmatpush.msra.mxu0 %v10074
      %10177 = vmatpush.msra.mxu0 %v10073
      %10178 = vmatpush.msra.mxu0 %v10072
      %10179 = vmatpush.msra.mxu0 %v10071
      %10180 = vmatmul.f32.gmra.mxu0 %v10142
      %v10181 = vpop.f32.mrf.mxu0
      %v10182 = vadd.f32 %v10162, %v10181
      %10183 = vdwg.mxu0
      %v10184 = vld [vmem:[#allocation5 + $0x20] sm:$0xff]
      %v10185 = vld [vmem:[#allocation5 + $0x28] sm:$0xff]
      %s10186 = scalar_lea.vmem %s9, 320
      %v10187 = vld [vmem:[%s10186] sm:$0xff]
      %v10188 = vld [vmem:[%s10186 + $0x8] sm:$0xff]
      %v10189 = vld [vmem:[%s10186 + $0x10] sm:$0xff]
      %v10190 = vld [vmem:[%s10186 + $0x18] sm:$0xff]
      %v10191 = vld [vmem:[%s10186 + $0x20] sm:$0xff]
      %v10192 = vld [vmem:[%s10186 + $0x28] sm:$0xff]
      %v10193 = vld [vmem:[%s10186 + $0x30] sm:$0xff]
      %v10194 = vld [vmem:[%s10186 + $0x38] sm:$0xff]
      %v10195 = vld [vmem:[%s10186 + $0x40] sm:$0xff]
      %v10196 = vld [vmem:[%s10186 + $0x48] sm:$0xff]
      %v10197 = vld [vmem:[%s10186 + $0x50] sm:$0xff]
      %v10198 = vld [vmem:[%s10186 + $0x58] sm:$0xff]
      %v10199 = vld [vmem:[%s10186 + $0x60] sm:$0xff]
      %v10200 = vld [vmem:[%s10186 + $0x68] sm:$0xff]
      %v10201 = vld [vmem:[%s10186 + $0x70] sm:$0xff]
      %v10202 = vld [vmem:[%s10186 + $0x78] sm:$0xff]
      %v10203 = vld [vmem:[%s10186 + $0x80] sm:$0xff]
      %v10204 = vld [vmem:[%s10186 + $0x88] sm:$0xff]
      %v10205 = vld [vmem:[%s10186 + $0x90] sm:$0xff]
      %v10206 = vld [vmem:[%s10186 + $0x98] sm:$0xff]
      %v10208 = vsel %vm6333, %v10185, 0
      %10210 = vmatpush.msra.mxu0 %v10202
      %10211 = vmatpush.msra.mxu0 %v10201
      %10212 = vmatpush.msra.mxu0 %v10200
      %10213 = vmatpush.msra.mxu0 %v10199
      %10214 = vmatpush.msra.mxu0 %v10198
      %10215 = vmatpush.msra.mxu0 %v10197
      %10216 = vmatpush.msra.mxu0 %v10196
      %10217 = vmatpush.msra.mxu0 %v10195
      %10218 = vmatpush.msra.mxu0 %v10194
      %10219 = vmatpush.msra.mxu0 %v10193
      %10220 = vmatpush.msra.mxu0 %v10192
      %10221 = vmatpush.msra.mxu0 %v10191
      %10222 = vmatpush.msra.mxu0 %v10190
      %10223 = vmatpush.msra.mxu0 %v10189
      %10224 = vmatpush.msra.mxu0 %v10188
      %10225 = vmatpush.msra.mxu0 %v10187
      %10226 = vmatmul.f32.gmra.mxu0 %v10184
      %v10227 = vpop.f32.mrf.mxu0
      %v10228 = vadd.f32 0.0, %v10227
      %10229 = vdwg.mxu0
      %10230 = vmatpush.msra.mxu0 0.0
      %10231 = vmatpush.msra.mxu0 0.0
      %10232 = vmatpush.msra.mxu0 0.0
      %10233 = vmatpush.msra.mxu0 0.0
      %10234 = vmatpush.msra.mxu0 0.0
      %10235 = vmatpush.msra.mxu0 0.0
      %10236 = vmatpush.msra.mxu0 0.0
      %10237 = vmatpush.msra.mxu0 0.0
      %10238 = vmatpush.msra.mxu0 0.0
      %10239 = vmatpush.msra.mxu0 0.0
      %10240 = vmatpush.msra.mxu0 0.0
      %10241 = vmatpush.msra.mxu0 0.0
      %10242 = vmatpush.msra.mxu0 %v10206
      %10243 = vmatpush.msra.mxu0 %v10205
      %10244 = vmatpush.msra.mxu0 %v10204
      %10245 = vmatpush.msra.mxu0 %v10203
      %10246 = vmatmul.f32.gmra.mxu0 %v10208
      %v10247 = vpop.f32.mrf.mxu0
      %v10248 = vadd.f32 %v10228, %v10247
      %10249 = vdwg.mxu0
      %v10250 = vadd.f32 %v10182, %v10248
      %v10251 = vld [vmem:[#allocation5 + $0x30] sm:$0xff]
      %v10252 = vld [vmem:[#allocation5 + $0x38] sm:$0xff]
      %s10253 = scalar_lea.vmem %s9, 480
      %v10254 = vld [vmem:[%s10253] sm:$0xff]
      %v10255 = vld [vmem:[%s10253 + $0x8] sm:$0xff]
      %v10256 = vld [vmem:[%s10253 + $0x10] sm:$0xff]
      %v10257 = vld [vmem:[%s10253 + $0x18] sm:$0xff]
      %v10258 = vld [vmem:[%s10253 + $0x20] sm:$0xff]
      %v10259 = vld [vmem:[%s10253 + $0x28] sm:$0xff]
      %v10260 = vld [vmem:[%s10253 + $0x30] sm:$0xff]
      %v10261 = vld [vmem:[%s10253 + $0x38] sm:$0xff]
      %v10262 = vld [vmem:[%s10253 + $0x40] sm:$0xff]
      %v10263 = vld [vmem:[%s10253 + $0x48] sm:$0xff]
      %v10264 = vld [vmem:[%s10253 + $0x50] sm:$0xff]
      %v10265 = vld [vmem:[%s10253 + $0x58] sm:$0xff]
      %v10266 = vld [vmem:[%s10253 + $0x60] sm:$0xff]
      %v10267 = vld [vmem:[%s10253 + $0x68] sm:$0xff]
      %v10268 = vld [vmem:[%s10253 + $0x70] sm:$0xff]
      %v10269 = vld [vmem:[%s10253 + $0x78] sm:$0xff]
      %v10270 = vld [vmem:[%s10253 + $0x80] sm:$0xff]
      %v10271 = vld [vmem:[%s10253 + $0x88] sm:$0xff]
      %v10272 = vld [vmem:[%s10253 + $0x90] sm:$0xff]
      %v10273 = vld [vmem:[%s10253 + $0x98] sm:$0xff]
      %v10275 = vsel %vm6333, %v10252, 0
      %10277 = vmatpush.msra.mxu0 %v10269
      %10278 = vmatpush.msra.mxu0 %v10268
      %10279 = vmatpush.msra.mxu0 %v10267
      %10280 = vmatpush.msra.mxu0 %v10266
      %10281 = vmatpush.msra.mxu0 %v10265
      %10282 = vmatpush.msra.mxu0 %v10264
      %10283 = vmatpush.msra.mxu0 %v10263
      %10284 = vmatpush.msra.mxu0 %v10262
      %10285 = vmatpush.msra.mxu0 %v10261
      %10286 = vmatpush.msra.mxu0 %v10260
      %10287 = vmatpush.msra.mxu0 %v10259
      %10288 = vmatpush.msra.mxu0 %v10258
      %10289 = vmatpush.msra.mxu0 %v10257
      %10290 = vmatpush.msra.mxu0 %v10256
      %10291 = vmatpush.msra.mxu0 %v10255
      %10292 = vmatpush.msra.mxu0 %v10254
      %10293 = vmatmul.f32.gmra.mxu0 %v10251
      %v10294 = vpop.f32.mrf.mxu0
      %v10295 = vadd.f32 0.0, %v10294
      %10296 = vdwg.mxu0
      %10297 = vmatpush.msra.mxu0 0.0
      %10298 = vmatpush.msra.mxu0 0.0
      %10299 = vmatpush.msra.mxu0 0.0
      %10300 = vmatpush.msra.mxu0 0.0
      %10301 = vmatpush.msra.mxu0 0.0
      %10302 = vmatpush.msra.mxu0 0.0
      %10303 = vmatpush.msra.mxu0 0.0
      %10304 = vmatpush.msra.mxu0 0.0
      %10305 = vmatpush.msra.mxu0 0.0
      %10306 = vmatpush.msra.mxu0 0.0
      %10307 = vmatpush.msra.mxu0 0.0
      %10308 = vmatpush.msra.mxu0 0.0
      %10309 = vmatpush.msra.mxu0 %v10273
      %10310 = vmatpush.msra.mxu0 %v10272
      %10311 = vmatpush.msra.mxu0 %v10271
      %10312 = vmatpush.msra.mxu0 %v10270
      %10313 = vmatmul.f32.gmra.mxu0 %v10275
      %v10314 = vpop.f32.mrf.mxu0
      %v10315 = vadd.f32 %v10295, %v10314
      %10316 = vdwg.mxu0
      %v10317 = vadd.f32 %v10250, %v10315
      %v10318 = vld [vmem:[#allocation5 + $0x40] sm:$0xff]
      %v10319 = vld [vmem:[#allocation5 + $0x48] sm:$0xff]
      %s10320 = scalar_lea.vmem %s9, 640
      %v10321 = vld [vmem:[%s10320] sm:$0xff]
      %v10322 = vld [vmem:[%s10320 + $0x8] sm:$0xff]
      %v10323 = vld [vmem:[%s10320 + $0x10] sm:$0xff]
      %v10324 = vld [vmem:[%s10320 + $0x18] sm:$0xff]
      %v10325 = vld [vmem:[%s10320 + $0x20] sm:$0xff]
      %v10326 = vld [vmem:[%s10320 + $0x28] sm:$0xff]
      %v10327 = vld [vmem:[%s10320 + $0x30] sm:$0xff]
      %v10328 = vld [vmem:[%s10320 + $0x38] sm:$0xff]
      %v10329 = vld [vmem:[%s10320 + $0x40] sm:$0xff]
      %v10330 = vld [vmem:[%s10320 + $0x48] sm:$0xff]
      %v10331 = vld [vmem:[%s10320 + $0x50] sm:$0xff]
      %v10332 = vld [vmem:[%s10320 + $0x58] sm:$0xff]
      %v10333 = vld [vmem:[%s10320 + $0x60] sm:$0xff]
      %v10334 = vld [vmem:[%s10320 + $0x68] sm:$0xff]
      %v10335 = vld [vmem:[%s10320 + $0x70] sm:$0xff]
      %v10336 = vld [vmem:[%s10320 + $0x78] sm:$0xff]
      %v10337 = vld [vmem:[%s10320 + $0x80] sm:$0xff]
      %v10338 = vld [vmem:[%s10320 + $0x88] sm:$0xff]
      %v10339 = vld [vmem:[%s10320 + $0x90] sm:$0xff]
      %v10340 = vld [vmem:[%s10320 + $0x98] sm:$0xff]
      %v10342 = vsel %vm6333, %v10319, 0
      %10344 = vmatpush.msra.mxu0 %v10336
      %10345 = vmatpush.msra.mxu0 %v10335
      %10346 = vmatpush.msra.mxu0 %v10334
      %10347 = vmatpush.msra.mxu0 %v10333
      %10348 = vmatpush.msra.mxu0 %v10332
      %10349 = vmatpush.msra.mxu0 %v10331
      %10350 = vmatpush.msra.mxu0 %v10330
      %10351 = vmatpush.msra.mxu0 %v10329
      %10352 = vmatpush.msra.mxu0 %v10328
      %10353 = vmatpush.msra.mxu0 %v10327
      %10354 = vmatpush.msra.mxu0 %v10326
      %10355 = vmatpush.msra.mxu0 %v10325
      %10356 = vmatpush.msra.mxu0 %v10324
      %10357 = vmatpush.msra.mxu0 %v10323
      %10358 = vmatpush.msra.mxu0 %v10322
      %10359 = vmatpush.msra.mxu0 %v10321
      %10360 = vmatmul.f32.gmra.mxu0 %v10318
      %v10361 = vpop.f32.mrf.mxu0
      %v10362 = vadd.f32 0.0, %v10361
      %10363 = vdwg.mxu0
      %10364 = vmatpush.msra.mxu0 0.0
      %10365 = vmatpush.msra.mxu0 0.0
      %10366 = vmatpush.msra.mxu0 0.0
      %10367 = vmatpush.msra.mxu0 0.0
      %10368 = vmatpush.msra.mxu0 0.0
      %10369 = vmatpush.msra.mxu0 0.0
      %10370 = vmatpush.msra.mxu0 0.0
      %10371 = vmatpush.msra.mxu0 0.0
      %10372 = vmatpush.msra.mxu0 0.0
      %10373 = vmatpush.msra.mxu0 0.0
      %10374 = vmatpush.msra.mxu0 0.0
      %10375 = vmatpush.msra.mxu0 0.0
      %10376 = vmatpush.msra.mxu0 %v10340
      %10377 = vmatpush.msra.mxu0 %v10339
      %10378 = vmatpush.msra.mxu0 %v10338
      %10379 = vmatpush.msra.mxu0 %v10337
      %10380 = vmatmul.f32.gmra.mxu0 %v10342
      %v10381 = vpop.f32.mrf.mxu0
      %v10382 = vadd.f32 %v10362, %v10381
      %10383 = vdwg.mxu0
      %v10384 = vadd.f32 %v10317, %v10382
      %v10385 = vld [vmem:[#allocation5 + $0x50] sm:$0xff]
      %v10386 = vld [vmem:[#allocation5 + $0x58] sm:$0xff]
      %s10387 = scalar_lea.vmem %s9, 800
      %v10388 = vld [vmem:[%s10387] sm:$0xff]
      %v10389 = vld [vmem:[%s10387 + $0x8] sm:$0xff]
      %v10390 = vld [vmem:[%s10387 + $0x10] sm:$0xff]
      %v10391 = vld [vmem:[%s10387 + $0x18] sm:$0xff]
      %v10392 = vld [vmem:[%s10387 + $0x20] sm:$0xff]
      %v10393 = vld [vmem:[%s10387 + $0x28] sm:$0xff]
      %v10394 = vld [vmem:[%s10387 + $0x30] sm:$0xff]
      %v10395 = vld [vmem:[%s10387 + $0x38] sm:$0xff]
      %v10396 = vld [vmem:[%s10387 + $0x40] sm:$0xff]
      %v10397 = vld [vmem:[%s10387 + $0x48] sm:$0xff]
      %v10398 = vld [vmem:[%s10387 + $0x50] sm:$0xff]
      %v10399 = vld [vmem:[%s10387 + $0x58] sm:$0xff]
      %v10400 = vld [vmem:[%s10387 + $0x60] sm:$0xff]
      %v10401 = vld [vmem:[%s10387 + $0x68] sm:$0xff]
      %v10402 = vld [vmem:[%s10387 + $0x70] sm:$0xff]
      %v10403 = vld [vmem:[%s10387 + $0x78] sm:$0xff]
      %v10404 = vld [vmem:[%s10387 + $0x80] sm:$0xff]
      %v10405 = vld [vmem:[%s10387 + $0x88] sm:$0xff]
      %v10406 = vld [vmem:[%s10387 + $0x90] sm:$0xff]
      %v10407 = vld [vmem:[%s10387 + $0x98] sm:$0xff]
      %v10409 = vsel %vm6333, %v10386, 0
      %10411 = vmatpush.msra.mxu0 %v10403
      %10412 = vmatpush.msra.mxu0 %v10402
      %10413 = vmatpush.msra.mxu0 %v10401
      %10414 = vmatpush.msra.mxu0 %v10400
      %10415 = vmatpush.msra.mxu0 %v10399
      %10416 = vmatpush.msra.mxu0 %v10398
      %10417 = vmatpush.msra.mxu0 %v10397
      %10418 = vmatpush.msra.mxu0 %v10396
      %10419 = vmatpush.msra.mxu0 %v10395
      %10420 = vmatpush.msra.mxu0 %v10394
      %10421 = vmatpush.msra.mxu0 %v10393
      %10422 = vmatpush.msra.mxu0 %v10392
      %10423 = vmatpush.msra.mxu0 %v10391
      %10424 = vmatpush.msra.mxu0 %v10390
      %10425 = vmatpush.msra.mxu0 %v10389
      %10426 = vmatpush.msra.mxu0 %v10388
      %10427 = vmatmul.f32.gmra.mxu0 %v10385
      %v10428 = vpop.f32.mrf.mxu0
      %v10429 = vadd.f32 0.0, %v10428
      %10430 = vdwg.mxu0
      %10431 = vmatpush.msra.mxu0 0.0
      %10432 = vmatpush.msra.mxu0 0.0
      %10433 = vmatpush.msra.mxu0 0.0
      %10434 = vmatpush.msra.mxu0 0.0
      %10435 = vmatpush.msra.mxu0 0.0
      %10436 = vmatpush.msra.mxu0 0.0
      %10437 = vmatpush.msra.mxu0 0.0
      %10438 = vmatpush.msra.mxu0 0.0
      %10439 = vmatpush.msra.mxu0 0.0
      %10440 = vmatpush.msra.mxu0 0.0
      %10441 = vmatpush.msra.mxu0 0.0
      %10442 = vmatpush.msra.mxu0 0.0
      %10443 = vmatpush.msra.mxu0 %v10407
      %10444 = vmatpush.msra.mxu0 %v10406
      %10445 = vmatpush.msra.mxu0 %v10405
      %10446 = vmatpush.msra.mxu0 %v10404
      %10447 = vmatmul.f32.gmra.mxu0 %v10409
      %v10448 = vpop.f32.mrf.mxu0
      %v10449 = vadd.f32 %v10429, %v10448
      %10450 = vdwg.mxu0
      %v10451 = vadd.f32 %v10384, %v10449
      %v10452 = vld [vmem:[%s10] sm:$0x1]
      %v10454 = vperm.slane %v10452, 0
      %v10456 = vadd.f32 %v10451, %v10454
      %v10457 = vxor.u32 %v10456, 2147483648
      %v10458 = vmul.f32 %v10457, 1.442695
      %v10459 = vpow.pop %v10458
      %v10460 = vadd.f32 %v10459, 1.0
      %v10461 = vrcp.pop %v10460
      %v10462 = vmul.f32 %v10460, %v10461
      %v10463 = vsub.f32 1.0, %v10462
      %v10464 = vmul.f32 %v10461, %v10463
      %v10465 = vadd.f32 %v10461, %v10464
      %vm10466 = vweird.f32 %v10460
      %vm10467 = vweird.f32 %v10461
      %vm10468 = vmor %vm10466, %vm10467
      %v10469 = vsel %vm10468, %v10461, %v10465
      %v10470 = vand.u32 2147483647, %v10460
      %vm10471 = vcmp.eq.f32.partialorder %v10470, 8.507059e+37
      %v10472 = vand.u32 %v10460, 2147483648
      %v10473 = vor.u32 1.1754944e-38, %v10472
      %v10474 = vsel %vm10471, %v10473, %v10469
      %v10475 = vmul.f32 1.0, %v10474
      %v10476 = vld [vmem:[%s11] sm:$0xff]
      %v10477 = vld [vmem:[%s11 + $0x8] sm:$0xff]
      %v10478 = vld [vmem:[%s11 + $0x10] sm:$0xff]
      %v10479 = vld [vmem:[%s11 + $0x18] sm:$0xff]
      %v10480 = vld [vmem:[%s11 + $0x20] sm:$0xff]
      %v10481 = vld [vmem:[%s11 + $0x28] sm:$0xff]
      %v10482 = vld [vmem:[%s11 + $0x30] sm:$0xff]
      %v10483 = vld [vmem:[%s11 + $0x38] sm:$0xff]
      %v10484 = vld [vmem:[%s12] sm:$0x1]
      %v10486 = vperm.slane %v10484, 0
      %v10489 = vsel %vm884, %v10475, 0
      %10491 = vmatpush.msra.mxu0 0.0
      %10492 = vmatpush.msra.mxu0 0.0
      %10493 = vmatpush.msra.mxu0 0.0
      %10494 = vmatpush.msra.mxu0 0.0
      %10495 = vmatpush.msra.mxu0 0.0
      %10496 = vmatpush.msra.mxu0 0.0
      %10497 = vmatpush.msra.mxu0 0.0
      %10498 = vmatpush.msra.mxu0 0.0
      %10499 = vmatpush.msra.mxu0 %v10483
      %10500 = vmatpush.msra.mxu0 %v10482
      %10501 = vmatpush.msra.mxu0 %v10481
      %10502 = vmatpush.msra.mxu0 %v10480
      %10503 = vmatpush.msra.mxu0 %v10479
      %10504 = vmatpush.msra.mxu0 %v10478
      %10505 = vmatpush.msra.mxu0 %v10477
      %10506 = vmatpush.msra.mxu0 %v10476
      %10507 = vmatmul.f32.gmra.mxu0 %v10489
      %v10508 = vpop.f32.mrf.mxu0
      %v10509 = vadd.f32 %v10486, %v10508
      %10510 = vdwg.mxu0
      %10511 = vst [vmem:[%s440] sm:$0xff] %v10509
      %p10512 = scmp.lt.s32.totalorder %s24, 3
      %s10513 = scalar_select %p10512, %s24, 3
      %s10514 = smul.addr %s10513, 8
      %s10515 = scalar_lea.vmem %s13, %s10514
      // Predicated region
      $region73: #{pallas_net_forward.1} parent=71 // pred_check
        %p10516 = pneg %p320
      $region74: #{pallas_net_forward.1} parent=71 // pred_check_branch
        %10518 = sbr.rel (%p10516) target = $region76
      $region75: #{pallas_net_forward.1} parent=71 // pred_region
        _
      $region76: #{pallas_net_forward.1} parent=71 // pred_fallthru
        _
    $region72: #{pallas_net_forward.1} parent=5 // pred_fallthru
      _
    %p10519 = scmp.le.s32.totalorder 2, %s19
    // Predicated region
    $region77: #{pallas_net_forward.1} parent=5 // pred_check
      %p10520 = pneg %p10519
    $region78: #{pallas_net_forward.1} parent=5 // pred_check_branch
      %10522 = sbr.rel (%p10520) target = $region80
    $region79: #{pallas_net_forward.1} parent=5 // pred_region
      %s10523 = ssub.s32 %s19, 2
      // Predicated region
      $region81: #{pallas_net_forward.1} parent=79 // pred_check
        %p10524 = pneg %p326
      $region82: #{pallas_net_forward.1} parent=79 // pred_check_branch
        %10526 = sbr.rel (%p10524) target = $region84
      $region83: #{pallas_net_forward.1} parent=79 // pred_region
        %p10527 = scmp.lt.s32.totalorder %s25, 3
        %s10528 = scalar_select %p10527, %s25, 3
        %s10529 = smul.addr %s10528, 8
        %s10530 = scalar_lea.vmem %s13, %s10529
      $region84: #{pallas_net_forward.1} parent=79 // pred_fallthru
        _
    $region80: #{pallas_net_forward.1} parent=5 // pred_fallthru
      _
  $region6: #{pallas_net_forward.1} parent=0 // loop_footer
    %s23 = sadd.s32 1, %s19
  $region7: #{pallas_net_forward.1} parent=0 // loop_footer_branch
    %18 = sbr.rel target = $region3
  $region8: #{pallas_net_forward.1} parent=0 // loop_exit
    _

</llo_original>
